<compile_context>
chip_gen: v5e
topology: v5e:2x2
jax: 0.10.0
libtpu: 0.0.40
codegen_flags: <defaults>
</compile_context>

<pallas_src>
import jax
import jax.numpy as jnp
from jax import lax
from jax.experimental import pallas as pl
from jax.experimental.pallas import tpu as pltpu

BN_EPS = 1e-5
K = 3      # conv kernel size
PAD = 1    # spatial zero padding
_TAPS = tuple((ky, kx) for ky in range(K) for kx in range(K))


def _bn_elu_channels_last(acc, gamma, beta, m):
    """Train-mode BatchNorm (stats over axis 0, biased var) + ELU, (M, C)."""
    inv_m = jnp.float32(1.0 / m)
    mean = jnp.sum(acc, axis=0, keepdims=True) * inv_m           # (1, C)
    ex2 = jnp.sum(acc * acc, axis=0, keepdims=True) * inv_m      # (1, C)
    var = ex2 - mean * mean                                      # biased var
    scale = gamma * lax.rsqrt(var + jnp.float32(BN_EPS))
    shift = beta - mean * scale
    y = acc * scale + shift
    # ELU(alpha=1).  exp(y)-1 kept (vs expm1): difference is ~ulp at this
    # tolerance and exp has a guaranteed Mosaic lowering.
    return jnp.where(y > 0.0, y, jnp.exp(y) - 1.0)


def _bn_elu_channels_first(acc, gamma, beta, m):
    """Same, for a (C, M) accumulator (stats reduced over the lane axis)."""
    inv_m = jnp.float32(1.0 / m)
    mean = jnp.sum(acc, axis=1, keepdims=True) * inv_m           # (C, 1)
    ex2 = jnp.sum(acc * acc, axis=1, keepdims=True) * inv_m
    var = ex2 - mean * mean
    scale = gamma * lax.rsqrt(var + jnp.float32(BN_EPS))
    shift = beta - mean * scale
    y = acc * scale + shift
    return jnp.where(y > 0.0, y, jnp.exp(y) - 1.0)


def double_conv_kernel(x_ref, w1_ref, w2_ref, bn1_ref, bn2_ref, o_ref,
                       xpad_ref, ypad_ref):
    # x_ref   : (N, H, W, Cin)       input activation (NHWC)
    # w1_ref  : (9, Cin, Cmid)       conv1 weight, one (Cin, Cmid) matrix/tap
    # w2_ref  : (9, Cout, Cmid)      conv2 weight, pre-transposed per tap
    # bn1_ref : (2, Cmid)            rows = [gamma1, beta1]
    # bn2_ref : (Cout, 2)            cols = [gamma2, beta2]
    # o_ref   : (Cout, N*H*W)        lane-dense output
    # xpad_ref: (N, H+2, W+2, Cin)   VMEM scratch, zero-padded input
    # ypad_ref: (N, H+2, W+2, Cmid)  VMEM scratch, zero-padded intermediate
    N, H, W, Cin = x_ref.shape
    Cmid = w1_ref.shape[2]
    Cout = w2_ref.shape[1]
    M = N * H * W
    # (H, W multiples of 8 keep the in-kernel reshapes layout-preserving.)

    # ---- zero-pad the input inside VMEM (no padded copy in HBM) -----------
    xpad_ref[...] = jnp.zeros(xpad_ref.shape, xpad_ref.dtype)
    xpad_ref[:, PAD:PAD + H, PAD:PAD + W, :] = x_ref[...]

    # ---- conv1: nine shifted (M, Cin) x (Cin, Cmid) GEMMs ------------------
    # Conv bias omitted on purpose: training-mode BN subtracts the batch mean,
    # which cancels a per-channel bias exactly.
    acc1 = jnp.zeros((M, Cmid), jnp.float32)
    for t, (ky, kx) in enumerate(_TAPS):
        win = xpad_ref[:, ky:ky + H, kx:kx + W, :].reshape(M, Cin)
        acc1 = acc1 + jnp.dot(win, w1_ref[t],
                              preferred_element_type=jnp.float32)

    # ---- BN1 (batch statistics, biased variance) + ELU ---------------------
    y1 = _bn_elu_channels_last(acc1, bn1_ref[0:1, :], bn1_ref[1:2, :], M)

    # ---- intermediate stays in VMEM: re-pad it for the second conv ---------
    ypad_ref[...] = jnp.zeros(ypad_ref.shape, ypad_ref.dtype)
    ypad_ref[:, PAD:PAD + H, PAD:PAD + W, :] = y1.reshape(N, H, W, Cmid)

    # ---- conv2: accumulate directly in (Cout, M) so the output store is
    #      lane-dense (M on the 128-lane axis, unmasked vst) -----------------
    acc2 = jnp.zeros((Cout, M), jnp.float32)
    for t, (ky, kx) in enumerate(_TAPS):
        win = ypad_ref[:, ky:ky + H, kx:kx + W, :].reshape(M, Cmid)
        # (Cout, Cmid) x (M, Cmid): contract the last dim of both (A @ B^T).
        acc2 = acc2 + lax.dot_general(
            w2_ref[t], win,
            dimension_numbers=(((1,), (1,)), ((), ())),
            preferred_element_type=jnp.float32)

    # ---- BN2 + ELU, lane-dense store ---------------------------------------
    y2 = _bn_elu_channels_first(acc2, bn2_ref[:, 0:1], bn2_ref[:, 1:2], M)
    o_ref[...] = y2.astype(o_ref.dtype)

    # TODO(synk): BatchNorm running_mean/running_var buffer updates (training
    # side effect) are not modeled; they do not affect the forward output.


@jax.jit
def double_conv_forward(x_nchw, params):
    """Forward of double_conv(in_ch, out_ch, 3, 1, 1) in training mode."""
    x = jnp.transpose(x_nchw, (0, 2, 3, 1)).astype(jnp.float32)  # NCHW -> NHWC
    N, H, W, Cin = x.shape
    w1, w2t = params["w1"], params["w2t"]
    bn1, bn2 = params["bn1"], params["bn2"]
    Cmid, Cout = w1.shape[2], w2t.shape[1]
    M = N * H * W
    Hp, Wp = H + 2 * PAD, W + 2 * PAD

    out = pl.pallas_call(
        double_conv_kernel,
        out_shape=jax.ShapeDtypeStruct((Cout, M), jnp.float32),
        in_specs=[pl.BlockSpec(memory_space=pltpu.MemorySpace.VMEM)] * 5,
        out_specs=pl.BlockSpec(memory_space=pltpu.MemorySpace.VMEM),
        scratch_shapes=[
            pltpu.VMEM((N, Hp, Wp, Cin), jnp.float32),
            pltpu.VMEM((N, Hp, Wp, Cmid), jnp.float32),
        ],
    )(x, w1, w2t, bn1, bn2)

    # (Cout, N*H*W) -> (N, Cout, H, W)
    return jnp.transpose(out.reshape(Cout, N, H, W), (1, 0, 2, 3))


# ----------------------------------------------------------------------------
# Deterministic synthetic parameters (no checkpoint)
# ----------------------------------------------------------------------------
def make_params(key, in_ch, out_ch):
    ks = jax.random.split(key, 8)
    w1 = jax.random.normal(ks[0], (K, K, in_ch, out_ch), jnp.float32) \
        / jnp.sqrt(K * K * in_ch)                                  # HWIO
    w2 = jax.random.normal(ks[1], (K, K, out_ch, out_ch), jnp.float32) \
        / jnp.sqrt(K * K * out_ch)                                 # HWIO
    b1 = 0.1 * jax.random.normal(ks[2], (out_ch,), jnp.float32)
    b2 = 0.1 * jax.random.normal(ks[3], (out_ch,), jnp.float32)
    g1 = 1.0 + 0.1 * jax.random.normal(ks[4], (out_ch,), jnp.float32)
    beta1 = 0.1 * jax.random.normal(ks[5], (out_ch,), jnp.float32)
    g2 = 1.0 + 0.1 * jax.random.normal(ks[6], (out_ch,), jnp.float32)
    beta2 = 0.1 * jax.random.normal(ks[7], (out_ch,), jnp.float32)
    return {
        # kernel-side layouts
        "w1": w1.reshape(K * K, in_ch, out_ch),                         # (9, Cin, Cmid)
        "w2t": jnp.transpose(w2, (0, 1, 3, 2)).reshape(K * K, out_ch, out_ch),  # (9, Cout, Cmid)
        "bn1": jnp.stack([g1, beta1], axis=0),                          # (2, Cmid)
        "bn2": jnp.stack([g2, beta2], axis=1),                          # (Cout, 2)
        # reference-side (HWIO weights + the conv biases the kernel drops)
        "w1_hwio": w1, "w2_hwio": w2, "b1": b1, "b2": b2,
        "g1": g1, "beta1": beta1, "g2": g2, "beta2": beta2,
    }


# ----------------------------------------------------------------------------
# Pure-JAX reference (includes the conv biases that the kernel omits)
# ----------------------------------------------------------------------------
def _ref_block(x_nhwc, w_hwio, b, g, beta):
    y = lax.conv_general_dilated(
        x_nhwc, w_hwio, window_strides=(1, 1), padding=((1, 1), (1, 1)),
        dimension_numbers=("NHWC", "HWIO", "NHWC"))
    y = y + b.reshape(1, 1, 1, -1)
    mean = jnp.mean(y, axis=(0, 1, 2), keepdims=True)
    var = jnp.mean((y - mean) ** 2, axis=(0, 1, 2), keepdims=True)
    y = (y - mean) * (g.reshape(1, 1, 1, -1) * lax.rsqrt(var + BN_EPS)) \
        + beta.reshape(1, 1, 1, -1)
    return jnp.where(y > 0.0, y, jnp.exp(y) - 1.0)


def double_conv_reference(x_nchw, params):
    x = jnp.transpose(x_nchw, (0, 2, 3, 1))
    y = _ref_block(x, params["w1_hwio"], params["b1"], params["g1"], params["beta1"])
    y = _ref_block(y, params["w2_hwio"], params["b2"], params["g2"], params["beta2"])
    return jnp.transpose(y, (0, 3, 1, 2))


if __name__ == "__main__":
    key = jax.random.PRNGKey(0)
    kx, kp = jax.random.split(key)

    N, Cin, Cout, H, W = 2, 4, 8, 16, 16
    x = jax.random.normal(kx, (N, Cin, H, W), jnp.float32)   # NCHW, like PyTorch
    params = make_params(kp, Cin, Cout)

    out = jax.block_until_ready(double_conv_forward(x, params))
    assert out.shape == (N, Cout, H, W), out.shape

    ref = jax.block_until_ready(double_conv_reference(x, params))
    max_err = float(jnp.max(jnp.abs(out - ref)))
    assert jnp.allclose(out, ref, atol=1e-3, rtol=1e-3), max_err

    print("KERNEL_OK")
</pallas_src>

<mosaic_0001>
module attributes {stable_mosaic.version = 11 : i64} {
  func.func @double_conv_kernel(%arg0: memref<2x16x16x4xf32, #tpu.memory_space<vmem>>, %arg1: memref<9x4x8xf32, #tpu.memory_space<vmem>>, %arg2: memref<9x8x8xf32, #tpu.memory_space<vmem>>, %arg3: memref<2x8xf32, #tpu.memory_space<vmem>>, %arg4: memref<8x2xf32, #tpu.memory_space<vmem>>, %arg5: memref<8x512xf32, #tpu.memory_space<vmem>>, %arg6: memref<2x18x18x4xf32, #tpu.memory_space<vmem>>, %arg7: memref<2x18x18x8xf32, #tpu.memory_space<vmem>>) attributes {dimension_semantics = [], scalar_prefetch = 0 : i64, scratch_operands = 2 : i64, tpu.core_type = #tpu.core_type<tc>} {
    %cst = arith.constant 0.000000e+00 : f32
    %0 = vector.broadcast %cst : f32 to vector<2x18x18x4xf32>
    %c0 = arith.constant 0 : index
    %c0_0 = arith.constant 0 : index
    %c0_1 = arith.constant 0 : index
    %c0_2 = arith.constant 0 : index
    %1 = vector.load %arg6[%c0, %c0_0, %c0_1, %c0_2] : memref<2x18x18x4xf32, #tpu.memory_space<vmem>>, vector<2x18x18x4xf32>
    tpu.vector_store %arg6[%c0, %c0_0, %c0_1, %c0_2], %0 {strides = array<i32>} : memref<2x18x18x4xf32, #tpu.memory_space<vmem>>, vector<2x18x18x4xf32>,
    %c0_3 = arith.constant 0 : index
    %c0_4 = arith.constant 0 : index
    %c0_5 = arith.constant 0 : index
    %c0_6 = arith.constant 0 : index
    %2 = vector.load %arg0[%c0_3, %c0_4, %c0_5, %c0_6] : memref<2x16x16x4xf32, #tpu.memory_space<vmem>>, vector<2x16x16x4xf32>
    %c0_7 = arith.constant 0 : index
    %c1 = arith.constant 1 : index
    %c1_8 = arith.constant 1 : index
    %c0_9 = arith.constant 0 : index
    %3 = vector.load %arg6[%c0_7, %c1, %c1_8, %c0_9] : memref<2x18x18x4xf32, #tpu.memory_space<vmem>>, vector<2x16x16x4xf32>
    tpu.vector_store %arg6[%c0_7, %c1, %c1_8, %c0_9], %2 {strides = array<i32>} : memref<2x18x18x4xf32, #tpu.memory_space<vmem>>, vector<2x16x16x4xf32>,
    %cst_10 = arith.constant 0.000000e+00 : f32
    %4 = vector.broadcast %cst_10 : f32 to vector<512x8xf32>
    %c0_11 = arith.constant 0 : index
    %c0_12 = arith.constant 0 : index
    %c0_13 = arith.constant 0 : index
    %c0_14 = arith.constant 0 : index
    %5 = vector.load %arg6[%c0_11, %c0_12, %c0_13, %c0_14] : memref<2x18x18x4xf32, #tpu.memory_space<vmem>>, vector<2x16x16x4xf32>
    %6 = vector.shape_cast %5 : vector<2x16x16x4xf32> to vector<512x4xf32>
    %c0_15 = arith.constant 0 : index
    %c0_16 = arith.constant 0 : index
    %c0_17 = arith.constant 0 : index
    %7 = vector.load %arg1[%c0_15, %c0_16, %c0_17] : memref<9x4x8xf32, #tpu.memory_space<vmem>>, vector<1x4x8xf32>
    %8 = vector.shape_cast %7 : vector<1x4x8xf32> to vector<4x8xf32>
    %cst_18 = arith.constant dense<0.000000e+00> : vector<512x8xf32>
    %9 = tpu.matmul %6, %8, %cst_18 {dimension_numbers = #tpu.dot_dimension_numbers<[1], [0], [0], [1], [0, 0, 1, 1], [], []>} : vector<512x4xf32>, vector<4x8xf32>, vector<512x8xf32> -> vector<512x8xf32>
    %10 = arith.addf %4, %9 : vector<512x8xf32>
    %c0_19 = arith.constant 0 : index
    %c0_20 = arith.constant 0 : index
    %c1_21 = arith.constant 1 : index
    %c0_22 = arith.constant 0 : index
    %11 = vector.load %arg6[%c0_19, %c0_20, %c1_21, %c0_22] : memref<2x18x18x4xf32, #tpu.memory_space<vmem>>, vector<2x16x16x4xf32>
    %12 = vector.shape_cast %11 : vector<2x16x16x4xf32> to vector<512x4xf32>
    %c1_23 = arith.constant 1 : index
    %c0_24 = arith.constant 0 : index
    %c0_25 = arith.constant 0 : index
    %13 = vector.load %arg1[%c1_23, %c0_24, %c0_25] : memref<9x4x8xf32, #tpu.memory_space<vmem>>, vector<1x4x8xf32>
    %14 = vector.shape_cast %13 : vector<1x4x8xf32> to vector<4x8xf32>
    %cst_26 = arith.constant dense<0.000000e+00> : vector<512x8xf32>
    %15 = tpu.matmul %12, %14, %cst_26 {dimension_numbers = #tpu.dot_dimension_numbers<[1], [0], [0], [1], [0, 0, 1, 1], [], []>} : vector<512x4xf32>, vector<4x8xf32>, vector<512x8xf32> -> vector<512x8xf32>
    %16 = arith.addf %10, %15 : vector<512x8xf32>
    %c0_27 = arith.constant 0 : index
    %c0_28 = arith.constant 0 : index
    %c2 = arith.constant 2 : index
    %c0_29 = arith.constant 0 : index
    %17 = vector.load %arg6[%c0_27, %c0_28, %c2, %c0_29] : memref<2x18x18x4xf32, #tpu.memory_space<vmem>>, vector<2x16x16x4xf32>
    %18 = vector.shape_cast %17 : vector<2x16x16x4xf32> to vector<512x4xf32>
    %c2_30 = arith.constant 2 : index
    %c0_31 = arith.constant 0 : index
    %c0_32 = arith.constant 0 : index
    %19 = vector.load %arg1[%c2_30, %c0_31, %c0_32] : memref<9x4x8xf32, #tpu.memory_space<vmem>>, vector<1x4x8xf32>
    %20 = vector.shape_cast %19 : vector<1x4x8xf32> to vector<4x8xf32>
    %cst_33 = arith.constant dense<0.000000e+00> : vector<512x8xf32>
    %21 = tpu.matmul %18, %20, %cst_33 {dimension_numbers = #tpu.dot_dimension_numbers<[1], [0], [0], [1], [0, 0, 1, 1], [], []>} : vector<512x4xf32>, vector<4x8xf32>, vector<512x8xf32> -> vector<512x8xf32>
    %22 = arith.addf %16, %21 : vector<512x8xf32>
    %c0_34 = arith.constant 0 : index
    %c1_35 = arith.constant 1 : index
    %c0_36 = arith.constant 0 : index
    %c0_37 = arith.constant 0 : index
    %23 = vector.load %arg6[%c0_34, %c1_35, %c0_36, %c0_37] : memref<2x18x18x4xf32, #tpu.memory_space<vmem>>, vector<2x16x16x4xf32>
    %24 = vector.shape_cast %23 : vector<2x16x16x4xf32> to vector<512x4xf32>
    %c3 = arith.constant 3 : index
    %c0_38 = arith.constant 0 : index
    %c0_39 = arith.constant 0 : index
    %25 = vector.load %arg1[%c3, %c0_38, %c0_39] : memref<9x4x8xf32, #tpu.memory_space<vmem>>, vector<1x4x8xf32>
    %26 = vector.shape_cast %25 : vector<1x4x8xf32> to vector<4x8xf32>
    %cst_40 = arith.constant dense<0.000000e+00> : vector<512x8xf32>
    %27 = tpu.matmul %24, %26, %cst_40 {dimension_numbers = #tpu.dot_dimension_numbers<[1], [0], [0], [1], [0, 0, 1, 1], [], []>} : vector<512x4xf32>, vector<4x8xf32>, vector<512x8xf32> -> vector<512x8xf32>
    %28 = arith.addf %22, %27 : vector<512x8xf32>
    %c0_41 = arith.constant 0 : index
    %c1_42 = arith.constant 1 : index
    %c1_43 = arith.constant 1 : index
    %c0_44 = arith.constant 0 : index
    %29 = vector.load %arg6[%c0_41, %c1_42, %c1_43, %c0_44] : memref<2x18x18x4xf32, #tpu.memory_space<vmem>>, vector<2x16x16x4xf32>
    %30 = vector.shape_cast %29 : vector<2x16x16x4xf32> to vector<512x4xf32>
    %c4 = arith.constant 4 : index
    %c0_45 = arith.constant 0 : index
    %c0_46 = arith.constant 0 : index
    %31 = vector.load %arg1[%c4, %c0_45, %c0_46] : memref<9x4x8xf32, #tpu.memory_space<vmem>>, vector<1x4x8xf32>
    %32 = vector.shape_cast %31 : vector<1x4x8xf32> to vector<4x8xf32>
    %cst_47 = arith.constant dense<0.000000e+00> : vector<512x8xf32>
    %33 = tpu.matmul %30, %32, %cst_47 {dimension_numbers = #tpu.dot_dimension_numbers<[1], [0], [0], [1], [0, 0, 1, 1], [], []>} : vector<512x4xf32>, vector<4x8xf32>, vector<512x8xf32> -> vector<512x8xf32>
    %34 = arith.addf %28, %33 : vector<512x8xf32>
    %c0_48 = arith.constant 0 : index
    %c1_49 = arith.constant 1 : index
    %c2_50 = arith.constant 2 : index
    %c0_51 = arith.constant 0 : index
    %35 = vector.load %arg6[%c0_48, %c1_49, %c2_50, %c0_51] : memref<2x18x18x4xf32, #tpu.memory_space<vmem>>, vector<2x16x16x4xf32>
    %36 = vector.shape_cast %35 : vector<2x16x16x4xf32> to vector<512x4xf32>
    %c5 = arith.constant 5 : index
    %c0_52 = arith.constant 0 : index
    %c0_53 = arith.constant 0 : index
    %37 = vector.load %arg1[%c5, %c0_52, %c0_53] : memref<9x4x8xf32, #tpu.memory_space<vmem>>, vector<1x4x8xf32>
    %38 = vector.shape_cast %37 : vector<1x4x8xf32> to vector<4x8xf32>
    %cst_54 = arith.constant dense<0.000000e+00> : vector<512x8xf32>
    %39 = tpu.matmul %36, %38, %cst_54 {dimension_numbers = #tpu.dot_dimension_numbers<[1], [0], [0], [1], [0, 0, 1, 1], [], []>} : vector<512x4xf32>, vector<4x8xf32>, vector<512x8xf32> -> vector<512x8xf32>
    %40 = arith.addf %34, %39 : vector<512x8xf32>
    %c0_55 = arith.constant 0 : index
    %c2_56 = arith.constant 2 : index
    %c0_57 = arith.constant 0 : index
    %c0_58 = arith.constant 0 : index
    %41 = vector.load %arg6[%c0_55, %c2_56, %c0_57, %c0_58] : memref<2x18x18x4xf32, #tpu.memory_space<vmem>>, vector<2x16x16x4xf32>
    %42 = vector.shape_cast %41 : vector<2x16x16x4xf32> to vector<512x4xf32>
    %c6 = arith.constant 6 : index
    %c0_59 = arith.constant 0 : index
    %c0_60 = arith.constant 0 : index
    %43 = vector.load %arg1[%c6, %c0_59, %c0_60] : memref<9x4x8xf32, #tpu.memory_space<vmem>>, vector<1x4x8xf32>
    %44 = vector.shape_cast %43 : vector<1x4x8xf32> to vector<4x8xf32>
    %cst_61 = arith.constant dense<0.000000e+00> : vector<512x8xf32>
    %45 = tpu.matmul %42, %44, %cst_61 {dimension_numbers = #tpu.dot_dimension_numbers<[1], [0], [0], [1], [0, 0, 1, 1], [], []>} : vector<512x4xf32>, vector<4x8xf32>, vector<512x8xf32> -> vector<512x8xf32>
    %46 = arith.addf %40, %45 : vector<512x8xf32>
    %c0_62 = arith.constant 0 : index
    %c2_63 = arith.constant 2 : index
    %c1_64 = arith.constant 1 : index
    %c0_65 = arith.constant 0 : index
    %47 = vector.load %arg6[%c0_62, %c2_63, %c1_64, %c0_65] : memref<2x18x18x4xf32, #tpu.memory_space<vmem>>, vector<2x16x16x4xf32>
    %48 = vector.shape_cast %47 : vector<2x16x16x4xf32> to vector<512x4xf32>
    %c7 = arith.constant 7 : index
    %c0_66 = arith.constant 0 : index
    %c0_67 = arith.constant 0 : index
    %49 = vector.load %arg1[%c7, %c0_66, %c0_67] : memref<9x4x8xf32, #tpu.memory_space<vmem>>, vector<1x4x8xf32>
    %50 = vector.shape_cast %49 : vector<1x4x8xf32> to vector<4x8xf32>
    %cst_68 = arith.constant dense<0.000000e+00> : vector<512x8xf32>
    %51 = tpu.matmul %48, %50, %cst_68 {dimension_numbers = #tpu.dot_dimension_numbers<[1], [0], [0], [1], [0, 0, 1, 1], [], []>} : vector<512x4xf32>, vector<4x8xf32>, vector<512x8xf32> -> vector<512x8xf32>
    %52 = arith.addf %46, %51 : vector<512x8xf32>
    %c0_69 = arith.constant 0 : index
    %c2_70 = arith.constant 2 : index
    %c2_71 = arith.constant 2 : index
    %c0_72 = arith.constant 0 : index
    %53 = vector.load %arg6[%c0_69, %c2_70, %c2_71, %c0_72] : memref<2x18x18x4xf32, #tpu.memory_space<vmem>>, vector<2x16x16x4xf32>
    %54 = vector.shape_cast %53 : vector<2x16x16x4xf32> to vector<512x4xf32>
    %c8 = arith.constant 8 : index
    %c0_73 = arith.constant 0 : index
    %c0_74 = arith.constant 0 : index
    %55 = vector.load %arg1[%c8, %c0_73, %c0_74] : memref<9x4x8xf32, #tpu.memory_space<vmem>>, vector<1x4x8xf32>
    %56 = vector.shape_cast %55 : vector<1x4x8xf32> to vector<4x8xf32>
    %cst_75 = arith.constant dense<0.000000e+00> : vector<512x8xf32>
    %57 = tpu.matmul %54, %56, %cst_75 {dimension_numbers = #tpu.dot_dimension_numbers<[1], [0], [0], [1], [0, 0, 1, 1], [], []>} : vector<512x4xf32>, vector<4x8xf32>, vector<512x8xf32> -> vector<512x8xf32>
    %58 = arith.addf %52, %57 : vector<512x8xf32>
    %c0_76 = arith.constant 0 : index
    %c0_77 = arith.constant 0 : index
    %59 = vector.load %arg3[%c0_76, %c0_77] : memref<2x8xf32, #tpu.memory_space<vmem>>, vector<1x8xf32>
    %c1_78 = arith.constant 1 : index
    %c0_79 = arith.constant 0 : index
    %60 = vector.load %arg3[%c1_78, %c0_79] : memref<2x8xf32, #tpu.memory_space<vmem>>, vector<1x8xf32>
    %cst_80 = arith.constant dense<0.000000e+00> : vector<8xf32>
    %61 = vector.multi_reduction <add>, %58, %cst_80 [0] : vector<512x8xf32> to vector<8xf32>
    %62 = vector.shape_cast %61 : vector<8xf32> to vector<1x8xf32>
    %cst_81 = arith.constant 0.001953125 : f32
    %63 = vector.broadcast %cst_81 : f32 to vector<1x8xf32>
    %64 = arith.mulf %62, %63 : vector<1x8xf32>
    %65 = arith.mulf %58, %58 : vector<512x8xf32>
    %cst_82 = arith.constant dense<0.000000e+00> : vector<8xf32>
    %66 = vector.multi_reduction <add>, %65, %cst_82 [0] : vector<512x8xf32> to vector<8xf32>
    %67 = vector.shape_cast %66 : vector<8xf32> to vector<1x8xf32>
    %cst_83 = arith.constant 0.001953125 : f32
    %68 = vector.broadcast %cst_83 : f32 to vector<1x8xf32>
    %69 = arith.mulf %67, %68 : vector<1x8xf32>
    %70 = arith.mulf %64, %64 : vector<1x8xf32>
    %71 = arith.subf %69, %70 : vector<1x8xf32>
    %cst_84 = arith.constant 9.99999974E-6 : f32
    %72 = vector.broadcast %cst_84 : f32 to vector<1x8xf32>
    %73 = arith.addf %71, %72 : vector<1x8xf32>
    %74 = math.rsqrt %73 : vector<1x8xf32>
    %75 = arith.mulf %59, %74 : vector<1x8xf32>
    %76 = arith.mulf %64, %75 : vector<1x8xf32>
    %77 = arith.subf %60, %76 : vector<1x8xf32>
    %78 = vector.broadcast %75 : vector<1x8xf32> to vector<512x8xf32>
    %79 = arith.mulf %58, %78 : vector<512x8xf32>
    %80 = vector.broadcast %77 : vector<1x8xf32> to vector<512x8xf32>
    %81 = arith.addf %79, %80 : vector<512x8xf32>
    %cst_85 = arith.constant 0.000000e+00 : f32
    %82 = vector.broadcast %cst_85 : f32 to vector<512x8xf32>
    %83 = arith.cmpf ogt, %81, %82 : vector<512x8xf32>
    %84 = math.exp %81 : vector<512x8xf32>
    %cst_86 = arith.constant 1.000000e+00 : f32
    %85 = vector.broadcast %cst_86 : f32 to vector<512x8xf32>
    %86 = arith.subf %84, %85 : vector<512x8xf32>
    %87 = arith.select %83, %81, %86 : vector<512x8xi1>, vector<512x8xf32>
    %cst_87 = arith.constant 0.000000e+00 : f32
    %88 = vector.broadcast %cst_87 : f32 to vector<2x18x18x8xf32>
    %c0_88 = arith.constant 0 : index
    %c0_89 = arith.constant 0 : index
    %c0_90 = arith.constant 0 : index
    %c0_91 = arith.constant 0 : index
    %89 = vector.load %arg7[%c0_88, %c0_89, %c0_90, %c0_91] : memref<2x18x18x8xf32, #tpu.memory_space<vmem>>, vector<2x18x18x8xf32>
    tpu.vector_store %arg7[%c0_88, %c0_89, %c0_90, %c0_91], %88 {strides = array<i32>} : memref<2x18x18x8xf32, #tpu.memory_space<vmem>>, vector<2x18x18x8xf32>,
    %90 = vector.shape_cast %87 : vector<512x8xf32> to vector<2x16x16x8xf32>
    %c0_92 = arith.constant 0 : index
    %c1_93 = arith.constant 1 : index
    %c1_94 = arith.constant 1 : index
    %c0_95 = arith.constant 0 : index
    %91 = vector.load %arg7[%c0_92, %c1_93, %c1_94, %c0_95] : memref<2x18x18x8xf32, #tpu.memory_space<vmem>>, vector<2x16x16x8xf32>
    tpu.vector_store %arg7[%c0_92, %c1_93, %c1_94, %c0_95], %90 {strides = array<i32>} : memref<2x18x18x8xf32, #tpu.memory_space<vmem>>, vector<2x16x16x8xf32>,
    %cst_96 = arith.constant 0.000000e+00 : f32
    %92 = vector.broadcast %cst_96 : f32 to vector<8x512xf32>
    %c0_97 = arith.constant 0 : index
    %c0_98 = arith.constant 0 : index
    %c0_99 = arith.constant 0 : index
    %c0_100 = arith.constant 0 : index
    %93 = vector.load %arg7[%c0_97, %c0_98, %c0_99, %c0_100] : memref<2x18x18x8xf32, #tpu.memory_space<vmem>>, vector<2x16x16x8xf32>
    %94 = vector.shape_cast %93 : vector<2x16x16x8xf32> to vector<512x8xf32>
    %c0_101 = arith.constant 0 : index
    %c0_102 = arith.constant 0 : index
    %c0_103 = arith.constant 0 : index
    %95 = vector.load %arg2[%c0_101, %c0_102, %c0_103] : memref<9x8x8xf32, #tpu.memory_space<vmem>>, vector<1x8x8xf32>
    %96 = vector.shape_cast %95 : vector<1x8x8xf32> to vector<8x8xf32>
    %cst_104 = arith.constant dense<0.000000e+00> : vector<8x512xf32>
    %97 = tpu.matmul %96, %94, %cst_104 {dimension_numbers = #tpu.dot_dimension_numbers<[1], [1], [0], [0], [0, 0, 1, 0], [], []>} : vector<8x8xf32>, vector<512x8xf32>, vector<8x512xf32> -> vector<8x512xf32>
    %98 = arith.addf %92, %97 : vector<8x512xf32>
    %c0_105 = arith.constant 0 : index
    %c0_106 = arith.constant 0 : index
    %c1_107 = arith.constant 1 : index
    %c0_108 = arith.constant 0 : index
    %99 = vector.load %arg7[%c0_105, %c0_106, %c1_107, %c0_108] : memref<2x18x18x8xf32, #tpu.memory_space<vmem>>, vector<2x16x16x8xf32>
    %100 = vector.shape_cast %99 : vector<2x16x16x8xf32> to vector<512x8xf32>
    %c1_109 = arith.constant 1 : index
    %c0_110 = arith.constant 0 : index
    %c0_111 = arith.constant 0 : index
    %101 = vector.load %arg2[%c1_109, %c0_110, %c0_111] : memref<9x8x8xf32, #tpu.memory_space<vmem>>, vector<1x8x8xf32>
    %102 = vector.shape_cast %101 : vector<1x8x8xf32> to vector<8x8xf32>
    %cst_112 = arith.constant dense<0.000000e+00> : vector<8x512xf32>
    %103 = tpu.matmul %102, %100, %cst_112 {dimension_numbers = #tpu.dot_dimension_numbers<[1], [1], [0], [0], [0, 0, 1, 0], [], []>} : vector<8x8xf32>, vector<512x8xf32>, vector<8x512xf32> -> vector<8x512xf32>
    %104 = arith.addf %98, %103 : vector<8x512xf32>
    %c0_113 = arith.constant 0 : index
    %c0_114 = arith.constant 0 : index
    %c2_115 = arith.constant 2 : index
    %c0_116 = arith.constant 0 : index
    %105 = vector.load %arg7[%c0_113, %c0_114, %c2_115, %c0_116] : memref<2x18x18x8xf32, #tpu.memory_space<vmem>>, vector<2x16x16x8xf32>
    %106 = vector.shape_cast %105 : vector<2x16x16x8xf32> to vector<512x8xf32>
    %c2_117 = arith.constant 2 : index
    %c0_118 = arith.constant 0 : index
    %c0_119 = arith.constant 0 : index
    %107 = vector.load %arg2[%c2_117, %c0_118, %c0_119] : memref<9x8x8xf32, #tpu.memory_space<vmem>>, vector<1x8x8xf32>
    %108 = vector.shape_cast %107 : vector<1x8x8xf32> to vector<8x8xf32>
    %cst_120 = arith.constant dense<0.000000e+00> : vector<8x512xf32>
    %109 = tpu.matmul %108, %106, %cst_120 {dimension_numbers = #tpu.dot_dimension_numbers<[1], [1], [0], [0], [0, 0, 1, 0], [], []>} : vector<8x8xf32>, vector<512x8xf32>, vector<8x512xf32> -> vector<8x512xf32>
    %110 = arith.addf %104, %109 : vector<8x512xf32>
    %c0_121 = arith.constant 0 : index
    %c1_122 = arith.constant 1 : index
    %c0_123 = arith.constant 0 : index
    %c0_124 = arith.constant 0 : index
    %111 = vector.load %arg7[%c0_121, %c1_122, %c0_123, %c0_124] : memref<2x18x18x8xf32, #tpu.memory_space<vmem>>, vector<2x16x16x8xf32>
    %112 = vector.shape_cast %111 : vector<2x16x16x8xf32> to vector<512x8xf32>
    %c3_125 = arith.constant 3 : index
    %c0_126 = arith.constant 0 : index
    %c0_127 = arith.constant 0 : index
    %113 = vector.load %arg2[%c3_125, %c0_126, %c0_127] : memref<9x8x8xf32, #tpu.memory_space<vmem>>, vector<1x8x8xf32>
    %114 = vector.shape_cast %113 : vector<1x8x8xf32> to vector<8x8xf32>
    %cst_128 = arith.constant dense<0.000000e+00> : vector<8x512xf32>
    %115 = tpu.matmul %114, %112, %cst_128 {dimension_numbers = #tpu.dot_dimension_numbers<[1], [1], [0], [0], [0, 0, 1, 0], [], []>} : vector<8x8xf32>, vector<512x8xf32>, vector<8x512xf32> -> vector<8x512xf32>
    %116 = arith.addf %110, %115 : vector<8x512xf32>
    %c0_129 = arith.constant 0 : index
    %c1_130 = arith.constant 1 : index
    %c1_131 = arith.constant 1 : index
    %c0_132 = arith.constant 0 : index
    %117 = vector.load %arg7[%c0_129, %c1_130, %c1_131, %c0_132] : memref<2x18x18x8xf32, #tpu.memory_space<vmem>>, vector<2x16x16x8xf32>
    %118 = vector.shape_cast %117 : vector<2x16x16x8xf32> to vector<512x8xf32>
    %c4_133 = arith.constant 4 : index
    %c0_134 = arith.constant 0 : index
    %c0_135 = arith.constant 0 : index
    %119 = vector.load %arg2[%c4_133, %c0_134, %c0_135] : memref<9x8x8xf32, #tpu.memory_space<vmem>>, vector<1x8x8xf32>
    %120 = vector.shape_cast %119 : vector<1x8x8xf32> to vector<8x8xf32>
    %cst_136 = arith.constant dense<0.000000e+00> : vector<8x512xf32>
    %121 = tpu.matmul %120, %118, %cst_136 {dimension_numbers = #tpu.dot_dimension_numbers<[1], [1], [0], [0], [0, 0, 1, 0], [], []>} : vector<8x8xf32>, vector<512x8xf32>, vector<8x512xf32> -> vector<8x512xf32>
    %122 = arith.addf %116, %121 : vector<8x512xf32>
    %c0_137 = arith.constant 0 : index
    %c1_138 = arith.constant 1 : index
    %c2_139 = arith.constant 2 : index
    %c0_140 = arith.constant 0 : index
    %123 = vector.load %arg7[%c0_137, %c1_138, %c2_139, %c0_140] : memref<2x18x18x8xf32, #tpu.memory_space<vmem>>, vector<2x16x16x8xf32>
    %124 = vector.shape_cast %123 : vector<2x16x16x8xf32> to vector<512x8xf32>
    %c5_141 = arith.constant 5 : index
    %c0_142 = arith.constant 0 : index
    %c0_143 = arith.constant 0 : index
    %125 = vector.load %arg2[%c5_141, %c0_142, %c0_143] : memref<9x8x8xf32, #tpu.memory_space<vmem>>, vector<1x8x8xf32>
    %126 = vector.shape_cast %125 : vector<1x8x8xf32> to vector<8x8xf32>
    %cst_144 = arith.constant dense<0.000000e+00> : vector<8x512xf32>
    %127 = tpu.matmul %126, %124, %cst_144 {dimension_numbers = #tpu.dot_dimension_numbers<[1], [1], [0], [0], [0, 0, 1, 0], [], []>} : vector<8x8xf32>, vector<512x8xf32>, vector<8x512xf32> -> vector<8x512xf32>
    %128 = arith.addf %122, %127 : vector<8x512xf32>
    %c0_145 = arith.constant 0 : index
    %c2_146 = arith.constant 2 : index
    %c0_147 = arith.constant 0 : index
    %c0_148 = arith.constant 0 : index
    %129 = vector.load %arg7[%c0_145, %c2_146, %c0_147, %c0_148] : memref<2x18x18x8xf32, #tpu.memory_space<vmem>>, vector<2x16x16x8xf32>
    %130 = vector.shape_cast %129 : vector<2x16x16x8xf32> to vector<512x8xf32>
    %c6_149 = arith.constant 6 : index
    %c0_150 = arith.constant 0 : index
    %c0_151 = arith.constant 0 : index
    %131 = vector.load %arg2[%c6_149, %c0_150, %c0_151] : memref<9x8x8xf32, #tpu.memory_space<vmem>>, vector<1x8x8xf32>
    %132 = vector.shape_cast %131 : vector<1x8x8xf32> to vector<8x8xf32>
    %cst_152 = arith.constant dense<0.000000e+00> : vector<8x512xf32>
    %133 = tpu.matmul %132, %130, %cst_152 {dimension_numbers = #tpu.dot_dimension_numbers<[1], [1], [0], [0], [0, 0, 1, 0], [], []>} : vector<8x8xf32>, vector<512x8xf32>, vector<8x512xf32> -> vector<8x512xf32>
    %134 = arith.addf %128, %133 : vector<8x512xf32>
    %c0_153 = arith.constant 0 : index
    %c2_154 = arith.constant 2 : index
    %c1_155 = arith.constant 1 : index
    %c0_156 = arith.constant 0 : index
    %135 = vector.load %arg7[%c0_153, %c2_154, %c1_155, %c0_156] : memref<2x18x18x8xf32, #tpu.memory_space<vmem>>, vector<2x16x16x8xf32>
    %136 = vector.shape_cast %135 : vector<2x16x16x8xf32> to vector<512x8xf32>
    %c7_157 = arith.constant 7 : index
    %c0_158 = arith.constant 0 : index
    %c0_159 = arith.constant 0 : index
    %137 = vector.load %arg2[%c7_157, %c0_158, %c0_159] : memref<9x8x8xf32, #tpu.memory_space<vmem>>, vector<1x8x8xf32>
    %138 = vector.shape_cast %137 : vector<1x8x8xf32> to vector<8x8xf32>
    %cst_160 = arith.constant dense<0.000000e+00> : vector<8x512xf32>
    %139 = tpu.matmul %138, %136, %cst_160 {dimension_numbers = #tpu.dot_dimension_numbers<[1], [1], [0], [0], [0, 0, 1, 0], [], []>} : vector<8x8xf32>, vector<512x8xf32>, vector<8x512xf32> -> vector<8x512xf32>
    %140 = arith.addf %134, %139 : vector<8x512xf32>
    %c0_161 = arith.constant 0 : index
    %c2_162 = arith.constant 2 : index
    %c2_163 = arith.constant 2 : index
    %c0_164 = arith.constant 0 : index
    %141 = vector.load %arg7[%c0_161, %c2_162, %c2_163, %c0_164] : memref<2x18x18x8xf32, #tpu.memory_space<vmem>>, vector<2x16x16x8xf32>
    %142 = vector.shape_cast %141 : vector<2x16x16x8xf32> to vector<512x8xf32>
    %c8_165 = arith.constant 8 : index
    %c0_166 = arith.constant 0 : index
    %c0_167 = arith.constant 0 : index
    %143 = vector.load %arg2[%c8_165, %c0_166, %c0_167] : memref<9x8x8xf32, #tpu.memory_space<vmem>>, vector<1x8x8xf32>
    %144 = vector.shape_cast %143 : vector<1x8x8xf32> to vector<8x8xf32>
    %cst_168 = arith.constant dense<0.000000e+00> : vector<8x512xf32>
    %145 = tpu.matmul %144, %142, %cst_168 {dimension_numbers = #tpu.dot_dimension_numbers<[1], [1], [0], [0], [0, 0, 1, 0], [], []>} : vector<8x8xf32>, vector<512x8xf32>, vector<8x512xf32> -> vector<8x512xf32>
    %146 = arith.addf %140, %145 : vector<8x512xf32>
    %c0_169 = arith.constant 0 : index
    %c0_170 = arith.constant 0 : index
    %147 = vector.load %arg4[%c0_169, %c0_170] : memref<8x2xf32, #tpu.memory_space<vmem>>, vector<8x1xf32>
    %c0_171 = arith.constant 0 : index
    %c1_172 = arith.constant 1 : index
    %148 = vector.load %arg4[%c0_171, %c1_172] : memref<8x2xf32, #tpu.memory_space<vmem>>, vector<8x1xf32>
    %cst_173 = arith.constant dense<0.000000e+00> : vector<8xf32>
    %149 = vector.multi_reduction <add>, %146, %cst_173 [1] : vector<8x512xf32> to vector<8xf32>
    %150 = vector.shape_cast %149 : vector<8xf32> to vector<8x1xf32>
    %cst_174 = arith.constant 0.001953125 : f32
    %151 = vector.broadcast %cst_174 : f32 to vector<8x1xf32>
    %152 = arith.mulf %150, %151 : vector<8x1xf32>
    %153 = arith.mulf %146, %146 : vector<8x512xf32>
    %cst_175 = arith.constant dense<0.000000e+00> : vector<8xf32>
    %154 = vector.multi_reduction <add>, %153, %cst_175 [1] : vector<8x512xf32> to vector<8xf32>
    %155 = vector.shape_cast %154 : vector<8xf32> to vector<8x1xf32>
    %cst_176 = arith.constant 0.001953125 : f32
    %156 = vector.broadcast %cst_176 : f32 to vector<8x1xf32>
    %157 = arith.mulf %155, %156 : vector<8x1xf32>
    %158 = arith.mulf %152, %152 : vector<8x1xf32>
    %159 = arith.subf %157, %158 : vector<8x1xf32>
    %cst_177 = arith.constant 9.99999974E-6 : f32
    %160 = vector.broadcast %cst_177 : f32 to vector<8x1xf32>
    %161 = arith.addf %159, %160 : vector<8x1xf32>
    %162 = math.rsqrt %161 : vector<8x1xf32>
    %163 = arith.mulf %147, %162 : vector<8x1xf32>
    %164 = arith.mulf %152, %163 : vector<8x1xf32>
    %165 = arith.subf %148, %164 : vector<8x1xf32>
    %166 = vector.broadcast %163 : vector<8x1xf32> to vector<8x512xf32>
    %167 = arith.mulf %146, %166 : vector<8x512xf32>
    %168 = vector.broadcast %165 : vector<8x1xf32> to vector<8x512xf32>
    %169 = arith.addf %167, %168 : vector<8x512xf32>
    %cst_178 = arith.constant 0.000000e+00 : f32
    %170 = vector.broadcast %cst_178 : f32 to vector<8x512xf32>
    %171 = arith.cmpf ogt, %169, %170 : vector<8x512xf32>
    %172 = math.exp %169 : vector<8x512xf32>
    %cst_179 = arith.constant 1.000000e+00 : f32
    %173 = vector.broadcast %cst_179 : f32 to vector<8x512xf32>
    %174 = arith.subf %172, %173 : vector<8x512xf32>
    %175 = arith.select %171, %169, %174 : vector<8x512xi1>, vector<8x512xf32>
    %c0_180 = arith.constant 0 : index
    %c0_181 = arith.constant 0 : index
    %176 = vector.load %arg5[%c0_180, %c0_181] : memref<8x512xf32, #tpu.memory_space<vmem>>, vector<8x512xf32>
    tpu.vector_store %arg5[%c0_180, %c0_181], %175 {strides = array<i32>} : memref<8x512xf32, #tpu.memory_space<vmem>>, vector<8x512xf32>,
    return
  }
}

</mosaic_0001>

<llo_original>
// kernel: double_conv_forward.1
$region0: #{double_conv_forward.1}
  #allocation0 [shape = 'u32[]', space=smem, size = 0x4, offset = 0x4, fixed_abs, tag = 'smem constant byte address 0x4 - core index']
  #allocation1 [shape = 'u32[72,128]{1,0:T(1,128)}', space=vmem, size = 0x9000, scoped, tag = 'internal scratch']
  #allocation2 [shape = 'f32[2,18,18,4]{3,2,1,0:T(8,128)}', space=vmem, size = 0x6c000, scoped, tag = 'scratch operand']
  #allocation3 [shape = 'f32[2,18,18,8]{3,2,1,0:T(8,128)}', space=vmem, size = 0x6c000, scoped, tag = 'scratch operand']
  %s0 = inlined_call_operand.vmem [shape: f32[2,16,16,4], index: 0, kind: input, shape index: {}]
  %s1 = inlined_call_operand.vmem [shape: f32[9,4,8], index: 1, kind: input, shape index: {}]
  %s2 = inlined_call_operand.vmem [shape: f32[9,8,8], index: 2, kind: input, shape index: {}]
  %s3 = inlined_call_operand.vmem [shape: f32[2,8], index: 3, kind: input, shape index: {}]
  %s4 = inlined_call_operand.vmem [shape: f32[8,2], index: 4, kind: input, shape index: {}]
  %s5 = inlined_call_operand.vmem [shape: f32[8,512], index: 5, kind: output, shape index: {}]
  %s6 = sld [smem:[#allocation0]]
  $region30: #{double_conv_forward.1} parent=0
    _
  %s8 = ssub.s32 1, %s6
  %s9 = scalar_select 0, %s8, %s6
  // Predicated region
  $region2: #{double_conv_forward.1} parent=0 // pred_check
    _
  $region3: #{double_conv_forward.1} parent=0 // pred_check_branch
    %11 = sbr.rel (0) target = $region5
  $region4: #{double_conv_forward.1} parent=0 // pred_region
    _
  $region5: #{double_conv_forward.1} parent=0 // pred_fallthru
    _
  // Predicated region
  $region6: #{double_conv_forward.1} parent=0 // pred_check
    _
  $region7: #{double_conv_forward.1} parent=0 // pred_check_branch
    %13 = sbr.rel (0) target = $region9
  $region8: #{double_conv_forward.1} parent=0 // pred_region
    _
  $region9: #{double_conv_forward.1} parent=0 // pred_fallthru
    _
  // Predicated region
  $region10: #{double_conv_forward.1} parent=0 // pred_check
    _
  $region11: #{double_conv_forward.1} parent=0 // pred_check_branch
    %15 = sbr.rel (0) target = $region13
  $region12: #{double_conv_forward.1} parent=0 // pred_region
    _
  $region13: #{double_conv_forward.1} parent=0 // pred_fallthru
    _
  // Predicated region
  $region14: #{double_conv_forward.1} parent=0 // pred_check
    _
  $region15: #{double_conv_forward.1} parent=0 // pred_check_branch
    %17 = sbr.rel (0) target = $region17
  $region16: #{double_conv_forward.1} parent=0 // pred_region
    _
  $region17: #{double_conv_forward.1} parent=0 // pred_fallthru
    _
  // Predicated region
  $region18: #{double_conv_forward.1} parent=0 // pred_check
    _
  $region19: #{double_conv_forward.1} parent=0 // pred_check_branch
    %19 = sbr.rel (0) target = $region21
  $region20: #{double_conv_forward.1} parent=0 // pred_region
    _
  $region21: #{double_conv_forward.1} parent=0 // pred_fallthru
    _
  %vm20 = vcmask 31744
  %21 = vst.msk [vmem:[#allocation2] sm:$0xff] %vm20, 0.0
  %22 = vst.msk [vmem:[#allocation2 + $0x8] sm:$0xff] %vm20, 0.0
  %vm23 = vcmask 25600
  %24 = vst.msk [vmem:[#allocation2 + $0x10] sm:$0x3] %vm23, 0.0
  %25 = vst.msk [vmem:[#allocation2 + $0x18] sm:$0xff] %vm20, 0.0
  %26 = vst.msk [vmem:[#allocation2 + $0x20] sm:$0xff] %vm20, 0.0
  %27 = vst.msk [vmem:[#allocation2 + $0x28] sm:$0x3] %vm23, 0.0
  %28 = vst.msk [vmem:[#allocation2 + $0x30] sm:$0xff] %vm20, 0.0
  %29 = vst.msk [vmem:[#allocation2 + $0x38] sm:$0xff] %vm20, 0.0
  %30 = vst.msk [vmem:[#allocation2 + $0x40] sm:$0x3] %vm23, 0.0
  %31 = vst.msk [vmem:[#allocation2 + $0x48] sm:$0xff] %vm20, 0.0
  %32 = vst.msk [vmem:[#allocation2 + $0x50] sm:$0xff] %vm20, 0.0
  %33 = vst.msk [vmem:[#allocation2 + $0x58] sm:$0x3] %vm23, 0.0
  %34 = vst.msk [vmem:[#allocation2 + $0x60] sm:$0xff] %vm20, 0.0
  %35 = vst.msk [vmem:[#allocation2 + $0x68] sm:$0xff] %vm20, 0.0
  %36 = vst.msk [vmem:[#allocation2 + $0x70] sm:$0x3] %vm23, 0.0
  %37 = vst.msk [vmem:[#allocation2 + $0x78] sm:$0xff] %vm20, 0.0
  %38 = vst.msk [vmem:[#allocation2 + $0x80] sm:$0xff] %vm20, 0.0
  %39 = vst.msk [vmem:[#allocation2 + $0x88] sm:$0x3] %vm23, 0.0
  %40 = vst.msk [vmem:[#allocation2 + $0x90] sm:$0xff] %vm20, 0.0
  %41 = vst.msk [vmem:[#allocation2 + $0x98] sm:$0xff] %vm20, 0.0
  %42 = vst.msk [vmem:[#allocation2 + $0xa0] sm:$0x3] %vm23, 0.0
  %43 = vst.msk [vmem:[#allocation2 + $0xa8] sm:$0xff] %vm20, 0.0
  %44 = vst.msk [vmem:[#allocation2 + $0xb0] sm:$0xff] %vm20, 0.0
  %45 = vst.msk [vmem:[#allocation2 + $0xb8] sm:$0x3] %vm23, 0.0
  %46 = vst.msk [vmem:[#allocation2 + $0xc0] sm:$0xff] %vm20, 0.0
  %47 = vst.msk [vmem:[#allocation2 + $0xc8] sm:$0xff] %vm20, 0.0
  %48 = vst.msk [vmem:[#allocation2 + $0xd0] sm:$0x3] %vm23, 0.0
  %49 = vst.msk [vmem:[#allocation2 + $0xd8] sm:$0xff] %vm20, 0.0
  %50 = vst.msk [vmem:[#allocation2 + $0xe0] sm:$0xff] %vm20, 0.0
  %51 = vst.msk [vmem:[#allocation2 + $0xe8] sm:$0x3] %vm23, 0.0
  %52 = vst.msk [vmem:[#allocation2 + $0xf0] sm:$0xff] %vm20, 0.0
  %53 = vst.msk [vmem:[#allocation2 + $0xf8] sm:$0xff] %vm20, 0.0
  %54 = vst.msk [vmem:[#allocation2 + $0x100] sm:$0x3] %vm23, 0.0
  %55 = vst.msk [vmem:[#allocation2 + $0x108] sm:$0xff] %vm20, 0.0
  %56 = vst.msk [vmem:[#allocation2 + $0x110] sm:$0xff] %vm20, 0.0
  %57 = vst.msk [vmem:[#allocation2 + $0x118] sm:$0x3] %vm23, 0.0
  %58 = vst.msk [vmem:[#allocation2 + $0x120] sm:$0xff] %vm20, 0.0
  %59 = vst.msk [vmem:[#allocation2 + $0x128] sm:$0xff] %vm20, 0.0
  %60 = vst.msk [vmem:[#allocation2 + $0x130] sm:$0x3] %vm23, 0.0
  %61 = vst.msk [vmem:[#allocation2 + $0x138] sm:$0xff] %vm20, 0.0
  %62 = vst.msk [vmem:[#allocation2 + $0x140] sm:$0xff] %vm20, 0.0
  %63 = vst.msk [vmem:[#allocation2 + $0x148] sm:$0x3] %vm23, 0.0
  %64 = vst.msk [vmem:[#allocation2 + $0x150] sm:$0xff] %vm20, 0.0
  %65 = vst.msk [vmem:[#allocation2 + $0x158] sm:$0xff] %vm20, 0.0
  %66 = vst.msk [vmem:[#allocation2 + $0x160] sm:$0x3] %vm23, 0.0
  %67 = vst.msk [vmem:[#allocation2 + $0x168] sm:$0xff] %vm20, 0.0
  %68 = vst.msk [vmem:[#allocation2 + $0x170] sm:$0xff] %vm20, 0.0
  %69 = vst.msk [vmem:[#allocation2 + $0x178] sm:$0x3] %vm23, 0.0
  %70 = vst.msk [vmem:[#allocation2 + $0x180] sm:$0xff] %vm20, 0.0
  %71 = vst.msk [vmem:[#allocation2 + $0x188] sm:$0xff] %vm20, 0.0
  %72 = vst.msk [vmem:[#allocation2 + $0x190] sm:$0x3] %vm23, 0.0
  %73 = vst.msk [vmem:[#allocation2 + $0x198] sm:$0xff] %vm20, 0.0
  %74 = vst.msk [vmem:[#allocation2 + $0x1a0] sm:$0xff] %vm20, 0.0
  %75 = vst.msk [vmem:[#allocation2 + $0x1a8] sm:$0x3] %vm23, 0.0
  %76 = vst.msk [vmem:[#allocation2 + $0x1b0] sm:$0xff] %vm20, 0.0
  %77 = vst.msk [vmem:[#allocation2 + $0x1b8] sm:$0xff] %vm20, 0.0
  %78 = vst.msk [vmem:[#allocation2 + $0x1c0] sm:$0x3] %vm23, 0.0
  %79 = vst.msk [vmem:[#allocation2 + $0x1c8] sm:$0xff] %vm20, 0.0
  %80 = vst.msk [vmem:[#allocation2 + $0x1d0] sm:$0xff] %vm20, 0.0
  %81 = vst.msk [vmem:[#allocation2 + $0x1d8] sm:$0x3] %vm23, 0.0
  %82 = vst.msk [vmem:[#allocation2 + $0x1e0] sm:$0xff] %vm20, 0.0
  %83 = vst.msk [vmem:[#allocation2 + $0x1e8] sm:$0xff] %vm20, 0.0
  %84 = vst.msk [vmem:[#allocation2 + $0x1f0] sm:$0x3] %vm23, 0.0
  %85 = vst.msk [vmem:[#allocation2 + $0x1f8] sm:$0xff] %vm20, 0.0
  %86 = vst.msk [vmem:[#allocation2 + $0x200] sm:$0xff] %vm20, 0.0
  %87 = vst.msk [vmem:[#allocation2 + $0x208] sm:$0x3] %vm23, 0.0
  %88 = vst.msk [vmem:[#allocation2 + $0x210] sm:$0xff] %vm20, 0.0
  %89 = vst.msk [vmem:[#allocation2 + $0x218] sm:$0xff] %vm20, 0.0
  %90 = vst.msk [vmem:[#allocation2 + $0x220] sm:$0x3] %vm23, 0.0
  %91 = vst.msk [vmem:[#allocation2 + $0x228] sm:$0xff] %vm20, 0.0
  %92 = vst.msk [vmem:[#allocation2 + $0x230] sm:$0xff] %vm20, 0.0
  %93 = vst.msk [vmem:[#allocation2 + $0x238] sm:$0x3] %vm23, 0.0
  %94 = vst.msk [vmem:[#allocation2 + $0x240] sm:$0xff] %vm20, 0.0
  %95 = vst.msk [vmem:[#allocation2 + $0x248] sm:$0xff] %vm20, 0.0
  %96 = vst.msk [vmem:[#allocation2 + $0x250] sm:$0x3] %vm23, 0.0
  %97 = vst.msk [vmem:[#allocation2 + $0x258] sm:$0xff] %vm20, 0.0
  %98 = vst.msk [vmem:[#allocation2 + $0x260] sm:$0xff] %vm20, 0.0
  %99 = vst.msk [vmem:[#allocation2 + $0x268] sm:$0x3] %vm23, 0.0
  %100 = vst.msk [vmem:[#allocation2 + $0x270] sm:$0xff] %vm20, 0.0
  %101 = vst.msk [vmem:[#allocation2 + $0x278] sm:$0xff] %vm20, 0.0
  %102 = vst.msk [vmem:[#allocation2 + $0x280] sm:$0x3] %vm23, 0.0
  %103 = vst.msk [vmem:[#allocation2 + $0x288] sm:$0xff] %vm20, 0.0
  %104 = vst.msk [vmem:[#allocation2 + $0x290] sm:$0xff] %vm20, 0.0
  %105 = vst.msk [vmem:[#allocation2 + $0x298] sm:$0x3] %vm23, 0.0
  %106 = vst.msk [vmem:[#allocation2 + $0x2a0] sm:$0xff] %vm20, 0.0
  %107 = vst.msk [vmem:[#allocation2 + $0x2a8] sm:$0xff] %vm20, 0.0
  %108 = vst.msk [vmem:[#allocation2 + $0x2b0] sm:$0x3] %vm23, 0.0
  %109 = vst.msk [vmem:[#allocation2 + $0x2b8] sm:$0xff] %vm20, 0.0
  %110 = vst.msk [vmem:[#allocation2 + $0x2c0] sm:$0xff] %vm20, 0.0
  %111 = vst.msk [vmem:[#allocation2 + $0x2c8] sm:$0x3] %vm23, 0.0
  %112 = vst.msk [vmem:[#allocation2 + $0x2d0] sm:$0xff] %vm20, 0.0
  %113 = vst.msk [vmem:[#allocation2 + $0x2d8] sm:$0xff] %vm20, 0.0
  %114 = vst.msk [vmem:[#allocation2 + $0x2e0] sm:$0x3] %vm23, 0.0
  %115 = vst.msk [vmem:[#allocation2 + $0x2e8] sm:$0xff] %vm20, 0.0
  %116 = vst.msk [vmem:[#allocation2 + $0x2f0] sm:$0xff] %vm20, 0.0
  %117 = vst.msk [vmem:[#allocation2 + $0x2f8] sm:$0x3] %vm23, 0.0
  %118 = vst.msk [vmem:[#allocation2 + $0x300] sm:$0xff] %vm20, 0.0
  %119 = vst.msk [vmem:[#allocation2 + $0x308] sm:$0xff] %vm20, 0.0
  %120 = vst.msk [vmem:[#allocation2 + $0x310] sm:$0x3] %vm23, 0.0
  %121 = vst.msk [vmem:[#allocation2 + $0x318] sm:$0xff] %vm20, 0.0
  %122 = vst.msk [vmem:[#allocation2 + $0x320] sm:$0xff] %vm20, 0.0
  %123 = vst.msk [vmem:[#allocation2 + $0x328] sm:$0x3] %vm23, 0.0
  %124 = vst.msk [vmem:[#allocation2 + $0x330] sm:$0xff] %vm20, 0.0
  %125 = vst.msk [vmem:[#allocation2 + $0x338] sm:$0xff] %vm20, 0.0
  %126 = vst.msk [vmem:[#allocation2 + $0x340] sm:$0x3] %vm23, 0.0
  %127 = vst.msk [vmem:[#allocation2 + $0x348] sm:$0xff] %vm20, 0.0
  %128 = vst.msk [vmem:[#allocation2 + $0x350] sm:$0xff] %vm20, 0.0
  %129 = vst.msk [vmem:[#allocation2 + $0x358] sm:$0x3] %vm23, 0.0
  %v130 = vld [vmem:[%s0] sm:$0xff]
  %v131 = vld [vmem:[%s0 + $0x8] sm:$0xff]
  %v132 = vld [vmem:[%s0 + $0x10] sm:$0xff]
  %v133 = vld [vmem:[%s0 + $0x18] sm:$0xff]
  %v134 = vld [vmem:[%s0 + $0x20] sm:$0xff]
  %v135 = vld [vmem:[%s0 + $0x28] sm:$0xff]
  %v136 = vld [vmem:[%s0 + $0x30] sm:$0xff]
  %v137 = vld [vmem:[%s0 + $0x38] sm:$0xff]
  %v138 = vld [vmem:[%s0 + $0x40] sm:$0xff]
  %v139 = vld [vmem:[%s0 + $0x48] sm:$0xff]
  %v140 = vld [vmem:[%s0 + $0x50] sm:$0xff]
  %v141 = vld [vmem:[%s0 + $0x58] sm:$0xff]
  %v142 = vld [vmem:[%s0 + $0x60] sm:$0xff]
  %v143 = vld [vmem:[%s0 + $0x68] sm:$0xff]
  %v144 = vld [vmem:[%s0 + $0x70] sm:$0xff]
  %v145 = vld [vmem:[%s0 + $0x78] sm:$0xff]
  %v146 = vld [vmem:[%s0 + $0x80] sm:$0xff]
  %v147 = vld [vmem:[%s0 + $0x88] sm:$0xff]
  %v148 = vld [vmem:[%s0 + $0x90] sm:$0xff]
  %v149 = vld [vmem:[%s0 + $0x98] sm:$0xff]
  %v150 = vld [vmem:[%s0 + $0xa0] sm:$0xff]
  %v151 = vld [vmem:[%s0 + $0xa8] sm:$0xff]
  %v152 = vld [vmem:[%s0 + $0xb0] sm:$0xff]
  %v153 = vld [vmem:[%s0 + $0xb8] sm:$0xff]
  %v154 = vld [vmem:[%s0 + $0xc0] sm:$0xff]
  %v155 = vld [vmem:[%s0 + $0xc8] sm:$0xff]
  %v156 = vld [vmem:[%s0 + $0xd0] sm:$0xff]
  %v157 = vld [vmem:[%s0 + $0xd8] sm:$0xff]
  %v158 = vld [vmem:[%s0 + $0xe0] sm:$0xff]
  %v159 = vld [vmem:[%s0 + $0xe8] sm:$0xff]
  %v160 = vld [vmem:[%s0 + $0xf0] sm:$0xff]
  %v161 = vld [vmem:[%s0 + $0xf8] sm:$0xff]
  %v162 = vld [vmem:[%s0 + $0x100] sm:$0xff]
  %v163 = vld [vmem:[%s0 + $0x108] sm:$0xff]
  %v164 = vld [vmem:[%s0 + $0x110] sm:$0xff]
  %v165 = vld [vmem:[%s0 + $0x118] sm:$0xff]
  %v166 = vld [vmem:[%s0 + $0x120] sm:$0xff]
  %v167 = vld [vmem:[%s0 + $0x128] sm:$0xff]
  %v168 = vld [vmem:[%s0 + $0x130] sm:$0xff]
  %v169 = vld [vmem:[%s0 + $0x138] sm:$0xff]
  %v170 = vld [vmem:[%s0 + $0x140] sm:$0xff]
  %v171 = vld [vmem:[%s0 + $0x148] sm:$0xff]
  %v172 = vld [vmem:[%s0 + $0x150] sm:$0xff]
  %v173 = vld [vmem:[%s0 + $0x158] sm:$0xff]
  %v174 = vld [vmem:[%s0 + $0x160] sm:$0xff]
  %v175 = vld [vmem:[%s0 + $0x168] sm:$0xff]
  %v176 = vld [vmem:[%s0 + $0x170] sm:$0xff]
  %v177 = vld [vmem:[%s0 + $0x178] sm:$0xff]
  %v178 = vld [vmem:[%s0 + $0x180] sm:$0xff]
  %v179 = vld [vmem:[%s0 + $0x188] sm:$0xff]
  %v180 = vld [vmem:[%s0 + $0x190] sm:$0xff]
  %v181 = vld [vmem:[%s0 + $0x198] sm:$0xff]
  %v182 = vld [vmem:[%s0 + $0x1a0] sm:$0xff]
  %v183 = vld [vmem:[%s0 + $0x1a8] sm:$0xff]
  %v184 = vld [vmem:[%s0 + $0x1b0] sm:$0xff]
  %v185 = vld [vmem:[%s0 + $0x1b8] sm:$0xff]
  %v186 = vld [vmem:[%s0 + $0x1c0] sm:$0xff]
  %v187 = vld [vmem:[%s0 + $0x1c8] sm:$0xff]
  %v188 = vld [vmem:[%s0 + $0x1d0] sm:$0xff]
  %v189 = vld [vmem:[%s0 + $0x1d8] sm:$0xff]
  %v190 = vld [vmem:[%s0 + $0x1e0] sm:$0xff]
  %v191 = vld [vmem:[%s0 + $0x1e8] sm:$0xff]
  %v192 = vld [vmem:[%s0 + $0x1f0] sm:$0xff]
  %v193 = vld [vmem:[%s0 + $0x1f8] sm:$0xff]
  %s194 = scalar_lea.vmem [#allocation2], 24
  %195 = vst.msk [vmem:[%s194 + $0x1] sm:$0xff] %vm20, %v130
  %196 = vst.msk [vmem:[%s194 + $0x9] sm:$0xff] %vm20, %v131
  %197 = vst.msk [vmem:[%s194 + $0x19] sm:$0xff] %vm20, %v132
  %198 = vst.msk [vmem:[%s194 + $0x21] sm:$0xff] %vm20, %v133
  %199 = vst.msk [vmem:[%s194 + $0x31] sm:$0xff] %vm20, %v134
  %200 = vst.msk [vmem:[%s194 + $0x39] sm:$0xff] %vm20, %v135
  %201 = vst.msk [vmem:[%s194 + $0x49] sm:$0xff] %vm20, %v136
  %202 = vst.msk [vmem:[%s194 + $0x51] sm:$0xff] %vm20, %v137
  %203 = vst.msk [vmem:[%s194 + $0x61] sm:$0xff] %vm20, %v138
  %204 = vst.msk [vmem:[%s194 + $0x69] sm:$0xff] %vm20, %v139
  %205 = vst.msk [vmem:[%s194 + $0x79] sm:$0xff] %vm20, %v140
  %206 = vst.msk [vmem:[%s194 + $0x81] sm:$0xff] %vm20, %v141
  %207 = vst.msk [vmem:[%s194 + $0x91] sm:$0xff] %vm20, %v142
  %208 = vst.msk [vmem:[%s194 + $0x99] sm:$0xff] %vm20, %v143
  %209 = vst.msk [vmem:[%s194 + $0xa9] sm:$0xff] %vm20, %v144
  %210 = vst.msk [vmem:[%s194 + $0xb1] sm:$0xff] %vm20, %v145
  %211 = vst.msk [vmem:[%s194 + $0xc1] sm:$0xff] %vm20, %v146
  %212 = vst.msk [vmem:[%s194 + $0xc9] sm:$0xff] %vm20, %v147
  %213 = vst.msk [vmem:[%s194 + $0xd9] sm:$0xff] %vm20, %v148
  %214 = vst.msk [vmem:[%s194 + $0xe1] sm:$0xff] %vm20, %v149
  %215 = vst.msk [vmem:[%s194 + $0xf1] sm:$0xff] %vm20, %v150
  %216 = vst.msk [vmem:[%s194 + $0xf9] sm:$0xff] %vm20, %v151
  %217 = vst.msk [vmem:[%s194 + $0x109] sm:$0xff] %vm20, %v152
  %218 = vst.msk [vmem:[%s194 + $0x111] sm:$0xff] %vm20, %v153
  %219 = vst.msk [vmem:[%s194 + $0x121] sm:$0xff] %vm20, %v154
  %220 = vst.msk [vmem:[%s194 + $0x129] sm:$0xff] %vm20, %v155
  %221 = vst.msk [vmem:[%s194 + $0x139] sm:$0xff] %vm20, %v156
  %222 = vst.msk [vmem:[%s194 + $0x141] sm:$0xff] %vm20, %v157
  %223 = vst.msk [vmem:[%s194 + $0x151] sm:$0xff] %vm20, %v158
  %224 = vst.msk [vmem:[%s194 + $0x159] sm:$0xff] %vm20, %v159
  %225 = vst.msk [vmem:[%s194 + $0x169] sm:$0xff] %vm20, %v160
  %226 = vst.msk [vmem:[%s194 + $0x171] sm:$0xff] %vm20, %v161
  %227 = vst.msk [vmem:[%s194 + $0x1b1] sm:$0xff] %vm20, %v162
  %228 = vst.msk [vmem:[%s194 + $0x1b9] sm:$0xff] %vm20, %v163
  %229 = vst.msk [vmem:[%s194 + $0x1c9] sm:$0xff] %vm20, %v164
  %230 = vst.msk [vmem:[%s194 + $0x1d1] sm:$0xff] %vm20, %v165
  %231 = vst.msk [vmem:[%s194 + $0x1e1] sm:$0xff] %vm20, %v166
  %232 = vst.msk [vmem:[%s194 + $0x1e9] sm:$0xff] %vm20, %v167
  %233 = vst.msk [vmem:[%s194 + $0x1f9] sm:$0xff] %vm20, %v168
  %234 = vst.msk [vmem:[%s194 + $0x201] sm:$0xff] %vm20, %v169
  %235 = vst.msk [vmem:[%s194 + $0x211] sm:$0xff] %vm20, %v170
  %236 = vst.msk [vmem:[%s194 + $0x219] sm:$0xff] %vm20, %v171
  %237 = vst.msk [vmem:[%s194 + $0x229] sm:$0xff] %vm20, %v172
  %238 = vst.msk [vmem:[%s194 + $0x231] sm:$0xff] %vm20, %v173
  %239 = vst.msk [vmem:[%s194 + $0x241] sm:$0xff] %vm20, %v174
  %240 = vst.msk [vmem:[%s194 + $0x249] sm:$0xff] %vm20, %v175
  %241 = vst.msk [vmem:[%s194 + $0x259] sm:$0xff] %vm20, %v176
  %242 = vst.msk [vmem:[%s194 + $0x261] sm:$0xff] %vm20, %v177
  %243 = vst.msk [vmem:[%s194 + $0x271] sm:$0xff] %vm20, %v178
  %244 = vst.msk [vmem:[%s194 + $0x279] sm:$0xff] %vm20, %v179
  %245 = vst.msk [vmem:[%s194 + $0x289] sm:$0xff] %vm20, %v180
  %246 = vst.msk [vmem:[%s194 + $0x291] sm:$0xff] %vm20, %v181
  %247 = vst.msk [vmem:[%s194 + $0x2a1] sm:$0xff] %vm20, %v182
  %248 = vst.msk [vmem:[%s194 + $0x2a9] sm:$0xff] %vm20, %v183
  %249 = vst.msk [vmem:[%s194 + $0x2b9] sm:$0xff] %vm20, %v184
  %250 = vst.msk [vmem:[%s194 + $0x2c1] sm:$0xff] %vm20, %v185
  %251 = vst.msk [vmem:[%s194 + $0x2d1] sm:$0xff] %vm20, %v186
  %252 = vst.msk [vmem:[%s194 + $0x2d9] sm:$0xff] %vm20, %v187
  %253 = vst.msk [vmem:[%s194 + $0x2e9] sm:$0xff] %vm20, %v188
  %254 = vst.msk [vmem:[%s194 + $0x2f1] sm:$0xff] %vm20, %v189
  %255 = vst.msk [vmem:[%s194 + $0x301] sm:$0xff] %vm20, %v190
  %256 = vst.msk [vmem:[%s194 + $0x309] sm:$0xff] %vm20, %v191
  %257 = vst.msk [vmem:[%s194 + $0x319] sm:$0xff] %vm20, %v192
  %258 = vst.msk [vmem:[%s194 + $0x321] sm:$0xff] %vm20, %v193
  %v259 = vld [vmem:[#allocation2] sm:$0xff]
  %v260 = vld [vmem:[#allocation2 + $0x8] sm:$0xff]
  %v261 = vld [vmem:[#allocation2 + $0x18] sm:$0xff]
  %v262 = vld [vmem:[#allocation2 + $0x20] sm:$0xff]
  %v263 = vld [vmem:[#allocation2 + $0x30] sm:$0xff]
  %v264 = vld [vmem:[#allocation2 + $0x38] sm:$0xff]
  %v265 = vld [vmem:[#allocation2 + $0x48] sm:$0xff]
  %v266 = vld [vmem:[#allocation2 + $0x50] sm:$0xff]
  %v267 = vld [vmem:[#allocation2 + $0x60] sm:$0xff]
  %v268 = vld [vmem:[#allocation2 + $0x68] sm:$0xff]
  %v269 = vld [vmem:[#allocation2 + $0x78] sm:$0xff]
  %v270 = vld [vmem:[#allocation2 + $0x80] sm:$0xff]
  %v271 = vld [vmem:[#allocation2 + $0x90] sm:$0xff]
  %v272 = vld [vmem:[#allocation2 + $0x98] sm:$0xff]
  %v273 = vld [vmem:[#allocation2 + $0xa8] sm:$0xff]
  %v274 = vld [vmem:[#allocation2 + $0xb0] sm:$0xff]
  %v275 = vld [vmem:[#allocation2 + $0xc0] sm:$0xff]
  %v276 = vld [vmem:[#allocation2 + $0xc8] sm:$0xff]
  %v277 = vld [vmem:[#allocation2 + $0xd8] sm:$0xff]
  %v278 = vld [vmem:[#allocation2 + $0xe0] sm:$0xff]
  %v279 = vld [vmem:[#allocation2 + $0xf0] sm:$0xff]
  %v280 = vld [vmem:[#allocation2 + $0xf8] sm:$0xff]
  %v281 = vld [vmem:[#allocation2 + $0x108] sm:$0xff]
  %v282 = vld [vmem:[#allocation2 + $0x110] sm:$0xff]
  %v283 = vld [vmem:[#allocation2 + $0x120] sm:$0xff]
  %v284 = vld [vmem:[#allocation2 + $0x128] sm:$0xff]
  %v285 = vld [vmem:[#allocation2 + $0x138] sm:$0xff]
  %v286 = vld [vmem:[#allocation2 + $0x140] sm:$0xff]
  %v287 = vld [vmem:[#allocation2 + $0x150] sm:$0xff]
  %v288 = vld [vmem:[#allocation2 + $0x158] sm:$0xff]
  %v289 = vld [vmem:[#allocation2 + $0x168] sm:$0xff]
  %v290 = vld [vmem:[#allocation2 + $0x170] sm:$0xff]
  %v291 = vld [vmem:[#allocation2 + $0x1b0] sm:$0xff]
  %v292 = vld [vmem:[#allocation2 + $0x1b8] sm:$0xff]
  %v293 = vld [vmem:[#allocation2 + $0x1c8] sm:$0xff]
  %v294 = vld [vmem:[#allocation2 + $0x1d0] sm:$0xff]
  %v295 = vld [vmem:[#allocation2 + $0x1e0] sm:$0xff]
  %v296 = vld [vmem:[#allocation2 + $0x1e8] sm:$0xff]
  %v297 = vld [vmem:[#allocation2 + $0x1f8] sm:$0xff]
  %v298 = vld [vmem:[#allocation2 + $0x200] sm:$0xff]
  %v299 = vld [vmem:[#allocation2 + $0x210] sm:$0xff]
  %v300 = vld [vmem:[#allocation2 + $0x218] sm:$0xff]
  %v301 = vld [vmem:[#allocation2 + $0x228] sm:$0xff]
  %v302 = vld [vmem:[#allocation2 + $0x230] sm:$0xff]
  %v303 = vld [vmem:[#allocation2 + $0x240] sm:$0xff]
  %v304 = vld [vmem:[#allocation2 + $0x248] sm:$0xff]
  %v305 = vld [vmem:[#allocation2 + $0x258] sm:$0xff]
  %v306 = vld [vmem:[#allocation2 + $0x260] sm:$0xff]
  %v307 = vld [vmem:[#allocation2 + $0x270] sm:$0xff]
  %v308 = vld [vmem:[#allocation2 + $0x278] sm:$0xff]
  %v309 = vld [vmem:[#allocation2 + $0x288] sm:$0xff]
  %v310 = vld [vmem:[#allocation2 + $0x290] sm:$0xff]
  %v311 = vld [vmem:[#allocation2 + $0x2a0] sm:$0xff]
  %v312 = vld [vmem:[#allocation2 + $0x2a8] sm:$0xff]
  %v313 = vld [vmem:[#allocation2 + $0x2b8] sm:$0xff]
  %v314 = vld [vmem:[#allocation2 + $0x2c0] sm:$0xff]
  %v315 = vld [vmem:[#allocation2 + $0x2d0] sm:$0xff]
  %v316 = vld [vmem:[#allocation2 + $0x2d8] sm:$0xff]
  %v317 = vld [vmem:[#allocation2 + $0x2e8] sm:$0xff]
  %v318 = vld [vmem:[#allocation2 + $0x2f0] sm:$0xff]
  %v319 = vld [vmem:[#allocation2 + $0x300] sm:$0xff]
  %v320 = vld [vmem:[#allocation2 + $0x308] sm:$0xff]
  %v321 = vld [vmem:[#allocation2 + $0x318] sm:$0xff]
  %v322 = vld [vmem:[#allocation2 + $0x320] sm:$0xff]
  %v323 = vld [vmem:[%s1] sm:$0xf]
  %v324 = vld [vmem:[#allocation2 + $0x1] sm:$0xff]
  %v325 = vld [vmem:[#allocation2 + $0x9] sm:$0xff]
  %v326 = vld [vmem:[#allocation2 + $0x19] sm:$0xff]
  %v327 = vld [vmem:[#allocation2 + $0x21] sm:$0xff]
  %v328 = vld [vmem:[#allocation2 + $0x31] sm:$0xff]
  %v329 = vld [vmem:[#allocation2 + $0x39] sm:$0xff]
  %v330 = vld [vmem:[#allocation2 + $0x49] sm:$0xff]
  %v331 = vld [vmem:[#allocation2 + $0x51] sm:$0xff]
  %v332 = vld [vmem:[#allocation2 + $0x61] sm:$0xff]
  %v333 = vld [vmem:[#allocation2 + $0x69] sm:$0xff]
  %v334 = vld [vmem:[#allocation2 + $0x79] sm:$0xff]
  %v335 = vld [vmem:[#allocation2 + $0x81] sm:$0xff]
  %v336 = vld [vmem:[#allocation2 + $0x91] sm:$0xff]
  %v337 = vld [vmem:[#allocation2 + $0x99] sm:$0xff]
  %v338 = vld [vmem:[#allocation2 + $0xa9] sm:$0xff]
  %v339 = vld [vmem:[#allocation2 + $0xb1] sm:$0xff]
  %v340 = vld [vmem:[#allocation2 + $0xc1] sm:$0xff]
  %v341 = vld [vmem:[#allocation2 + $0xc9] sm:$0xff]
  %v342 = vld [vmem:[#allocation2 + $0xd9] sm:$0xff]
  %v343 = vld [vmem:[#allocation2 + $0xe1] sm:$0xff]
  %v344 = vld [vmem:[#allocation2 + $0xf1] sm:$0xff]
  %v345 = vld [vmem:[#allocation2 + $0xf9] sm:$0xff]
  %v346 = vld [vmem:[#allocation2 + $0x109] sm:$0xff]
  %v347 = vld [vmem:[#allocation2 + $0x111] sm:$0xff]
  %v348 = vld [vmem:[#allocation2 + $0x121] sm:$0xff]
  %v349 = vld [vmem:[#allocation2 + $0x129] sm:$0xff]
  %v350 = vld [vmem:[#allocation2 + $0x139] sm:$0xff]
  %v351 = vld [vmem:[#allocation2 + $0x141] sm:$0xff]
  %v352 = vld [vmem:[#allocation2 + $0x151] sm:$0xff]
  %v353 = vld [vmem:[#allocation2 + $0x159] sm:$0xff]
  %v354 = vld [vmem:[#allocation2 + $0x169] sm:$0xff]
  %v355 = vld [vmem:[#allocation2 + $0x171] sm:$0xff]
  %v356 = vld [vmem:[#allocation2 + $0x1b1] sm:$0xff]
  %v357 = vld [vmem:[#allocation2 + $0x1b9] sm:$0xff]
  %v358 = vld [vmem:[#allocation2 + $0x1c9] sm:$0xff]
  %v359 = vld [vmem:[#allocation2 + $0x1d1] sm:$0xff]
  %v360 = vld [vmem:[#allocation2 + $0x1e1] sm:$0xff]
  %v361 = vld [vmem:[#allocation2 + $0x1e9] sm:$0xff]
  %v362 = vld [vmem:[#allocation2 + $0x1f9] sm:$0xff]
  %v363 = vld [vmem:[#allocation2 + $0x201] sm:$0xff]
  %v364 = vld [vmem:[#allocation2 + $0x211] sm:$0xff]
  %v365 = vld [vmem:[#allocation2 + $0x219] sm:$0xff]
  %v366 = vld [vmem:[#allocation2 + $0x229] sm:$0xff]
  %v367 = vld [vmem:[#allocation2 + $0x231] sm:$0xff]
  %v368 = vld [vmem:[#allocation2 + $0x241] sm:$0xff]
  %v369 = vld [vmem:[#allocation2 + $0x249] sm:$0xff]
  %v370 = vld [vmem:[#allocation2 + $0x259] sm:$0xff]
  %v371 = vld [vmem:[#allocation2 + $0x261] sm:$0xff]
  %v372 = vld [vmem:[#allocation2 + $0x271] sm:$0xff]
  %v373 = vld [vmem:[#allocation2 + $0x279] sm:$0xff]
  %v374 = vld [vmem:[#allocation2 + $0x289] sm:$0xff]
  %v375 = vld [vmem:[#allocation2 + $0x291] sm:$0xff]
  %v376 = vld [vmem:[#allocation2 + $0x2a1] sm:$0xff]
  %v377 = vld [vmem:[#allocation2 + $0x2a9] sm:$0xff]
  %v378 = vld [vmem:[#allocation2 + $0x2b9] sm:$0xff]
  %v379 = vld [vmem:[#allocation2 + $0x2c1] sm:$0xff]
  %v380 = vld [vmem:[#allocation2 + $0x2d1] sm:$0xff]
  %v381 = vld [vmem:[#allocation2 + $0x2d9] sm:$0xff]
  %v382 = vld [vmem:[#allocation2 + $0x2e9] sm:$0xff]
  %v383 = vld [vmem:[#allocation2 + $0x2f1] sm:$0xff]
  %v384 = vld [vmem:[#allocation2 + $0x301] sm:$0xff]
  %v385 = vld [vmem:[#allocation2 + $0x309] sm:$0xff]
  %v386 = vld [vmem:[#allocation2 + $0x319] sm:$0xff]
  %v387 = vld [vmem:[#allocation2 + $0x321] sm:$0xff]
  %s388 = scalar_lea.vmem %s1, 4
  %v389 = vld [vmem:[%s388] sm:$0xf]
  %v391 = vsel %vm20, %v324, 0
  %v394 = vsel %vm20, %v325, 0
  %v397 = vsel %vm20, %v326, 0
  %v400 = vsel %vm20, %v327, 0
  %v403 = vsel %vm20, %v328, 0
  %v406 = vsel %vm20, %v329, 0
  %v409 = vsel %vm20, %v330, 0
  %v412 = vsel %vm20, %v331, 0
  %v415 = vsel %vm20, %v332, 0
  %v418 = vsel %vm20, %v333, 0
  %v421 = vsel %vm20, %v334, 0
  %v424 = vsel %vm20, %v335, 0
  %v427 = vsel %vm20, %v336, 0
  %v430 = vsel %vm20, %v337, 0
  %v433 = vsel %vm20, %v338, 0
  %v436 = vsel %vm20, %v339, 0
  %v439 = vsel %vm20, %v340, 0
  %v442 = vsel %vm20, %v341, 0
  %v445 = vsel %vm20, %v342, 0
  %v448 = vsel %vm20, %v343, 0
  %v451 = vsel %vm20, %v344, 0
  %v454 = vsel %vm20, %v345, 0
  %v457 = vsel %vm20, %v346, 0
  %v460 = vsel %vm20, %v347, 0
  %v463 = vsel %vm20, %v348, 0
  %v466 = vsel %vm20, %v349, 0
  %v469 = vsel %vm20, %v350, 0
  %v472 = vsel %vm20, %v351, 0
  %v475 = vsel %vm20, %v352, 0
  %v478 = vsel %vm20, %v353, 0
  %v481 = vsel %vm20, %v354, 0
  %v484 = vsel %vm20, %v355, 0
  %v487 = vsel %vm20, %v356, 0
  %v490 = vsel %vm20, %v357, 0
  %v493 = vsel %vm20, %v358, 0
  %v496 = vsel %vm20, %v359, 0
  %v499 = vsel %vm20, %v360, 0
  %v502 = vsel %vm20, %v361, 0
  %v505 = vsel %vm20, %v362, 0
  %v508 = vsel %vm20, %v363, 0
  %v511 = vsel %vm20, %v364, 0
  %v514 = vsel %vm20, %v365, 0
  %v517 = vsel %vm20, %v366, 0
  %v520 = vsel %vm20, %v367, 0
  %v523 = vsel %vm20, %v368, 0
  %v526 = vsel %vm20, %v369, 0
  %v529 = vsel %vm20, %v370, 0
  %v532 = vsel %vm20, %v371, 0
  %v535 = vsel %vm20, %v372, 0
  %v538 = vsel %vm20, %v373, 0
  %v541 = vsel %vm20, %v374, 0
  %v544 = vsel %vm20, %v375, 0
  %v547 = vsel %vm20, %v376, 0
  %v550 = vsel %vm20, %v377, 0
  %v553 = vsel %vm20, %v378, 0
  %v556 = vsel %vm20, %v379, 0
  %v559 = vsel %vm20, %v380, 0
  %v562 = vsel %vm20, %v381, 0
  %v565 = vsel %vm20, %v382, 0
  %v568 = vsel %vm20, %v383, 0
  %v571 = vsel %vm20, %v384, 0
  %v574 = vsel %vm20, %v385, 0
  %v577 = vsel %vm20, %v386, 0
  %v580 = vsel %vm20, %v387, 0
  %vm582 = vcmask 1043456
  %v584 = vsel %vm582, %v389, 0
  %586 = vmatpush.msra.mxu0 0.0
  %587 = vmatpush.msra.mxu0 0.0
  %588 = vmatpush.msra.mxu0 0.0
  %589 = vmatpush.msra.mxu0 0.0
  %590 = vmatpush.msra.mxu0 0.0
  %591 = vmatpush.msra.mxu0 0.0
  %592 = vmatpush.msra.mxu0 0.0
  %593 = vmatpush.msra.mxu0 0.0
  %594 = vmatpush.msra.mxu0 0.0
  %595 = vmatpush.msra.mxu0 0.0
  %596 = vmatpush.msra.mxu0 0.0
  %597 = vmatpush.msra.mxu0 0.0
  %598 = vmatpush.msra.mxu0 0.0
  %599 = vmatpush.msra.mxu0 0.0
  %600 = vmatpush.msra.mxu0 0.0
  %601 = vmatpush.msra.mxu0 %v584
  %602 = vmatmul.f32.gmra.mxu0 %v391
  %v603 = vpop.f32.mrf.mxu0
  %v604 = vadd.f32 0.0, %v603
  %605 = vmatmul.f32.gmra.mxu0 %v394
  %v606 = vpop.f32.mrf.mxu0
  %v607 = vadd.f32 0.0, %v606
  %608 = vmatmul.f32.gmra.mxu0 %v397
  %v609 = vpop.f32.mrf.mxu0
  %v610 = vadd.f32 0.0, %v609
  %611 = vmatmul.f32.gmra.mxu0 %v400
  %v612 = vpop.f32.mrf.mxu0
  %v613 = vadd.f32 0.0, %v612
  %614 = vmatmul.f32.gmra.mxu0 %v403
  %v615 = vpop.f32.mrf.mxu0
  %v616 = vadd.f32 0.0, %v615
  %617 = vmatmul.f32.gmra.mxu0 %v406
  %v618 = vpop.f32.mrf.mxu0
  %v619 = vadd.f32 0.0, %v618
  %620 = vmatmul.f32.gmra.mxu0 %v409
  %v621 = vpop.f32.mrf.mxu0
  %v622 = vadd.f32 0.0, %v621
  %623 = vmatmul.f32.gmra.mxu0 %v412
  %v624 = vpop.f32.mrf.mxu0
  %v625 = vadd.f32 0.0, %v624
  %626 = vmatmul.f32.gmra.mxu0 %v415
  %v627 = vpop.f32.mrf.mxu0
  %v628 = vadd.f32 0.0, %v627
  %629 = vmatmul.f32.gmra.mxu0 %v418
  %v630 = vpop.f32.mrf.mxu0
  %v631 = vadd.f32 0.0, %v630
  %632 = vmatmul.f32.gmra.mxu0 %v421
  %v633 = vpop.f32.mrf.mxu0
  %v634 = vadd.f32 0.0, %v633
  %635 = vmatmul.f32.gmra.mxu0 %v424
  %v636 = vpop.f32.mrf.mxu0
  %v637 = vadd.f32 0.0, %v636
  %638 = vmatmul.f32.gmra.mxu0 %v427
  %v639 = vpop.f32.mrf.mxu0
  %v640 = vadd.f32 0.0, %v639
  %641 = vmatmul.f32.gmra.mxu0 %v430
  %v642 = vpop.f32.mrf.mxu0
  %v643 = vadd.f32 0.0, %v642
  %644 = vmatmul.f32.gmra.mxu0 %v433
  %v645 = vpop.f32.mrf.mxu0
  %v646 = vadd.f32 0.0, %v645
  %647 = vmatmul.f32.gmra.mxu0 %v436
  %v648 = vpop.f32.mrf.mxu0
  %v649 = vadd.f32 0.0, %v648
  %650 = vmatmul.f32.gmra.mxu0 %v439
  %v651 = vpop.f32.mrf.mxu0
  %v652 = vadd.f32 0.0, %v651
  %653 = vmatmul.f32.gmra.mxu0 %v442
  %v654 = vpop.f32.mrf.mxu0
  %v655 = vadd.f32 0.0, %v654
  %656 = vmatmul.f32.gmra.mxu0 %v445
  %v657 = vpop.f32.mrf.mxu0
  %v658 = vadd.f32 0.0, %v657
  %659 = vmatmul.f32.gmra.mxu0 %v448
  %v660 = vpop.f32.mrf.mxu0
  %v661 = vadd.f32 0.0, %v660
  %662 = vmatmul.f32.gmra.mxu0 %v451
  %v663 = vpop.f32.mrf.mxu0
  %v664 = vadd.f32 0.0, %v663
  %665 = vmatmul.f32.gmra.mxu0 %v454
  %v666 = vpop.f32.mrf.mxu0
  %v667 = vadd.f32 0.0, %v666
  %668 = vmatmul.f32.gmra.mxu0 %v457
  %v669 = vpop.f32.mrf.mxu0
  %v670 = vadd.f32 0.0, %v669
  %671 = vmatmul.f32.gmra.mxu0 %v460
  %v672 = vpop.f32.mrf.mxu0
  %v673 = vadd.f32 0.0, %v672
  %674 = vmatmul.f32.gmra.mxu0 %v463
  %v675 = vpop.f32.mrf.mxu0
  %v676 = vadd.f32 0.0, %v675
  %677 = vmatmul.f32.gmra.mxu0 %v466
  %v678 = vpop.f32.mrf.mxu0
  %v679 = vadd.f32 0.0, %v678
  %680 = vmatmul.f32.gmra.mxu0 %v469
  %v681 = vpop.f32.mrf.mxu0
  %v682 = vadd.f32 0.0, %v681
  %683 = vmatmul.f32.gmra.mxu0 %v472
  %v684 = vpop.f32.mrf.mxu0
  %v685 = vadd.f32 0.0, %v684
  %686 = vmatmul.f32.gmra.mxu0 %v475
  %v687 = vpop.f32.mrf.mxu0
  %v688 = vadd.f32 0.0, %v687
  %689 = vmatmul.f32.gmra.mxu0 %v478
  %v690 = vpop.f32.mrf.mxu0
  %v691 = vadd.f32 0.0, %v690
  %692 = vmatmul.f32.gmra.mxu0 %v481
  %v693 = vpop.f32.mrf.mxu0
  %v694 = vadd.f32 0.0, %v693
  %695 = vmatmul.f32.gmra.mxu0 %v484
  %v696 = vpop.f32.mrf.mxu0
  %v697 = vadd.f32 0.0, %v696
  %698 = vmatmul.f32.gmra.mxu0 %v487
  %v699 = vpop.f32.mrf.mxu0
  %v700 = vadd.f32 0.0, %v699
  %701 = vmatmul.f32.gmra.mxu0 %v490
  %v702 = vpop.f32.mrf.mxu0
  %v703 = vadd.f32 0.0, %v702
  %704 = vmatmul.f32.gmra.mxu0 %v493
  %v705 = vpop.f32.mrf.mxu0
  %v706 = vadd.f32 0.0, %v705
  %707 = vmatmul.f32.gmra.mxu0 %v496
  %v708 = vpop.f32.mrf.mxu0
  %v709 = vadd.f32 0.0, %v708
  %710 = vmatmul.f32.gmra.mxu0 %v499
  %v711 = vpop.f32.mrf.mxu0
  %v712 = vadd.f32 0.0, %v711
  %713 = vmatmul.f32.gmra.mxu0 %v502
  %v714 = vpop.f32.mrf.mxu0
  %v715 = vadd.f32 0.0, %v714
  %716 = vmatmul.f32.gmra.mxu0 %v505
  %v717 = vpop.f32.mrf.mxu0
  %v718 = vadd.f32 0.0, %v717
  %719 = vmatmul.f32.gmra.mxu0 %v508
  %v720 = vpop.f32.mrf.mxu0
  %v721 = vadd.f32 0.0, %v720
  %722 = vmatmul.f32.gmra.mxu0 %v511
  %v723 = vpop.f32.mrf.mxu0
  %v724 = vadd.f32 0.0, %v723
  %725 = vmatmul.f32.gmra.mxu0 %v514
  %v726 = vpop.f32.mrf.mxu0
  %v727 = vadd.f32 0.0, %v726
  %728 = vmatmul.f32.gmra.mxu0 %v517
  %v729 = vpop.f32.mrf.mxu0
  %v730 = vadd.f32 0.0, %v729
  %731 = vmatmul.f32.gmra.mxu0 %v520
  %v732 = vpop.f32.mrf.mxu0
  %v733 = vadd.f32 0.0, %v732
  %734 = vmatmul.f32.gmra.mxu0 %v523
  %v735 = vpop.f32.mrf.mxu0
  %v736 = vadd.f32 0.0, %v735
  %737 = vmatmul.f32.gmra.mxu0 %v526
  %v738 = vpop.f32.mrf.mxu0
  %v739 = vadd.f32 0.0, %v738
  %740 = vmatmul.f32.gmra.mxu0 %v529
  %v741 = vpop.f32.mrf.mxu0
  %v742 = vadd.f32 0.0, %v741
  %743 = vmatmul.f32.gmra.mxu0 %v532
  %v744 = vpop.f32.mrf.mxu0
  %v745 = vadd.f32 0.0, %v744
  %746 = vmatmul.f32.gmra.mxu0 %v535
  %v747 = vpop.f32.mrf.mxu0
  %v748 = vadd.f32 0.0, %v747
  %749 = vmatmul.f32.gmra.mxu0 %v538
  %v750 = vpop.f32.mrf.mxu0
  %v751 = vadd.f32 0.0, %v750
  %752 = vmatmul.f32.gmra.mxu0 %v541
  %v753 = vpop.f32.mrf.mxu0
  %v754 = vadd.f32 0.0, %v753
  %755 = vmatmul.f32.gmra.mxu0 %v544
  %v756 = vpop.f32.mrf.mxu0
  %v757 = vadd.f32 0.0, %v756
  %758 = vmatmul.f32.gmra.mxu0 %v547
  %v759 = vpop.f32.mrf.mxu0
  %v760 = vadd.f32 0.0, %v759
  %761 = vmatmul.f32.gmra.mxu0 %v550
  %v762 = vpop.f32.mrf.mxu0
  %v763 = vadd.f32 0.0, %v762
  %764 = vmatmul.f32.gmra.mxu0 %v553
  %v765 = vpop.f32.mrf.mxu0
  %v766 = vadd.f32 0.0, %v765
  %767 = vmatmul.f32.gmra.mxu0 %v556
  %v768 = vpop.f32.mrf.mxu0
  %v769 = vadd.f32 0.0, %v768
  %770 = vmatmul.f32.gmra.mxu0 %v559
  %v771 = vpop.f32.mrf.mxu0
  %v772 = vadd.f32 0.0, %v771
  %773 = vmatmul.f32.gmra.mxu0 %v562
  %v774 = vpop.f32.mrf.mxu0
  %v775 = vadd.f32 0.0, %v774
  %776 = vmatmul.f32.gmra.mxu0 %v565
  %v777 = vpop.f32.mrf.mxu0
  %v778 = vadd.f32 0.0, %v777
  %779 = vmatmul.f32.gmra.mxu0 %v568
  %v780 = vpop.f32.mrf.mxu0
  %v781 = vadd.f32 0.0, %v780
  %782 = vmatmul.f32.gmra.mxu0 %v571
  %v783 = vpop.f32.mrf.mxu0
  %v784 = vadd.f32 0.0, %v783
  %785 = vmatmul.f32.gmra.mxu0 %v574
  %v786 = vpop.f32.mrf.mxu0
  %v787 = vadd.f32 0.0, %v786
  %788 = vmatmul.f32.gmra.mxu0 %v577
  %v789 = vpop.f32.mrf.mxu0
  %v790 = vadd.f32 0.0, %v789
  %791 = vmatmul.f32.gmra.mxu0 %v580
  %v792 = vpop.f32.mrf.mxu0
  %v793 = vadd.f32 0.0, %v792
  %794 = vdwg.mxu0
  %v796 = vsel %vm20, %v259, 0
  %v799 = vsel %vm20, %v260, 0
  %v802 = vsel %vm20, %v261, 0
  %v805 = vsel %vm20, %v262, 0
  %v808 = vsel %vm20, %v263, 0
  %v811 = vsel %vm20, %v264, 0
  %v814 = vsel %vm20, %v265, 0
  %v817 = vsel %vm20, %v266, 0
  %v820 = vsel %vm20, %v267, 0
  %v823 = vsel %vm20, %v268, 0
  %v826 = vsel %vm20, %v269, 0
  %v829 = vsel %vm20, %v270, 0
  %v832 = vsel %vm20, %v271, 0
  %v835 = vsel %vm20, %v272, 0
  %v838 = vsel %vm20, %v273, 0
  %v841 = vsel %vm20, %v274, 0
  %v844 = vsel %vm20, %v275, 0
  %v847 = vsel %vm20, %v276, 0
  %v850 = vsel %vm20, %v277, 0
  %v853 = vsel %vm20, %v278, 0
  %v856 = vsel %vm20, %v279, 0
  %v859 = vsel %vm20, %v280, 0
  %v862 = vsel %vm20, %v281, 0
  %v865 = vsel %vm20, %v282, 0
  %v868 = vsel %vm20, %v283, 0
  %v871 = vsel %vm20, %v284, 0
  %v874 = vsel %vm20, %v285, 0
  %v877 = vsel %vm20, %v286, 0
  %v880 = vsel %vm20, %v287, 0
  %v883 = vsel %vm20, %v288, 0
  %v886 = vsel %vm20, %v289, 0
  %v889 = vsel %vm20, %v290, 0
  %v892 = vsel %vm20, %v291, 0
  %v895 = vsel %vm20, %v292, 0
  %v898 = vsel %vm20, %v293, 0
  %v901 = vsel %vm20, %v294, 0
  %v904 = vsel %vm20, %v295, 0
  %v907 = vsel %vm20, %v296, 0
  %v910 = vsel %vm20, %v297, 0
  %v913 = vsel %vm20, %v298, 0
  %v916 = vsel %vm20, %v299, 0
  %v919 = vsel %vm20, %v300, 0
  %v922 = vsel %vm20, %v301, 0
  %v925 = vsel %vm20, %v302, 0
  %v928 = vsel %vm20, %v303, 0
  %v931 = vsel %vm20, %v304, 0
  %v934 = vsel %vm20, %v305, 0
  %v937 = vsel %vm20, %v306, 0
  %v940 = vsel %vm20, %v307, 0
  %v943 = vsel %vm20, %v308, 0
  %v946 = vsel %vm20, %v309, 0
  %v949 = vsel %vm20, %v310, 0
  %v952 = vsel %vm20, %v311, 0
  %v955 = vsel %vm20, %v312, 0
  %v958 = vsel %vm20, %v313, 0
  %v961 = vsel %vm20, %v314, 0
  %v964 = vsel %vm20, %v315, 0
  %v967 = vsel %vm20, %v316, 0
  %v970 = vsel %vm20, %v317, 0
  %v973 = vsel %vm20, %v318, 0
  %v976 = vsel %vm20, %v319, 0
  %v979 = vsel %vm20, %v320, 0
  %v982 = vsel %vm20, %v321, 0
  %v985 = vsel %vm20, %v322, 0
  %v988 = vsel %vm582, %v323, 0
  %990 = vmatpush.msra.mxu0 0.0
  %991 = vmatpush.msra.mxu0 0.0
  %992 = vmatpush.msra.mxu0 0.0
  %993 = vmatpush.msra.mxu0 0.0
  %994 = vmatpush.msra.mxu0 0.0
  %995 = vmatpush.msra.mxu0 0.0
  %996 = vmatpush.msra.mxu0 0.0
  %997 = vmatpush.msra.mxu0 0.0
  %998 = vmatpush.msra.mxu0 0.0
  %999 = vmatpush.msra.mxu0 0.0
  %1000 = vmatpush.msra.mxu0 0.0
  %1001 = vmatpush.msra.mxu0 0.0
  %1002 = vmatpush.msra.mxu0 0.0
  %1003 = vmatpush.msra.mxu0 0.0
  %1004 = vmatpush.msra.mxu0 0.0
  %1005 = vmatpush.msra.mxu0 %v988
  %1006 = vmatmul.f32.gmra.mxu0 %v796
  %v1007 = vpop.f32.mrf.mxu0
  %v1008 = vadd.f32 %v604, %v1007
  %1009 = vmatmul.f32.gmra.mxu0 %v799
  %v1010 = vpop.f32.mrf.mxu0
  %v1011 = vadd.f32 %v607, %v1010
  %1012 = vmatmul.f32.gmra.mxu0 %v802
  %v1013 = vpop.f32.mrf.mxu0
  %v1014 = vadd.f32 %v610, %v1013
  %1015 = vmatmul.f32.gmra.mxu0 %v805
  %v1016 = vpop.f32.mrf.mxu0
  %v1017 = vadd.f32 %v613, %v1016
  %1018 = vmatmul.f32.gmra.mxu0 %v808
  %v1019 = vpop.f32.mrf.mxu0
  %v1020 = vadd.f32 %v616, %v1019
  %1021 = vmatmul.f32.gmra.mxu0 %v811
  %v1022 = vpop.f32.mrf.mxu0
  %v1023 = vadd.f32 %v619, %v1022
  %1024 = vmatmul.f32.gmra.mxu0 %v814
  %v1025 = vpop.f32.mrf.mxu0
  %v1026 = vadd.f32 %v622, %v1025
  %1027 = vmatmul.f32.gmra.mxu0 %v817
  %v1028 = vpop.f32.mrf.mxu0
  %v1029 = vadd.f32 %v625, %v1028
  %1030 = vmatmul.f32.gmra.mxu0 %v820
  %v1031 = vpop.f32.mrf.mxu0
  %v1032 = vadd.f32 %v628, %v1031
  %1033 = vmatmul.f32.gmra.mxu0 %v823
  %v1034 = vpop.f32.mrf.mxu0
  %v1035 = vadd.f32 %v631, %v1034
  %1036 = vmatmul.f32.gmra.mxu0 %v826
  %v1037 = vpop.f32.mrf.mxu0
  %v1038 = vadd.f32 %v634, %v1037
  %1039 = vmatmul.f32.gmra.mxu0 %v829
  %v1040 = vpop.f32.mrf.mxu0
  %v1041 = vadd.f32 %v637, %v1040
  %1042 = vmatmul.f32.gmra.mxu0 %v832
  %v1043 = vpop.f32.mrf.mxu0
  %v1044 = vadd.f32 %v640, %v1043
  %1045 = vmatmul.f32.gmra.mxu0 %v835
  %v1046 = vpop.f32.mrf.mxu0
  %v1047 = vadd.f32 %v643, %v1046
  %1048 = vmatmul.f32.gmra.mxu0 %v838
  %v1049 = vpop.f32.mrf.mxu0
  %v1050 = vadd.f32 %v646, %v1049
  %1051 = vmatmul.f32.gmra.mxu0 %v841
  %v1052 = vpop.f32.mrf.mxu0
  %v1053 = vadd.f32 %v649, %v1052
  %1054 = vmatmul.f32.gmra.mxu0 %v844
  %v1055 = vpop.f32.mrf.mxu0
  %v1056 = vadd.f32 %v652, %v1055
  %1057 = vmatmul.f32.gmra.mxu0 %v847
  %v1058 = vpop.f32.mrf.mxu0
  %v1059 = vadd.f32 %v655, %v1058
  %1060 = vmatmul.f32.gmra.mxu0 %v850
  %v1061 = vpop.f32.mrf.mxu0
  %v1062 = vadd.f32 %v658, %v1061
  %1063 = vmatmul.f32.gmra.mxu0 %v853
  %v1064 = vpop.f32.mrf.mxu0
  %v1065 = vadd.f32 %v661, %v1064
  %1066 = vmatmul.f32.gmra.mxu0 %v856
  %v1067 = vpop.f32.mrf.mxu0
  %v1068 = vadd.f32 %v664, %v1067
  %1069 = vmatmul.f32.gmra.mxu0 %v859
  %v1070 = vpop.f32.mrf.mxu0
  %v1071 = vadd.f32 %v667, %v1070
  %1072 = vmatmul.f32.gmra.mxu0 %v862
  %v1073 = vpop.f32.mrf.mxu0
  %v1074 = vadd.f32 %v670, %v1073
  %1075 = vmatmul.f32.gmra.mxu0 %v865
  %v1076 = vpop.f32.mrf.mxu0
  %v1077 = vadd.f32 %v673, %v1076
  %1078 = vmatmul.f32.gmra.mxu0 %v868
  %v1079 = vpop.f32.mrf.mxu0
  %v1080 = vadd.f32 %v676, %v1079
  %1081 = vmatmul.f32.gmra.mxu0 %v871
  %v1082 = vpop.f32.mrf.mxu0
  %v1083 = vadd.f32 %v679, %v1082
  %1084 = vmatmul.f32.gmra.mxu0 %v874
  %v1085 = vpop.f32.mrf.mxu0
  %v1086 = vadd.f32 %v682, %v1085
  %1087 = vmatmul.f32.gmra.mxu0 %v877
  %v1088 = vpop.f32.mrf.mxu0
  %v1089 = vadd.f32 %v685, %v1088
  %1090 = vmatmul.f32.gmra.mxu0 %v880
  %v1091 = vpop.f32.mrf.mxu0
  %v1092 = vadd.f32 %v688, %v1091
  %1093 = vmatmul.f32.gmra.mxu0 %v883
  %v1094 = vpop.f32.mrf.mxu0
  %v1095 = vadd.f32 %v691, %v1094
  %1096 = vmatmul.f32.gmra.mxu0 %v886
  %v1097 = vpop.f32.mrf.mxu0
  %v1098 = vadd.f32 %v694, %v1097
  %1099 = vmatmul.f32.gmra.mxu0 %v889
  %v1100 = vpop.f32.mrf.mxu0
  %v1101 = vadd.f32 %v697, %v1100
  %1102 = vmatmul.f32.gmra.mxu0 %v892
  %v1103 = vpop.f32.mrf.mxu0
  %v1104 = vadd.f32 %v700, %v1103
  %1105 = vmatmul.f32.gmra.mxu0 %v895
  %v1106 = vpop.f32.mrf.mxu0
  %v1107 = vadd.f32 %v703, %v1106
  %1108 = vmatmul.f32.gmra.mxu0 %v898
  %v1109 = vpop.f32.mrf.mxu0
  %v1110 = vadd.f32 %v706, %v1109
  %1111 = vmatmul.f32.gmra.mxu0 %v901
  %v1112 = vpop.f32.mrf.mxu0
  %v1113 = vadd.f32 %v709, %v1112
  %1114 = vmatmul.f32.gmra.mxu0 %v904
  %v1115 = vpop.f32.mrf.mxu0
  %v1116 = vadd.f32 %v712, %v1115
  %1117 = vmatmul.f32.gmra.mxu0 %v907
  %v1118 = vpop.f32.mrf.mxu0
  %v1119 = vadd.f32 %v715, %v1118
  %1120 = vmatmul.f32.gmra.mxu0 %v910
  %v1121 = vpop.f32.mrf.mxu0
  %v1122 = vadd.f32 %v718, %v1121
  %1123 = vmatmul.f32.gmra.mxu0 %v913
  %v1124 = vpop.f32.mrf.mxu0
  %v1125 = vadd.f32 %v721, %v1124
  %1126 = vmatmul.f32.gmra.mxu0 %v916
  %v1127 = vpop.f32.mrf.mxu0
  %v1128 = vadd.f32 %v724, %v1127
  %1129 = vmatmul.f32.gmra.mxu0 %v919
  %v1130 = vpop.f32.mrf.mxu0
  %v1131 = vadd.f32 %v727, %v1130
  %1132 = vmatmul.f32.gmra.mxu0 %v922
  %v1133 = vpop.f32.mrf.mxu0
  %v1134 = vadd.f32 %v730, %v1133
  %1135 = vmatmul.f32.gmra.mxu0 %v925
  %v1136 = vpop.f32.mrf.mxu0
  %v1137 = vadd.f32 %v733, %v1136
  %1138 = vmatmul.f32.gmra.mxu0 %v928
  %v1139 = vpop.f32.mrf.mxu0
  %v1140 = vadd.f32 %v736, %v1139
  %1141 = vmatmul.f32.gmra.mxu0 %v931
  %v1142 = vpop.f32.mrf.mxu0
  %v1143 = vadd.f32 %v739, %v1142
  %1144 = vmatmul.f32.gmra.mxu0 %v934
  %v1145 = vpop.f32.mrf.mxu0
  %v1146 = vadd.f32 %v742, %v1145
  %1147 = vmatmul.f32.gmra.mxu0 %v937
  %v1148 = vpop.f32.mrf.mxu0
  %v1149 = vadd.f32 %v745, %v1148
  %1150 = vmatmul.f32.gmra.mxu0 %v940
  %v1151 = vpop.f32.mrf.mxu0
  %v1152 = vadd.f32 %v748, %v1151
  %1153 = vmatmul.f32.gmra.mxu0 %v943
  %v1154 = vpop.f32.mrf.mxu0
  %v1155 = vadd.f32 %v751, %v1154
  %1156 = vmatmul.f32.gmra.mxu0 %v946
  %v1157 = vpop.f32.mrf.mxu0
  %v1158 = vadd.f32 %v754, %v1157
  %1159 = vmatmul.f32.gmra.mxu0 %v949
  %v1160 = vpop.f32.mrf.mxu0
  %v1161 = vadd.f32 %v757, %v1160
  %1162 = vmatmul.f32.gmra.mxu0 %v952
  %v1163 = vpop.f32.mrf.mxu0
  %v1164 = vadd.f32 %v760, %v1163
  %1165 = vmatmul.f32.gmra.mxu0 %v955
  %v1166 = vpop.f32.mrf.mxu0
  %v1167 = vadd.f32 %v763, %v1166
  %1168 = vmatmul.f32.gmra.mxu0 %v958
  %v1169 = vpop.f32.mrf.mxu0
  %v1170 = vadd.f32 %v766, %v1169
  %1171 = vmatmul.f32.gmra.mxu0 %v961
  %v1172 = vpop.f32.mrf.mxu0
  %v1173 = vadd.f32 %v769, %v1172
  %1174 = vmatmul.f32.gmra.mxu0 %v964
  %v1175 = vpop.f32.mrf.mxu0
  %v1176 = vadd.f32 %v772, %v1175
  %1177 = vmatmul.f32.gmra.mxu0 %v967
  %v1178 = vpop.f32.mrf.mxu0
  %v1179 = vadd.f32 %v775, %v1178
  %1180 = vmatmul.f32.gmra.mxu0 %v970
  %v1181 = vpop.f32.mrf.mxu0
  %v1182 = vadd.f32 %v778, %v1181
  %1183 = vmatmul.f32.gmra.mxu0 %v973
  %v1184 = vpop.f32.mrf.mxu0
  %v1185 = vadd.f32 %v781, %v1184
  %1186 = vmatmul.f32.gmra.mxu0 %v976
  %v1187 = vpop.f32.mrf.mxu0
  %v1188 = vadd.f32 %v784, %v1187
  %1189 = vmatmul.f32.gmra.mxu0 %v979
  %v1190 = vpop.f32.mrf.mxu0
  %v1191 = vadd.f32 %v787, %v1190
  %1192 = vmatmul.f32.gmra.mxu0 %v982
  %v1193 = vpop.f32.mrf.mxu0
  %v1194 = vadd.f32 %v790, %v1193
  %1195 = vmatmul.f32.gmra.mxu0 %v985
  %v1196 = vpop.f32.mrf.mxu0
  %v1197 = vadd.f32 %v793, %v1196
  %1198 = vdwg.mxu0
  %v1199 = vld [vmem:[#allocation2 + $0x2] sm:$0xff]
  %v1200 = vld [vmem:[#allocation2 + $0xa] sm:$0xff]
  %v1201 = vld [vmem:[#allocation2 + $0x1a] sm:$0xff]
  %v1202 = vld [vmem:[#allocation2 + $0x22] sm:$0xff]
  %v1203 = vld [vmem:[#allocation2 + $0x32] sm:$0xff]
  %v1204 = vld [vmem:[#allocation2 + $0x3a] sm:$0xff]
  %v1205 = vld [vmem:[#allocation2 + $0x4a] sm:$0xff]
  %v1206 = vld [vmem:[#allocation2 + $0x52] sm:$0xff]
  %v1207 = vld [vmem:[#allocation2 + $0x62] sm:$0xff]
  %v1208 = vld [vmem:[#allocation2 + $0x6a] sm:$0xff]
  %v1209 = vld [vmem:[#allocation2 + $0x7a] sm:$0xff]
  %v1210 = vld [vmem:[#allocation2 + $0x82] sm:$0xff]
  %v1211 = vld [vmem:[#allocation2 + $0x92] sm:$0xff]
  %v1212 = vld [vmem:[#allocation2 + $0x9a] sm:$0xff]
  %v1213 = vld [vmem:[#allocation2 + $0xaa] sm:$0xff]
  %v1214 = vld [vmem:[#allocation2 + $0xb2] sm:$0xff]
  %v1215 = vld [vmem:[#allocation2 + $0xc2] sm:$0xff]
  %v1216 = vld [vmem:[#allocation2 + $0xca] sm:$0xff]
  %v1217 = vld [vmem:[#allocation2 + $0xda] sm:$0xff]
  %v1218 = vld [vmem:[#allocation2 + $0xe2] sm:$0xff]
  %v1219 = vld [vmem:[#allocation2 + $0xf2] sm:$0xff]
  %v1220 = vld [vmem:[#allocation2 + $0xfa] sm:$0xff]
  %v1221 = vld [vmem:[#allocation2 + $0x10a] sm:$0xff]
  %v1222 = vld [vmem:[#allocation2 + $0x112] sm:$0xff]
  %v1223 = vld [vmem:[#allocation2 + $0x122] sm:$0xff]
  %v1224 = vld [vmem:[#allocation2 + $0x12a] sm:$0xff]
  %v1225 = vld [vmem:[#allocation2 + $0x13a] sm:$0xff]
  %v1226 = vld [vmem:[#allocation2 + $0x142] sm:$0xff]
  %v1227 = vld [vmem:[#allocation2 + $0x152] sm:$0xff]
  %v1228 = vld [vmem:[#allocation2 + $0x15a] sm:$0xff]
  %v1229 = vld [vmem:[#allocation2 + $0x16a] sm:$0xff]
  %v1230 = vld [vmem:[#allocation2 + $0x172] sm:$0xff]
  %v1231 = vld [vmem:[#allocation2 + $0x1b2] sm:$0xff]
  %v1232 = vld [vmem:[#allocation2 + $0x1ba] sm:$0xff]
  %v1233 = vld [vmem:[#allocation2 + $0x1ca] sm:$0xff]
  %v1234 = vld [vmem:[#allocation2 + $0x1d2] sm:$0xff]
  %v1235 = vld [vmem:[#allocation2 + $0x1e2] sm:$0xff]
  %v1236 = vld [vmem:[#allocation2 + $0x1ea] sm:$0xff]
  %v1237 = vld [vmem:[#allocation2 + $0x1fa] sm:$0xff]
  %v1238 = vld [vmem:[#allocation2 + $0x202] sm:$0xff]
  %v1239 = vld [vmem:[#allocation2 + $0x212] sm:$0xff]
  %v1240 = vld [vmem:[#allocation2 + $0x21a] sm:$0xff]
  %v1241 = vld [vmem:[#allocation2 + $0x22a] sm:$0xff]
  %v1242 = vld [vmem:[#allocation2 + $0x232] sm:$0xff]
  %v1243 = vld [vmem:[#allocation2 + $0x242] sm:$0xff]
  %v1244 = vld [vmem:[#allocation2 + $0x24a] sm:$0xff]
  %v1245 = vld [vmem:[#allocation2 + $0x25a] sm:$0xff]
  %v1246 = vld [vmem:[#allocation2 + $0x262] sm:$0xff]
  %v1247 = vld [vmem:[#allocation2 + $0x272] sm:$0xff]
  %v1248 = vld [vmem:[#allocation2 + $0x27a] sm:$0xff]
  %v1249 = vld [vmem:[#allocation2 + $0x28a] sm:$0xff]
  %v1250 = vld [vmem:[#allocation2 + $0x292] sm:$0xff]
  %v1251 = vld [vmem:[#allocation2 + $0x2a2] sm:$0xff]
  %v1252 = vld [vmem:[#allocation2 + $0x2aa] sm:$0xff]
  %v1253 = vld [vmem:[#allocation2 + $0x2ba] sm:$0xff]
  %v1254 = vld [vmem:[#allocation2 + $0x2c2] sm:$0xff]
  %v1255 = vld [vmem:[#allocation2 + $0x2d2] sm:$0xff]
  %v1256 = vld [vmem:[#allocation2 + $0x2da] sm:$0xff]
  %v1257 = vld [vmem:[#allocation2 + $0x2ea] sm:$0xff]
  %v1258 = vld [vmem:[#allocation2 + $0x2f2] sm:$0xff]
  %v1259 = vld [vmem:[#allocation2 + $0x302] sm:$0xff]
  %v1260 = vld [vmem:[#allocation2 + $0x30a] sm:$0xff]
  %v1261 = vld [vmem:[#allocation2 + $0x31a] sm:$0xff]
  %v1262 = vld [vmem:[#allocation2 + $0x322] sm:$0xff]
  %s1263 = scalar_lea.vmem %s1, 8
  %v1264 = vld [vmem:[%s1263] sm:$0xf]
  %v1266 = vsel %vm20, %v1199, 0
  %v1269 = vsel %vm20, %v1200, 0
  %v1272 = vsel %vm20, %v1201, 0
  %v1275 = vsel %vm20, %v1202, 0
  %v1278 = vsel %vm20, %v1203, 0
  %v1281 = vsel %vm20, %v1204, 0
  %v1284 = vsel %vm20, %v1205, 0
  %v1287 = vsel %vm20, %v1206, 0
  %v1290 = vsel %vm20, %v1207, 0
  %v1293 = vsel %vm20, %v1208, 0
  %v1296 = vsel %vm20, %v1209, 0
  %v1299 = vsel %vm20, %v1210, 0
  %v1302 = vsel %vm20, %v1211, 0
  %v1305 = vsel %vm20, %v1212, 0
  %v1308 = vsel %vm20, %v1213, 0
  %v1311 = vsel %vm20, %v1214, 0
  %v1314 = vsel %vm20, %v1215, 0
  %v1317 = vsel %vm20, %v1216, 0
  %v1320 = vsel %vm20, %v1217, 0
  %v1323 = vsel %vm20, %v1218, 0
  %v1326 = vsel %vm20, %v1219, 0
  %v1329 = vsel %vm20, %v1220, 0
  %v1332 = vsel %vm20, %v1221, 0
  %v1335 = vsel %vm20, %v1222, 0
  %v1338 = vsel %vm20, %v1223, 0
  %v1341 = vsel %vm20, %v1224, 0
  %v1344 = vsel %vm20, %v1225, 0
  %v1347 = vsel %vm20, %v1226, 0
  %v1350 = vsel %vm20, %v1227, 0
  %v1353 = vsel %vm20, %v1228, 0
  %v1356 = vsel %vm20, %v1229, 0
  %v1359 = vsel %vm20, %v1230, 0
  %v1362 = vsel %vm20, %v1231, 0
  %v1365 = vsel %vm20, %v1232, 0
  %v1368 = vsel %vm20, %v1233, 0
  %v1371 = vsel %vm20, %v1234, 0
  %v1374 = vsel %vm20, %v1235, 0
  %v1377 = vsel %vm20, %v1236, 0
  %v1380 = vsel %vm20, %v1237, 0
  %v1383 = vsel %vm20, %v1238, 0
  %v1386 = vsel %vm20, %v1239, 0
  %v1389 = vsel %vm20, %v1240, 0
  %v1392 = vsel %vm20, %v1241, 0
  %v1395 = vsel %vm20, %v1242, 0
  %v1398 = vsel %vm20, %v1243, 0
  %v1401 = vsel %vm20, %v1244, 0
  %v1404 = vsel %vm20, %v1245, 0
  %v1407 = vsel %vm20, %v1246, 0
  %v1410 = vsel %vm20, %v1247, 0
  %v1413 = vsel %vm20, %v1248, 0
  %v1416 = vsel %vm20, %v1249, 0
  %v1419 = vsel %vm20, %v1250, 0
  %v1422 = vsel %vm20, %v1251, 0
  %v1425 = vsel %vm20, %v1252, 0
  %v1428 = vsel %vm20, %v1253, 0
  %v1431 = vsel %vm20, %v1254, 0
  %v1434 = vsel %vm20, %v1255, 0
  %v1437 = vsel %vm20, %v1256, 0
  %v1440 = vsel %vm20, %v1257, 0
  %v1443 = vsel %vm20, %v1258, 0
  %v1446 = vsel %vm20, %v1259, 0
  %v1449 = vsel %vm20, %v1260, 0
  %v1452 = vsel %vm20, %v1261, 0
  %v1455 = vsel %vm20, %v1262, 0
  %v1458 = vsel %vm582, %v1264, 0
  %1460 = vmatpush.msra.mxu0 0.0
  %1461 = vmatpush.msra.mxu0 0.0
  %1462 = vmatpush.msra.mxu0 0.0
  %1463 = vmatpush.msra.mxu0 0.0
  %1464 = vmatpush.msra.mxu0 0.0
  %1465 = vmatpush.msra.mxu0 0.0
  %1466 = vmatpush.msra.mxu0 0.0
  %1467 = vmatpush.msra.mxu0 0.0
  %1468 = vmatpush.msra.mxu0 0.0
  %1469 = vmatpush.msra.mxu0 0.0
  %1470 = vmatpush.msra.mxu0 0.0
  %1471 = vmatpush.msra.mxu0 0.0
  %1472 = vmatpush.msra.mxu0 0.0
  %1473 = vmatpush.msra.mxu0 0.0
  %1474 = vmatpush.msra.mxu0 0.0
  %1475 = vmatpush.msra.mxu0 %v1458
  %1476 = vmatmul.f32.gmra.mxu0 %v1266
  %v1477 = vpop.f32.mrf.mxu0
  %v1478 = vadd.f32 0.0, %v1477
  %1479 = vmatmul.f32.gmra.mxu0 %v1269
  %v1480 = vpop.f32.mrf.mxu0
  %v1481 = vadd.f32 0.0, %v1480
  %1482 = vmatmul.f32.gmra.mxu0 %v1272
  %v1483 = vpop.f32.mrf.mxu0
  %v1484 = vadd.f32 0.0, %v1483
  %1485 = vmatmul.f32.gmra.mxu0 %v1275
  %v1486 = vpop.f32.mrf.mxu0
  %v1487 = vadd.f32 0.0, %v1486
  %1488 = vmatmul.f32.gmra.mxu0 %v1278
  %v1489 = vpop.f32.mrf.mxu0
  %v1490 = vadd.f32 0.0, %v1489
  %1491 = vmatmul.f32.gmra.mxu0 %v1281
  %v1492 = vpop.f32.mrf.mxu0
  %v1493 = vadd.f32 0.0, %v1492
  %1494 = vmatmul.f32.gmra.mxu0 %v1284
  %v1495 = vpop.f32.mrf.mxu0
  %v1496 = vadd.f32 0.0, %v1495
  %1497 = vmatmul.f32.gmra.mxu0 %v1287
  %v1498 = vpop.f32.mrf.mxu0
  %v1499 = vadd.f32 0.0, %v1498
  %1500 = vmatmul.f32.gmra.mxu0 %v1290
  %v1501 = vpop.f32.mrf.mxu0
  %v1502 = vadd.f32 0.0, %v1501
  %1503 = vmatmul.f32.gmra.mxu0 %v1293
  %v1504 = vpop.f32.mrf.mxu0
  %v1505 = vadd.f32 0.0, %v1504
  %1506 = vmatmul.f32.gmra.mxu0 %v1296
  %v1507 = vpop.f32.mrf.mxu0
  %v1508 = vadd.f32 0.0, %v1507
  %1509 = vmatmul.f32.gmra.mxu0 %v1299
  %v1510 = vpop.f32.mrf.mxu0
  %v1511 = vadd.f32 0.0, %v1510
  %1512 = vmatmul.f32.gmra.mxu0 %v1302
  %v1513 = vpop.f32.mrf.mxu0
  %v1514 = vadd.f32 0.0, %v1513
  %1515 = vmatmul.f32.gmra.mxu0 %v1305
  %v1516 = vpop.f32.mrf.mxu0
  %v1517 = vadd.f32 0.0, %v1516
  %1518 = vmatmul.f32.gmra.mxu0 %v1308
  %v1519 = vpop.f32.mrf.mxu0
  %v1520 = vadd.f32 0.0, %v1519
  %1521 = vmatmul.f32.gmra.mxu0 %v1311
  %v1522 = vpop.f32.mrf.mxu0
  %v1523 = vadd.f32 0.0, %v1522
  %1524 = vmatmul.f32.gmra.mxu0 %v1314
  %v1525 = vpop.f32.mrf.mxu0
  %v1526 = vadd.f32 0.0, %v1525
  %1527 = vmatmul.f32.gmra.mxu0 %v1317
  %v1528 = vpop.f32.mrf.mxu0
  %v1529 = vadd.f32 0.0, %v1528
  %1530 = vmatmul.f32.gmra.mxu0 %v1320
  %v1531 = vpop.f32.mrf.mxu0
  %v1532 = vadd.f32 0.0, %v1531
  %1533 = vmatmul.f32.gmra.mxu0 %v1323
  %v1534 = vpop.f32.mrf.mxu0
  %v1535 = vadd.f32 0.0, %v1534
  %1536 = vmatmul.f32.gmra.mxu0 %v1326
  %v1537 = vpop.f32.mrf.mxu0
  %v1538 = vadd.f32 0.0, %v1537
  %1539 = vmatmul.f32.gmra.mxu0 %v1329
  %v1540 = vpop.f32.mrf.mxu0
  %v1541 = vadd.f32 0.0, %v1540
  %1542 = vmatmul.f32.gmra.mxu0 %v1332
  %v1543 = vpop.f32.mrf.mxu0
  %v1544 = vadd.f32 0.0, %v1543
  %1545 = vmatmul.f32.gmra.mxu0 %v1335
  %v1546 = vpop.f32.mrf.mxu0
  %v1547 = vadd.f32 0.0, %v1546
  %1548 = vmatmul.f32.gmra.mxu0 %v1338
  %v1549 = vpop.f32.mrf.mxu0
  %v1550 = vadd.f32 0.0, %v1549
  %1551 = vmatmul.f32.gmra.mxu0 %v1341
  %v1552 = vpop.f32.mrf.mxu0
  %v1553 = vadd.f32 0.0, %v1552
  %1554 = vmatmul.f32.gmra.mxu0 %v1344
  %v1555 = vpop.f32.mrf.mxu0
  %v1556 = vadd.f32 0.0, %v1555
  %1557 = vmatmul.f32.gmra.mxu0 %v1347
  %v1558 = vpop.f32.mrf.mxu0
  %v1559 = vadd.f32 0.0, %v1558
  %1560 = vmatmul.f32.gmra.mxu0 %v1350
  %v1561 = vpop.f32.mrf.mxu0
  %v1562 = vadd.f32 0.0, %v1561
  %1563 = vmatmul.f32.gmra.mxu0 %v1353
  %v1564 = vpop.f32.mrf.mxu0
  %v1565 = vadd.f32 0.0, %v1564
  %1566 = vmatmul.f32.gmra.mxu0 %v1356
  %v1567 = vpop.f32.mrf.mxu0
  %v1568 = vadd.f32 0.0, %v1567
  %1569 = vmatmul.f32.gmra.mxu0 %v1359
  %v1570 = vpop.f32.mrf.mxu0
  %v1571 = vadd.f32 0.0, %v1570
  %1572 = vmatmul.f32.gmra.mxu0 %v1362
  %v1573 = vpop.f32.mrf.mxu0
  %v1574 = vadd.f32 0.0, %v1573
  %1575 = vmatmul.f32.gmra.mxu0 %v1365
  %v1576 = vpop.f32.mrf.mxu0
  %v1577 = vadd.f32 0.0, %v1576
  %1578 = vmatmul.f32.gmra.mxu0 %v1368
  %v1579 = vpop.f32.mrf.mxu0
  %v1580 = vadd.f32 0.0, %v1579
  %1581 = vmatmul.f32.gmra.mxu0 %v1371
  %v1582 = vpop.f32.mrf.mxu0
  %v1583 = vadd.f32 0.0, %v1582
  %1584 = vmatmul.f32.gmra.mxu0 %v1374
  %v1585 = vpop.f32.mrf.mxu0
  %v1586 = vadd.f32 0.0, %v1585
  %1587 = vmatmul.f32.gmra.mxu0 %v1377
  %v1588 = vpop.f32.mrf.mxu0
  %v1589 = vadd.f32 0.0, %v1588
  %1590 = vmatmul.f32.gmra.mxu0 %v1380
  %v1591 = vpop.f32.mrf.mxu0
  %v1592 = vadd.f32 0.0, %v1591
  %1593 = vmatmul.f32.gmra.mxu0 %v1383
  %v1594 = vpop.f32.mrf.mxu0
  %v1595 = vadd.f32 0.0, %v1594
  %1596 = vmatmul.f32.gmra.mxu0 %v1386
  %v1597 = vpop.f32.mrf.mxu0
  %v1598 = vadd.f32 0.0, %v1597
  %1599 = vmatmul.f32.gmra.mxu0 %v1389
  %v1600 = vpop.f32.mrf.mxu0
  %v1601 = vadd.f32 0.0, %v1600
  %1602 = vmatmul.f32.gmra.mxu0 %v1392
  %v1603 = vpop.f32.mrf.mxu0
  %v1604 = vadd.f32 0.0, %v1603
  %1605 = vmatmul.f32.gmra.mxu0 %v1395
  %v1606 = vpop.f32.mrf.mxu0
  %v1607 = vadd.f32 0.0, %v1606
  %1608 = vmatmul.f32.gmra.mxu0 %v1398
  %v1609 = vpop.f32.mrf.mxu0
  %v1610 = vadd.f32 0.0, %v1609
  %1611 = vmatmul.f32.gmra.mxu0 %v1401
  %v1612 = vpop.f32.mrf.mxu0
  %v1613 = vadd.f32 0.0, %v1612
  %1614 = vmatmul.f32.gmra.mxu0 %v1404
  %v1615 = vpop.f32.mrf.mxu0
  %v1616 = vadd.f32 0.0, %v1615
  %1617 = vmatmul.f32.gmra.mxu0 %v1407
  %v1618 = vpop.f32.mrf.mxu0
  %v1619 = vadd.f32 0.0, %v1618
  %1620 = vmatmul.f32.gmra.mxu0 %v1410
  %v1621 = vpop.f32.mrf.mxu0
  %v1622 = vadd.f32 0.0, %v1621
  %1623 = vmatmul.f32.gmra.mxu0 %v1413
  %v1624 = vpop.f32.mrf.mxu0
  %v1625 = vadd.f32 0.0, %v1624
  %1626 = vmatmul.f32.gmra.mxu0 %v1416
  %v1627 = vpop.f32.mrf.mxu0
  %v1628 = vadd.f32 0.0, %v1627
  %1629 = vmatmul.f32.gmra.mxu0 %v1419
  %v1630 = vpop.f32.mrf.mxu0
  %v1631 = vadd.f32 0.0, %v1630
  %1632 = vmatmul.f32.gmra.mxu0 %v1422
  %v1633 = vpop.f32.mrf.mxu0
  %v1634 = vadd.f32 0.0, %v1633
  %1635 = vmatmul.f32.gmra.mxu0 %v1425
  %v1636 = vpop.f32.mrf.mxu0
  %v1637 = vadd.f32 0.0, %v1636
  %1638 = vmatmul.f32.gmra.mxu0 %v1428
  %v1639 = vpop.f32.mrf.mxu0
  %v1640 = vadd.f32 0.0, %v1639
  %1641 = vmatmul.f32.gmra.mxu0 %v1431
  %v1642 = vpop.f32.mrf.mxu0
  %v1643 = vadd.f32 0.0, %v1642
  %1644 = vmatmul.f32.gmra.mxu0 %v1434
  %v1645 = vpop.f32.mrf.mxu0
  %v1646 = vadd.f32 0.0, %v1645
  %1647 = vmatmul.f32.gmra.mxu0 %v1437
  %v1648 = vpop.f32.mrf.mxu0
  %v1649 = vadd.f32 0.0, %v1648
  %1650 = vmatmul.f32.gmra.mxu0 %v1440
  %v1651 = vpop.f32.mrf.mxu0
  %v1652 = vadd.f32 0.0, %v1651
  %1653 = vmatmul.f32.gmra.mxu0 %v1443
  %v1654 = vpop.f32.mrf.mxu0
  %v1655 = vadd.f32 0.0, %v1654
  %1656 = vmatmul.f32.gmra.mxu0 %v1446
  %v1657 = vpop.f32.mrf.mxu0
  %v1658 = vadd.f32 0.0, %v1657
  %1659 = vmatmul.f32.gmra.mxu0 %v1449
  %v1660 = vpop.f32.mrf.mxu0
  %v1661 = vadd.f32 0.0, %v1660
  %1662 = vmatmul.f32.gmra.mxu0 %v1452
  %v1663 = vpop.f32.mrf.mxu0
  %v1664 = vadd.f32 0.0, %v1663
  %1665 = vmatmul.f32.gmra.mxu0 %v1455
  %v1666 = vpop.f32.mrf.mxu0
  %v1667 = vadd.f32 0.0, %v1666
  %1668 = vdwg.mxu0
  %v1669 = vadd.f32 %v1008, %v1478
  %v1670 = vadd.f32 %v1011, %v1481
  %v1671 = vadd.f32 %v1014, %v1484
  %v1672 = vadd.f32 %v1017, %v1487
  %v1673 = vadd.f32 %v1020, %v1490
  %v1674 = vadd.f32 %v1023, %v1493
  %v1675 = vadd.f32 %v1026, %v1496
  %v1676 = vadd.f32 %v1029, %v1499
  %v1677 = vadd.f32 %v1032, %v1502
  %v1678 = vadd.f32 %v1035, %v1505
  %v1679 = vadd.f32 %v1038, %v1508
  %v1680 = vadd.f32 %v1041, %v1511
  %v1681 = vadd.f32 %v1044, %v1514
  %v1682 = vadd.f32 %v1047, %v1517
  %v1683 = vadd.f32 %v1050, %v1520
  %v1684 = vadd.f32 %v1053, %v1523
  %v1685 = vadd.f32 %v1056, %v1526
  %v1686 = vadd.f32 %v1059, %v1529
  %v1687 = vadd.f32 %v1062, %v1532
  %v1688 = vadd.f32 %v1065, %v1535
  %v1689 = vadd.f32 %v1068, %v1538
  %v1690 = vadd.f32 %v1071, %v1541
  %v1691 = vadd.f32 %v1074, %v1544
  %v1692 = vadd.f32 %v1077, %v1547
  %v1693 = vadd.f32 %v1080, %v1550
  %v1694 = vadd.f32 %v1083, %v1553
  %v1695 = vadd.f32 %v1086, %v1556
  %v1696 = vadd.f32 %v1089, %v1559
  %v1697 = vadd.f32 %v1092, %v1562
  %v1698 = vadd.f32 %v1095, %v1565
  %v1699 = vadd.f32 %v1098, %v1568
  %v1700 = vadd.f32 %v1101, %v1571
  %v1701 = vadd.f32 %v1104, %v1574
  %v1702 = vadd.f32 %v1107, %v1577
  %v1703 = vadd.f32 %v1110, %v1580
  %v1704 = vadd.f32 %v1113, %v1583
  %v1705 = vadd.f32 %v1116, %v1586
  %v1706 = vadd.f32 %v1119, %v1589
  %v1707 = vadd.f32 %v1122, %v1592
  %v1708 = vadd.f32 %v1125, %v1595
  %v1709 = vadd.f32 %v1128, %v1598
  %v1710 = vadd.f32 %v1131, %v1601
  %v1711 = vadd.f32 %v1134, %v1604
  %v1712 = vadd.f32 %v1137, %v1607
  %v1713 = vadd.f32 %v1140, %v1610
  %v1714 = vadd.f32 %v1143, %v1613
  %v1715 = vadd.f32 %v1146, %v1616
  %v1716 = vadd.f32 %v1149, %v1619
  %v1717 = vadd.f32 %v1152, %v1622
  %v1718 = vadd.f32 %v1155, %v1625
  %v1719 = vadd.f32 %v1158, %v1628
  %v1720 = vadd.f32 %v1161, %v1631
  %v1721 = vadd.f32 %v1164, %v1634
  %v1722 = vadd.f32 %v1167, %v1637
  %v1723 = vadd.f32 %v1170, %v1640
  %v1724 = vadd.f32 %v1173, %v1643
  %v1725 = vadd.f32 %v1176, %v1646
  %v1726 = vadd.f32 %v1179, %v1649
  %v1727 = vadd.f32 %v1182, %v1652
  %v1728 = vadd.f32 %v1185, %v1655
  %v1729 = vadd.f32 %v1188, %v1658
  %v1730 = vadd.f32 %v1191, %v1661
  %v1731 = vadd.f32 %v1194, %v1664
  %v1732 = vadd.f32 %v1197, %v1667
  %v1733 = vld [vmem:[%s194] sm:$0xff]
  %v1734 = vld [vmem:[%s194 + $0x8] sm:$0xff]
  %v1735 = vld [vmem:[%s194 + $0x18] sm:$0xff]
  %v1736 = vld [vmem:[%s194 + $0x20] sm:$0xff]
  %v1737 = vld [vmem:[%s194 + $0x30] sm:$0xff]
  %v1738 = vld [vmem:[%s194 + $0x38] sm:$0xff]
  %v1739 = vld [vmem:[%s194 + $0x48] sm:$0xff]
  %v1740 = vld [vmem:[%s194 + $0x50] sm:$0xff]
  %v1741 = vld [vmem:[%s194 + $0x60] sm:$0xff]
  %v1742 = vld [vmem:[%s194 + $0x68] sm:$0xff]
  %v1743 = vld [vmem:[%s194 + $0x78] sm:$0xff]
  %v1744 = vld [vmem:[%s194 + $0x80] sm:$0xff]
  %v1745 = vld [vmem:[%s194 + $0x90] sm:$0xff]
  %v1746 = vld [vmem:[%s194 + $0x98] sm:$0xff]
  %v1747 = vld [vmem:[%s194 + $0xa8] sm:$0xff]
  %v1748 = vld [vmem:[%s194 + $0xb0] sm:$0xff]
  %v1749 = vld [vmem:[%s194 + $0xc0] sm:$0xff]
  %v1750 = vld [vmem:[%s194 + $0xc8] sm:$0xff]
  %v1751 = vld [vmem:[%s194 + $0xd8] sm:$0xff]
  %v1752 = vld [vmem:[%s194 + $0xe0] sm:$0xff]
  %v1753 = vld [vmem:[%s194 + $0xf0] sm:$0xff]
  %v1754 = vld [vmem:[%s194 + $0xf8] sm:$0xff]
  %v1755 = vld [vmem:[%s194 + $0x108] sm:$0xff]
  %v1756 = vld [vmem:[%s194 + $0x110] sm:$0xff]
  %v1757 = vld [vmem:[%s194 + $0x120] sm:$0xff]
  %v1758 = vld [vmem:[%s194 + $0x128] sm:$0xff]
  %v1759 = vld [vmem:[%s194 + $0x138] sm:$0xff]
  %v1760 = vld [vmem:[%s194 + $0x140] sm:$0xff]
  %v1761 = vld [vmem:[%s194 + $0x150] sm:$0xff]
  %v1762 = vld [vmem:[%s194 + $0x158] sm:$0xff]
  %v1763 = vld [vmem:[%s194 + $0x168] sm:$0xff]
  %v1764 = vld [vmem:[%s194 + $0x170] sm:$0xff]
  %v1765 = vld [vmem:[%s194 + $0x1b0] sm:$0xff]
  %v1766 = vld [vmem:[%s194 + $0x1b8] sm:$0xff]
  %v1767 = vld [vmem:[%s194 + $0x1c8] sm:$0xff]
  %v1768 = vld [vmem:[%s194 + $0x1d0] sm:$0xff]
  %v1769 = vld [vmem:[%s194 + $0x1e0] sm:$0xff]
  %v1770 = vld [vmem:[%s194 + $0x1e8] sm:$0xff]
  %v1771 = vld [vmem:[%s194 + $0x1f8] sm:$0xff]
  %v1772 = vld [vmem:[%s194 + $0x200] sm:$0xff]
  %v1773 = vld [vmem:[%s194 + $0x210] sm:$0xff]
  %v1774 = vld [vmem:[%s194 + $0x218] sm:$0xff]
  %v1775 = vld [vmem:[%s194 + $0x228] sm:$0xff]
  %v1776 = vld [vmem:[%s194 + $0x230] sm:$0xff]
  %v1777 = vld [vmem:[%s194 + $0x240] sm:$0xff]
  %v1778 = vld [vmem:[%s194 + $0x248] sm:$0xff]
  %v1779 = vld [vmem:[%s194 + $0x258] sm:$0xff]
  %v1780 = vld [vmem:[%s194 + $0x260] sm:$0xff]
  %v1781 = vld [vmem:[%s194 + $0x270] sm:$0xff]
  %v1782 = vld [vmem:[%s194 + $0x278] sm:$0xff]
  %v1783 = vld [vmem:[%s194 + $0x288] sm:$0xff]
  %v1784 = vld [vmem:[%s194 + $0x290] sm:$0xff]
  %v1785 = vld [vmem:[%s194 + $0x2a0] sm:$0xff]
  %v1786 = vld [vmem:[%s194 + $0x2a8] sm:$0xff]
  %v1787 = vld [vmem:[%s194 + $0x2b8] sm:$0xff]
  %v1788 = vld [vmem:[%s194 + $0x2c0] sm:$0xff]
  %v1789 = vld [vmem:[%s194 + $0x2d0] sm:$0xff]
  %v1790 = vld [vmem:[%s194 + $0x2d8] sm:$0xff]
  %v1791 = vld [vmem:[%s194 + $0x2e8] sm:$0xff]
  %v1792 = vld [vmem:[%s194 + $0x2f0] sm:$0xff]
  %v1793 = vld [vmem:[%s194 + $0x300] sm:$0xff]
  %v1794 = vld [vmem:[%s194 + $0x308] sm:$0xff]
  %v1795 = vld [vmem:[%s194 + $0x318] sm:$0xff]
  %v1796 = vld [vmem:[%s194 + $0x320] sm:$0xff]
  %s1797 = scalar_lea.vmem %s1, 12
  %v1798 = vld [vmem:[%s1797] sm:$0xf]
  %v1800 = vsel %vm20, %v1733, 0
  %v1803 = vsel %vm20, %v1734, 0
  %v1806 = vsel %vm20, %v1735, 0
  %v1809 = vsel %vm20, %v1736, 0
  %v1812 = vsel %vm20, %v1737, 0
  %v1815 = vsel %vm20, %v1738, 0
  %v1818 = vsel %vm20, %v1739, 0
  %v1821 = vsel %vm20, %v1740, 0
  %v1824 = vsel %vm20, %v1741, 0
  %v1827 = vsel %vm20, %v1742, 0
  %v1830 = vsel %vm20, %v1743, 0
  %v1833 = vsel %vm20, %v1744, 0
  %v1836 = vsel %vm20, %v1745, 0
  %v1839 = vsel %vm20, %v1746, 0
  %v1842 = vsel %vm20, %v1747, 0
  %v1845 = vsel %vm20, %v1748, 0
  %v1848 = vsel %vm20, %v1749, 0
  %v1851 = vsel %vm20, %v1750, 0
  %v1854 = vsel %vm20, %v1751, 0
  %v1857 = vsel %vm20, %v1752, 0
  %v1860 = vsel %vm20, %v1753, 0
  %v1863 = vsel %vm20, %v1754, 0
  %v1866 = vsel %vm20, %v1755, 0
  %v1869 = vsel %vm20, %v1756, 0
  %v1872 = vsel %vm20, %v1757, 0
  %v1875 = vsel %vm20, %v1758, 0
  %v1878 = vsel %vm20, %v1759, 0
  %v1881 = vsel %vm20, %v1760, 0
  %v1884 = vsel %vm20, %v1761, 0
  %v1887 = vsel %vm20, %v1762, 0
  %v1890 = vsel %vm20, %v1763, 0
  %v1893 = vsel %vm20, %v1764, 0
  %v1896 = vsel %vm20, %v1765, 0
  %v1899 = vsel %vm20, %v1766, 0
  %v1902 = vsel %vm20, %v1767, 0
  %v1905 = vsel %vm20, %v1768, 0
  %v1908 = vsel %vm20, %v1769, 0
  %v1911 = vsel %vm20, %v1770, 0
  %v1914 = vsel %vm20, %v1771, 0
  %v1917 = vsel %vm20, %v1772, 0
  %v1920 = vsel %vm20, %v1773, 0
  %v1923 = vsel %vm20, %v1774, 0
  %v1926 = vsel %vm20, %v1775, 0
  %v1929 = vsel %vm20, %v1776, 0
  %v1932 = vsel %vm20, %v1777, 0
  %v1935 = vsel %vm20, %v1778, 0
  %v1938 = vsel %vm20, %v1779, 0
  %v1941 = vsel %vm20, %v1780, 0
  %v1944 = vsel %vm20, %v1781, 0
  %v1947 = vsel %vm20, %v1782, 0
  %v1950 = vsel %vm20, %v1783, 0
  %v1953 = vsel %vm20, %v1784, 0
  %v1956 = vsel %vm20, %v1785, 0
  %v1959 = vsel %vm20, %v1786, 0
  %v1962 = vsel %vm20, %v1787, 0
  %v1965 = vsel %vm20, %v1788, 0
  %v1968 = vsel %vm20, %v1789, 0
  %v1971 = vsel %vm20, %v1790, 0
  %v1974 = vsel %vm20, %v1791, 0
  %v1977 = vsel %vm20, %v1792, 0
  %v1980 = vsel %vm20, %v1793, 0
  %v1983 = vsel %vm20, %v1794, 0
  %v1986 = vsel %vm20, %v1795, 0
  %v1989 = vsel %vm20, %v1796, 0
  %v1992 = vsel %vm582, %v1798, 0
  %1994 = vmatpush.msra.mxu0 0.0
  %1995 = vmatpush.msra.mxu0 0.0
  %1996 = vmatpush.msra.mxu0 0.0
  %1997 = vmatpush.msra.mxu0 0.0
  %1998 = vmatpush.msra.mxu0 0.0
  %1999 = vmatpush.msra.mxu0 0.0
  %2000 = vmatpush.msra.mxu0 0.0
  %2001 = vmatpush.msra.mxu0 0.0
  %2002 = vmatpush.msra.mxu0 0.0
  %2003 = vmatpush.msra.mxu0 0.0
  %2004 = vmatpush.msra.mxu0 0.0
  %2005 = vmatpush.msra.mxu0 0.0
  %2006 = vmatpush.msra.mxu0 0.0
  %2007 = vmatpush.msra.mxu0 0.0
  %2008 = vmatpush.msra.mxu0 0.0
  %2009 = vmatpush.msra.mxu0 %v1992
  %2010 = vmatmul.f32.gmra.mxu0 %v1800
  %v2011 = vpop.f32.mrf.mxu0
  %v2012 = vadd.f32 0.0, %v2011
  %2013 = vmatmul.f32.gmra.mxu0 %v1803
  %v2014 = vpop.f32.mrf.mxu0
  %v2015 = vadd.f32 0.0, %v2014
  %2016 = vmatmul.f32.gmra.mxu0 %v1806
  %v2017 = vpop.f32.mrf.mxu0
  %v2018 = vadd.f32 0.0, %v2017
  %2019 = vmatmul.f32.gmra.mxu0 %v1809
  %v2020 = vpop.f32.mrf.mxu0
  %v2021 = vadd.f32 0.0, %v2020
  %2022 = vmatmul.f32.gmra.mxu0 %v1812
  %v2023 = vpop.f32.mrf.mxu0
  %v2024 = vadd.f32 0.0, %v2023
  %2025 = vmatmul.f32.gmra.mxu0 %v1815
  %v2026 = vpop.f32.mrf.mxu0
  %v2027 = vadd.f32 0.0, %v2026
  %2028 = vmatmul.f32.gmra.mxu0 %v1818
  %v2029 = vpop.f32.mrf.mxu0
  %v2030 = vadd.f32 0.0, %v2029
  %2031 = vmatmul.f32.gmra.mxu0 %v1821
  %v2032 = vpop.f32.mrf.mxu0
  %v2033 = vadd.f32 0.0, %v2032
  %2034 = vmatmul.f32.gmra.mxu0 %v1824
  %v2035 = vpop.f32.mrf.mxu0
  %v2036 = vadd.f32 0.0, %v2035
  %2037 = vmatmul.f32.gmra.mxu0 %v1827
  %v2038 = vpop.f32.mrf.mxu0
  %v2039 = vadd.f32 0.0, %v2038
  %2040 = vmatmul.f32.gmra.mxu0 %v1830
  %v2041 = vpop.f32.mrf.mxu0
  %v2042 = vadd.f32 0.0, %v2041
  %2043 = vmatmul.f32.gmra.mxu0 %v1833
  %v2044 = vpop.f32.mrf.mxu0
  %v2045 = vadd.f32 0.0, %v2044
  %2046 = vmatmul.f32.gmra.mxu0 %v1836
  %v2047 = vpop.f32.mrf.mxu0
  %v2048 = vadd.f32 0.0, %v2047
  %2049 = vmatmul.f32.gmra.mxu0 %v1839
  %v2050 = vpop.f32.mrf.mxu0
  %v2051 = vadd.f32 0.0, %v2050
  %2052 = vmatmul.f32.gmra.mxu0 %v1842
  %v2053 = vpop.f32.mrf.mxu0
  %v2054 = vadd.f32 0.0, %v2053
  %2055 = vmatmul.f32.gmra.mxu0 %v1845
  %v2056 = vpop.f32.mrf.mxu0
  %v2057 = vadd.f32 0.0, %v2056
  %2058 = vmatmul.f32.gmra.mxu0 %v1848
  %v2059 = vpop.f32.mrf.mxu0
  %v2060 = vadd.f32 0.0, %v2059
  %2061 = vmatmul.f32.gmra.mxu0 %v1851
  %v2062 = vpop.f32.mrf.mxu0
  %v2063 = vadd.f32 0.0, %v2062
  %2064 = vmatmul.f32.gmra.mxu0 %v1854
  %v2065 = vpop.f32.mrf.mxu0
  %v2066 = vadd.f32 0.0, %v2065
  %2067 = vmatmul.f32.gmra.mxu0 %v1857
  %v2068 = vpop.f32.mrf.mxu0
  %v2069 = vadd.f32 0.0, %v2068
  %2070 = vmatmul.f32.gmra.mxu0 %v1860
  %v2071 = vpop.f32.mrf.mxu0
  %v2072 = vadd.f32 0.0, %v2071
  %2073 = vmatmul.f32.gmra.mxu0 %v1863
  %v2074 = vpop.f32.mrf.mxu0
  %v2075 = vadd.f32 0.0, %v2074
  %2076 = vmatmul.f32.gmra.mxu0 %v1866
  %v2077 = vpop.f32.mrf.mxu0
  %v2078 = vadd.f32 0.0, %v2077
  %2079 = vmatmul.f32.gmra.mxu0 %v1869
  %v2080 = vpop.f32.mrf.mxu0
  %v2081 = vadd.f32 0.0, %v2080
  %2082 = vmatmul.f32.gmra.mxu0 %v1872
  %v2083 = vpop.f32.mrf.mxu0
  %v2084 = vadd.f32 0.0, %v2083
  %2085 = vmatmul.f32.gmra.mxu0 %v1875
  %v2086 = vpop.f32.mrf.mxu0
  %v2087 = vadd.f32 0.0, %v2086
  %2088 = vmatmul.f32.gmra.mxu0 %v1878
  %v2089 = vpop.f32.mrf.mxu0
  %v2090 = vadd.f32 0.0, %v2089
  %2091 = vmatmul.f32.gmra.mxu0 %v1881
  %v2092 = vpop.f32.mrf.mxu0
  %v2093 = vadd.f32 0.0, %v2092
  %2094 = vmatmul.f32.gmra.mxu0 %v1884
  %v2095 = vpop.f32.mrf.mxu0
  %v2096 = vadd.f32 0.0, %v2095
  %2097 = vmatmul.f32.gmra.mxu0 %v1887
  %v2098 = vpop.f32.mrf.mxu0
  %v2099 = vadd.f32 0.0, %v2098
  %2100 = vmatmul.f32.gmra.mxu0 %v1890
  %v2101 = vpop.f32.mrf.mxu0
  %v2102 = vadd.f32 0.0, %v2101
  %2103 = vmatmul.f32.gmra.mxu0 %v1893
  %v2104 = vpop.f32.mrf.mxu0
  %v2105 = vadd.f32 0.0, %v2104
  %2106 = vmatmul.f32.gmra.mxu0 %v1896
  %v2107 = vpop.f32.mrf.mxu0
  %v2108 = vadd.f32 0.0, %v2107
  %2109 = vmatmul.f32.gmra.mxu0 %v1899
  %v2110 = vpop.f32.mrf.mxu0
  %v2111 = vadd.f32 0.0, %v2110
  %2112 = vmatmul.f32.gmra.mxu0 %v1902
  %v2113 = vpop.f32.mrf.mxu0
  %v2114 = vadd.f32 0.0, %v2113
  %2115 = vmatmul.f32.gmra.mxu0 %v1905
  %v2116 = vpop.f32.mrf.mxu0
  %v2117 = vadd.f32 0.0, %v2116
  %2118 = vmatmul.f32.gmra.mxu0 %v1908
  %v2119 = vpop.f32.mrf.mxu0
  %v2120 = vadd.f32 0.0, %v2119
  %2121 = vmatmul.f32.gmra.mxu0 %v1911
  %v2122 = vpop.f32.mrf.mxu0
  %v2123 = vadd.f32 0.0, %v2122
  %2124 = vmatmul.f32.gmra.mxu0 %v1914
  %v2125 = vpop.f32.mrf.mxu0
  %v2126 = vadd.f32 0.0, %v2125
  %2127 = vmatmul.f32.gmra.mxu0 %v1917
  %v2128 = vpop.f32.mrf.mxu0
  %v2129 = vadd.f32 0.0, %v2128
  %2130 = vmatmul.f32.gmra.mxu0 %v1920
  %v2131 = vpop.f32.mrf.mxu0
  %v2132 = vadd.f32 0.0, %v2131
  %2133 = vmatmul.f32.gmra.mxu0 %v1923
  %v2134 = vpop.f32.mrf.mxu0
  %v2135 = vadd.f32 0.0, %v2134
  %2136 = vmatmul.f32.gmra.mxu0 %v1926
  %v2137 = vpop.f32.mrf.mxu0
  %v2138 = vadd.f32 0.0, %v2137
  %2139 = vmatmul.f32.gmra.mxu0 %v1929
  %v2140 = vpop.f32.mrf.mxu0
  %v2141 = vadd.f32 0.0, %v2140
  %2142 = vmatmul.f32.gmra.mxu0 %v1932
  %v2143 = vpop.f32.mrf.mxu0
  %v2144 = vadd.f32 0.0, %v2143
  %2145 = vmatmul.f32.gmra.mxu0 %v1935
  %v2146 = vpop.f32.mrf.mxu0
  %v2147 = vadd.f32 0.0, %v2146
  %2148 = vmatmul.f32.gmra.mxu0 %v1938
  %v2149 = vpop.f32.mrf.mxu0
  %v2150 = vadd.f32 0.0, %v2149
  %2151 = vmatmul.f32.gmra.mxu0 %v1941
  %v2152 = vpop.f32.mrf.mxu0
  %v2153 = vadd.f32 0.0, %v2152
  %2154 = vmatmul.f32.gmra.mxu0 %v1944
  %v2155 = vpop.f32.mrf.mxu0
  %v2156 = vadd.f32 0.0, %v2155
  %2157 = vmatmul.f32.gmra.mxu0 %v1947
  %v2158 = vpop.f32.mrf.mxu0
  %v2159 = vadd.f32 0.0, %v2158
  %2160 = vmatmul.f32.gmra.mxu0 %v1950
  %v2161 = vpop.f32.mrf.mxu0
  %v2162 = vadd.f32 0.0, %v2161
  %2163 = vmatmul.f32.gmra.mxu0 %v1953
  %v2164 = vpop.f32.mrf.mxu0
  %v2165 = vadd.f32 0.0, %v2164
  %2166 = vmatmul.f32.gmra.mxu0 %v1956
  %v2167 = vpop.f32.mrf.mxu0
  %v2168 = vadd.f32 0.0, %v2167
  %2169 = vmatmul.f32.gmra.mxu0 %v1959
  %v2170 = vpop.f32.mrf.mxu0
  %v2171 = vadd.f32 0.0, %v2170
  %2172 = vmatmul.f32.gmra.mxu0 %v1962
  %v2173 = vpop.f32.mrf.mxu0
  %v2174 = vadd.f32 0.0, %v2173
  %2175 = vmatmul.f32.gmra.mxu0 %v1965
  %v2176 = vpop.f32.mrf.mxu0
  %v2177 = vadd.f32 0.0, %v2176
  %2178 = vmatmul.f32.gmra.mxu0 %v1968
  %v2179 = vpop.f32.mrf.mxu0
  %v2180 = vadd.f32 0.0, %v2179
  %2181 = vmatmul.f32.gmra.mxu0 %v1971
  %v2182 = vpop.f32.mrf.mxu0
  %v2183 = vadd.f32 0.0, %v2182
  %2184 = vmatmul.f32.gmra.mxu0 %v1974
  %v2185 = vpop.f32.mrf.mxu0
  %v2186 = vadd.f32 0.0, %v2185
  %2187 = vmatmul.f32.gmra.mxu0 %v1977
  %v2188 = vpop.f32.mrf.mxu0
  %v2189 = vadd.f32 0.0, %v2188
  %2190 = vmatmul.f32.gmra.mxu0 %v1980
  %v2191 = vpop.f32.mrf.mxu0
  %v2192 = vadd.f32 0.0, %v2191
  %2193 = vmatmul.f32.gmra.mxu0 %v1983
  %v2194 = vpop.f32.mrf.mxu0
  %v2195 = vadd.f32 0.0, %v2194
  %2196 = vmatmul.f32.gmra.mxu0 %v1986
  %v2197 = vpop.f32.mrf.mxu0
  %v2198 = vadd.f32 0.0, %v2197
  %2199 = vmatmul.f32.gmra.mxu0 %v1989
  %v2200 = vpop.f32.mrf.mxu0
  %v2201 = vadd.f32 0.0, %v2200
  %2202 = vdwg.mxu0
  %v2203 = vadd.f32 %v1669, %v2012
  %v2204 = vadd.f32 %v1670, %v2015
  %v2205 = vadd.f32 %v1671, %v2018
  %v2206 = vadd.f32 %v1672, %v2021
  %v2207 = vadd.f32 %v1673, %v2024
  %v2208 = vadd.f32 %v1674, %v2027
  %v2209 = vadd.f32 %v1675, %v2030
  %v2210 = vadd.f32 %v1676, %v2033
  %v2211 = vadd.f32 %v1677, %v2036
  %v2212 = vadd.f32 %v1678, %v2039
  %v2213 = vadd.f32 %v1679, %v2042
  %v2214 = vadd.f32 %v1680, %v2045
  %v2215 = vadd.f32 %v1681, %v2048
  %v2216 = vadd.f32 %v1682, %v2051
  %v2217 = vadd.f32 %v1683, %v2054
  %v2218 = vadd.f32 %v1684, %v2057
  %v2219 = vadd.f32 %v1685, %v2060
  %v2220 = vadd.f32 %v1686, %v2063
  %v2221 = vadd.f32 %v1687, %v2066
  %v2222 = vadd.f32 %v1688, %v2069
  %v2223 = vadd.f32 %v1689, %v2072
  %v2224 = vadd.f32 %v1690, %v2075
  %v2225 = vadd.f32 %v1691, %v2078
  %v2226 = vadd.f32 %v1692, %v2081
  %v2227 = vadd.f32 %v1693, %v2084
  %v2228 = vadd.f32 %v1694, %v2087
  %v2229 = vadd.f32 %v1695, %v2090
  %v2230 = vadd.f32 %v1696, %v2093
  %v2231 = vadd.f32 %v1697, %v2096
  %v2232 = vadd.f32 %v1698, %v2099
  %v2233 = vadd.f32 %v1699, %v2102
  %v2234 = vadd.f32 %v1700, %v2105
  %v2235 = vadd.f32 %v1701, %v2108
  %v2236 = vadd.f32 %v1702, %v2111
  %v2237 = vadd.f32 %v1703, %v2114
  %v2238 = vadd.f32 %v1704, %v2117
  %v2239 = vadd.f32 %v1705, %v2120
  %v2240 = vadd.f32 %v1706, %v2123
  %v2241 = vadd.f32 %v1707, %v2126
  %v2242 = vadd.f32 %v1708, %v2129
  %v2243 = vadd.f32 %v1709, %v2132
  %v2244 = vadd.f32 %v1710, %v2135
  %v2245 = vadd.f32 %v1711, %v2138
  %v2246 = vadd.f32 %v1712, %v2141
  %v2247 = vadd.f32 %v1713, %v2144
  %v2248 = vadd.f32 %v1714, %v2147
  %v2249 = vadd.f32 %v1715, %v2150
  %v2250 = vadd.f32 %v1716, %v2153
  %v2251 = vadd.f32 %v1717, %v2156
  %v2252 = vadd.f32 %v1718, %v2159
  %v2253 = vadd.f32 %v1719, %v2162
  %v2254 = vadd.f32 %v1720, %v2165
  %v2255 = vadd.f32 %v1721, %v2168
  %v2256 = vadd.f32 %v1722, %v2171
  %v2257 = vadd.f32 %v1723, %v2174
  %v2258 = vadd.f32 %v1724, %v2177
  %v2259 = vadd.f32 %v1725, %v2180
  %v2260 = vadd.f32 %v1726, %v2183
  %v2261 = vadd.f32 %v1727, %v2186
  %v2262 = vadd.f32 %v1728, %v2189
  %v2263 = vadd.f32 %v1729, %v2192
  %v2264 = vadd.f32 %v1730, %v2195
  %v2265 = vadd.f32 %v1731, %v2198
  %v2266 = vadd.f32 %v1732, %v2201
  %v2267 = vld [vmem:[%s194 + $0x1] sm:$0xff]
  %v2268 = vld [vmem:[%s194 + $0x9] sm:$0xff]
  %v2269 = vld [vmem:[%s194 + $0x19] sm:$0xff]
  %v2270 = vld [vmem:[%s194 + $0x21] sm:$0xff]
  %v2271 = vld [vmem:[%s194 + $0x31] sm:$0xff]
  %v2272 = vld [vmem:[%s194 + $0x39] sm:$0xff]
  %v2273 = vld [vmem:[%s194 + $0x49] sm:$0xff]
  %v2274 = vld [vmem:[%s194 + $0x51] sm:$0xff]
  %v2275 = vld [vmem:[%s194 + $0x61] sm:$0xff]
  %v2276 = vld [vmem:[%s194 + $0x69] sm:$0xff]
  %v2277 = vld [vmem:[%s194 + $0x79] sm:$0xff]
  %v2278 = vld [vmem:[%s194 + $0x81] sm:$0xff]
  %v2279 = vld [vmem:[%s194 + $0x91] sm:$0xff]
  %v2280 = vld [vmem:[%s194 + $0x99] sm:$0xff]
  %v2281 = vld [vmem:[%s194 + $0xa9] sm:$0xff]
  %v2282 = vld [vmem:[%s194 + $0xb1] sm:$0xff]
  %v2283 = vld [vmem:[%s194 + $0xc1] sm:$0xff]
  %v2284 = vld [vmem:[%s194 + $0xc9] sm:$0xff]
  %v2285 = vld [vmem:[%s194 + $0xd9] sm:$0xff]
  %v2286 = vld [vmem:[%s194 + $0xe1] sm:$0xff]
  %v2287 = vld [vmem:[%s194 + $0xf1] sm:$0xff]
  %v2288 = vld [vmem:[%s194 + $0xf9] sm:$0xff]
  %v2289 = vld [vmem:[%s194 + $0x109] sm:$0xff]
  %v2290 = vld [vmem:[%s194 + $0x111] sm:$0xff]
  %v2291 = vld [vmem:[%s194 + $0x121] sm:$0xff]
  %v2292 = vld [vmem:[%s194 + $0x129] sm:$0xff]
  %v2293 = vld [vmem:[%s194 + $0x139] sm:$0xff]
  %v2294 = vld [vmem:[%s194 + $0x141] sm:$0xff]
  %v2295 = vld [vmem:[%s194 + $0x151] sm:$0xff]
  %v2296 = vld [vmem:[%s194 + $0x159] sm:$0xff]
  %v2297 = vld [vmem:[%s194 + $0x169] sm:$0xff]
  %v2298 = vld [vmem:[%s194 + $0x171] sm:$0xff]
  %v2299 = vld [vmem:[%s194 + $0x1b1] sm:$0xff]
  %v2300 = vld [vmem:[%s194 + $0x1b9] sm:$0xff]
  %v2301 = vld [vmem:[%s194 + $0x1c9] sm:$0xff]
  %v2302 = vld [vmem:[%s194 + $0x1d1] sm:$0xff]
  %v2303 = vld [vmem:[%s194 + $0x1e1] sm:$0xff]
  %v2304 = vld [vmem:[%s194 + $0x1e9] sm:$0xff]
  %v2305 = vld [vmem:[%s194 + $0x1f9] sm:$0xff]
  %v2306 = vld [vmem:[%s194 + $0x201] sm:$0xff]
  %v2307 = vld [vmem:[%s194 + $0x211] sm:$0xff]
  %v2308 = vld [vmem:[%s194 + $0x219] sm:$0xff]
  %v2309 = vld [vmem:[%s194 + $0x229] sm:$0xff]
  %v2310 = vld [vmem:[%s194 + $0x231] sm:$0xff]
  %v2311 = vld [vmem:[%s194 + $0x241] sm:$0xff]
  %v2312 = vld [vmem:[%s194 + $0x249] sm:$0xff]
  %v2313 = vld [vmem:[%s194 + $0x259] sm:$0xff]
  %v2314 = vld [vmem:[%s194 + $0x261] sm:$0xff]
  %v2315 = vld [vmem:[%s194 + $0x271] sm:$0xff]
  %v2316 = vld [vmem:[%s194 + $0x279] sm:$0xff]
  %v2317 = vld [vmem:[%s194 + $0x289] sm:$0xff]
  %v2318 = vld [vmem:[%s194 + $0x291] sm:$0xff]
  %v2319 = vld [vmem:[%s194 + $0x2a1] sm:$0xff]
  %v2320 = vld [vmem:[%s194 + $0x2a9] sm:$0xff]
  %v2321 = vld [vmem:[%s194 + $0x2b9] sm:$0xff]
  %v2322 = vld [vmem:[%s194 + $0x2c1] sm:$0xff]
  %v2323 = vld [vmem:[%s194 + $0x2d1] sm:$0xff]
  %v2324 = vld [vmem:[%s194 + $0x2d9] sm:$0xff]
  %v2325 = vld [vmem:[%s194 + $0x2e9] sm:$0xff]
  %v2326 = vld [vmem:[%s194 + $0x2f1] sm:$0xff]
  %v2327 = vld [vmem:[%s194 + $0x301] sm:$0xff]
  %v2328 = vld [vmem:[%s194 + $0x309] sm:$0xff]
  %v2329 = vld [vmem:[%s194 + $0x319] sm:$0xff]
  %v2330 = vld [vmem:[%s194 + $0x321] sm:$0xff]
  %s2331 = scalar_lea.vmem %s1, 16
  %v2332 = vld [vmem:[%s2331] sm:$0xf]
  %v2334 = vsel %vm20, %v2267, 0
  %v2337 = vsel %vm20, %v2268, 0
  %v2340 = vsel %vm20, %v2269, 0
  %v2343 = vsel %vm20, %v2270, 0
  %v2346 = vsel %vm20, %v2271, 0
  %v2349 = vsel %vm20, %v2272, 0
  %v2352 = vsel %vm20, %v2273, 0
  %v2355 = vsel %vm20, %v2274, 0
  %v2358 = vsel %vm20, %v2275, 0
  %v2361 = vsel %vm20, %v2276, 0
  %v2364 = vsel %vm20, %v2277, 0
  %v2367 = vsel %vm20, %v2278, 0
  %v2370 = vsel %vm20, %v2279, 0
  %v2373 = vsel %vm20, %v2280, 0
  %v2376 = vsel %vm20, %v2281, 0
  %v2379 = vsel %vm20, %v2282, 0
  %v2382 = vsel %vm20, %v2283, 0
  %v2385 = vsel %vm20, %v2284, 0
  %v2388 = vsel %vm20, %v2285, 0
  %v2391 = vsel %vm20, %v2286, 0
  %v2394 = vsel %vm20, %v2287, 0
  %v2397 = vsel %vm20, %v2288, 0
  %v2400 = vsel %vm20, %v2289, 0
  %v2403 = vsel %vm20, %v2290, 0
  %v2406 = vsel %vm20, %v2291, 0
  %v2409 = vsel %vm20, %v2292, 0
  %v2412 = vsel %vm20, %v2293, 0
  %v2415 = vsel %vm20, %v2294, 0
  %v2418 = vsel %vm20, %v2295, 0
  %v2421 = vsel %vm20, %v2296, 0
  %v2424 = vsel %vm20, %v2297, 0
  %v2427 = vsel %vm20, %v2298, 0
  %v2430 = vsel %vm20, %v2299, 0
  %v2433 = vsel %vm20, %v2300, 0
  %v2436 = vsel %vm20, %v2301, 0
  %v2439 = vsel %vm20, %v2302, 0
  %v2442 = vsel %vm20, %v2303, 0
  %v2445 = vsel %vm20, %v2304, 0
  %v2448 = vsel %vm20, %v2305, 0
  %v2451 = vsel %vm20, %v2306, 0
  %v2454 = vsel %vm20, %v2307, 0
  %v2457 = vsel %vm20, %v2308, 0
  %v2460 = vsel %vm20, %v2309, 0
  %v2463 = vsel %vm20, %v2310, 0
  %v2466 = vsel %vm20, %v2311, 0
  %v2469 = vsel %vm20, %v2312, 0
  %v2472 = vsel %vm20, %v2313, 0
  %v2475 = vsel %vm20, %v2314, 0
  %v2478 = vsel %vm20, %v2315, 0
  %v2481 = vsel %vm20, %v2316, 0
  %v2484 = vsel %vm20, %v2317, 0
  %v2487 = vsel %vm20, %v2318, 0
  %v2490 = vsel %vm20, %v2319, 0
  %v2493 = vsel %vm20, %v2320, 0
  %v2496 = vsel %vm20, %v2321, 0
  %v2499 = vsel %vm20, %v2322, 0
  %v2502 = vsel %vm20, %v2323, 0
  %v2505 = vsel %vm20, %v2324, 0
  %v2508 = vsel %vm20, %v2325, 0
  %v2511 = vsel %vm20, %v2326, 0
  %v2514 = vsel %vm20, %v2327, 0
  %v2517 = vsel %vm20, %v2328, 0
  %v2520 = vsel %vm20, %v2329, 0
  %v2523 = vsel %vm20, %v2330, 0
  %v2526 = vsel %vm582, %v2332, 0
  %2528 = vmatpush.msra.mxu0 0.0
  %2529 = vmatpush.msra.mxu0 0.0
  %2530 = vmatpush.msra.mxu0 0.0
  %2531 = vmatpush.msra.mxu0 0.0
  %2532 = vmatpush.msra.mxu0 0.0
  %2533 = vmatpush.msra.mxu0 0.0
  %2534 = vmatpush.msra.mxu0 0.0
  %2535 = vmatpush.msra.mxu0 0.0
  %2536 = vmatpush.msra.mxu0 0.0
  %2537 = vmatpush.msra.mxu0 0.0
  %2538 = vmatpush.msra.mxu0 0.0
  %2539 = vmatpush.msra.mxu0 0.0
  %2540 = vmatpush.msra.mxu0 0.0
  %2541 = vmatpush.msra.mxu0 0.0
  %2542 = vmatpush.msra.mxu0 0.0
  %2543 = vmatpush.msra.mxu0 %v2526
  %2544 = vmatmul.f32.gmra.mxu0 %v2334
  %v2545 = vpop.f32.mrf.mxu0
  %v2546 = vadd.f32 0.0, %v2545
  %2547 = vmatmul.f32.gmra.mxu0 %v2337
  %v2548 = vpop.f32.mrf.mxu0
  %v2549 = vadd.f32 0.0, %v2548
  %2550 = vmatmul.f32.gmra.mxu0 %v2340
  %v2551 = vpop.f32.mrf.mxu0
  %v2552 = vadd.f32 0.0, %v2551
  %2553 = vmatmul.f32.gmra.mxu0 %v2343
  %v2554 = vpop.f32.mrf.mxu0
  %v2555 = vadd.f32 0.0, %v2554
  %2556 = vmatmul.f32.gmra.mxu0 %v2346
  %v2557 = vpop.f32.mrf.mxu0
  %v2558 = vadd.f32 0.0, %v2557
  %2559 = vmatmul.f32.gmra.mxu0 %v2349
  %v2560 = vpop.f32.mrf.mxu0
  %v2561 = vadd.f32 0.0, %v2560
  %2562 = vmatmul.f32.gmra.mxu0 %v2352
  %v2563 = vpop.f32.mrf.mxu0
  %v2564 = vadd.f32 0.0, %v2563
  %2565 = vmatmul.f32.gmra.mxu0 %v2355
  %v2566 = vpop.f32.mrf.mxu0
  %v2567 = vadd.f32 0.0, %v2566
  %2568 = vmatmul.f32.gmra.mxu0 %v2358
  %v2569 = vpop.f32.mrf.mxu0
  %v2570 = vadd.f32 0.0, %v2569
  %2571 = vmatmul.f32.gmra.mxu0 %v2361
  %v2572 = vpop.f32.mrf.mxu0
  %v2573 = vadd.f32 0.0, %v2572
  %2574 = vmatmul.f32.gmra.mxu0 %v2364
  %v2575 = vpop.f32.mrf.mxu0
  %v2576 = vadd.f32 0.0, %v2575
  %2577 = vmatmul.f32.gmra.mxu0 %v2367
  %v2578 = vpop.f32.mrf.mxu0
  %v2579 = vadd.f32 0.0, %v2578
  %2580 = vmatmul.f32.gmra.mxu0 %v2370
  %v2581 = vpop.f32.mrf.mxu0
  %v2582 = vadd.f32 0.0, %v2581
  %2583 = vmatmul.f32.gmra.mxu0 %v2373
  %v2584 = vpop.f32.mrf.mxu0
  %v2585 = vadd.f32 0.0, %v2584
  %2586 = vmatmul.f32.gmra.mxu0 %v2376
  %v2587 = vpop.f32.mrf.mxu0
  %v2588 = vadd.f32 0.0, %v2587
  %2589 = vmatmul.f32.gmra.mxu0 %v2379
  %v2590 = vpop.f32.mrf.mxu0
  %v2591 = vadd.f32 0.0, %v2590
  %2592 = vmatmul.f32.gmra.mxu0 %v2382
  %v2593 = vpop.f32.mrf.mxu0
  %v2594 = vadd.f32 0.0, %v2593
  %2595 = vmatmul.f32.gmra.mxu0 %v2385
  %v2596 = vpop.f32.mrf.mxu0
  %v2597 = vadd.f32 0.0, %v2596
  %2598 = vmatmul.f32.gmra.mxu0 %v2388
  %v2599 = vpop.f32.mrf.mxu0
  %v2600 = vadd.f32 0.0, %v2599
  %2601 = vmatmul.f32.gmra.mxu0 %v2391
  %v2602 = vpop.f32.mrf.mxu0
  %v2603 = vadd.f32 0.0, %v2602
  %2604 = vmatmul.f32.gmra.mxu0 %v2394
  %v2605 = vpop.f32.mrf.mxu0
  %v2606 = vadd.f32 0.0, %v2605
  %2607 = vmatmul.f32.gmra.mxu0 %v2397
  %v2608 = vpop.f32.mrf.mxu0
  %v2609 = vadd.f32 0.0, %v2608
  %2610 = vmatmul.f32.gmra.mxu0 %v2400
  %v2611 = vpop.f32.mrf.mxu0
  %v2612 = vadd.f32 0.0, %v2611
  %2613 = vmatmul.f32.gmra.mxu0 %v2403
  %v2614 = vpop.f32.mrf.mxu0
  %v2615 = vadd.f32 0.0, %v2614
  %2616 = vmatmul.f32.gmra.mxu0 %v2406
  %v2617 = vpop.f32.mrf.mxu0
  %v2618 = vadd.f32 0.0, %v2617
  %2619 = vmatmul.f32.gmra.mxu0 %v2409
  %v2620 = vpop.f32.mrf.mxu0
  %v2621 = vadd.f32 0.0, %v2620
  %2622 = vmatmul.f32.gmra.mxu0 %v2412
  %v2623 = vpop.f32.mrf.mxu0
  %v2624 = vadd.f32 0.0, %v2623
  %2625 = vmatmul.f32.gmra.mxu0 %v2415
  %v2626 = vpop.f32.mrf.mxu0
  %v2627 = vadd.f32 0.0, %v2626
  %2628 = vmatmul.f32.gmra.mxu0 %v2418
  %v2629 = vpop.f32.mrf.mxu0
  %v2630 = vadd.f32 0.0, %v2629
  %2631 = vmatmul.f32.gmra.mxu0 %v2421
  %v2632 = vpop.f32.mrf.mxu0
  %v2633 = vadd.f32 0.0, %v2632
  %2634 = vmatmul.f32.gmra.mxu0 %v2424
  %v2635 = vpop.f32.mrf.mxu0
  %v2636 = vadd.f32 0.0, %v2635
  %2637 = vmatmul.f32.gmra.mxu0 %v2427
  %v2638 = vpop.f32.mrf.mxu0
  %v2639 = vadd.f32 0.0, %v2638
  %2640 = vmatmul.f32.gmra.mxu0 %v2430
  %v2641 = vpop.f32.mrf.mxu0
  %v2642 = vadd.f32 0.0, %v2641
  %2643 = vmatmul.f32.gmra.mxu0 %v2433
  %v2644 = vpop.f32.mrf.mxu0
  %v2645 = vadd.f32 0.0, %v2644
  %2646 = vmatmul.f32.gmra.mxu0 %v2436
  %v2647 = vpop.f32.mrf.mxu0
  %v2648 = vadd.f32 0.0, %v2647
  %2649 = vmatmul.f32.gmra.mxu0 %v2439
  %v2650 = vpop.f32.mrf.mxu0
  %v2651 = vadd.f32 0.0, %v2650
  %2652 = vmatmul.f32.gmra.mxu0 %v2442
  %v2653 = vpop.f32.mrf.mxu0
  %v2654 = vadd.f32 0.0, %v2653
  %2655 = vmatmul.f32.gmra.mxu0 %v2445
  %v2656 = vpop.f32.mrf.mxu0
  %v2657 = vadd.f32 0.0, %v2656
  %2658 = vmatmul.f32.gmra.mxu0 %v2448
  %v2659 = vpop.f32.mrf.mxu0
  %v2660 = vadd.f32 0.0, %v2659
  %2661 = vmatmul.f32.gmra.mxu0 %v2451
  %v2662 = vpop.f32.mrf.mxu0
  %v2663 = vadd.f32 0.0, %v2662
  %2664 = vmatmul.f32.gmra.mxu0 %v2454
  %v2665 = vpop.f32.mrf.mxu0
  %v2666 = vadd.f32 0.0, %v2665
  %2667 = vmatmul.f32.gmra.mxu0 %v2457
  %v2668 = vpop.f32.mrf.mxu0
  %v2669 = vadd.f32 0.0, %v2668
  %2670 = vmatmul.f32.gmra.mxu0 %v2460
  %v2671 = vpop.f32.mrf.mxu0
  %v2672 = vadd.f32 0.0, %v2671
  %2673 = vmatmul.f32.gmra.mxu0 %v2463
  %v2674 = vpop.f32.mrf.mxu0
  %v2675 = vadd.f32 0.0, %v2674
  %2676 = vmatmul.f32.gmra.mxu0 %v2466
  %v2677 = vpop.f32.mrf.mxu0
  %v2678 = vadd.f32 0.0, %v2677
  %2679 = vmatmul.f32.gmra.mxu0 %v2469
  %v2680 = vpop.f32.mrf.mxu0
  %v2681 = vadd.f32 0.0, %v2680
  %2682 = vmatmul.f32.gmra.mxu0 %v2472
  %v2683 = vpop.f32.mrf.mxu0
  %v2684 = vadd.f32 0.0, %v2683
  %2685 = vmatmul.f32.gmra.mxu0 %v2475
  %v2686 = vpop.f32.mrf.mxu0
  %v2687 = vadd.f32 0.0, %v2686
  %2688 = vmatmul.f32.gmra.mxu0 %v2478
  %v2689 = vpop.f32.mrf.mxu0
  %v2690 = vadd.f32 0.0, %v2689
  %2691 = vmatmul.f32.gmra.mxu0 %v2481
  %v2692 = vpop.f32.mrf.mxu0
  %v2693 = vadd.f32 0.0, %v2692
  %2694 = vmatmul.f32.gmra.mxu0 %v2484
  %v2695 = vpop.f32.mrf.mxu0
  %v2696 = vadd.f32 0.0, %v2695
  %2697 = vmatmul.f32.gmra.mxu0 %v2487
  %v2698 = vpop.f32.mrf.mxu0
  %v2699 = vadd.f32 0.0, %v2698
  %2700 = vmatmul.f32.gmra.mxu0 %v2490
  %v2701 = vpop.f32.mrf.mxu0
  %v2702 = vadd.f32 0.0, %v2701
  %2703 = vmatmul.f32.gmra.mxu0 %v2493
  %v2704 = vpop.f32.mrf.mxu0
  %v2705 = vadd.f32 0.0, %v2704
  %2706 = vmatmul.f32.gmra.mxu0 %v2496
  %v2707 = vpop.f32.mrf.mxu0
  %v2708 = vadd.f32 0.0, %v2707
  %2709 = vmatmul.f32.gmra.mxu0 %v2499
  %v2710 = vpop.f32.mrf.mxu0
  %v2711 = vadd.f32 0.0, %v2710
  %2712 = vmatmul.f32.gmra.mxu0 %v2502
  %v2713 = vpop.f32.mrf.mxu0
  %v2714 = vadd.f32 0.0, %v2713
  %2715 = vmatmul.f32.gmra.mxu0 %v2505
  %v2716 = vpop.f32.mrf.mxu0
  %v2717 = vadd.f32 0.0, %v2716
  %2718 = vmatmul.f32.gmra.mxu0 %v2508
  %v2719 = vpop.f32.mrf.mxu0
  %v2720 = vadd.f32 0.0, %v2719
  %2721 = vmatmul.f32.gmra.mxu0 %v2511
  %v2722 = vpop.f32.mrf.mxu0
  %v2723 = vadd.f32 0.0, %v2722
  %2724 = vmatmul.f32.gmra.mxu0 %v2514
  %v2725 = vpop.f32.mrf.mxu0
  %v2726 = vadd.f32 0.0, %v2725
  %2727 = vmatmul.f32.gmra.mxu0 %v2517
  %v2728 = vpop.f32.mrf.mxu0
  %v2729 = vadd.f32 0.0, %v2728
  %2730 = vmatmul.f32.gmra.mxu0 %v2520
  %v2731 = vpop.f32.mrf.mxu0
  %v2732 = vadd.f32 0.0, %v2731
  %2733 = vmatmul.f32.gmra.mxu0 %v2523
  %v2734 = vpop.f32.mrf.mxu0
  %v2735 = vadd.f32 0.0, %v2734
  %2736 = vdwg.mxu0
  %v2737 = vadd.f32 %v2203, %v2546
  %v2738 = vadd.f32 %v2204, %v2549
  %v2739 = vadd.f32 %v2205, %v2552
  %v2740 = vadd.f32 %v2206, %v2555
  %v2741 = vadd.f32 %v2207, %v2558
  %v2742 = vadd.f32 %v2208, %v2561
  %v2743 = vadd.f32 %v2209, %v2564
  %v2744 = vadd.f32 %v2210, %v2567
  %v2745 = vadd.f32 %v2211, %v2570
  %v2746 = vadd.f32 %v2212, %v2573
  %v2747 = vadd.f32 %v2213, %v2576
  %v2748 = vadd.f32 %v2214, %v2579
  %v2749 = vadd.f32 %v2215, %v2582
  %v2750 = vadd.f32 %v2216, %v2585
  %v2751 = vadd.f32 %v2217, %v2588
  %v2752 = vadd.f32 %v2218, %v2591
  %v2753 = vadd.f32 %v2219, %v2594
  %v2754 = vadd.f32 %v2220, %v2597
  %v2755 = vadd.f32 %v2221, %v2600
  %v2756 = vadd.f32 %v2222, %v2603
  %v2757 = vadd.f32 %v2223, %v2606
  %v2758 = vadd.f32 %v2224, %v2609
  %v2759 = vadd.f32 %v2225, %v2612
  %v2760 = vadd.f32 %v2226, %v2615
  %v2761 = vadd.f32 %v2227, %v2618
  %v2762 = vadd.f32 %v2228, %v2621
  %v2763 = vadd.f32 %v2229, %v2624
  %v2764 = vadd.f32 %v2230, %v2627
  %v2765 = vadd.f32 %v2231, %v2630
  %v2766 = vadd.f32 %v2232, %v2633
  %v2767 = vadd.f32 %v2233, %v2636
  %v2768 = vadd.f32 %v2234, %v2639
  %v2769 = vadd.f32 %v2235, %v2642
  %v2770 = vadd.f32 %v2236, %v2645
  %v2771 = vadd.f32 %v2237, %v2648
  %v2772 = vadd.f32 %v2238, %v2651
  %v2773 = vadd.f32 %v2239, %v2654
  %v2774 = vadd.f32 %v2240, %v2657
  %v2775 = vadd.f32 %v2241, %v2660
  %v2776 = vadd.f32 %v2242, %v2663
  %v2777 = vadd.f32 %v2243, %v2666
  %v2778 = vadd.f32 %v2244, %v2669
  %v2779 = vadd.f32 %v2245, %v2672
  %v2780 = vadd.f32 %v2246, %v2675
  %v2781 = vadd.f32 %v2247, %v2678
  %v2782 = vadd.f32 %v2248, %v2681
  %v2783 = vadd.f32 %v2249, %v2684
  %v2784 = vadd.f32 %v2250, %v2687
  %v2785 = vadd.f32 %v2251, %v2690
  %v2786 = vadd.f32 %v2252, %v2693
  %v2787 = vadd.f32 %v2253, %v2696
  %v2788 = vadd.f32 %v2254, %v2699
  %v2789 = vadd.f32 %v2255, %v2702
  %v2790 = vadd.f32 %v2256, %v2705
  %v2791 = vadd.f32 %v2257, %v2708
  %v2792 = vadd.f32 %v2258, %v2711
  %v2793 = vadd.f32 %v2259, %v2714
  %v2794 = vadd.f32 %v2260, %v2717
  %v2795 = vadd.f32 %v2261, %v2720
  %v2796 = vadd.f32 %v2262, %v2723
  %v2797 = vadd.f32 %v2263, %v2726
  %v2798 = vadd.f32 %v2264, %v2729
  %v2799 = vadd.f32 %v2265, %v2732
  %v2800 = vadd.f32 %v2266, %v2735
  %v2801 = vld [vmem:[%s194 + $0x2] sm:$0xff]
  %v2802 = vld [vmem:[%s194 + $0xa] sm:$0xff]
  %v2803 = vld [vmem:[%s194 + $0x1a] sm:$0xff]
  %v2804 = vld [vmem:[%s194 + $0x22] sm:$0xff]
  %v2805 = vld [vmem:[%s194 + $0x32] sm:$0xff]
  %v2806 = vld [vmem:[%s194 + $0x3a] sm:$0xff]
  %v2807 = vld [vmem:[%s194 + $0x4a] sm:$0xff]
  %v2808 = vld [vmem:[%s194 + $0x52] sm:$0xff]
  %v2809 = vld [vmem:[%s194 + $0x62] sm:$0xff]
  %v2810 = vld [vmem:[%s194 + $0x6a] sm:$0xff]
  %v2811 = vld [vmem:[%s194 + $0x7a] sm:$0xff]
  %v2812 = vld [vmem:[%s194 + $0x82] sm:$0xff]
  %v2813 = vld [vmem:[%s194 + $0x92] sm:$0xff]
  %v2814 = vld [vmem:[%s194 + $0x9a] sm:$0xff]
  %v2815 = vld [vmem:[%s194 + $0xaa] sm:$0xff]
  %v2816 = vld [vmem:[%s194 + $0xb2] sm:$0xff]
  %v2817 = vld [vmem:[%s194 + $0xc2] sm:$0xff]
  %v2818 = vld [vmem:[%s194 + $0xca] sm:$0xff]
  %v2819 = vld [vmem:[%s194 + $0xda] sm:$0xff]
  %v2820 = vld [vmem:[%s194 + $0xe2] sm:$0xff]
  %v2821 = vld [vmem:[%s194 + $0xf2] sm:$0xff]
  %v2822 = vld [vmem:[%s194 + $0xfa] sm:$0xff]
  %v2823 = vld [vmem:[%s194 + $0x10a] sm:$0xff]
  %v2824 = vld [vmem:[%s194 + $0x112] sm:$0xff]
  %v2825 = vld [vmem:[%s194 + $0x122] sm:$0xff]
  %v2826 = vld [vmem:[%s194 + $0x12a] sm:$0xff]
  %v2827 = vld [vmem:[%s194 + $0x13a] sm:$0xff]
  %v2828 = vld [vmem:[%s194 + $0x142] sm:$0xff]
  %v2829 = vld [vmem:[%s194 + $0x152] sm:$0xff]
  %v2830 = vld [vmem:[%s194 + $0x15a] sm:$0xff]
  %v2831 = vld [vmem:[%s194 + $0x16a] sm:$0xff]
  %v2832 = vld [vmem:[%s194 + $0x172] sm:$0xff]
  %v2833 = vld [vmem:[%s194 + $0x1b2] sm:$0xff]
  %v2834 = vld [vmem:[%s194 + $0x1ba] sm:$0xff]
  %v2835 = vld [vmem:[%s194 + $0x1ca] sm:$0xff]
  %v2836 = vld [vmem:[%s194 + $0x1d2] sm:$0xff]
  %v2837 = vld [vmem:[%s194 + $0x1e2] sm:$0xff]
  %v2838 = vld [vmem:[%s194 + $0x1ea] sm:$0xff]
  %v2839 = vld [vmem:[%s194 + $0x1fa] sm:$0xff]
  %v2840 = vld [vmem:[%s194 + $0x202] sm:$0xff]
  %v2841 = vld [vmem:[%s194 + $0x212] sm:$0xff]
  %v2842 = vld [vmem:[%s194 + $0x21a] sm:$0xff]
  %v2843 = vld [vmem:[%s194 + $0x22a] sm:$0xff]
  %v2844 = vld [vmem:[%s194 + $0x232] sm:$0xff]
  %v2845 = vld [vmem:[%s194 + $0x242] sm:$0xff]
  %v2846 = vld [vmem:[%s194 + $0x24a] sm:$0xff]
  %v2847 = vld [vmem:[%s194 + $0x25a] sm:$0xff]
  %v2848 = vld [vmem:[%s194 + $0x262] sm:$0xff]
  %v2849 = vld [vmem:[%s194 + $0x272] sm:$0xff]
  %v2850 = vld [vmem:[%s194 + $0x27a] sm:$0xff]
  %v2851 = vld [vmem:[%s194 + $0x28a] sm:$0xff]
  %v2852 = vld [vmem:[%s194 + $0x292] sm:$0xff]
  %v2853 = vld [vmem:[%s194 + $0x2a2] sm:$0xff]
  %v2854 = vld [vmem:[%s194 + $0x2aa] sm:$0xff]
  %v2855 = vld [vmem:[%s194 + $0x2ba] sm:$0xff]
  %v2856 = vld [vmem:[%s194 + $0x2c2] sm:$0xff]
  %v2857 = vld [vmem:[%s194 + $0x2d2] sm:$0xff]
  %v2858 = vld [vmem:[%s194 + $0x2da] sm:$0xff]
  %v2859 = vld [vmem:[%s194 + $0x2ea] sm:$0xff]
  %v2860 = vld [vmem:[%s194 + $0x2f2] sm:$0xff]
  %v2861 = vld [vmem:[%s194 + $0x302] sm:$0xff]
  %v2862 = vld [vmem:[%s194 + $0x30a] sm:$0xff]
  %v2863 = vld [vmem:[%s194 + $0x31a] sm:$0xff]
  %v2864 = vld [vmem:[%s194 + $0x322] sm:$0xff]
  %s2865 = scalar_lea.vmem %s1, 20
  %v2866 = vld [vmem:[%s2865] sm:$0xf]
  %v2868 = vsel %vm20, %v2801, 0
  %v2871 = vsel %vm20, %v2802, 0
  %v2874 = vsel %vm20, %v2803, 0
  %v2877 = vsel %vm20, %v2804, 0
  %v2880 = vsel %vm20, %v2805, 0
  %v2883 = vsel %vm20, %v2806, 0
  %v2886 = vsel %vm20, %v2807, 0
  %v2889 = vsel %vm20, %v2808, 0
  %v2892 = vsel %vm20, %v2809, 0
  %v2895 = vsel %vm20, %v2810, 0
  %v2898 = vsel %vm20, %v2811, 0
  %v2901 = vsel %vm20, %v2812, 0
  %v2904 = vsel %vm20, %v2813, 0
  %v2907 = vsel %vm20, %v2814, 0
  %v2910 = vsel %vm20, %v2815, 0
  %v2913 = vsel %vm20, %v2816, 0
  %v2916 = vsel %vm20, %v2817, 0
  %v2919 = vsel %vm20, %v2818, 0
  %v2922 = vsel %vm20, %v2819, 0
  %v2925 = vsel %vm20, %v2820, 0
  %v2928 = vsel %vm20, %v2821, 0
  %v2931 = vsel %vm20, %v2822, 0
  %v2934 = vsel %vm20, %v2823, 0
  %v2937 = vsel %vm20, %v2824, 0
  %v2940 = vsel %vm20, %v2825, 0
  %v2943 = vsel %vm20, %v2826, 0
  %v2946 = vsel %vm20, %v2827, 0
  %v2949 = vsel %vm20, %v2828, 0
  %v2952 = vsel %vm20, %v2829, 0
  %v2955 = vsel %vm20, %v2830, 0
  %v2958 = vsel %vm20, %v2831, 0
  %v2961 = vsel %vm20, %v2832, 0
  %v2964 = vsel %vm20, %v2833, 0
  %v2967 = vsel %vm20, %v2834, 0
  %v2970 = vsel %vm20, %v2835, 0
  %v2973 = vsel %vm20, %v2836, 0
  %v2976 = vsel %vm20, %v2837, 0
  %v2979 = vsel %vm20, %v2838, 0
  %v2982 = vsel %vm20, %v2839, 0
  %v2985 = vsel %vm20, %v2840, 0
  %v2988 = vsel %vm20, %v2841, 0
  %v2991 = vsel %vm20, %v2842, 0
  %v2994 = vsel %vm20, %v2843, 0
  %v2997 = vsel %vm20, %v2844, 0
  %v3000 = vsel %vm20, %v2845, 0
  %v3003 = vsel %vm20, %v2846, 0
  %v3006 = vsel %vm20, %v2847, 0
  %v3009 = vsel %vm20, %v2848, 0
  %v3012 = vsel %vm20, %v2849, 0
  %v3015 = vsel %vm20, %v2850, 0
  %v3018 = vsel %vm20, %v2851, 0
  %v3021 = vsel %vm20, %v2852, 0
  %v3024 = vsel %vm20, %v2853, 0
  %v3027 = vsel %vm20, %v2854, 0
  %v3030 = vsel %vm20, %v2855, 0
  %v3033 = vsel %vm20, %v2856, 0
  %v3036 = vsel %vm20, %v2857, 0
  %v3039 = vsel %vm20, %v2858, 0
  %v3042 = vsel %vm20, %v2859, 0
  %v3045 = vsel %vm20, %v2860, 0
  %v3048 = vsel %vm20, %v2861, 0
  %v3051 = vsel %vm20, %v2862, 0
  %v3054 = vsel %vm20, %v2863, 0
  %v3057 = vsel %vm20, %v2864, 0
  %v3060 = vsel %vm582, %v2866, 0
  %3062 = vmatpush.msra.mxu0 0.0
  %3063 = vmatpush.msra.mxu0 0.0
  %3064 = vmatpush.msra.mxu0 0.0
  %3065 = vmatpush.msra.mxu0 0.0
  %3066 = vmatpush.msra.mxu0 0.0
  %3067 = vmatpush.msra.mxu0 0.0
  %3068 = vmatpush.msra.mxu0 0.0
  %3069 = vmatpush.msra.mxu0 0.0
  %3070 = vmatpush.msra.mxu0 0.0
  %3071 = vmatpush.msra.mxu0 0.0
  %3072 = vmatpush.msra.mxu0 0.0
  %3073 = vmatpush.msra.mxu0 0.0
  %3074 = vmatpush.msra.mxu0 0.0
  %3075 = vmatpush.msra.mxu0 0.0
  %3076 = vmatpush.msra.mxu0 0.0
  %3077 = vmatpush.msra.mxu0 %v3060
  %3078 = vmatmul.f32.gmra.mxu0 %v2868
  %v3079 = vpop.f32.mrf.mxu0
  %v3080 = vadd.f32 0.0, %v3079
  %3081 = vmatmul.f32.gmra.mxu0 %v2871
  %v3082 = vpop.f32.mrf.mxu0
  %v3083 = vadd.f32 0.0, %v3082
  %3084 = vmatmul.f32.gmra.mxu0 %v2874
  %v3085 = vpop.f32.mrf.mxu0
  %v3086 = vadd.f32 0.0, %v3085
  %3087 = vmatmul.f32.gmra.mxu0 %v2877
  %v3088 = vpop.f32.mrf.mxu0
  %v3089 = vadd.f32 0.0, %v3088
  %3090 = vmatmul.f32.gmra.mxu0 %v2880
  %v3091 = vpop.f32.mrf.mxu0
  %v3092 = vadd.f32 0.0, %v3091
  %3093 = vmatmul.f32.gmra.mxu0 %v2883
  %v3094 = vpop.f32.mrf.mxu0
  %v3095 = vadd.f32 0.0, %v3094
  %3096 = vmatmul.f32.gmra.mxu0 %v2886
  %v3097 = vpop.f32.mrf.mxu0
  %v3098 = vadd.f32 0.0, %v3097
  %3099 = vmatmul.f32.gmra.mxu0 %v2889
  %v3100 = vpop.f32.mrf.mxu0
  %v3101 = vadd.f32 0.0, %v3100
  %3102 = vmatmul.f32.gmra.mxu0 %v2892
  %v3103 = vpop.f32.mrf.mxu0
  %v3104 = vadd.f32 0.0, %v3103
  %3105 = vmatmul.f32.gmra.mxu0 %v2895
  %v3106 = vpop.f32.mrf.mxu0
  %v3107 = vadd.f32 0.0, %v3106
  %3108 = vmatmul.f32.gmra.mxu0 %v2898
  %v3109 = vpop.f32.mrf.mxu0
  %v3110 = vadd.f32 0.0, %v3109
  %3111 = vmatmul.f32.gmra.mxu0 %v2901
  %v3112 = vpop.f32.mrf.mxu0
  %v3113 = vadd.f32 0.0, %v3112
  %3114 = vmatmul.f32.gmra.mxu0 %v2904
  %v3115 = vpop.f32.mrf.mxu0
  %v3116 = vadd.f32 0.0, %v3115
  %3117 = vmatmul.f32.gmra.mxu0 %v2907
  %v3118 = vpop.f32.mrf.mxu0
  %v3119 = vadd.f32 0.0, %v3118
  %3120 = vmatmul.f32.gmra.mxu0 %v2910
  %v3121 = vpop.f32.mrf.mxu0
  %v3122 = vadd.f32 0.0, %v3121
  %3123 = vmatmul.f32.gmra.mxu0 %v2913
  %v3124 = vpop.f32.mrf.mxu0
  %v3125 = vadd.f32 0.0, %v3124
  %3126 = vmatmul.f32.gmra.mxu0 %v2916
  %v3127 = vpop.f32.mrf.mxu0
  %v3128 = vadd.f32 0.0, %v3127
  %3129 = vmatmul.f32.gmra.mxu0 %v2919
  %v3130 = vpop.f32.mrf.mxu0
  %v3131 = vadd.f32 0.0, %v3130
  %3132 = vmatmul.f32.gmra.mxu0 %v2922
  %v3133 = vpop.f32.mrf.mxu0
  %v3134 = vadd.f32 0.0, %v3133
  %3135 = vmatmul.f32.gmra.mxu0 %v2925
  %v3136 = vpop.f32.mrf.mxu0
  %v3137 = vadd.f32 0.0, %v3136
  %3138 = vmatmul.f32.gmra.mxu0 %v2928
  %v3139 = vpop.f32.mrf.mxu0
  %v3140 = vadd.f32 0.0, %v3139
  %3141 = vmatmul.f32.gmra.mxu0 %v2931
  %v3142 = vpop.f32.mrf.mxu0
  %v3143 = vadd.f32 0.0, %v3142
  %3144 = vmatmul.f32.gmra.mxu0 %v2934
  %v3145 = vpop.f32.mrf.mxu0
  %v3146 = vadd.f32 0.0, %v3145
  %3147 = vmatmul.f32.gmra.mxu0 %v2937
  %v3148 = vpop.f32.mrf.mxu0
  %v3149 = vadd.f32 0.0, %v3148
  %3150 = vmatmul.f32.gmra.mxu0 %v2940
  %v3151 = vpop.f32.mrf.mxu0
  %v3152 = vadd.f32 0.0, %v3151
  %3153 = vmatmul.f32.gmra.mxu0 %v2943
  %v3154 = vpop.f32.mrf.mxu0
  %v3155 = vadd.f32 0.0, %v3154
  %3156 = vmatmul.f32.gmra.mxu0 %v2946
  %v3157 = vpop.f32.mrf.mxu0
  %v3158 = vadd.f32 0.0, %v3157
  %3159 = vmatmul.f32.gmra.mxu0 %v2949
  %v3160 = vpop.f32.mrf.mxu0
  %v3161 = vadd.f32 0.0, %v3160
  %3162 = vmatmul.f32.gmra.mxu0 %v2952
  %v3163 = vpop.f32.mrf.mxu0
  %v3164 = vadd.f32 0.0, %v3163
  %3165 = vmatmul.f32.gmra.mxu0 %v2955
  %v3166 = vpop.f32.mrf.mxu0
  %v3167 = vadd.f32 0.0, %v3166
  %3168 = vmatmul.f32.gmra.mxu0 %v2958
  %v3169 = vpop.f32.mrf.mxu0
  %v3170 = vadd.f32 0.0, %v3169
  %3171 = vmatmul.f32.gmra.mxu0 %v2961
  %v3172 = vpop.f32.mrf.mxu0
  %v3173 = vadd.f32 0.0, %v3172
  %3174 = vmatmul.f32.gmra.mxu0 %v2964
  %v3175 = vpop.f32.mrf.mxu0
  %v3176 = vadd.f32 0.0, %v3175
  %3177 = vmatmul.f32.gmra.mxu0 %v2967
  %v3178 = vpop.f32.mrf.mxu0
  %v3179 = vadd.f32 0.0, %v3178
  %3180 = vmatmul.f32.gmra.mxu0 %v2970
  %v3181 = vpop.f32.mrf.mxu0
  %v3182 = vadd.f32 0.0, %v3181
  %3183 = vmatmul.f32.gmra.mxu0 %v2973
  %v3184 = vpop.f32.mrf.mxu0
  %v3185 = vadd.f32 0.0, %v3184
  %3186 = vmatmul.f32.gmra.mxu0 %v2976
  %v3187 = vpop.f32.mrf.mxu0
  %v3188 = vadd.f32 0.0, %v3187
  %3189 = vmatmul.f32.gmra.mxu0 %v2979
  %v3190 = vpop.f32.mrf.mxu0
  %v3191 = vadd.f32 0.0, %v3190
  %3192 = vmatmul.f32.gmra.mxu0 %v2982
  %v3193 = vpop.f32.mrf.mxu0
  %v3194 = vadd.f32 0.0, %v3193
  %3195 = vmatmul.f32.gmra.mxu0 %v2985
  %v3196 = vpop.f32.mrf.mxu0
  %v3197 = vadd.f32 0.0, %v3196
  %3198 = vmatmul.f32.gmra.mxu0 %v2988
  %v3199 = vpop.f32.mrf.mxu0
  %v3200 = vadd.f32 0.0, %v3199
  %3201 = vmatmul.f32.gmra.mxu0 %v2991
  %v3202 = vpop.f32.mrf.mxu0
  %v3203 = vadd.f32 0.0, %v3202
  %3204 = vmatmul.f32.gmra.mxu0 %v2994
  %v3205 = vpop.f32.mrf.mxu0
  %v3206 = vadd.f32 0.0, %v3205
  %3207 = vmatmul.f32.gmra.mxu0 %v2997
  %v3208 = vpop.f32.mrf.mxu0
  %v3209 = vadd.f32 0.0, %v3208
  %3210 = vmatmul.f32.gmra.mxu0 %v3000
  %v3211 = vpop.f32.mrf.mxu0
  %v3212 = vadd.f32 0.0, %v3211
  %3213 = vmatmul.f32.gmra.mxu0 %v3003
  %v3214 = vpop.f32.mrf.mxu0
  %v3215 = vadd.f32 0.0, %v3214
  %3216 = vmatmul.f32.gmra.mxu0 %v3006
  %v3217 = vpop.f32.mrf.mxu0
  %v3218 = vadd.f32 0.0, %v3217
  %3219 = vmatmul.f32.gmra.mxu0 %v3009
  %v3220 = vpop.f32.mrf.mxu0
  %v3221 = vadd.f32 0.0, %v3220
  %3222 = vmatmul.f32.gmra.mxu0 %v3012
  %v3223 = vpop.f32.mrf.mxu0
  %v3224 = vadd.f32 0.0, %v3223
  %3225 = vmatmul.f32.gmra.mxu0 %v3015
  %v3226 = vpop.f32.mrf.mxu0
  %v3227 = vadd.f32 0.0, %v3226
  %3228 = vmatmul.f32.gmra.mxu0 %v3018
  %v3229 = vpop.f32.mrf.mxu0
  %v3230 = vadd.f32 0.0, %v3229
  %3231 = vmatmul.f32.gmra.mxu0 %v3021
  %v3232 = vpop.f32.mrf.mxu0
  %v3233 = vadd.f32 0.0, %v3232
  %3234 = vmatmul.f32.gmra.mxu0 %v3024
  %v3235 = vpop.f32.mrf.mxu0
  %v3236 = vadd.f32 0.0, %v3235
  %3237 = vmatmul.f32.gmra.mxu0 %v3027
  %v3238 = vpop.f32.mrf.mxu0
  %v3239 = vadd.f32 0.0, %v3238
  %3240 = vmatmul.f32.gmra.mxu0 %v3030
  %v3241 = vpop.f32.mrf.mxu0
  %v3242 = vadd.f32 0.0, %v3241
  %3243 = vmatmul.f32.gmra.mxu0 %v3033
  %v3244 = vpop.f32.mrf.mxu0
  %v3245 = vadd.f32 0.0, %v3244
  %3246 = vmatmul.f32.gmra.mxu0 %v3036
  %v3247 = vpop.f32.mrf.mxu0
  %v3248 = vadd.f32 0.0, %v3247
  %3249 = vmatmul.f32.gmra.mxu0 %v3039
  %v3250 = vpop.f32.mrf.mxu0
  %v3251 = vadd.f32 0.0, %v3250
  %3252 = vmatmul.f32.gmra.mxu0 %v3042
  %v3253 = vpop.f32.mrf.mxu0
  %v3254 = vadd.f32 0.0, %v3253
  %3255 = vmatmul.f32.gmra.mxu0 %v3045
  %v3256 = vpop.f32.mrf.mxu0
  %v3257 = vadd.f32 0.0, %v3256
  %3258 = vmatmul.f32.gmra.mxu0 %v3048
  %v3259 = vpop.f32.mrf.mxu0
  %v3260 = vadd.f32 0.0, %v3259
  %3261 = vmatmul.f32.gmra.mxu0 %v3051
  %v3262 = vpop.f32.mrf.mxu0
  %v3263 = vadd.f32 0.0, %v3262
  %3264 = vmatmul.f32.gmra.mxu0 %v3054
  %v3265 = vpop.f32.mrf.mxu0
  %v3266 = vadd.f32 0.0, %v3265
  %3267 = vmatmul.f32.gmra.mxu0 %v3057
  %v3268 = vpop.f32.mrf.mxu0
  %v3269 = vadd.f32 0.0, %v3268
  %3270 = vdwg.mxu0
  %v3271 = vadd.f32 %v2737, %v3080
  %v3272 = vadd.f32 %v2738, %v3083
  %v3273 = vadd.f32 %v2739, %v3086
  %v3274 = vadd.f32 %v2740, %v3089
  %v3275 = vadd.f32 %v2741, %v3092
  %v3276 = vadd.f32 %v2742, %v3095
  %v3277 = vadd.f32 %v2743, %v3098
  %v3278 = vadd.f32 %v2744, %v3101
  %v3279 = vadd.f32 %v2745, %v3104
  %v3280 = vadd.f32 %v2746, %v3107
  %v3281 = vadd.f32 %v2747, %v3110
  %v3282 = vadd.f32 %v2748, %v3113
  %v3283 = vadd.f32 %v2749, %v3116
  %v3284 = vadd.f32 %v2750, %v3119
  %v3285 = vadd.f32 %v2751, %v3122
  %v3286 = vadd.f32 %v2752, %v3125
  %v3287 = vadd.f32 %v2753, %v3128
  %v3288 = vadd.f32 %v2754, %v3131
  %v3289 = vadd.f32 %v2755, %v3134
  %v3290 = vadd.f32 %v2756, %v3137
  %v3291 = vadd.f32 %v2757, %v3140
  %v3292 = vadd.f32 %v2758, %v3143
  %v3293 = vadd.f32 %v2759, %v3146
  %v3294 = vadd.f32 %v2760, %v3149
  %v3295 = vadd.f32 %v2761, %v3152
  %v3296 = vadd.f32 %v2762, %v3155
  %v3297 = vadd.f32 %v2763, %v3158
  %v3298 = vadd.f32 %v2764, %v3161
  %v3299 = vadd.f32 %v2765, %v3164
  %v3300 = vadd.f32 %v2766, %v3167
  %v3301 = vadd.f32 %v2767, %v3170
  %v3302 = vadd.f32 %v2768, %v3173
  %v3303 = vadd.f32 %v2769, %v3176
  %v3304 = vadd.f32 %v2770, %v3179
  %v3305 = vadd.f32 %v2771, %v3182
  %v3306 = vadd.f32 %v2772, %v3185
  %v3307 = vadd.f32 %v2773, %v3188
  %v3308 = vadd.f32 %v2774, %v3191
  %v3309 = vadd.f32 %v2775, %v3194
  %v3310 = vadd.f32 %v2776, %v3197
  %v3311 = vadd.f32 %v2777, %v3200
  %v3312 = vadd.f32 %v2778, %v3203
  %v3313 = vadd.f32 %v2779, %v3206
  %v3314 = vadd.f32 %v2780, %v3209
  %v3315 = vadd.f32 %v2781, %v3212
  %v3316 = vadd.f32 %v2782, %v3215
  %v3317 = vadd.f32 %v2783, %v3218
  %v3318 = vadd.f32 %v2784, %v3221
  %v3319 = vadd.f32 %v2785, %v3224
  %v3320 = vadd.f32 %v2786, %v3227
  %v3321 = vadd.f32 %v2787, %v3230
  %v3322 = vadd.f32 %v2788, %v3233
  %v3323 = vadd.f32 %v2789, %v3236
  %v3324 = vadd.f32 %v2790, %v3239
  %v3325 = vadd.f32 %v2791, %v3242
  %v3326 = vadd.f32 %v2792, %v3245
  %v3327 = vadd.f32 %v2793, %v3248
  %v3328 = vadd.f32 %v2794, %v3251
  %v3329 = vadd.f32 %v2795, %v3254
  %v3330 = vadd.f32 %v2796, %v3257
  %v3331 = vadd.f32 %v2797, %v3260
  %v3332 = vadd.f32 %v2798, %v3263
  %v3333 = vadd.f32 %v2799, %v3266
  %v3334 = vadd.f32 %v2800, %v3269
  %s3335 = scalar_lea.vmem [#allocation2], 48
  %v3336 = vld [vmem:[%s3335] sm:$0xff]
  %v3337 = vld [vmem:[%s3335 + $0x8] sm:$0xff]
  %v3338 = vld [vmem:[%s3335 + $0x18] sm:$0xff]
  %v3339 = vld [vmem:[%s3335 + $0x20] sm:$0xff]
  %v3340 = vld [vmem:[%s3335 + $0x30] sm:$0xff]
  %v3341 = vld [vmem:[%s3335 + $0x38] sm:$0xff]
  %v3342 = vld [vmem:[%s3335 + $0x48] sm:$0xff]
  %v3343 = vld [vmem:[%s3335 + $0x50] sm:$0xff]
  %v3344 = vld [vmem:[%s3335 + $0x60] sm:$0xff]
  %v3345 = vld [vmem:[%s3335 + $0x68] sm:$0xff]
  %v3346 = vld [vmem:[%s3335 + $0x78] sm:$0xff]
  %v3347 = vld [vmem:[%s3335 + $0x80] sm:$0xff]
  %v3348 = vld [vmem:[%s3335 + $0x90] sm:$0xff]
  %v3349 = vld [vmem:[%s3335 + $0x98] sm:$0xff]
  %v3350 = vld [vmem:[%s3335 + $0xa8] sm:$0xff]
  %v3351 = vld [vmem:[%s3335 + $0xb0] sm:$0xff]
  %v3352 = vld [vmem:[%s3335 + $0xc0] sm:$0xff]
  %v3353 = vld [vmem:[%s3335 + $0xc8] sm:$0xff]
  %v3354 = vld [vmem:[%s3335 + $0xd8] sm:$0xff]
  %v3355 = vld [vmem:[%s3335 + $0xe0] sm:$0xff]
  %v3356 = vld [vmem:[%s3335 + $0xf0] sm:$0xff]
  %v3357 = vld [vmem:[%s3335 + $0xf8] sm:$0xff]
  %v3358 = vld [vmem:[%s3335 + $0x108] sm:$0xff]
  %v3359 = vld [vmem:[%s3335 + $0x110] sm:$0xff]
  %v3360 = vld [vmem:[%s3335 + $0x120] sm:$0xff]
  %v3361 = vld [vmem:[%s3335 + $0x128] sm:$0xff]
  %v3362 = vld [vmem:[%s3335 + $0x138] sm:$0xff]
  %v3363 = vld [vmem:[%s3335 + $0x140] sm:$0xff]
  %v3364 = vld [vmem:[%s3335 + $0x150] sm:$0xff]
  %v3365 = vld [vmem:[%s3335 + $0x158] sm:$0xff]
  %v3366 = vld [vmem:[%s3335 + $0x168] sm:$0xff]
  %v3367 = vld [vmem:[%s3335 + $0x170] sm:$0xff]
  %v3368 = vld [vmem:[%s3335 + $0x1b0] sm:$0xff]
  %v3369 = vld [vmem:[%s3335 + $0x1b8] sm:$0xff]
  %v3370 = vld [vmem:[%s3335 + $0x1c8] sm:$0xff]
  %v3371 = vld [vmem:[%s3335 + $0x1d0] sm:$0xff]
  %v3372 = vld [vmem:[%s3335 + $0x1e0] sm:$0xff]
  %v3373 = vld [vmem:[%s3335 + $0x1e8] sm:$0xff]
  %v3374 = vld [vmem:[%s3335 + $0x1f8] sm:$0xff]
  %v3375 = vld [vmem:[%s3335 + $0x200] sm:$0xff]
  %v3376 = vld [vmem:[%s3335 + $0x210] sm:$0xff]
  %v3377 = vld [vmem:[%s3335 + $0x218] sm:$0xff]
  %v3378 = vld [vmem:[%s3335 + $0x228] sm:$0xff]
  %v3379 = vld [vmem:[%s3335 + $0x230] sm:$0xff]
  %v3380 = vld [vmem:[%s3335 + $0x240] sm:$0xff]
  %v3381 = vld [vmem:[%s3335 + $0x248] sm:$0xff]
  %v3382 = vld [vmem:[%s3335 + $0x258] sm:$0xff]
  %v3383 = vld [vmem:[%s3335 + $0x260] sm:$0xff]
  %v3384 = vld [vmem:[%s3335 + $0x270] sm:$0xff]
  %v3385 = vld [vmem:[%s3335 + $0x278] sm:$0xff]
  %v3386 = vld [vmem:[%s3335 + $0x288] sm:$0xff]
  %v3387 = vld [vmem:[%s3335 + $0x290] sm:$0xff]
  %v3388 = vld [vmem:[%s3335 + $0x2a0] sm:$0xff]
  %v3389 = vld [vmem:[%s3335 + $0x2a8] sm:$0xff]
  %v3390 = vld [vmem:[%s3335 + $0x2b8] sm:$0xff]
  %v3391 = vld [vmem:[%s3335 + $0x2c0] sm:$0xff]
  %v3392 = vld [vmem:[%s3335 + $0x2d0] sm:$0xff]
  %v3393 = vld [vmem:[%s3335 + $0x2d8] sm:$0xff]
  %v3394 = vld [vmem:[%s3335 + $0x2e8] sm:$0xff]
  %v3395 = vld [vmem:[%s3335 + $0x2f0] sm:$0xff]
  %v3396 = vld [vmem:[%s3335 + $0x300] sm:$0xff]
  %v3397 = vld [vmem:[%s3335 + $0x308] sm:$0xff]
  %v3398 = vld [vmem:[%s3335 + $0x318] sm:$0xff]
  %v3399 = vld [vmem:[%s3335 + $0x320] sm:$0xff]
  %s3400 = scalar_lea.vmem %s1, 24
  %v3401 = vld [vmem:[%s3400] sm:$0xf]
  %v3403 = vsel %vm20, %v3336, 0
  %v3406 = vsel %vm20, %v3337, 0
  %v3409 = vsel %vm20, %v3338, 0
  %v3412 = vsel %vm20, %v3339, 0
  %v3415 = vsel %vm20, %v3340, 0
  %v3418 = vsel %vm20, %v3341, 0
  %v3421 = vsel %vm20, %v3342, 0
  %v3424 = vsel %vm20, %v3343, 0
  %v3427 = vsel %vm20, %v3344, 0
  %v3430 = vsel %vm20, %v3345, 0
  %v3433 = vsel %vm20, %v3346, 0
  %v3436 = vsel %vm20, %v3347, 0
  %v3439 = vsel %vm20, %v3348, 0
  %v3442 = vsel %vm20, %v3349, 0
  %v3445 = vsel %vm20, %v3350, 0
  %v3448 = vsel %vm20, %v3351, 0
  %v3451 = vsel %vm20, %v3352, 0
  %v3454 = vsel %vm20, %v3353, 0
  %v3457 = vsel %vm20, %v3354, 0
  %v3460 = vsel %vm20, %v3355, 0
  %v3463 = vsel %vm20, %v3356, 0
  %v3466 = vsel %vm20, %v3357, 0
  %v3469 = vsel %vm20, %v3358, 0
  %v3472 = vsel %vm20, %v3359, 0
  %v3475 = vsel %vm20, %v3360, 0
  %v3478 = vsel %vm20, %v3361, 0
  %v3481 = vsel %vm20, %v3362, 0
  %v3484 = vsel %vm20, %v3363, 0
  %v3487 = vsel %vm20, %v3364, 0
  %v3490 = vsel %vm20, %v3365, 0
  %v3493 = vsel %vm20, %v3366, 0
  %v3496 = vsel %vm20, %v3367, 0
  %v3499 = vsel %vm20, %v3368, 0
  %v3502 = vsel %vm20, %v3369, 0
  %v3505 = vsel %vm20, %v3370, 0
  %v3508 = vsel %vm20, %v3371, 0
  %v3511 = vsel %vm20, %v3372, 0
  %v3514 = vsel %vm20, %v3373, 0
  %v3517 = vsel %vm20, %v3374, 0
  %v3520 = vsel %vm20, %v3375, 0
  %v3523 = vsel %vm20, %v3376, 0
  %v3526 = vsel %vm20, %v3377, 0
  %v3529 = vsel %vm20, %v3378, 0
  %v3532 = vsel %vm20, %v3379, 0
  %v3535 = vsel %vm20, %v3380, 0
  %v3538 = vsel %vm20, %v3381, 0
  %v3541 = vsel %vm20, %v3382, 0
  %v3544 = vsel %vm20, %v3383, 0
  %v3547 = vsel %vm20, %v3384, 0
  %v3550 = vsel %vm20, %v3385, 0
  %v3553 = vsel %vm20, %v3386, 0
  %v3556 = vsel %vm20, %v3387, 0
  %v3559 = vsel %vm20, %v3388, 0
  %v3562 = vsel %vm20, %v3389, 0
  %v3565 = vsel %vm20, %v3390, 0
  %v3568 = vsel %vm20, %v3391, 0
  %v3571 = vsel %vm20, %v3392, 0
  %v3574 = vsel %vm20, %v3393, 0
  %v3577 = vsel %vm20, %v3394, 0
  %v3580 = vsel %vm20, %v3395, 0
  %v3583 = vsel %vm20, %v3396, 0
  %v3586 = vsel %vm20, %v3397, 0
  %v3589 = vsel %vm20, %v3398, 0
  %v3592 = vsel %vm20, %v3399, 0
  %v3595 = vsel %vm582, %v3401, 0
  %3597 = vmatpush.msra.mxu0 0.0
  %3598 = vmatpush.msra.mxu0 0.0
  %3599 = vmatpush.msra.mxu0 0.0
  %3600 = vmatpush.msra.mxu0 0.0
  %3601 = vmatpush.msra.mxu0 0.0
  %3602 = vmatpush.msra.mxu0 0.0
  %3603 = vmatpush.msra.mxu0 0.0
  %3604 = vmatpush.msra.mxu0 0.0
  %3605 = vmatpush.msra.mxu0 0.0
  %3606 = vmatpush.msra.mxu0 0.0
  %3607 = vmatpush.msra.mxu0 0.0
  %3608 = vmatpush.msra.mxu0 0.0
  %3609 = vmatpush.msra.mxu0 0.0
  %3610 = vmatpush.msra.mxu0 0.0
  %3611 = vmatpush.msra.mxu0 0.0
  %3612 = vmatpush.msra.mxu0 %v3595
  %3613 = vmatmul.f32.gmra.mxu0 %v3403
  %v3614 = vpop.f32.mrf.mxu0
  %v3615 = vadd.f32 0.0, %v3614
  %3616 = vmatmul.f32.gmra.mxu0 %v3406
  %v3617 = vpop.f32.mrf.mxu0
  %v3618 = vadd.f32 0.0, %v3617
  %3619 = vmatmul.f32.gmra.mxu0 %v3409
  %v3620 = vpop.f32.mrf.mxu0
  %v3621 = vadd.f32 0.0, %v3620
  %3622 = vmatmul.f32.gmra.mxu0 %v3412
  %v3623 = vpop.f32.mrf.mxu0
  %v3624 = vadd.f32 0.0, %v3623
  %3625 = vmatmul.f32.gmra.mxu0 %v3415
  %v3626 = vpop.f32.mrf.mxu0
  %v3627 = vadd.f32 0.0, %v3626
  %3628 = vmatmul.f32.gmra.mxu0 %v3418
  %v3629 = vpop.f32.mrf.mxu0
  %v3630 = vadd.f32 0.0, %v3629
  %3631 = vmatmul.f32.gmra.mxu0 %v3421
  %v3632 = vpop.f32.mrf.mxu0
  %v3633 = vadd.f32 0.0, %v3632
  %3634 = vmatmul.f32.gmra.mxu0 %v3424
  %v3635 = vpop.f32.mrf.mxu0
  %v3636 = vadd.f32 0.0, %v3635
  %3637 = vmatmul.f32.gmra.mxu0 %v3427
  %v3638 = vpop.f32.mrf.mxu0
  %v3639 = vadd.f32 0.0, %v3638
  %3640 = vmatmul.f32.gmra.mxu0 %v3430
  %v3641 = vpop.f32.mrf.mxu0
  %v3642 = vadd.f32 0.0, %v3641
  %3643 = vmatmul.f32.gmra.mxu0 %v3433
  %v3644 = vpop.f32.mrf.mxu0
  %v3645 = vadd.f32 0.0, %v3644
  %3646 = vmatmul.f32.gmra.mxu0 %v3436
  %v3647 = vpop.f32.mrf.mxu0
  %v3648 = vadd.f32 0.0, %v3647
  %3649 = vmatmul.f32.gmra.mxu0 %v3439
  %v3650 = vpop.f32.mrf.mxu0
  %v3651 = vadd.f32 0.0, %v3650
  %3652 = vmatmul.f32.gmra.mxu0 %v3442
  %v3653 = vpop.f32.mrf.mxu0
  %v3654 = vadd.f32 0.0, %v3653
  %3655 = vmatmul.f32.gmra.mxu0 %v3445
  %v3656 = vpop.f32.mrf.mxu0
  %v3657 = vadd.f32 0.0, %v3656
  %3658 = vmatmul.f32.gmra.mxu0 %v3448
  %v3659 = vpop.f32.mrf.mxu0
  %v3660 = vadd.f32 0.0, %v3659
  %3661 = vmatmul.f32.gmra.mxu0 %v3451
  %v3662 = vpop.f32.mrf.mxu0
  %v3663 = vadd.f32 0.0, %v3662
  %3664 = vmatmul.f32.gmra.mxu0 %v3454
  %v3665 = vpop.f32.mrf.mxu0
  %v3666 = vadd.f32 0.0, %v3665
  %3667 = vmatmul.f32.gmra.mxu0 %v3457
  %v3668 = vpop.f32.mrf.mxu0
  %v3669 = vadd.f32 0.0, %v3668
  %3670 = vmatmul.f32.gmra.mxu0 %v3460
  %v3671 = vpop.f32.mrf.mxu0
  %v3672 = vadd.f32 0.0, %v3671
  %3673 = vmatmul.f32.gmra.mxu0 %v3463
  %v3674 = vpop.f32.mrf.mxu0
  %v3675 = vadd.f32 0.0, %v3674
  %3676 = vmatmul.f32.gmra.mxu0 %v3466
  %v3677 = vpop.f32.mrf.mxu0
  %v3678 = vadd.f32 0.0, %v3677
  %3679 = vmatmul.f32.gmra.mxu0 %v3469
  %v3680 = vpop.f32.mrf.mxu0
  %v3681 = vadd.f32 0.0, %v3680
  %3682 = vmatmul.f32.gmra.mxu0 %v3472
  %v3683 = vpop.f32.mrf.mxu0
  %v3684 = vadd.f32 0.0, %v3683
  %3685 = vmatmul.f32.gmra.mxu0 %v3475
  %v3686 = vpop.f32.mrf.mxu0
  %v3687 = vadd.f32 0.0, %v3686
  %3688 = vmatmul.f32.gmra.mxu0 %v3478
  %v3689 = vpop.f32.mrf.mxu0
  %v3690 = vadd.f32 0.0, %v3689
  %3691 = vmatmul.f32.gmra.mxu0 %v3481
  %v3692 = vpop.f32.mrf.mxu0
  %v3693 = vadd.f32 0.0, %v3692
  %3694 = vmatmul.f32.gmra.mxu0 %v3484
  %v3695 = vpop.f32.mrf.mxu0
  %v3696 = vadd.f32 0.0, %v3695
  %3697 = vmatmul.f32.gmra.mxu0 %v3487
  %v3698 = vpop.f32.mrf.mxu0
  %v3699 = vadd.f32 0.0, %v3698
  %3700 = vmatmul.f32.gmra.mxu0 %v3490
  %v3701 = vpop.f32.mrf.mxu0
  %v3702 = vadd.f32 0.0, %v3701
  %3703 = vmatmul.f32.gmra.mxu0 %v3493
  %v3704 = vpop.f32.mrf.mxu0
  %v3705 = vadd.f32 0.0, %v3704
  %3706 = vmatmul.f32.gmra.mxu0 %v3496
  %v3707 = vpop.f32.mrf.mxu0
  %v3708 = vadd.f32 0.0, %v3707
  %3709 = vmatmul.f32.gmra.mxu0 %v3499
  %v3710 = vpop.f32.mrf.mxu0
  %v3711 = vadd.f32 0.0, %v3710
  %3712 = vmatmul.f32.gmra.mxu0 %v3502
  %v3713 = vpop.f32.mrf.mxu0
  %v3714 = vadd.f32 0.0, %v3713
  %3715 = vmatmul.f32.gmra.mxu0 %v3505
  %v3716 = vpop.f32.mrf.mxu0
  %v3717 = vadd.f32 0.0, %v3716
  %3718 = vmatmul.f32.gmra.mxu0 %v3508
  %v3719 = vpop.f32.mrf.mxu0
  %v3720 = vadd.f32 0.0, %v3719
  %3721 = vmatmul.f32.gmra.mxu0 %v3511
  %v3722 = vpop.f32.mrf.mxu0
  %v3723 = vadd.f32 0.0, %v3722
  %3724 = vmatmul.f32.gmra.mxu0 %v3514
  %v3725 = vpop.f32.mrf.mxu0
  %v3726 = vadd.f32 0.0, %v3725
  %3727 = vmatmul.f32.gmra.mxu0 %v3517
  %v3728 = vpop.f32.mrf.mxu0
  %v3729 = vadd.f32 0.0, %v3728
  %3730 = vmatmul.f32.gmra.mxu0 %v3520
  %v3731 = vpop.f32.mrf.mxu0
  %v3732 = vadd.f32 0.0, %v3731
  %3733 = vmatmul.f32.gmra.mxu0 %v3523
  %v3734 = vpop.f32.mrf.mxu0
  %v3735 = vadd.f32 0.0, %v3734
  %3736 = vmatmul.f32.gmra.mxu0 %v3526
  %v3737 = vpop.f32.mrf.mxu0
  %v3738 = vadd.f32 0.0, %v3737
  %3739 = vmatmul.f32.gmra.mxu0 %v3529
  %v3740 = vpop.f32.mrf.mxu0
  %v3741 = vadd.f32 0.0, %v3740
  %3742 = vmatmul.f32.gmra.mxu0 %v3532
  %v3743 = vpop.f32.mrf.mxu0
  %v3744 = vadd.f32 0.0, %v3743
  %3745 = vmatmul.f32.gmra.mxu0 %v3535
  %v3746 = vpop.f32.mrf.mxu0
  %v3747 = vadd.f32 0.0, %v3746
  %3748 = vmatmul.f32.gmra.mxu0 %v3538
  %v3749 = vpop.f32.mrf.mxu0
  %v3750 = vadd.f32 0.0, %v3749
  %3751 = vmatmul.f32.gmra.mxu0 %v3541
  %v3752 = vpop.f32.mrf.mxu0
  %v3753 = vadd.f32 0.0, %v3752
  %3754 = vmatmul.f32.gmra.mxu0 %v3544
  %v3755 = vpop.f32.mrf.mxu0
  %v3756 = vadd.f32 0.0, %v3755
  %3757 = vmatmul.f32.gmra.mxu0 %v3547
  %v3758 = vpop.f32.mrf.mxu0
  %v3759 = vadd.f32 0.0, %v3758
  %3760 = vmatmul.f32.gmra.mxu0 %v3550
  %v3761 = vpop.f32.mrf.mxu0
  %v3762 = vadd.f32 0.0, %v3761
  %3763 = vmatmul.f32.gmra.mxu0 %v3553
  %v3764 = vpop.f32.mrf.mxu0
  %v3765 = vadd.f32 0.0, %v3764
  %3766 = vmatmul.f32.gmra.mxu0 %v3556
  %v3767 = vpop.f32.mrf.mxu0
  %v3768 = vadd.f32 0.0, %v3767
  %3769 = vmatmul.f32.gmra.mxu0 %v3559
  %v3770 = vpop.f32.mrf.mxu0
  %v3771 = vadd.f32 0.0, %v3770
  %3772 = vmatmul.f32.gmra.mxu0 %v3562
  %v3773 = vpop.f32.mrf.mxu0
  %v3774 = vadd.f32 0.0, %v3773
  %3775 = vmatmul.f32.gmra.mxu0 %v3565
  %v3776 = vpop.f32.mrf.mxu0
  %v3777 = vadd.f32 0.0, %v3776
  %3778 = vmatmul.f32.gmra.mxu0 %v3568
  %v3779 = vpop.f32.mrf.mxu0
  %v3780 = vadd.f32 0.0, %v3779
  %3781 = vmatmul.f32.gmra.mxu0 %v3571
  %v3782 = vpop.f32.mrf.mxu0
  %v3783 = vadd.f32 0.0, %v3782
  %3784 = vmatmul.f32.gmra.mxu0 %v3574
  %v3785 = vpop.f32.mrf.mxu0
  %v3786 = vadd.f32 0.0, %v3785
  %3787 = vmatmul.f32.gmra.mxu0 %v3577
  %v3788 = vpop.f32.mrf.mxu0
  %v3789 = vadd.f32 0.0, %v3788
  %3790 = vmatmul.f32.gmra.mxu0 %v3580
  %v3791 = vpop.f32.mrf.mxu0
  %v3792 = vadd.f32 0.0, %v3791
  %3793 = vmatmul.f32.gmra.mxu0 %v3583
  %v3794 = vpop.f32.mrf.mxu0
  %v3795 = vadd.f32 0.0, %v3794
  %3796 = vmatmul.f32.gmra.mxu0 %v3586
  %v3797 = vpop.f32.mrf.mxu0
  %v3798 = vadd.f32 0.0, %v3797
  %3799 = vmatmul.f32.gmra.mxu0 %v3589
  %v3800 = vpop.f32.mrf.mxu0
  %v3801 = vadd.f32 0.0, %v3800
  %3802 = vmatmul.f32.gmra.mxu0 %v3592
  %v3803 = vpop.f32.mrf.mxu0
  %v3804 = vadd.f32 0.0, %v3803
  %3805 = vdwg.mxu0
  %v3806 = vadd.f32 %v3271, %v3615
  %v3807 = vadd.f32 %v3272, %v3618
  %v3808 = vadd.f32 %v3273, %v3621
  %v3809 = vadd.f32 %v3274, %v3624
  %v3810 = vadd.f32 %v3275, %v3627
  %v3811 = vadd.f32 %v3276, %v3630
  %v3812 = vadd.f32 %v3277, %v3633
  %v3813 = vadd.f32 %v3278, %v3636
  %v3814 = vadd.f32 %v3279, %v3639
  %v3815 = vadd.f32 %v3280, %v3642
  %v3816 = vadd.f32 %v3281, %v3645
  %v3817 = vadd.f32 %v3282, %v3648
  %v3818 = vadd.f32 %v3283, %v3651
  %v3819 = vadd.f32 %v3284, %v3654
  %v3820 = vadd.f32 %v3285, %v3657
  %v3821 = vadd.f32 %v3286, %v3660
  %v3822 = vadd.f32 %v3287, %v3663
  %v3823 = vadd.f32 %v3288, %v3666
  %v3824 = vadd.f32 %v3289, %v3669
  %v3825 = vadd.f32 %v3290, %v3672
  %v3826 = vadd.f32 %v3291, %v3675
  %v3827 = vadd.f32 %v3292, %v3678
  %v3828 = vadd.f32 %v3293, %v3681
  %v3829 = vadd.f32 %v3294, %v3684
  %v3830 = vadd.f32 %v3295, %v3687
  %v3831 = vadd.f32 %v3296, %v3690
  %v3832 = vadd.f32 %v3297, %v3693
  %v3833 = vadd.f32 %v3298, %v3696
  %v3834 = vadd.f32 %v3299, %v3699
  %v3835 = vadd.f32 %v3300, %v3702
  %v3836 = vadd.f32 %v3301, %v3705
  %v3837 = vadd.f32 %v3302, %v3708
  %v3838 = vadd.f32 %v3303, %v3711
  %v3839 = vadd.f32 %v3304, %v3714
  %v3840 = vadd.f32 %v3305, %v3717
  %v3841 = vadd.f32 %v3306, %v3720
  %v3842 = vadd.f32 %v3307, %v3723
  %v3843 = vadd.f32 %v3308, %v3726
  %v3844 = vadd.f32 %v3309, %v3729
  %v3845 = vadd.f32 %v3310, %v3732
  %v3846 = vadd.f32 %v3311, %v3735
  %v3847 = vadd.f32 %v3312, %v3738
  %v3848 = vadd.f32 %v3313, %v3741
  %v3849 = vadd.f32 %v3314, %v3744
  %v3850 = vadd.f32 %v3315, %v3747
  %v3851 = vadd.f32 %v3316, %v3750
  %v3852 = vadd.f32 %v3317, %v3753
  %v3853 = vadd.f32 %v3318, %v3756
  %v3854 = vadd.f32 %v3319, %v3759
  %v3855 = vadd.f32 %v3320, %v3762
  %v3856 = vadd.f32 %v3321, %v3765
  %v3857 = vadd.f32 %v3322, %v3768
  %v3858 = vadd.f32 %v3323, %v3771
  %v3859 = vadd.f32 %v3324, %v3774
  %v3860 = vadd.f32 %v3325, %v3777
  %v3861 = vadd.f32 %v3326, %v3780
  %v3862 = vadd.f32 %v3327, %v3783
  %v3863 = vadd.f32 %v3328, %v3786
  %v3864 = vadd.f32 %v3329, %v3789
  %v3865 = vadd.f32 %v3330, %v3792
  %v3866 = vadd.f32 %v3331, %v3795
  %v3867 = vadd.f32 %v3332, %v3798
  %v3868 = vadd.f32 %v3333, %v3801
  %v3869 = vadd.f32 %v3334, %v3804
  %v3870 = vld [vmem:[%s3335 + $0x1] sm:$0xff]
  %v3871 = vld [vmem:[%s3335 + $0x9] sm:$0xff]
  %v3872 = vld [vmem:[%s3335 + $0x19] sm:$0xff]
  %v3873 = vld [vmem:[%s3335 + $0x21] sm:$0xff]
  %v3874 = vld [vmem:[%s3335 + $0x31] sm:$0xff]
  %v3875 = vld [vmem:[%s3335 + $0x39] sm:$0xff]
  %v3876 = vld [vmem:[%s3335 + $0x49] sm:$0xff]
  %v3877 = vld [vmem:[%s3335 + $0x51] sm:$0xff]
  %v3878 = vld [vmem:[%s3335 + $0x61] sm:$0xff]
  %v3879 = vld [vmem:[%s3335 + $0x69] sm:$0xff]
  %v3880 = vld [vmem:[%s3335 + $0x79] sm:$0xff]
  %v3881 = vld [vmem:[%s3335 + $0x81] sm:$0xff]
  %v3882 = vld [vmem:[%s3335 + $0x91] sm:$0xff]
  %v3883 = vld [vmem:[%s3335 + $0x99] sm:$0xff]
  %v3884 = vld [vmem:[%s3335 + $0xa9] sm:$0xff]
  %v3885 = vld [vmem:[%s3335 + $0xb1] sm:$0xff]
  %v3886 = vld [vmem:[%s3335 + $0xc1] sm:$0xff]
  %v3887 = vld [vmem:[%s3335 + $0xc9] sm:$0xff]
  %v3888 = vld [vmem:[%s3335 + $0xd9] sm:$0xff]
  %v3889 = vld [vmem:[%s3335 + $0xe1] sm:$0xff]
  %v3890 = vld [vmem:[%s3335 + $0xf1] sm:$0xff]
  %v3891 = vld [vmem:[%s3335 + $0xf9] sm:$0xff]
  %v3892 = vld [vmem:[%s3335 + $0x109] sm:$0xff]
  %v3893 = vld [vmem:[%s3335 + $0x111] sm:$0xff]
  %v3894 = vld [vmem:[%s3335 + $0x121] sm:$0xff]
  %v3895 = vld [vmem:[%s3335 + $0x129] sm:$0xff]
  %v3896 = vld [vmem:[%s3335 + $0x139] sm:$0xff]
  %v3897 = vld [vmem:[%s3335 + $0x141] sm:$0xff]
  %v3898 = vld [vmem:[%s3335 + $0x151] sm:$0xff]
  %v3899 = vld [vmem:[%s3335 + $0x159] sm:$0xff]
  %v3900 = vld [vmem:[%s3335 + $0x169] sm:$0xff]
  %v3901 = vld [vmem:[%s3335 + $0x171] sm:$0xff]
  %v3902 = vld [vmem:[%s3335 + $0x1b1] sm:$0xff]
  %v3903 = vld [vmem:[%s3335 + $0x1b9] sm:$0xff]
  %v3904 = vld [vmem:[%s3335 + $0x1c9] sm:$0xff]
  %v3905 = vld [vmem:[%s3335 + $0x1d1] sm:$0xff]
  %v3906 = vld [vmem:[%s3335 + $0x1e1] sm:$0xff]
  %v3907 = vld [vmem:[%s3335 + $0x1e9] sm:$0xff]
  %v3908 = vld [vmem:[%s3335 + $0x1f9] sm:$0xff]
  %v3909 = vld [vmem:[%s3335 + $0x201] sm:$0xff]
  %v3910 = vld [vmem:[%s3335 + $0x211] sm:$0xff]
  %v3911 = vld [vmem:[%s3335 + $0x219] sm:$0xff]
  %v3912 = vld [vmem:[%s3335 + $0x229] sm:$0xff]
  %v3913 = vld [vmem:[%s3335 + $0x231] sm:$0xff]
  %v3914 = vld [vmem:[%s3335 + $0x241] sm:$0xff]
  %v3915 = vld [vmem:[%s3335 + $0x249] sm:$0xff]
  %v3916 = vld [vmem:[%s3335 + $0x259] sm:$0xff]
  %v3917 = vld [vmem:[%s3335 + $0x261] sm:$0xff]
  %v3918 = vld [vmem:[%s3335 + $0x271] sm:$0xff]
  %v3919 = vld [vmem:[%s3335 + $0x279] sm:$0xff]
  %v3920 = vld [vmem:[%s3335 + $0x289] sm:$0xff]
  %v3921 = vld [vmem:[%s3335 + $0x291] sm:$0xff]
  %v3922 = vld [vmem:[%s3335 + $0x2a1] sm:$0xff]
  %v3923 = vld [vmem:[%s3335 + $0x2a9] sm:$0xff]
  %v3924 = vld [vmem:[%s3335 + $0x2b9] sm:$0xff]
  %v3925 = vld [vmem:[%s3335 + $0x2c1] sm:$0xff]
  %v3926 = vld [vmem:[%s3335 + $0x2d1] sm:$0xff]
  %v3927 = vld [vmem:[%s3335 + $0x2d9] sm:$0xff]
  %v3928 = vld [vmem:[%s3335 + $0x2e9] sm:$0xff]
  %v3929 = vld [vmem:[%s3335 + $0x2f1] sm:$0xff]
  %v3930 = vld [vmem:[%s3335 + $0x301] sm:$0xff]
  %v3931 = vld [vmem:[%s3335 + $0x309] sm:$0xff]
  %v3932 = vld [vmem:[%s3335 + $0x319] sm:$0xff]
  %v3933 = vld [vmem:[%s3335 + $0x321] sm:$0xff]
  %s3934 = scalar_lea.vmem %s1, 28
  %v3935 = vld [vmem:[%s3934] sm:$0xf]
  %v3937 = vsel %vm20, %v3870, 0
  %v3940 = vsel %vm20, %v3871, 0
  %v3943 = vsel %vm20, %v3872, 0
  %v3946 = vsel %vm20, %v3873, 0
  %v3949 = vsel %vm20, %v3874, 0
  %v3952 = vsel %vm20, %v3875, 0
  %v3955 = vsel %vm20, %v3876, 0
  %v3958 = vsel %vm20, %v3877, 0
  %v3961 = vsel %vm20, %v3878, 0
  %v3964 = vsel %vm20, %v3879, 0
  %v3967 = vsel %vm20, %v3880, 0
  %v3970 = vsel %vm20, %v3881, 0
  %v3973 = vsel %vm20, %v3882, 0
  %v3976 = vsel %vm20, %v3883, 0
  %v3979 = vsel %vm20, %v3884, 0
  %v3982 = vsel %vm20, %v3885, 0
  %v3985 = vsel %vm20, %v3886, 0
  %v3988 = vsel %vm20, %v3887, 0
  %v3991 = vsel %vm20, %v3888, 0
  %v3994 = vsel %vm20, %v3889, 0
  %v3997 = vsel %vm20, %v3890, 0
  %v4000 = vsel %vm20, %v3891, 0
  %v4003 = vsel %vm20, %v3892, 0
  %v4006 = vsel %vm20, %v3893, 0
  %v4009 = vsel %vm20, %v3894, 0
  %v4012 = vsel %vm20, %v3895, 0
  %v4015 = vsel %vm20, %v3896, 0
  %v4018 = vsel %vm20, %v3897, 0
  %v4021 = vsel %vm20, %v3898, 0
  %v4024 = vsel %vm20, %v3899, 0
  %v4027 = vsel %vm20, %v3900, 0
  %v4030 = vsel %vm20, %v3901, 0
  %v4033 = vsel %vm20, %v3902, 0
  %v4036 = vsel %vm20, %v3903, 0
  %v4039 = vsel %vm20, %v3904, 0
  %v4042 = vsel %vm20, %v3905, 0
  %v4045 = vsel %vm20, %v3906, 0
  %v4048 = vsel %vm20, %v3907, 0
  %v4051 = vsel %vm20, %v3908, 0
  %v4054 = vsel %vm20, %v3909, 0
  %v4057 = vsel %vm20, %v3910, 0
  %v4060 = vsel %vm20, %v3911, 0
  %v4063 = vsel %vm20, %v3912, 0
  %v4066 = vsel %vm20, %v3913, 0
  %v4069 = vsel %vm20, %v3914, 0
  %v4072 = vsel %vm20, %v3915, 0
  %v4075 = vsel %vm20, %v3916, 0
  %v4078 = vsel %vm20, %v3917, 0
  %v4081 = vsel %vm20, %v3918, 0
  %v4084 = vsel %vm20, %v3919, 0
  %v4087 = vsel %vm20, %v3920, 0
  %v4090 = vsel %vm20, %v3921, 0
  %v4093 = vsel %vm20, %v3922, 0
  %v4096 = vsel %vm20, %v3923, 0
  %v4099 = vsel %vm20, %v3924, 0
  %v4102 = vsel %vm20, %v3925, 0
  %v4105 = vsel %vm20, %v3926, 0
  %v4108 = vsel %vm20, %v3927, 0
  %v4111 = vsel %vm20, %v3928, 0
  %v4114 = vsel %vm20, %v3929, 0
  %v4117 = vsel %vm20, %v3930, 0
  %v4120 = vsel %vm20, %v3931, 0
  %v4123 = vsel %vm20, %v3932, 0
  %v4126 = vsel %vm20, %v3933, 0
  %v4129 = vsel %vm582, %v3935, 0
  %4131 = vmatpush.msra.mxu0 0.0
  %4132 = vmatpush.msra.mxu0 0.0
  %4133 = vmatpush.msra.mxu0 0.0
  %4134 = vmatpush.msra.mxu0 0.0
  %4135 = vmatpush.msra.mxu0 0.0
  %4136 = vmatpush.msra.mxu0 0.0
  %4137 = vmatpush.msra.mxu0 0.0
  %4138 = vmatpush.msra.mxu0 0.0
  %4139 = vmatpush.msra.mxu0 0.0
  %4140 = vmatpush.msra.mxu0 0.0
  %4141 = vmatpush.msra.mxu0 0.0
  %4142 = vmatpush.msra.mxu0 0.0
  %4143 = vmatpush.msra.mxu0 0.0
  %4144 = vmatpush.msra.mxu0 0.0
  %4145 = vmatpush.msra.mxu0 0.0
  %4146 = vmatpush.msra.mxu0 %v4129
  %4147 = vmatmul.f32.gmra.mxu0 %v3937
  %v4148 = vpop.f32.mrf.mxu0
  %v4149 = vadd.f32 0.0, %v4148
  %4150 = vmatmul.f32.gmra.mxu0 %v3940
  %v4151 = vpop.f32.mrf.mxu0
  %v4152 = vadd.f32 0.0, %v4151
  %4153 = vmatmul.f32.gmra.mxu0 %v3943
  %v4154 = vpop.f32.mrf.mxu0
  %v4155 = vadd.f32 0.0, %v4154
  %4156 = vmatmul.f32.gmra.mxu0 %v3946
  %v4157 = vpop.f32.mrf.mxu0
  %v4158 = vadd.f32 0.0, %v4157
  %4159 = vmatmul.f32.gmra.mxu0 %v3949
  %v4160 = vpop.f32.mrf.mxu0
  %v4161 = vadd.f32 0.0, %v4160
  %4162 = vmatmul.f32.gmra.mxu0 %v3952
  %v4163 = vpop.f32.mrf.mxu0
  %v4164 = vadd.f32 0.0, %v4163
  %4165 = vmatmul.f32.gmra.mxu0 %v3955
  %v4166 = vpop.f32.mrf.mxu0
  %v4167 = vadd.f32 0.0, %v4166
  %4168 = vmatmul.f32.gmra.mxu0 %v3958
  %v4169 = vpop.f32.mrf.mxu0
  %v4170 = vadd.f32 0.0, %v4169
  %4171 = vmatmul.f32.gmra.mxu0 %v3961
  %v4172 = vpop.f32.mrf.mxu0
  %v4173 = vadd.f32 0.0, %v4172
  %4174 = vmatmul.f32.gmra.mxu0 %v3964
  %v4175 = vpop.f32.mrf.mxu0
  %v4176 = vadd.f32 0.0, %v4175
  %4177 = vmatmul.f32.gmra.mxu0 %v3967
  %v4178 = vpop.f32.mrf.mxu0
  %v4179 = vadd.f32 0.0, %v4178
  %4180 = vmatmul.f32.gmra.mxu0 %v3970
  %v4181 = vpop.f32.mrf.mxu0
  %v4182 = vadd.f32 0.0, %v4181
  %4183 = vmatmul.f32.gmra.mxu0 %v3973
  %v4184 = vpop.f32.mrf.mxu0
  %v4185 = vadd.f32 0.0, %v4184
  %4186 = vmatmul.f32.gmra.mxu0 %v3976
  %v4187 = vpop.f32.mrf.mxu0
  %v4188 = vadd.f32 0.0, %v4187
  %4189 = vmatmul.f32.gmra.mxu0 %v3979
  %v4190 = vpop.f32.mrf.mxu0
  %v4191 = vadd.f32 0.0, %v4190
  %4192 = vmatmul.f32.gmra.mxu0 %v3982
  %v4193 = vpop.f32.mrf.mxu0
  %v4194 = vadd.f32 0.0, %v4193
  %4195 = vmatmul.f32.gmra.mxu0 %v3985
  %v4196 = vpop.f32.mrf.mxu0
  %v4197 = vadd.f32 0.0, %v4196
  %4198 = vmatmul.f32.gmra.mxu0 %v3988
  %v4199 = vpop.f32.mrf.mxu0
  %v4200 = vadd.f32 0.0, %v4199
  %4201 = vmatmul.f32.gmra.mxu0 %v3991
  %v4202 = vpop.f32.mrf.mxu0
  %v4203 = vadd.f32 0.0, %v4202
  %4204 = vmatmul.f32.gmra.mxu0 %v3994
  %v4205 = vpop.f32.mrf.mxu0
  %v4206 = vadd.f32 0.0, %v4205
  %4207 = vmatmul.f32.gmra.mxu0 %v3997
  %v4208 = vpop.f32.mrf.mxu0
  %v4209 = vadd.f32 0.0, %v4208
  %4210 = vmatmul.f32.gmra.mxu0 %v4000
  %v4211 = vpop.f32.mrf.mxu0
  %v4212 = vadd.f32 0.0, %v4211
  %4213 = vmatmul.f32.gmra.mxu0 %v4003
  %v4214 = vpop.f32.mrf.mxu0
  %v4215 = vadd.f32 0.0, %v4214
  %4216 = vmatmul.f32.gmra.mxu0 %v4006
  %v4217 = vpop.f32.mrf.mxu0
  %v4218 = vadd.f32 0.0, %v4217
  %4219 = vmatmul.f32.gmra.mxu0 %v4009
  %v4220 = vpop.f32.mrf.mxu0
  %v4221 = vadd.f32 0.0, %v4220
  %4222 = vmatmul.f32.gmra.mxu0 %v4012
  %v4223 = vpop.f32.mrf.mxu0
  %v4224 = vadd.f32 0.0, %v4223
  %4225 = vmatmul.f32.gmra.mxu0 %v4015
  %v4226 = vpop.f32.mrf.mxu0
  %v4227 = vadd.f32 0.0, %v4226
  %4228 = vmatmul.f32.gmra.mxu0 %v4018
  %v4229 = vpop.f32.mrf.mxu0
  %v4230 = vadd.f32 0.0, %v4229
  %4231 = vmatmul.f32.gmra.mxu0 %v4021
  %v4232 = vpop.f32.mrf.mxu0
  %v4233 = vadd.f32 0.0, %v4232
  %4234 = vmatmul.f32.gmra.mxu0 %v4024
  %v4235 = vpop.f32.mrf.mxu0
  %v4236 = vadd.f32 0.0, %v4235
  %4237 = vmatmul.f32.gmra.mxu0 %v4027
  %v4238 = vpop.f32.mrf.mxu0
  %v4239 = vadd.f32 0.0, %v4238
  %4240 = vmatmul.f32.gmra.mxu0 %v4030
  %v4241 = vpop.f32.mrf.mxu0
  %v4242 = vadd.f32 0.0, %v4241
  %4243 = vmatmul.f32.gmra.mxu0 %v4033
  %v4244 = vpop.f32.mrf.mxu0
  %v4245 = vadd.f32 0.0, %v4244
  %4246 = vmatmul.f32.gmra.mxu0 %v4036
  %v4247 = vpop.f32.mrf.mxu0
  %v4248 = vadd.f32 0.0, %v4247
  %4249 = vmatmul.f32.gmra.mxu0 %v4039
  %v4250 = vpop.f32.mrf.mxu0
  %v4251 = vadd.f32 0.0, %v4250
  %4252 = vmatmul.f32.gmra.mxu0 %v4042
  %v4253 = vpop.f32.mrf.mxu0
  %v4254 = vadd.f32 0.0, %v4253
  %4255 = vmatmul.f32.gmra.mxu0 %v4045
  %v4256 = vpop.f32.mrf.mxu0
  %v4257 = vadd.f32 0.0, %v4256
  %4258 = vmatmul.f32.gmra.mxu0 %v4048
  %v4259 = vpop.f32.mrf.mxu0
  %v4260 = vadd.f32 0.0, %v4259
  %4261 = vmatmul.f32.gmra.mxu0 %v4051
  %v4262 = vpop.f32.mrf.mxu0
  %v4263 = vadd.f32 0.0, %v4262
  %4264 = vmatmul.f32.gmra.mxu0 %v4054
  %v4265 = vpop.f32.mrf.mxu0
  %v4266 = vadd.f32 0.0, %v4265
  %4267 = vmatmul.f32.gmra.mxu0 %v4057
  %v4268 = vpop.f32.mrf.mxu0
  %v4269 = vadd.f32 0.0, %v4268
  %4270 = vmatmul.f32.gmra.mxu0 %v4060
  %v4271 = vpop.f32.mrf.mxu0
  %v4272 = vadd.f32 0.0, %v4271
  %4273 = vmatmul.f32.gmra.mxu0 %v4063
  %v4274 = vpop.f32.mrf.mxu0
  %v4275 = vadd.f32 0.0, %v4274
  %4276 = vmatmul.f32.gmra.mxu0 %v4066
  %v4277 = vpop.f32.mrf.mxu0
  %v4278 = vadd.f32 0.0, %v4277
  %4279 = vmatmul.f32.gmra.mxu0 %v4069
  %v4280 = vpop.f32.mrf.mxu0
  %v4281 = vadd.f32 0.0, %v4280
  %4282 = vmatmul.f32.gmra.mxu0 %v4072
  %v4283 = vpop.f32.mrf.mxu0
  %v4284 = vadd.f32 0.0, %v4283
  %4285 = vmatmul.f32.gmra.mxu0 %v4075
  %v4286 = vpop.f32.mrf.mxu0
  %v4287 = vadd.f32 0.0, %v4286
  %4288 = vmatmul.f32.gmra.mxu0 %v4078
  %v4289 = vpop.f32.mrf.mxu0
  %v4290 = vadd.f32 0.0, %v4289
  %4291 = vmatmul.f32.gmra.mxu0 %v4081
  %v4292 = vpop.f32.mrf.mxu0
  %v4293 = vadd.f32 0.0, %v4292
  %4294 = vmatmul.f32.gmra.mxu0 %v4084
  %v4295 = vpop.f32.mrf.mxu0
  %v4296 = vadd.f32 0.0, %v4295
  %4297 = vmatmul.f32.gmra.mxu0 %v4087
  %v4298 = vpop.f32.mrf.mxu0
  %v4299 = vadd.f32 0.0, %v4298
  %4300 = vmatmul.f32.gmra.mxu0 %v4090
  %v4301 = vpop.f32.mrf.mxu0
  %v4302 = vadd.f32 0.0, %v4301
  %4303 = vmatmul.f32.gmra.mxu0 %v4093
  %v4304 = vpop.f32.mrf.mxu0
  %v4305 = vadd.f32 0.0, %v4304
  %4306 = vmatmul.f32.gmra.mxu0 %v4096
  %v4307 = vpop.f32.mrf.mxu0
  %v4308 = vadd.f32 0.0, %v4307
  %4309 = vmatmul.f32.gmra.mxu0 %v4099
  %v4310 = vpop.f32.mrf.mxu0
  %v4311 = vadd.f32 0.0, %v4310
  %4312 = vmatmul.f32.gmra.mxu0 %v4102
  %v4313 = vpop.f32.mrf.mxu0
  %v4314 = vadd.f32 0.0, %v4313
  %4315 = vmatmul.f32.gmra.mxu0 %v4105
  %v4316 = vpop.f32.mrf.mxu0
  %v4317 = vadd.f32 0.0, %v4316
  %4318 = vmatmul.f32.gmra.mxu0 %v4108
  %v4319 = vpop.f32.mrf.mxu0
  %v4320 = vadd.f32 0.0, %v4319
  %4321 = vmatmul.f32.gmra.mxu0 %v4111
  %v4322 = vpop.f32.mrf.mxu0
  %v4323 = vadd.f32 0.0, %v4322
  %4324 = vmatmul.f32.gmra.mxu0 %v4114
  %v4325 = vpop.f32.mrf.mxu0
  %v4326 = vadd.f32 0.0, %v4325
  %4327 = vmatmul.f32.gmra.mxu0 %v4117
  %v4328 = vpop.f32.mrf.mxu0
  %v4329 = vadd.f32 0.0, %v4328
  %4330 = vmatmul.f32.gmra.mxu0 %v4120
  %v4331 = vpop.f32.mrf.mxu0
  %v4332 = vadd.f32 0.0, %v4331
  %4333 = vmatmul.f32.gmra.mxu0 %v4123
  %v4334 = vpop.f32.mrf.mxu0
  %v4335 = vadd.f32 0.0, %v4334
  %4336 = vmatmul.f32.gmra.mxu0 %v4126
  %v4337 = vpop.f32.mrf.mxu0
  %v4338 = vadd.f32 0.0, %v4337
  %4339 = vdwg.mxu0
  %v4340 = vadd.f32 %v3806, %v4149
  %v4341 = vadd.f32 %v3807, %v4152
  %v4342 = vadd.f32 %v3808, %v4155
  %v4343 = vadd.f32 %v3809, %v4158
  %v4344 = vadd.f32 %v3810, %v4161
  %v4345 = vadd.f32 %v3811, %v4164
  %v4346 = vadd.f32 %v3812, %v4167
  %v4347 = vadd.f32 %v3813, %v4170
  %v4348 = vadd.f32 %v3814, %v4173
  %v4349 = vadd.f32 %v3815, %v4176
  %v4350 = vadd.f32 %v3816, %v4179
  %v4351 = vadd.f32 %v3817, %v4182
  %v4352 = vadd.f32 %v3818, %v4185
  %v4353 = vadd.f32 %v3819, %v4188
  %v4354 = vadd.f32 %v3820, %v4191
  %v4355 = vadd.f32 %v3821, %v4194
  %v4356 = vadd.f32 %v3822, %v4197
  %v4357 = vadd.f32 %v3823, %v4200
  %v4358 = vadd.f32 %v3824, %v4203
  %v4359 = vadd.f32 %v3825, %v4206
  %v4360 = vadd.f32 %v3826, %v4209
  %v4361 = vadd.f32 %v3827, %v4212
  %v4362 = vadd.f32 %v3828, %v4215
  %v4363 = vadd.f32 %v3829, %v4218
  %v4364 = vadd.f32 %v3830, %v4221
  %v4365 = vadd.f32 %v3831, %v4224
  %v4366 = vadd.f32 %v3832, %v4227
  %v4367 = vadd.f32 %v3833, %v4230
  %v4368 = vadd.f32 %v3834, %v4233
  %v4369 = vadd.f32 %v3835, %v4236
  %v4370 = vadd.f32 %v3836, %v4239
  %v4371 = vadd.f32 %v3837, %v4242
  %v4372 = vadd.f32 %v3838, %v4245
  %v4373 = vadd.f32 %v3839, %v4248
  %v4374 = vadd.f32 %v3840, %v4251
  %v4375 = vadd.f32 %v3841, %v4254
  %v4376 = vadd.f32 %v3842, %v4257
  %v4377 = vadd.f32 %v3843, %v4260
  %v4378 = vadd.f32 %v3844, %v4263
  %v4379 = vadd.f32 %v3845, %v4266
  %v4380 = vadd.f32 %v3846, %v4269
  %v4381 = vadd.f32 %v3847, %v4272
  %v4382 = vadd.f32 %v3848, %v4275
  %v4383 = vadd.f32 %v3849, %v4278
  %v4384 = vadd.f32 %v3850, %v4281
  %v4385 = vadd.f32 %v3851, %v4284
  %v4386 = vadd.f32 %v3852, %v4287
  %v4387 = vadd.f32 %v3853, %v4290
  %v4388 = vadd.f32 %v3854, %v4293
  %v4389 = vadd.f32 %v3855, %v4296
  %v4390 = vadd.f32 %v3856, %v4299
  %v4391 = vadd.f32 %v3857, %v4302
  %v4392 = vadd.f32 %v3858, %v4305
  %v4393 = vadd.f32 %v3859, %v4308
  %v4394 = vadd.f32 %v3860, %v4311
  %v4395 = vadd.f32 %v3861, %v4314
  %v4396 = vadd.f32 %v3862, %v4317
  %v4397 = vadd.f32 %v3863, %v4320
  %v4398 = vadd.f32 %v3864, %v4323
  %v4399 = vadd.f32 %v3865, %v4326
  %v4400 = vadd.f32 %v3866, %v4329
  %v4401 = vadd.f32 %v3867, %v4332
  %v4402 = vadd.f32 %v3868, %v4335
  %v4403 = vadd.f32 %v3869, %v4338
  %v4404 = vld [vmem:[%s3335 + $0x2] sm:$0xff]
  %v4405 = vld [vmem:[%s3335 + $0xa] sm:$0xff]
  %v4406 = vld [vmem:[%s3335 + $0x1a] sm:$0xff]
  %v4407 = vld [vmem:[%s3335 + $0x22] sm:$0xff]
  %v4408 = vld [vmem:[%s3335 + $0x32] sm:$0xff]
  %v4409 = vld [vmem:[%s3335 + $0x3a] sm:$0xff]
  %v4410 = vld [vmem:[%s3335 + $0x4a] sm:$0xff]
  %v4411 = vld [vmem:[%s3335 + $0x52] sm:$0xff]
  %v4412 = vld [vmem:[%s3335 + $0x62] sm:$0xff]
  %v4413 = vld [vmem:[%s3335 + $0x6a] sm:$0xff]
  %v4414 = vld [vmem:[%s3335 + $0x7a] sm:$0xff]
  %v4415 = vld [vmem:[%s3335 + $0x82] sm:$0xff]
  %v4416 = vld [vmem:[%s3335 + $0x92] sm:$0xff]
  %v4417 = vld [vmem:[%s3335 + $0x9a] sm:$0xff]
  %v4418 = vld [vmem:[%s3335 + $0xaa] sm:$0xff]
  %v4419 = vld [vmem:[%s3335 + $0xb2] sm:$0xff]
  %v4420 = vld [vmem:[%s3335 + $0xc2] sm:$0xff]
  %v4421 = vld [vmem:[%s3335 + $0xca] sm:$0xff]
  %v4422 = vld [vmem:[%s3335 + $0xda] sm:$0xff]
  %v4423 = vld [vmem:[%s3335 + $0xe2] sm:$0xff]
  %v4424 = vld [vmem:[%s3335 + $0xf2] sm:$0xff]
  %v4425 = vld [vmem:[%s3335 + $0xfa] sm:$0xff]
  %v4426 = vld [vmem:[%s3335 + $0x10a] sm:$0xff]
  %v4427 = vld [vmem:[%s3335 + $0x112] sm:$0xff]
  %v4428 = vld [vmem:[%s3335 + $0x122] sm:$0xff]
  %v4429 = vld [vmem:[%s3335 + $0x12a] sm:$0xff]
  %v4430 = vld [vmem:[%s3335 + $0x13a] sm:$0xff]
  %v4431 = vld [vmem:[%s3335 + $0x142] sm:$0xff]
  %v4432 = vld [vmem:[%s3335 + $0x152] sm:$0xff]
  %v4433 = vld [vmem:[%s3335 + $0x15a] sm:$0xff]
  %v4434 = vld [vmem:[%s3335 + $0x16a] sm:$0xff]
  %v4435 = vld [vmem:[%s3335 + $0x172] sm:$0xff]
  %v4436 = vld [vmem:[%s3335 + $0x1b2] sm:$0xff]
  %v4437 = vld [vmem:[%s3335 + $0x1ba] sm:$0xff]
  %v4438 = vld [vmem:[%s3335 + $0x1ca] sm:$0xff]
  %v4439 = vld [vmem:[%s3335 + $0x1d2] sm:$0xff]
  %v4440 = vld [vmem:[%s3335 + $0x1e2] sm:$0xff]
  %v4441 = vld [vmem:[%s3335 + $0x1ea] sm:$0xff]
  %v4442 = vld [vmem:[%s3335 + $0x1fa] sm:$0xff]
  %v4443 = vld [vmem:[%s3335 + $0x202] sm:$0xff]
  %v4444 = vld [vmem:[%s3335 + $0x212] sm:$0xff]
  %v4445 = vld [vmem:[%s3335 + $0x21a] sm:$0xff]
  %v4446 = vld [vmem:[%s3335 + $0x22a] sm:$0xff]
  %v4447 = vld [vmem:[%s3335 + $0x232] sm:$0xff]
  %v4448 = vld [vmem:[%s3335 + $0x242] sm:$0xff]
  %v4449 = vld [vmem:[%s3335 + $0x24a] sm:$0xff]
  %v4450 = vld [vmem:[%s3335 + $0x25a] sm:$0xff]
  %v4451 = vld [vmem:[%s3335 + $0x262] sm:$0xff]
  %v4452 = vld [vmem:[%s3335 + $0x272] sm:$0xff]
  %v4453 = vld [vmem:[%s3335 + $0x27a] sm:$0xff]
  %v4454 = vld [vmem:[%s3335 + $0x28a] sm:$0xff]
  %v4455 = vld [vmem:[%s3335 + $0x292] sm:$0xff]
  %v4456 = vld [vmem:[%s3335 + $0x2a2] sm:$0xff]
  %v4457 = vld [vmem:[%s3335 + $0x2aa] sm:$0xff]
  %v4458 = vld [vmem:[%s3335 + $0x2ba] sm:$0xff]
  %v4459 = vld [vmem:[%s3335 + $0x2c2] sm:$0xff]
  %v4460 = vld [vmem:[%s3335 + $0x2d2] sm:$0xff]
  %v4461 = vld [vmem:[%s3335 + $0x2da] sm:$0xff]
  %v4462 = vld [vmem:[%s3335 + $0x2ea] sm:$0xff]
  %v4463 = vld [vmem:[%s3335 + $0x2f2] sm:$0xff]
  %v4464 = vld [vmem:[%s3335 + $0x302] sm:$0xff]
  %v4465 = vld [vmem:[%s3335 + $0x30a] sm:$0xff]
  %v4466 = vld [vmem:[%s3335 + $0x31a] sm:$0xff]
  %v4467 = vld [vmem:[%s3335 + $0x322] sm:$0xff]
  %s4468 = scalar_lea.vmem %s1, 32
  %v4469 = vld [vmem:[%s4468] sm:$0xf]
  %v4471 = vsel %vm20, %v4404, 0
  %v4474 = vsel %vm20, %v4405, 0
  %v4477 = vsel %vm20, %v4406, 0
  %v4480 = vsel %vm20, %v4407, 0
  %v4483 = vsel %vm20, %v4408, 0
  %v4486 = vsel %vm20, %v4409, 0
  %v4489 = vsel %vm20, %v4410, 0
  %v4492 = vsel %vm20, %v4411, 0
  %v4495 = vsel %vm20, %v4412, 0
  %v4498 = vsel %vm20, %v4413, 0
  %v4501 = vsel %vm20, %v4414, 0
  %v4504 = vsel %vm20, %v4415, 0
  %v4507 = vsel %vm20, %v4416, 0
  %v4510 = vsel %vm20, %v4417, 0
  %v4513 = vsel %vm20, %v4418, 0
  %v4516 = vsel %vm20, %v4419, 0
  %v4519 = vsel %vm20, %v4420, 0
  %v4522 = vsel %vm20, %v4421, 0
  %v4525 = vsel %vm20, %v4422, 0
  %v4528 = vsel %vm20, %v4423, 0
  %v4531 = vsel %vm20, %v4424, 0
  %v4534 = vsel %vm20, %v4425, 0
  %v4537 = vsel %vm20, %v4426, 0
  %v4540 = vsel %vm20, %v4427, 0
  %v4543 = vsel %vm20, %v4428, 0
  %v4546 = vsel %vm20, %v4429, 0
  %v4549 = vsel %vm20, %v4430, 0
  %v4552 = vsel %vm20, %v4431, 0
  %v4555 = vsel %vm20, %v4432, 0
  %v4558 = vsel %vm20, %v4433, 0
  %v4561 = vsel %vm20, %v4434, 0
  %v4564 = vsel %vm20, %v4435, 0
  %v4567 = vsel %vm20, %v4436, 0
  %v4570 = vsel %vm20, %v4437, 0
  %v4573 = vsel %vm20, %v4438, 0
  %v4576 = vsel %vm20, %v4439, 0
  %v4579 = vsel %vm20, %v4440, 0
  %v4582 = vsel %vm20, %v4441, 0
  %v4585 = vsel %vm20, %v4442, 0
  %v4588 = vsel %vm20, %v4443, 0
  %v4591 = vsel %vm20, %v4444, 0
  %v4594 = vsel %vm20, %v4445, 0
  %v4597 = vsel %vm20, %v4446, 0
  %v4600 = vsel %vm20, %v4447, 0
  %v4603 = vsel %vm20, %v4448, 0
  %v4606 = vsel %vm20, %v4449, 0
  %v4609 = vsel %vm20, %v4450, 0
  %v4612 = vsel %vm20, %v4451, 0
  %v4615 = vsel %vm20, %v4452, 0
  %v4618 = vsel %vm20, %v4453, 0
  %v4621 = vsel %vm20, %v4454, 0
  %v4624 = vsel %vm20, %v4455, 0
  %v4627 = vsel %vm20, %v4456, 0
  %v4630 = vsel %vm20, %v4457, 0
  %v4633 = vsel %vm20, %v4458, 0
  %v4636 = vsel %vm20, %v4459, 0
  %v4639 = vsel %vm20, %v4460, 0
  %v4642 = vsel %vm20, %v4461, 0
  %v4645 = vsel %vm20, %v4462, 0
  %v4648 = vsel %vm20, %v4463, 0
  %v4651 = vsel %vm20, %v4464, 0
  %v4654 = vsel %vm20, %v4465, 0
  %v4657 = vsel %vm20, %v4466, 0
  %v4660 = vsel %vm20, %v4467, 0
  %v4663 = vsel %vm582, %v4469, 0
  %4665 = vmatpush.msra.mxu0 0.0
  %4666 = vmatpush.msra.mxu0 0.0
  %4667 = vmatpush.msra.mxu0 0.0
  %4668 = vmatpush.msra.mxu0 0.0
  %4669 = vmatpush.msra.mxu0 0.0
  %4670 = vmatpush.msra.mxu0 0.0
  %4671 = vmatpush.msra.mxu0 0.0
  %4672 = vmatpush.msra.mxu0 0.0
  %4673 = vmatpush.msra.mxu0 0.0
  %4674 = vmatpush.msra.mxu0 0.0
  %4675 = vmatpush.msra.mxu0 0.0
  %4676 = vmatpush.msra.mxu0 0.0
  %4677 = vmatpush.msra.mxu0 0.0
  %4678 = vmatpush.msra.mxu0 0.0
  %4679 = vmatpush.msra.mxu0 0.0
  %4680 = vmatpush.msra.mxu0 %v4663
  %4681 = vmatmul.f32.gmra.mxu0 %v4471
  %v4682 = vpop.f32.mrf.mxu0
  %v4683 = vadd.f32 0.0, %v4682
  %4684 = vmatmul.f32.gmra.mxu0 %v4474
  %v4685 = vpop.f32.mrf.mxu0
  %v4686 = vadd.f32 0.0, %v4685
  %4687 = vmatmul.f32.gmra.mxu0 %v4477
  %v4688 = vpop.f32.mrf.mxu0
  %v4689 = vadd.f32 0.0, %v4688
  %4690 = vmatmul.f32.gmra.mxu0 %v4480
  %v4691 = vpop.f32.mrf.mxu0
  %v4692 = vadd.f32 0.0, %v4691
  %4693 = vmatmul.f32.gmra.mxu0 %v4483
  %v4694 = vpop.f32.mrf.mxu0
  %v4695 = vadd.f32 0.0, %v4694
  %4696 = vmatmul.f32.gmra.mxu0 %v4486
  %v4697 = vpop.f32.mrf.mxu0
  %v4698 = vadd.f32 0.0, %v4697
  %4699 = vmatmul.f32.gmra.mxu0 %v4489
  %v4700 = vpop.f32.mrf.mxu0
  %v4701 = vadd.f32 0.0, %v4700
  %4702 = vmatmul.f32.gmra.mxu0 %v4492
  %v4703 = vpop.f32.mrf.mxu0
  %v4704 = vadd.f32 0.0, %v4703
  %4705 = vmatmul.f32.gmra.mxu0 %v4495
  %v4706 = vpop.f32.mrf.mxu0
  %v4707 = vadd.f32 0.0, %v4706
  %4708 = vmatmul.f32.gmra.mxu0 %v4498
  %v4709 = vpop.f32.mrf.mxu0
  %v4710 = vadd.f32 0.0, %v4709
  %4711 = vmatmul.f32.gmra.mxu0 %v4501
  %v4712 = vpop.f32.mrf.mxu0
  %v4713 = vadd.f32 0.0, %v4712
  %4714 = vmatmul.f32.gmra.mxu0 %v4504
  %v4715 = vpop.f32.mrf.mxu0
  %v4716 = vadd.f32 0.0, %v4715
  %4717 = vmatmul.f32.gmra.mxu0 %v4507
  %v4718 = vpop.f32.mrf.mxu0
  %v4719 = vadd.f32 0.0, %v4718
  %4720 = vmatmul.f32.gmra.mxu0 %v4510
  %v4721 = vpop.f32.mrf.mxu0
  %v4722 = vadd.f32 0.0, %v4721
  %4723 = vmatmul.f32.gmra.mxu0 %v4513
  %v4724 = vpop.f32.mrf.mxu0
  %v4725 = vadd.f32 0.0, %v4724
  %4726 = vmatmul.f32.gmra.mxu0 %v4516
  %v4727 = vpop.f32.mrf.mxu0
  %v4728 = vadd.f32 0.0, %v4727
  %4729 = vmatmul.f32.gmra.mxu0 %v4519
  %v4730 = vpop.f32.mrf.mxu0
  %v4731 = vadd.f32 0.0, %v4730
  %4732 = vmatmul.f32.gmra.mxu0 %v4522
  %v4733 = vpop.f32.mrf.mxu0
  %v4734 = vadd.f32 0.0, %v4733
  %4735 = vmatmul.f32.gmra.mxu0 %v4525
  %v4736 = vpop.f32.mrf.mxu0
  %v4737 = vadd.f32 0.0, %v4736
  %4738 = vmatmul.f32.gmra.mxu0 %v4528
  %v4739 = vpop.f32.mrf.mxu0
  %v4740 = vadd.f32 0.0, %v4739
  %4741 = vmatmul.f32.gmra.mxu0 %v4531
  %v4742 = vpop.f32.mrf.mxu0
  %v4743 = vadd.f32 0.0, %v4742
  %4744 = vmatmul.f32.gmra.mxu0 %v4534
  %v4745 = vpop.f32.mrf.mxu0
  %v4746 = vadd.f32 0.0, %v4745
  %4747 = vmatmul.f32.gmra.mxu0 %v4537
  %v4748 = vpop.f32.mrf.mxu0
  %v4749 = vadd.f32 0.0, %v4748
  %4750 = vmatmul.f32.gmra.mxu0 %v4540
  %v4751 = vpop.f32.mrf.mxu0
  %v4752 = vadd.f32 0.0, %v4751
  %4753 = vmatmul.f32.gmra.mxu0 %v4543
  %v4754 = vpop.f32.mrf.mxu0
  %v4755 = vadd.f32 0.0, %v4754
  %4756 = vmatmul.f32.gmra.mxu0 %v4546
  %v4757 = vpop.f32.mrf.mxu0
  %v4758 = vadd.f32 0.0, %v4757
  %4759 = vmatmul.f32.gmra.mxu0 %v4549
  %v4760 = vpop.f32.mrf.mxu0
  %v4761 = vadd.f32 0.0, %v4760
  %4762 = vmatmul.f32.gmra.mxu0 %v4552
  %v4763 = vpop.f32.mrf.mxu0
  %v4764 = vadd.f32 0.0, %v4763
  %4765 = vmatmul.f32.gmra.mxu0 %v4555
  %v4766 = vpop.f32.mrf.mxu0
  %v4767 = vadd.f32 0.0, %v4766
  %4768 = vmatmul.f32.gmra.mxu0 %v4558
  %v4769 = vpop.f32.mrf.mxu0
  %v4770 = vadd.f32 0.0, %v4769
  %4771 = vmatmul.f32.gmra.mxu0 %v4561
  %v4772 = vpop.f32.mrf.mxu0
  %v4773 = vadd.f32 0.0, %v4772
  %4774 = vmatmul.f32.gmra.mxu0 %v4564
  %v4775 = vpop.f32.mrf.mxu0
  %v4776 = vadd.f32 0.0, %v4775
  %4777 = vmatmul.f32.gmra.mxu0 %v4567
  %v4778 = vpop.f32.mrf.mxu0
  %v4779 = vadd.f32 0.0, %v4778
  %4780 = vmatmul.f32.gmra.mxu0 %v4570
  %v4781 = vpop.f32.mrf.mxu0
  %v4782 = vadd.f32 0.0, %v4781
  %4783 = vmatmul.f32.gmra.mxu0 %v4573
  %v4784 = vpop.f32.mrf.mxu0
  %v4785 = vadd.f32 0.0, %v4784
  %4786 = vmatmul.f32.gmra.mxu0 %v4576
  %v4787 = vpop.f32.mrf.mxu0
  %v4788 = vadd.f32 0.0, %v4787
  %4789 = vmatmul.f32.gmra.mxu0 %v4579
  %v4790 = vpop.f32.mrf.mxu0
  %v4791 = vadd.f32 0.0, %v4790
  %4792 = vmatmul.f32.gmra.mxu0 %v4582
  %v4793 = vpop.f32.mrf.mxu0
  %v4794 = vadd.f32 0.0, %v4793
  %4795 = vmatmul.f32.gmra.mxu0 %v4585
  %v4796 = vpop.f32.mrf.mxu0
  %v4797 = vadd.f32 0.0, %v4796
  %4798 = vmatmul.f32.gmra.mxu0 %v4588
  %v4799 = vpop.f32.mrf.mxu0
  %v4800 = vadd.f32 0.0, %v4799
  %4801 = vmatmul.f32.gmra.mxu0 %v4591
  %v4802 = vpop.f32.mrf.mxu0
  %v4803 = vadd.f32 0.0, %v4802
  %4804 = vmatmul.f32.gmra.mxu0 %v4594
  %v4805 = vpop.f32.mrf.mxu0
  %v4806 = vadd.f32 0.0, %v4805
  %4807 = vmatmul.f32.gmra.mxu0 %v4597
  %v4808 = vpop.f32.mrf.mxu0
  %v4809 = vadd.f32 0.0, %v4808
  %4810 = vmatmul.f32.gmra.mxu0 %v4600
  %v4811 = vpop.f32.mrf.mxu0
  %v4812 = vadd.f32 0.0, %v4811
  %4813 = vmatmul.f32.gmra.mxu0 %v4603
  %v4814 = vpop.f32.mrf.mxu0
  %v4815 = vadd.f32 0.0, %v4814
  %4816 = vmatmul.f32.gmra.mxu0 %v4606
  %v4817 = vpop.f32.mrf.mxu0
  %v4818 = vadd.f32 0.0, %v4817
  %4819 = vmatmul.f32.gmra.mxu0 %v4609
  %v4820 = vpop.f32.mrf.mxu0
  %v4821 = vadd.f32 0.0, %v4820
  %4822 = vmatmul.f32.gmra.mxu0 %v4612
  %v4823 = vpop.f32.mrf.mxu0
  %v4824 = vadd.f32 0.0, %v4823
  %4825 = vmatmul.f32.gmra.mxu0 %v4615
  %v4826 = vpop.f32.mrf.mxu0
  %v4827 = vadd.f32 0.0, %v4826
  %4828 = vmatmul.f32.gmra.mxu0 %v4618
  %v4829 = vpop.f32.mrf.mxu0
  %v4830 = vadd.f32 0.0, %v4829
  %4831 = vmatmul.f32.gmra.mxu0 %v4621
  %v4832 = vpop.f32.mrf.mxu0
  %v4833 = vadd.f32 0.0, %v4832
  %4834 = vmatmul.f32.gmra.mxu0 %v4624
  %v4835 = vpop.f32.mrf.mxu0
  %v4836 = vadd.f32 0.0, %v4835
  %4837 = vmatmul.f32.gmra.mxu0 %v4627
  %v4838 = vpop.f32.mrf.mxu0
  %v4839 = vadd.f32 0.0, %v4838
  %4840 = vmatmul.f32.gmra.mxu0 %v4630
  %v4841 = vpop.f32.mrf.mxu0
  %v4842 = vadd.f32 0.0, %v4841
  %4843 = vmatmul.f32.gmra.mxu0 %v4633
  %v4844 = vpop.f32.mrf.mxu0
  %v4845 = vadd.f32 0.0, %v4844
  %4846 = vmatmul.f32.gmra.mxu0 %v4636
  %v4847 = vpop.f32.mrf.mxu0
  %v4848 = vadd.f32 0.0, %v4847
  %4849 = vmatmul.f32.gmra.mxu0 %v4639
  %v4850 = vpop.f32.mrf.mxu0
  %v4851 = vadd.f32 0.0, %v4850
  %4852 = vmatmul.f32.gmra.mxu0 %v4642
  %v4853 = vpop.f32.mrf.mxu0
  %v4854 = vadd.f32 0.0, %v4853
  %4855 = vmatmul.f32.gmra.mxu0 %v4645
  %v4856 = vpop.f32.mrf.mxu0
  %v4857 = vadd.f32 0.0, %v4856
  %4858 = vmatmul.f32.gmra.mxu0 %v4648
  %v4859 = vpop.f32.mrf.mxu0
  %v4860 = vadd.f32 0.0, %v4859
  %4861 = vmatmul.f32.gmra.mxu0 %v4651
  %v4862 = vpop.f32.mrf.mxu0
  %v4863 = vadd.f32 0.0, %v4862
  %4864 = vmatmul.f32.gmra.mxu0 %v4654
  %v4865 = vpop.f32.mrf.mxu0
  %v4866 = vadd.f32 0.0, %v4865
  %4867 = vmatmul.f32.gmra.mxu0 %v4657
  %v4868 = vpop.f32.mrf.mxu0
  %v4869 = vadd.f32 0.0, %v4868
  %4870 = vmatmul.f32.gmra.mxu0 %v4660
  %v4871 = vpop.f32.mrf.mxu0
  %v4872 = vadd.f32 0.0, %v4871
  %4873 = vdwg.mxu0
  %v4874 = vadd.f32 %v4340, %v4683
  %v4875 = vadd.f32 %v4341, %v4686
  %v4876 = vadd.f32 %v4342, %v4689
  %v4877 = vadd.f32 %v4343, %v4692
  %v4878 = vadd.f32 %v4344, %v4695
  %v4879 = vadd.f32 %v4345, %v4698
  %v4880 = vadd.f32 %v4346, %v4701
  %v4881 = vadd.f32 %v4347, %v4704
  %v4882 = vadd.f32 %v4348, %v4707
  %v4883 = vadd.f32 %v4349, %v4710
  %v4884 = vadd.f32 %v4350, %v4713
  %v4885 = vadd.f32 %v4351, %v4716
  %v4886 = vadd.f32 %v4352, %v4719
  %v4887 = vadd.f32 %v4353, %v4722
  %v4888 = vadd.f32 %v4354, %v4725
  %v4889 = vadd.f32 %v4355, %v4728
  %v4890 = vadd.f32 %v4356, %v4731
  %v4891 = vadd.f32 %v4357, %v4734
  %v4892 = vadd.f32 %v4358, %v4737
  %v4893 = vadd.f32 %v4359, %v4740
  %v4894 = vadd.f32 %v4360, %v4743
  %v4895 = vadd.f32 %v4361, %v4746
  %v4896 = vadd.f32 %v4362, %v4749
  %v4897 = vadd.f32 %v4363, %v4752
  %v4898 = vadd.f32 %v4364, %v4755
  %v4899 = vadd.f32 %v4365, %v4758
  %v4900 = vadd.f32 %v4366, %v4761
  %v4901 = vadd.f32 %v4367, %v4764
  %v4902 = vadd.f32 %v4368, %v4767
  %v4903 = vadd.f32 %v4369, %v4770
  %v4904 = vadd.f32 %v4370, %v4773
  %v4905 = vadd.f32 %v4371, %v4776
  %v4906 = vadd.f32 %v4372, %v4779
  %v4907 = vadd.f32 %v4373, %v4782
  %v4908 = vadd.f32 %v4374, %v4785
  %v4909 = vadd.f32 %v4375, %v4788
  %v4910 = vadd.f32 %v4376, %v4791
  %v4911 = vadd.f32 %v4377, %v4794
  %v4912 = vadd.f32 %v4378, %v4797
  %v4913 = vadd.f32 %v4379, %v4800
  %v4914 = vadd.f32 %v4380, %v4803
  %v4915 = vadd.f32 %v4381, %v4806
  %v4916 = vadd.f32 %v4382, %v4809
  %v4917 = vadd.f32 %v4383, %v4812
  %v4918 = vadd.f32 %v4384, %v4815
  %v4919 = vadd.f32 %v4385, %v4818
  %v4920 = vadd.f32 %v4386, %v4821
  %v4921 = vadd.f32 %v4387, %v4824
  %v4922 = vadd.f32 %v4388, %v4827
  %v4923 = vadd.f32 %v4389, %v4830
  %v4924 = vadd.f32 %v4390, %v4833
  %v4925 = vadd.f32 %v4391, %v4836
  %v4926 = vadd.f32 %v4392, %v4839
  %v4927 = vadd.f32 %v4393, %v4842
  %v4928 = vadd.f32 %v4394, %v4845
  %v4929 = vadd.f32 %v4395, %v4848
  %v4930 = vadd.f32 %v4396, %v4851
  %v4931 = vadd.f32 %v4397, %v4854
  %v4932 = vadd.f32 %v4398, %v4857
  %v4933 = vadd.f32 %v4399, %v4860
  %v4934 = vadd.f32 %v4400, %v4863
  %v4935 = vadd.f32 %v4401, %v4866
  %v4936 = vadd.f32 %v4402, %v4869
  %v4937 = vadd.f32 %v4403, %v4872
  %v4938 = vld [vmem:[%s3] sm:$0x1]
  %v4939 = vld [vmem:[%s3 + $0x1] sm:$0x1]
  %vm4940 = vcmask 64512
  %v4941 = vsel %vm4940, %v4874, 0.0
  %v4942 = vsel %vm4940, %v4875, 0.0
  %v4943 = vadd.f32 %v4941, %v4942
  %v4944 = vsel %vm4940, %v4876, 0.0
  %v4945 = vadd.f32 %v4943, %v4944
  %v4946 = vsel %vm4940, %v4877, 0.0
  %v4947 = vadd.f32 %v4945, %v4946
  %v4948 = vsel %vm4940, %v4878, 0.0
  %v4949 = vadd.f32 %v4947, %v4948
  %v4950 = vsel %vm4940, %v4879, 0.0
  %v4951 = vadd.f32 %v4949, %v4950
  %v4952 = vsel %vm4940, %v4880, 0.0
  %v4953 = vadd.f32 %v4951, %v4952
  %v4954 = vsel %vm4940, %v4881, 0.0
  %v4955 = vadd.f32 %v4953, %v4954
  %v4956 = vsel %vm4940, %v4882, 0.0
  %v4957 = vadd.f32 %v4955, %v4956
  %v4958 = vsel %vm4940, %v4883, 0.0
  %v4959 = vadd.f32 %v4957, %v4958
  %v4960 = vsel %vm4940, %v4884, 0.0
  %v4961 = vadd.f32 %v4959, %v4960
  %v4962 = vsel %vm4940, %v4885, 0.0
  %v4963 = vadd.f32 %v4961, %v4962
  %v4964 = vsel %vm4940, %v4886, 0.0
  %v4965 = vadd.f32 %v4963, %v4964
  %v4966 = vsel %vm4940, %v4887, 0.0
  %v4967 = vadd.f32 %v4965, %v4966
  %v4968 = vsel %vm4940, %v4888, 0.0
  %v4969 = vadd.f32 %v4967, %v4968
  %v4970 = vsel %vm4940, %v4889, 0.0
  %v4971 = vadd.f32 %v4969, %v4970
  %v4972 = vsel %vm4940, %v4890, 0.0
  %v4973 = vadd.f32 %v4971, %v4972
  %v4974 = vsel %vm4940, %v4891, 0.0
  %v4975 = vadd.f32 %v4973, %v4974
  %v4976 = vsel %vm4940, %v4892, 0.0
  %v4977 = vadd.f32 %v4975, %v4976
  %v4978 = vsel %vm4940, %v4893, 0.0
  %v4979 = vadd.f32 %v4977, %v4978
  %v4980 = vsel %vm4940, %v4894, 0.0
  %v4981 = vadd.f32 %v4979, %v4980
  %v4982 = vsel %vm4940, %v4895, 0.0
  %v4983 = vadd.f32 %v4981, %v4982
  %v4984 = vsel %vm4940, %v4896, 0.0
  %v4985 = vadd.f32 %v4983, %v4984
  %v4986 = vsel %vm4940, %v4897, 0.0
  %v4987 = vadd.f32 %v4985, %v4986
  %v4988 = vsel %vm4940, %v4898, 0.0
  %v4989 = vadd.f32 %v4987, %v4988
  %v4990 = vsel %vm4940, %v4899, 0.0
  %v4991 = vadd.f32 %v4989, %v4990
  %v4992 = vsel %vm4940, %v4900, 0.0
  %v4993 = vadd.f32 %v4991, %v4992
  %v4994 = vsel %vm4940, %v4901, 0.0
  %v4995 = vadd.f32 %v4993, %v4994
  %v4996 = vsel %vm4940, %v4902, 0.0
  %v4997 = vadd.f32 %v4995, %v4996
  %v4998 = vsel %vm4940, %v4903, 0.0
  %v4999 = vadd.f32 %v4997, %v4998
  %v5000 = vsel %vm4940, %v4904, 0.0
  %v5001 = vadd.f32 %v4999, %v5000
  %v5002 = vsel %vm4940, %v4905, 0.0
  %v5003 = vadd.f32 %v5001, %v5002
  %v5004 = vsel %vm4940, %v4906, 0.0
  %v5005 = vadd.f32 %v5003, %v5004
  %v5006 = vsel %vm4940, %v4907, 0.0
  %v5007 = vadd.f32 %v5005, %v5006
  %v5008 = vsel %vm4940, %v4908, 0.0
  %v5009 = vadd.f32 %v5007, %v5008
  %v5010 = vsel %vm4940, %v4909, 0.0
  %v5011 = vadd.f32 %v5009, %v5010
  %v5012 = vsel %vm4940, %v4910, 0.0
  %v5013 = vadd.f32 %v5011, %v5012
  %v5014 = vsel %vm4940, %v4911, 0.0
  %v5015 = vadd.f32 %v5013, %v5014
  %v5016 = vsel %vm4940, %v4912, 0.0
  %v5017 = vadd.f32 %v5015, %v5016
  %v5018 = vsel %vm4940, %v4913, 0.0
  %v5019 = vadd.f32 %v5017, %v5018
  %v5020 = vsel %vm4940, %v4914, 0.0
  %v5021 = vadd.f32 %v5019, %v5020
  %v5022 = vsel %vm4940, %v4915, 0.0
  %v5023 = vadd.f32 %v5021, %v5022
  %v5024 = vsel %vm4940, %v4916, 0.0
  %v5025 = vadd.f32 %v5023, %v5024
  %v5026 = vsel %vm4940, %v4917, 0.0
  %v5027 = vadd.f32 %v5025, %v5026
  %v5028 = vsel %vm4940, %v4918, 0.0
  %v5029 = vadd.f32 %v5027, %v5028
  %v5030 = vsel %vm4940, %v4919, 0.0
  %v5031 = vadd.f32 %v5029, %v5030
  %v5032 = vsel %vm4940, %v4920, 0.0
  %v5033 = vadd.f32 %v5031, %v5032
  %v5034 = vsel %vm4940, %v4921, 0.0
  %v5035 = vadd.f32 %v5033, %v5034
  %v5036 = vsel %vm4940, %v4922, 0.0
  %v5037 = vadd.f32 %v5035, %v5036
  %v5038 = vsel %vm4940, %v4923, 0.0
  %v5039 = vadd.f32 %v5037, %v5038
  %v5040 = vsel %vm4940, %v4924, 0.0
  %v5041 = vadd.f32 %v5039, %v5040
  %v5042 = vsel %vm4940, %v4925, 0.0
  %v5043 = vadd.f32 %v5041, %v5042
  %v5044 = vsel %vm4940, %v4926, 0.0
  %v5045 = vadd.f32 %v5043, %v5044
  %v5046 = vsel %vm4940, %v4927, 0.0
  %v5047 = vadd.f32 %v5045, %v5046
  %v5048 = vsel %vm4940, %v4928, 0.0
  %v5049 = vadd.f32 %v5047, %v5048
  %v5050 = vsel %vm4940, %v4929, 0.0
  %v5051 = vadd.f32 %v5049, %v5050
  %v5052 = vsel %vm4940, %v4930, 0.0
  %v5053 = vadd.f32 %v5051, %v5052
  %v5054 = vsel %vm4940, %v4931, 0.0
  %v5055 = vadd.f32 %v5053, %v5054
  %v5056 = vsel %vm4940, %v4932, 0.0
  %v5057 = vadd.f32 %v5055, %v5056
  %v5058 = vsel %vm4940, %v4933, 0.0
  %v5059 = vadd.f32 %v5057, %v5058
  %v5060 = vsel %vm4940, %v4934, 0.0
  %v5061 = vadd.f32 %v5059, %v5060
  %v5062 = vsel %vm4940, %v4935, 0.0
  %v5063 = vadd.f32 %v5061, %v5062
  %v5064 = vsel %vm4940, %v4936, 0.0
  %v5065 = vadd.f32 %v5063, %v5064
  %v5066 = vsel %vm4940, %v4937, 0.0
  %v5067 = vadd.f32 %v5065, %v5066
  %v5068 = vrot.slane %v5067, 4
  %v5069 = vadd.f32 %v5067, %v5068
  %v5070 = vrot.slane %v5069, 2
  %v5071 = vadd.f32 %v5069, %v5070
  %v5072 = vrot.slane %v5071, 1
  %v5073 = vadd.f32 %v5071, %v5072
  %v5074 = vmul.f32 %v5073, 0.001953125
  %v5075 = vmul.f32 %v4874, %v4874
  %v5076 = vmul.f32 %v4875, %v4875
  %v5077 = vmul.f32 %v4876, %v4876
  %v5078 = vmul.f32 %v4877, %v4877
  %v5079 = vmul.f32 %v4878, %v4878
  %v5080 = vmul.f32 %v4879, %v4879
  %v5081 = vmul.f32 %v4880, %v4880
  %v5082 = vmul.f32 %v4881, %v4881
  %v5083 = vmul.f32 %v4882, %v4882
  %v5084 = vmul.f32 %v4883, %v4883
  %v5085 = vmul.f32 %v4884, %v4884
  %v5086 = vmul.f32 %v4885, %v4885
  %v5087 = vmul.f32 %v4886, %v4886
  %v5088 = vmul.f32 %v4887, %v4887
  %v5089 = vmul.f32 %v4888, %v4888
  %v5090 = vmul.f32 %v4889, %v4889
  %v5091 = vmul.f32 %v4890, %v4890
  %v5092 = vmul.f32 %v4891, %v4891
  %v5093 = vmul.f32 %v4892, %v4892
  %v5094 = vmul.f32 %v4893, %v4893
  %v5095 = vmul.f32 %v4894, %v4894
  %v5096 = vmul.f32 %v4895, %v4895
  %v5097 = vmul.f32 %v4896, %v4896
  %v5098 = vmul.f32 %v4897, %v4897
  %v5099 = vmul.f32 %v4898, %v4898
  %v5100 = vmul.f32 %v4899, %v4899
  %v5101 = vmul.f32 %v4900, %v4900
  %v5102 = vmul.f32 %v4901, %v4901
  %v5103 = vmul.f32 %v4902, %v4902
  %v5104 = vmul.f32 %v4903, %v4903
  %v5105 = vmul.f32 %v4904, %v4904
  %v5106 = vmul.f32 %v4905, %v4905
  %v5107 = vmul.f32 %v4906, %v4906
  %v5108 = vmul.f32 %v4907, %v4907
  %v5109 = vmul.f32 %v4908, %v4908
  %v5110 = vmul.f32 %v4909, %v4909
  %v5111 = vmul.f32 %v4910, %v4910
  %v5112 = vmul.f32 %v4911, %v4911
  %v5113 = vmul.f32 %v4912, %v4912
  %v5114 = vmul.f32 %v4913, %v4913
  %v5115 = vmul.f32 %v4914, %v4914
  %v5116 = vmul.f32 %v4915, %v4915
  %v5117 = vmul.f32 %v4916, %v4916
  %v5118 = vmul.f32 %v4917, %v4917
  %v5119 = vmul.f32 %v4918, %v4918
  %v5120 = vmul.f32 %v4919, %v4919
  %v5121 = vmul.f32 %v4920, %v4920
  %v5122 = vmul.f32 %v4921, %v4921
  %v5123 = vmul.f32 %v4922, %v4922
  %v5124 = vmul.f32 %v4923, %v4923
  %v5125 = vmul.f32 %v4924, %v4924
  %v5126 = vmul.f32 %v4925, %v4925
  %v5127 = vmul.f32 %v4926, %v4926
  %v5128 = vmul.f32 %v4927, %v4927
  %v5129 = vmul.f32 %v4928, %v4928
  %v5130 = vmul.f32 %v4929, %v4929
  %v5131 = vmul.f32 %v4930, %v4930
  %v5132 = vmul.f32 %v4931, %v4931
  %v5133 = vmul.f32 %v4932, %v4932
  %v5134 = vmul.f32 %v4933, %v4933
  %v5135 = vmul.f32 %v4934, %v4934
  %v5136 = vmul.f32 %v4935, %v4935
  %v5137 = vmul.f32 %v4936, %v4936
  %v5138 = vmul.f32 %v4937, %v4937
  %v5139 = vsel %vm4940, %v5075, 0.0
  %v5140 = vsel %vm4940, %v5076, 0.0
  %v5141 = vadd.f32 %v5139, %v5140
  %v5142 = vsel %vm4940, %v5077, 0.0
  %v5143 = vadd.f32 %v5141, %v5142
  %v5144 = vsel %vm4940, %v5078, 0.0
  %v5145 = vadd.f32 %v5143, %v5144
  %v5146 = vsel %vm4940, %v5079, 0.0
  %v5147 = vadd.f32 %v5145, %v5146
  %v5148 = vsel %vm4940, %v5080, 0.0
  %v5149 = vadd.f32 %v5147, %v5148
  %v5150 = vsel %vm4940, %v5081, 0.0
  %v5151 = vadd.f32 %v5149, %v5150
  %v5152 = vsel %vm4940, %v5082, 0.0
  %v5153 = vadd.f32 %v5151, %v5152
  %v5154 = vsel %vm4940, %v5083, 0.0
  %v5155 = vadd.f32 %v5153, %v5154
  %v5156 = vsel %vm4940, %v5084, 0.0
  %v5157 = vadd.f32 %v5155, %v5156
  %v5158 = vsel %vm4940, %v5085, 0.0
  %v5159 = vadd.f32 %v5157, %v5158
  %v5160 = vsel %vm4940, %v5086, 0.0
  %v5161 = vadd.f32 %v5159, %v5160
  %v5162 = vsel %vm4940, %v5087, 0.0
  %v5163 = vadd.f32 %v5161, %v5162
  %v5164 = vsel %vm4940, %v5088, 0.0
  %v5165 = vadd.f32 %v5163, %v5164
  %v5166 = vsel %vm4940, %v5089, 0.0
  %v5167 = vadd.f32 %v5165, %v5166
  %v5168 = vsel %vm4940, %v5090, 0.0
  %v5169 = vadd.f32 %v5167, %v5168
  %v5170 = vsel %vm4940, %v5091, 0.0
  %v5171 = vadd.f32 %v5169, %v5170
  %v5172 = vsel %vm4940, %v5092, 0.0
  %v5173 = vadd.f32 %v5171, %v5172
  %v5174 = vsel %vm4940, %v5093, 0.0
  %v5175 = vadd.f32 %v5173, %v5174
  %v5176 = vsel %vm4940, %v5094, 0.0
  %v5177 = vadd.f32 %v5175, %v5176
  %v5178 = vsel %vm4940, %v5095, 0.0
  %v5179 = vadd.f32 %v5177, %v5178
  %v5180 = vsel %vm4940, %v5096, 0.0
  %v5181 = vadd.f32 %v5179, %v5180
  %v5182 = vsel %vm4940, %v5097, 0.0
  %v5183 = vadd.f32 %v5181, %v5182
  %v5184 = vsel %vm4940, %v5098, 0.0
  %v5185 = vadd.f32 %v5183, %v5184
  %v5186 = vsel %vm4940, %v5099, 0.0
  %v5187 = vadd.f32 %v5185, %v5186
  %v5188 = vsel %vm4940, %v5100, 0.0
  %v5189 = vadd.f32 %v5187, %v5188
  %v5190 = vsel %vm4940, %v5101, 0.0
  %v5191 = vadd.f32 %v5189, %v5190
  %v5192 = vsel %vm4940, %v5102, 0.0
  %v5193 = vadd.f32 %v5191, %v5192
  %v5194 = vsel %vm4940, %v5103, 0.0
  %v5195 = vadd.f32 %v5193, %v5194
  %v5196 = vsel %vm4940, %v5104, 0.0
  %v5197 = vadd.f32 %v5195, %v5196
  %v5198 = vsel %vm4940, %v5105, 0.0
  %v5199 = vadd.f32 %v5197, %v5198
  %v5200 = vsel %vm4940, %v5106, 0.0
  %v5201 = vadd.f32 %v5199, %v5200
  %v5202 = vsel %vm4940, %v5107, 0.0
  %v5203 = vadd.f32 %v5201, %v5202
  %v5204 = vsel %vm4940, %v5108, 0.0
  %v5205 = vadd.f32 %v5203, %v5204
  %v5206 = vsel %vm4940, %v5109, 0.0
  %v5207 = vadd.f32 %v5205, %v5206
  %v5208 = vsel %vm4940, %v5110, 0.0
  %v5209 = vadd.f32 %v5207, %v5208
  %v5210 = vsel %vm4940, %v5111, 0.0
  %v5211 = vadd.f32 %v5209, %v5210
  %v5212 = vsel %vm4940, %v5112, 0.0
  %v5213 = vadd.f32 %v5211, %v5212
  %v5214 = vsel %vm4940, %v5113, 0.0
  %v5215 = vadd.f32 %v5213, %v5214
  %v5216 = vsel %vm4940, %v5114, 0.0
  %v5217 = vadd.f32 %v5215, %v5216
  %v5218 = vsel %vm4940, %v5115, 0.0
  %v5219 = vadd.f32 %v5217, %v5218
  %v5220 = vsel %vm4940, %v5116, 0.0
  %v5221 = vadd.f32 %v5219, %v5220
  %v5222 = vsel %vm4940, %v5117, 0.0
  %v5223 = vadd.f32 %v5221, %v5222
  %v5224 = vsel %vm4940, %v5118, 0.0
  %v5225 = vadd.f32 %v5223, %v5224
  %v5226 = vsel %vm4940, %v5119, 0.0
  %v5227 = vadd.f32 %v5225, %v5226
  %v5228 = vsel %vm4940, %v5120, 0.0
  %v5229 = vadd.f32 %v5227, %v5228
  %v5230 = vsel %vm4940, %v5121, 0.0
  %v5231 = vadd.f32 %v5229, %v5230
  %v5232 = vsel %vm4940, %v5122, 0.0
  %v5233 = vadd.f32 %v5231, %v5232
  %v5234 = vsel %vm4940, %v5123, 0.0
  %v5235 = vadd.f32 %v5233, %v5234
  %v5236 = vsel %vm4940, %v5124, 0.0
  %v5237 = vadd.f32 %v5235, %v5236
  %v5238 = vsel %vm4940, %v5125, 0.0
  %v5239 = vadd.f32 %v5237, %v5238
  %v5240 = vsel %vm4940, %v5126, 0.0
  %v5241 = vadd.f32 %v5239, %v5240
  %v5242 = vsel %vm4940, %v5127, 0.0
  %v5243 = vadd.f32 %v5241, %v5242
  %v5244 = vsel %vm4940, %v5128, 0.0
  %v5245 = vadd.f32 %v5243, %v5244
  %v5246 = vsel %vm4940, %v5129, 0.0
  %v5247 = vadd.f32 %v5245, %v5246
  %v5248 = vsel %vm4940, %v5130, 0.0
  %v5249 = vadd.f32 %v5247, %v5248
  %v5250 = vsel %vm4940, %v5131, 0.0
  %v5251 = vadd.f32 %v5249, %v5250
  %v5252 = vsel %vm4940, %v5132, 0.0
  %v5253 = vadd.f32 %v5251, %v5252
  %v5254 = vsel %vm4940, %v5133, 0.0
  %v5255 = vadd.f32 %v5253, %v5254
  %v5256 = vsel %vm4940, %v5134, 0.0
  %v5257 = vadd.f32 %v5255, %v5256
  %v5258 = vsel %vm4940, %v5135, 0.0
  %v5259 = vadd.f32 %v5257, %v5258
  %v5260 = vsel %vm4940, %v5136, 0.0
  %v5261 = vadd.f32 %v5259, %v5260
  %v5262 = vsel %vm4940, %v5137, 0.0
  %v5263 = vadd.f32 %v5261, %v5262
  %v5264 = vsel %vm4940, %v5138, 0.0
  %v5265 = vadd.f32 %v5263, %v5264
  %v5266 = vrot.slane %v5265, 4
  %v5267 = vadd.f32 %v5265, %v5266
  %v5268 = vrot.slane %v5267, 2
  %v5269 = vadd.f32 %v5267, %v5268
  %v5270 = vrot.slane %v5269, 1
  %v5271 = vadd.f32 %v5269, %v5270
  %v5272 = vmul.f32 %v5271, 0.001953125
  %v5273 = vmul.f32 %v5074, %v5074
  %v5274 = vsub.f32 %v5272, %v5273
  %v5275 = vadd.f32 %v5274, 1e-05
  %v5276 = vrsqrt.pop %v5275
  %v5277 = vmul.f32 %v5276, %v5275
  %v5278 = vmul.f32 %v5277, %v5276
  %v5279 = vmul.f32 0.5, %v5278
  %v5280 = vsub.f32 1.5, %v5279
  %v5281 = vmul.f32 %v5276, %v5280
  %vm5282 = vweird.f32 %v5275
  %vm5283 = vweird.f32 %v5276
  %vm5284 = vmor %vm5282, %vm5283
  %v5285 = vsel %vm5284, %v5276, %v5281
  %v5286 = vmul.f32 %v4938, %v5285
  %v5287 = vmul.f32 %v5074, %v5286
  %v5288 = vsub.f32 %v4939, %v5287
  %v5289 = vperm.slane %v5286, 0
  %v5290 = vmul.f32 %v4874, %v5289
  %v5291 = vmul.f32 %v4875, %v5289
  %v5292 = vmul.f32 %v4876, %v5289
  %v5293 = vmul.f32 %v4877, %v5289
  %v5294 = vmul.f32 %v4878, %v5289
  %v5295 = vmul.f32 %v4879, %v5289
  %v5296 = vmul.f32 %v4880, %v5289
  %v5297 = vmul.f32 %v4881, %v5289
  %v5298 = vmul.f32 %v4882, %v5289
  %v5299 = vmul.f32 %v4883, %v5289
  %v5300 = vmul.f32 %v4884, %v5289
  %v5301 = vmul.f32 %v4885, %v5289
  %v5302 = vmul.f32 %v4886, %v5289
  %v5303 = vmul.f32 %v4887, %v5289
  %v5304 = vmul.f32 %v4888, %v5289
  %v5305 = vmul.f32 %v4889, %v5289
  %v5306 = vmul.f32 %v4890, %v5289
  %v5307 = vmul.f32 %v4891, %v5289
  %v5308 = vmul.f32 %v4892, %v5289
  %v5309 = vmul.f32 %v4893, %v5289
  %v5310 = vmul.f32 %v4894, %v5289
  %v5311 = vmul.f32 %v4895, %v5289
  %v5312 = vmul.f32 %v4896, %v5289
  %v5313 = vmul.f32 %v4897, %v5289
  %v5314 = vmul.f32 %v4898, %v5289
  %v5315 = vmul.f32 %v4899, %v5289
  %v5316 = vmul.f32 %v4900, %v5289
  %v5317 = vmul.f32 %v4901, %v5289
  %v5318 = vmul.f32 %v4902, %v5289
  %v5319 = vmul.f32 %v4903, %v5289
  %v5320 = vmul.f32 %v4904, %v5289
  %v5321 = vmul.f32 %v4905, %v5289
  %v5322 = vmul.f32 %v4906, %v5289
  %v5323 = vmul.f32 %v4907, %v5289
  %v5324 = vmul.f32 %v4908, %v5289
  %v5325 = vmul.f32 %v4909, %v5289
  %v5326 = vmul.f32 %v4910, %v5289
  %v5327 = vmul.f32 %v4911, %v5289
  %v5328 = vmul.f32 %v4912, %v5289
  %v5329 = vmul.f32 %v4913, %v5289
  %v5330 = vmul.f32 %v4914, %v5289
  %v5331 = vmul.f32 %v4915, %v5289
  %v5332 = vmul.f32 %v4916, %v5289
  %v5333 = vmul.f32 %v4917, %v5289
  %v5334 = vmul.f32 %v4918, %v5289
  %v5335 = vmul.f32 %v4919, %v5289
  %v5336 = vmul.f32 %v4920, %v5289
  %v5337 = vmul.f32 %v4921, %v5289
  %v5338 = vmul.f32 %v4922, %v5289
  %v5339 = vmul.f32 %v4923, %v5289
  %v5340 = vmul.f32 %v4924, %v5289
  %v5341 = vmul.f32 %v4925, %v5289
  %v5342 = vmul.f32 %v4926, %v5289
  %v5343 = vmul.f32 %v4927, %v5289
  %v5344 = vmul.f32 %v4928, %v5289
  %v5345 = vmul.f32 %v4929, %v5289
  %v5346 = vmul.f32 %v4930, %v5289
  %v5347 = vmul.f32 %v4931, %v5289
  %v5348 = vmul.f32 %v4932, %v5289
  %v5349 = vmul.f32 %v4933, %v5289
  %v5350 = vmul.f32 %v4934, %v5289
  %v5351 = vmul.f32 %v4935, %v5289
  %v5352 = vmul.f32 %v4936, %v5289
  %v5353 = vmul.f32 %v4937, %v5289
  %v5354 = vperm.slane %v5288, 0
  %v5355 = vadd.f32 %v5290, %v5354
  %v5356 = vadd.f32 %v5291, %v5354
  %v5357 = vadd.f32 %v5292, %v5354
  %v5358 = vadd.f32 %v5293, %v5354
  %v5359 = vadd.f32 %v5294, %v5354
  %v5360 = vadd.f32 %v5295, %v5354
  %v5361 = vadd.f32 %v5296, %v5354
  %v5362 = vadd.f32 %v5297, %v5354
  %v5363 = vadd.f32 %v5298, %v5354
  %v5364 = vadd.f32 %v5299, %v5354
  %v5365 = vadd.f32 %v5300, %v5354
  %v5366 = vadd.f32 %v5301, %v5354
  %v5367 = vadd.f32 %v5302, %v5354
  %v5368 = vadd.f32 %v5303, %v5354
  %v5369 = vadd.f32 %v5304, %v5354
  %v5370 = vadd.f32 %v5305, %v5354
  %v5371 = vadd.f32 %v5306, %v5354
  %v5372 = vadd.f32 %v5307, %v5354
  %v5373 = vadd.f32 %v5308, %v5354
  %v5374 = vadd.f32 %v5309, %v5354
  %v5375 = vadd.f32 %v5310, %v5354
  %v5376 = vadd.f32 %v5311, %v5354
  %v5377 = vadd.f32 %v5312, %v5354
  %v5378 = vadd.f32 %v5313, %v5354
  %v5379 = vadd.f32 %v5314, %v5354
  %v5380 = vadd.f32 %v5315, %v5354
  %v5381 = vadd.f32 %v5316, %v5354
  %v5382 = vadd.f32 %v5317, %v5354
  %v5383 = vadd.f32 %v5318, %v5354
  %v5384 = vadd.f32 %v5319, %v5354
  %v5385 = vadd.f32 %v5320, %v5354
  %v5386 = vadd.f32 %v5321, %v5354
  %v5387 = vadd.f32 %v5322, %v5354
  %v5388 = vadd.f32 %v5323, %v5354
  %v5389 = vadd.f32 %v5324, %v5354
  %v5390 = vadd.f32 %v5325, %v5354
  %v5391 = vadd.f32 %v5326, %v5354
  %v5392 = vadd.f32 %v5327, %v5354
  %v5393 = vadd.f32 %v5328, %v5354
  %v5394 = vadd.f32 %v5329, %v5354
  %v5395 = vadd.f32 %v5330, %v5354
  %v5396 = vadd.f32 %v5331, %v5354
  %v5397 = vadd.f32 %v5332, %v5354
  %v5398 = vadd.f32 %v5333, %v5354
  %v5399 = vadd.f32 %v5334, %v5354
  %v5400 = vadd.f32 %v5335, %v5354
  %v5401 = vadd.f32 %v5336, %v5354
  %v5402 = vadd.f32 %v5337, %v5354
  %v5403 = vadd.f32 %v5338, %v5354
  %v5404 = vadd.f32 %v5339, %v5354
  %v5405 = vadd.f32 %v5340, %v5354
  %v5406 = vadd.f32 %v5341, %v5354
  %v5407 = vadd.f32 %v5342, %v5354
  %v5408 = vadd.f32 %v5343, %v5354
  %v5409 = vadd.f32 %v5344, %v5354
  %v5410 = vadd.f32 %v5345, %v5354
  %v5411 = vadd.f32 %v5346, %v5354
  %v5412 = vadd.f32 %v5347, %v5354
  %v5413 = vadd.f32 %v5348, %v5354
  %v5414 = vadd.f32 %v5349, %v5354
  %v5415 = vadd.f32 %v5350, %v5354
  %v5416 = vadd.f32 %v5351, %v5354
  %v5417 = vadd.f32 %v5352, %v5354
  %v5418 = vadd.f32 %v5353, %v5354
  %vm5419 = vcmp.gt.f32.partialorder %v5355, 0.0
  %vm5420 = vcmp.gt.f32.partialorder %v5356, 0.0
  %vm5421 = vcmp.gt.f32.partialorder %v5357, 0.0
  %vm5422 = vcmp.gt.f32.partialorder %v5358, 0.0
  %vm5423 = vcmp.gt.f32.partialorder %v5359, 0.0
  %vm5424 = vcmp.gt.f32.partialorder %v5360, 0.0
  %vm5425 = vcmp.gt.f32.partialorder %v5361, 0.0
  %vm5426 = vcmp.gt.f32.partialorder %v5362, 0.0
  %vm5427 = vcmp.gt.f32.partialorder %v5363, 0.0
  %vm5428 = vcmp.gt.f32.partialorder %v5364, 0.0
  %vm5429 = vcmp.gt.f32.partialorder %v5365, 0.0
  %vm5430 = vcmp.gt.f32.partialorder %v5366, 0.0
  %vm5431 = vcmp.gt.f32.partialorder %v5367, 0.0
  %vm5432 = vcmp.gt.f32.partialorder %v5368, 0.0
  %vm5433 = vcmp.gt.f32.partialorder %v5369, 0.0
  %vm5434 = vcmp.gt.f32.partialorder %v5370, 0.0
  %vm5435 = vcmp.gt.f32.partialorder %v5371, 0.0
  %vm5436 = vcmp.gt.f32.partialorder %v5372, 0.0
  %vm5437 = vcmp.gt.f32.partialorder %v5373, 0.0
  %vm5438 = vcmp.gt.f32.partialorder %v5374, 0.0
  %vm5439 = vcmp.gt.f32.partialorder %v5375, 0.0
  %vm5440 = vcmp.gt.f32.partialorder %v5376, 0.0
  %vm5441 = vcmp.gt.f32.partialorder %v5377, 0.0
  %vm5442 = vcmp.gt.f32.partialorder %v5378, 0.0
  %vm5443 = vcmp.gt.f32.partialorder %v5379, 0.0
  %vm5444 = vcmp.gt.f32.partialorder %v5380, 0.0
  %vm5445 = vcmp.gt.f32.partialorder %v5381, 0.0
  %vm5446 = vcmp.gt.f32.partialorder %v5382, 0.0
  %vm5447 = vcmp.gt.f32.partialorder %v5383, 0.0
  %vm5448 = vcmp.gt.f32.partialorder %v5384, 0.0
  %vm5449 = vcmp.gt.f32.partialorder %v5385, 0.0
  %vm5450 = vcmp.gt.f32.partialorder %v5386, 0.0
  %vm5451 = vcmp.gt.f32.partialorder %v5387, 0.0
  %vm5452 = vcmp.gt.f32.partialorder %v5388, 0.0
  %vm5453 = vcmp.gt.f32.partialorder %v5389, 0.0
  %vm5454 = vcmp.gt.f32.partialorder %v5390, 0.0
  %vm5455 = vcmp.gt.f32.partialorder %v5391, 0.0
  %vm5456 = vcmp.gt.f32.partialorder %v5392, 0.0
  %vm5457 = vcmp.gt.f32.partialorder %v5393, 0.0
  %vm5458 = vcmp.gt.f32.partialorder %v5394, 0.0
  %vm5459 = vcmp.gt.f32.partialorder %v5395, 0.0
  %vm5460 = vcmp.gt.f32.partialorder %v5396, 0.0
  %vm5461 = vcmp.gt.f32.partialorder %v5397, 0.0
  %vm5462 = vcmp.gt.f32.partialorder %v5398, 0.0
  %vm5463 = vcmp.gt.f32.partialorder %v5399, 0.0
  %vm5464 = vcmp.gt.f32.partialorder %v5400, 0.0
  %vm5465 = vcmp.gt.f32.partialorder %v5401, 0.0
  %vm5466 = vcmp.gt.f32.partialorder %v5402, 0.0
  %vm5467 = vcmp.gt.f32.partialorder %v5403, 0.0
  %vm5468 = vcmp.gt.f32.partialorder %v5404, 0.0
  %vm5469 = vcmp.gt.f32.partialorder %v5405, 0.0
  %vm5470 = vcmp.gt.f32.partialorder %v5406, 0.0
  %vm5471 = vcmp.gt.f32.partialorder %v5407, 0.0
  %vm5472 = vcmp.gt.f32.partialorder %v5408, 0.0
  %vm5473 = vcmp.gt.f32.partialorder %v5409, 0.0
  %vm5474 = vcmp.gt.f32.partialorder %v5410, 0.0
  %vm5475 = vcmp.gt.f32.partialorder %v5411, 0.0
  %vm5476 = vcmp.gt.f32.partialorder %v5412, 0.0
  %vm5477 = vcmp.gt.f32.partialorder %v5413, 0.0
  %vm5478 = vcmp.gt.f32.partialorder %v5414, 0.0
  %vm5479 = vcmp.gt.f32.partialorder %v5415, 0.0
  %vm5480 = vcmp.gt.f32.partialorder %v5416, 0.0
  %vm5481 = vcmp.gt.f32.partialorder %v5417, 0.0
  %vm5482 = vcmp.gt.f32.partialorder %v5418, 0.0
  %v5483 = vmul.f32 %v5355, 1.442695
  %v5484 = vpow.pop %v5483
  %v5485 = vmul.f32 %v5356, 1.442695
  %v5486 = vpow.pop %v5485
  %v5487 = vmul.f32 %v5357, 1.442695
  %v5488 = vpow.pop %v5487
  %v5489 = vmul.f32 %v5358, 1.442695
  %v5490 = vpow.pop %v5489
  %v5491 = vmul.f32 %v5359, 1.442695
  %v5492 = vpow.pop %v5491
  %v5493 = vmul.f32 %v5360, 1.442695
  %v5494 = vpow.pop %v5493
  %v5495 = vmul.f32 %v5361, 1.442695
  %v5496 = vpow.pop %v5495
  %v5497 = vmul.f32 %v5362, 1.442695
  %v5498 = vpow.pop %v5497
  %v5499 = vmul.f32 %v5363, 1.442695
  %v5500 = vpow.pop %v5499
  %v5501 = vmul.f32 %v5364, 1.442695
  %v5502 = vpow.pop %v5501
  %v5503 = vmul.f32 %v5365, 1.442695
  %v5504 = vpow.pop %v5503
  %v5505 = vmul.f32 %v5366, 1.442695
  %v5506 = vpow.pop %v5505
  %v5507 = vmul.f32 %v5367, 1.442695
  %v5508 = vpow.pop %v5507
  %v5509 = vmul.f32 %v5368, 1.442695
  %v5510 = vpow.pop %v5509
  %v5511 = vmul.f32 %v5369, 1.442695
  %v5512 = vpow.pop %v5511
  %v5513 = vmul.f32 %v5370, 1.442695
  %v5514 = vpow.pop %v5513
  %v5515 = vmul.f32 %v5371, 1.442695
  %v5516 = vpow.pop %v5515
  %v5517 = vmul.f32 %v5372, 1.442695
  %v5518 = vpow.pop %v5517
  %v5519 = vmul.f32 %v5373, 1.442695
  %v5520 = vpow.pop %v5519
  %v5521 = vmul.f32 %v5374, 1.442695
  %v5522 = vpow.pop %v5521
  %v5523 = vmul.f32 %v5375, 1.442695
  %v5524 = vpow.pop %v5523
  %v5525 = vmul.f32 %v5376, 1.442695
  %v5526 = vpow.pop %v5525
  %v5527 = vmul.f32 %v5377, 1.442695
  %v5528 = vpow.pop %v5527
  %v5529 = vmul.f32 %v5378, 1.442695
  %v5530 = vpow.pop %v5529
  %v5531 = vmul.f32 %v5379, 1.442695
  %v5532 = vpow.pop %v5531
  %v5533 = vmul.f32 %v5380, 1.442695
  %v5534 = vpow.pop %v5533
  %v5535 = vmul.f32 %v5381, 1.442695
  %v5536 = vpow.pop %v5535
  %v5537 = vmul.f32 %v5382, 1.442695
  %v5538 = vpow.pop %v5537
  %v5539 = vmul.f32 %v5383, 1.442695
  %v5540 = vpow.pop %v5539
  %v5541 = vmul.f32 %v5384, 1.442695
  %v5542 = vpow.pop %v5541
  %v5543 = vmul.f32 %v5385, 1.442695
  %v5544 = vpow.pop %v5543
  %v5545 = vmul.f32 %v5386, 1.442695
  %v5546 = vpow.pop %v5545
  %v5547 = vmul.f32 %v5387, 1.442695
  %v5548 = vpow.pop %v5547
  %v5549 = vmul.f32 %v5388, 1.442695
  %v5550 = vpow.pop %v5549
  %v5551 = vmul.f32 %v5389, 1.442695
  %v5552 = vpow.pop %v5551
  %v5553 = vmul.f32 %v5390, 1.442695
  %v5554 = vpow.pop %v5553
  %v5555 = vmul.f32 %v5391, 1.442695
  %v5556 = vpow.pop %v5555
  %v5557 = vmul.f32 %v5392, 1.442695
  %v5558 = vpow.pop %v5557
  %v5559 = vmul.f32 %v5393, 1.442695
  %v5560 = vpow.pop %v5559
  %v5561 = vmul.f32 %v5394, 1.442695
  %v5562 = vpow.pop %v5561
  %v5563 = vmul.f32 %v5395, 1.442695
  %v5564 = vpow.pop %v5563
  %v5565 = vmul.f32 %v5396, 1.442695
  %v5566 = vpow.pop %v5565
  %v5567 = vmul.f32 %v5397, 1.442695
  %v5568 = vpow.pop %v5567
  %v5569 = vmul.f32 %v5398, 1.442695
  %v5570 = vpow.pop %v5569
  %v5571 = vmul.f32 %v5399, 1.442695
  %v5572 = vpow.pop %v5571
  %v5573 = vmul.f32 %v5400, 1.442695
  %v5574 = vpow.pop %v5573
  %v5575 = vmul.f32 %v5401, 1.442695
  %v5576 = vpow.pop %v5575
  %v5577 = vmul.f32 %v5402, 1.442695
  %v5578 = vpow.pop %v5577
  %v5579 = vmul.f32 %v5403, 1.442695
  %v5580 = vpow.pop %v5579
  %v5581 = vmul.f32 %v5404, 1.442695
  %v5582 = vpow.pop %v5581
  %v5583 = vmul.f32 %v5405, 1.442695
  %v5584 = vpow.pop %v5583
  %v5585 = vmul.f32 %v5406, 1.442695
  %v5586 = vpow.pop %v5585
  %v5587 = vmul.f32 %v5407, 1.442695
  %v5588 = vpow.pop %v5587
  %v5589 = vmul.f32 %v5408, 1.442695
  %v5590 = vpow.pop %v5589
  %v5591 = vmul.f32 %v5409, 1.442695
  %v5592 = vpow.pop %v5591
  %v5593 = vmul.f32 %v5410, 1.442695
  %v5594 = vpow.pop %v5593
  %v5595 = vmul.f32 %v5411, 1.442695
  %v5596 = vpow.pop %v5595
  %v5597 = vmul.f32 %v5412, 1.442695
  %v5598 = vpow.pop %v5597
  %v5599 = vmul.f32 %v5413, 1.442695
  %v5600 = vpow.pop %v5599
  %v5601 = vmul.f32 %v5414, 1.442695
  %v5602 = vpow.pop %v5601
  %v5603 = vmul.f32 %v5415, 1.442695
  %v5604 = vpow.pop %v5603
  %v5605 = vmul.f32 %v5416, 1.442695
  %v5606 = vpow.pop %v5605
  %v5607 = vmul.f32 %v5417, 1.442695
  %v5608 = vpow.pop %v5607
  %v5609 = vmul.f32 %v5418, 1.442695
  %v5610 = vpow.pop %v5609
  %v5611 = vsub.f32 %v5484, 1.0
  %v5612 = vsub.f32 %v5486, 1.0
  %v5613 = vsub.f32 %v5488, 1.0
  %v5614 = vsub.f32 %v5490, 1.0
  %v5615 = vsub.f32 %v5492, 1.0
  %v5616 = vsub.f32 %v5494, 1.0
  %v5617 = vsub.f32 %v5496, 1.0
  %v5618 = vsub.f32 %v5498, 1.0
  %v5619 = vsub.f32 %v5500, 1.0
  %v5620 = vsub.f32 %v5502, 1.0
  %v5621 = vsub.f32 %v5504, 1.0
  %v5622 = vsub.f32 %v5506, 1.0
  %v5623 = vsub.f32 %v5508, 1.0
  %v5624 = vsub.f32 %v5510, 1.0
  %v5625 = vsub.f32 %v5512, 1.0
  %v5626 = vsub.f32 %v5514, 1.0
  %v5627 = vsub.f32 %v5516, 1.0
  %v5628 = vsub.f32 %v5518, 1.0
  %v5629 = vsub.f32 %v5520, 1.0
  %v5630 = vsub.f32 %v5522, 1.0
  %v5631 = vsub.f32 %v5524, 1.0
  %v5632 = vsub.f32 %v5526, 1.0
  %v5633 = vsub.f32 %v5528, 1.0
  %v5634 = vsub.f32 %v5530, 1.0
  %v5635 = vsub.f32 %v5532, 1.0
  %v5636 = vsub.f32 %v5534, 1.0
  %v5637 = vsub.f32 %v5536, 1.0
  %v5638 = vsub.f32 %v5538, 1.0
  %v5639 = vsub.f32 %v5540, 1.0
  %v5640 = vsub.f32 %v5542, 1.0
  %v5641 = vsub.f32 %v5544, 1.0
  %v5642 = vsub.f32 %v5546, 1.0
  %v5643 = vsub.f32 %v5548, 1.0
  %v5644 = vsub.f32 %v5550, 1.0
  %v5645 = vsub.f32 %v5552, 1.0
  %v5646 = vsub.f32 %v5554, 1.0
  %v5647 = vsub.f32 %v5556, 1.0
  %v5648 = vsub.f32 %v5558, 1.0
  %v5649 = vsub.f32 %v5560, 1.0
  %v5650 = vsub.f32 %v5562, 1.0
  %v5651 = vsub.f32 %v5564, 1.0
  %v5652 = vsub.f32 %v5566, 1.0
  %v5653 = vsub.f32 %v5568, 1.0
  %v5654 = vsub.f32 %v5570, 1.0
  %v5655 = vsub.f32 %v5572, 1.0
  %v5656 = vsub.f32 %v5574, 1.0
  %v5657 = vsub.f32 %v5576, 1.0
  %v5658 = vsub.f32 %v5578, 1.0
  %v5659 = vsub.f32 %v5580, 1.0
  %v5660 = vsub.f32 %v5582, 1.0
  %v5661 = vsub.f32 %v5584, 1.0
  %v5662 = vsub.f32 %v5586, 1.0
  %v5663 = vsub.f32 %v5588, 1.0
  %v5664 = vsub.f32 %v5590, 1.0
  %v5665 = vsub.f32 %v5592, 1.0
  %v5666 = vsub.f32 %v5594, 1.0
  %v5667 = vsub.f32 %v5596, 1.0
  %v5668 = vsub.f32 %v5598, 1.0
  %v5669 = vsub.f32 %v5600, 1.0
  %v5670 = vsub.f32 %v5602, 1.0
  %v5671 = vsub.f32 %v5604, 1.0
  %v5672 = vsub.f32 %v5606, 1.0
  %v5673 = vsub.f32 %v5608, 1.0
  %v5674 = vsub.f32 %v5610, 1.0
  %v5675 = vsel %vm5419, %v5355, %v5611
  %v5676 = vsel %vm5420, %v5356, %v5612
  %v5677 = vsel %vm5421, %v5357, %v5613
  %v5678 = vsel %vm5422, %v5358, %v5614
  %v5679 = vsel %vm5423, %v5359, %v5615
  %v5680 = vsel %vm5424, %v5360, %v5616
  %v5681 = vsel %vm5425, %v5361, %v5617
  %v5682 = vsel %vm5426, %v5362, %v5618
  %v5683 = vsel %vm5427, %v5363, %v5619
  %v5684 = vsel %vm5428, %v5364, %v5620
  %v5685 = vsel %vm5429, %v5365, %v5621
  %v5686 = vsel %vm5430, %v5366, %v5622
  %v5687 = vsel %vm5431, %v5367, %v5623
  %v5688 = vsel %vm5432, %v5368, %v5624
  %v5689 = vsel %vm5433, %v5369, %v5625
  %v5690 = vsel %vm5434, %v5370, %v5626
  %v5691 = vsel %vm5435, %v5371, %v5627
  %v5692 = vsel %vm5436, %v5372, %v5628
  %v5693 = vsel %vm5437, %v5373, %v5629
  %v5694 = vsel %vm5438, %v5374, %v5630
  %v5695 = vsel %vm5439, %v5375, %v5631
  %v5696 = vsel %vm5440, %v5376, %v5632
  %v5697 = vsel %vm5441, %v5377, %v5633
  %v5698 = vsel %vm5442, %v5378, %v5634
  %v5699 = vsel %vm5443, %v5379, %v5635
  %v5700 = vsel %vm5444, %v5380, %v5636
  %v5701 = vsel %vm5445, %v5381, %v5637
  %v5702 = vsel %vm5446, %v5382, %v5638
  %v5703 = vsel %vm5447, %v5383, %v5639
  %v5704 = vsel %vm5448, %v5384, %v5640
  %v5705 = vsel %vm5449, %v5385, %v5641
  %v5706 = vsel %vm5450, %v5386, %v5642
  %v5707 = vsel %vm5451, %v5387, %v5643
  %v5708 = vsel %vm5452, %v5388, %v5644
  %v5709 = vsel %vm5453, %v5389, %v5645
  %v5710 = vsel %vm5454, %v5390, %v5646
  %v5711 = vsel %vm5455, %v5391, %v5647
  %v5712 = vsel %vm5456, %v5392, %v5648
  %v5713 = vsel %vm5457, %v5393, %v5649
  %v5714 = vsel %vm5458, %v5394, %v5650
  %v5715 = vsel %vm5459, %v5395, %v5651
  %v5716 = vsel %vm5460, %v5396, %v5652
  %v5717 = vsel %vm5461, %v5397, %v5653
  %v5718 = vsel %vm5462, %v5398, %v5654
  %v5719 = vsel %vm5463, %v5399, %v5655
  %v5720 = vsel %vm5464, %v5400, %v5656
  %v5721 = vsel %vm5465, %v5401, %v5657
  %v5722 = vsel %vm5466, %v5402, %v5658
  %v5723 = vsel %vm5467, %v5403, %v5659
  %v5724 = vsel %vm5468, %v5404, %v5660
  %v5725 = vsel %vm5469, %v5405, %v5661
  %v5726 = vsel %vm5470, %v5406, %v5662
  %v5727 = vsel %vm5471, %v5407, %v5663
  %v5728 = vsel %vm5472, %v5408, %v5664
  %v5729 = vsel %vm5473, %v5409, %v5665
  %v5730 = vsel %vm5474, %v5410, %v5666
  %v5731 = vsel %vm5475, %v5411, %v5667
  %v5732 = vsel %vm5476, %v5412, %v5668
  %v5733 = vsel %vm5477, %v5413, %v5669
  %v5734 = vsel %vm5478, %v5414, %v5670
  %v5735 = vsel %vm5479, %v5415, %v5671
  %v5736 = vsel %vm5480, %v5416, %v5672
  %v5737 = vsel %vm5481, %v5417, %v5673
  %v5738 = vsel %vm5482, %v5418, %v5674
  %5739 = vst.msk [vmem:[#allocation3] sm:$0xff] %vm4940, 0.0
  %5740 = vst.msk [vmem:[#allocation3 + $0x8] sm:$0xff] %vm4940, 0.0
  %vm5741 = vcmask 58368
  %5742 = vst.msk [vmem:[#allocation3 + $0x10] sm:$0x3] %vm5741, 0.0
  %5743 = vst.msk [vmem:[#allocation3 + $0x18] sm:$0xff] %vm4940, 0.0
  %5744 = vst.msk [vmem:[#allocation3 + $0x20] sm:$0xff] %vm4940, 0.0
  %5745 = vst.msk [vmem:[#allocation3 + $0x28] sm:$0x3] %vm5741, 0.0
  %5746 = vst.msk [vmem:[#allocation3 + $0x30] sm:$0xff] %vm4940, 0.0
  %5747 = vst.msk [vmem:[#allocation3 + $0x38] sm:$0xff] %vm4940, 0.0
  %5748 = vst.msk [vmem:[#allocation3 + $0x40] sm:$0x3] %vm5741, 0.0
  %5749 = vst.msk [vmem:[#allocation3 + $0x48] sm:$0xff] %vm4940, 0.0
  %5750 = vst.msk [vmem:[#allocation3 + $0x50] sm:$0xff] %vm4940, 0.0
  %5751 = vst.msk [vmem:[#allocation3 + $0x58] sm:$0x3] %vm5741, 0.0
  %5752 = vst.msk [vmem:[#allocation3 + $0x60] sm:$0xff] %vm4940, 0.0
  %5753 = vst.msk [vmem:[#allocation3 + $0x68] sm:$0xff] %vm4940, 0.0
  %5754 = vst.msk [vmem:[#allocation3 + $0x70] sm:$0x3] %vm5741, 0.0
  %5755 = vst.msk [vmem:[#allocation3 + $0x78] sm:$0xff] %vm4940, 0.0
  %5756 = vst.msk [vmem:[#allocation3 + $0x80] sm:$0xff] %vm4940, 0.0
  %5757 = vst.msk [vmem:[#allocation3 + $0x88] sm:$0x3] %vm5741, 0.0
  %5758 = vst.msk [vmem:[#allocation3 + $0x90] sm:$0xff] %vm4940, 0.0
  %5759 = vst.msk [vmem:[#allocation3 + $0x98] sm:$0xff] %vm4940, 0.0
  %5760 = vst.msk [vmem:[#allocation3 + $0xa0] sm:$0x3] %vm5741, 0.0
  %5761 = vst.msk [vmem:[#allocation3 + $0xa8] sm:$0xff] %vm4940, 0.0
  %5762 = vst.msk [vmem:[#allocation3 + $0xb0] sm:$0xff] %vm4940, 0.0
  %5763 = vst.msk [vmem:[#allocation3 + $0xb8] sm:$0x3] %vm5741, 0.0
  %5764 = vst.msk [vmem:[#allocation3 + $0xc0] sm:$0xff] %vm4940, 0.0
  %5765 = vst.msk [vmem:[#allocation3 + $0xc8] sm:$0xff] %vm4940, 0.0
  %5766 = vst.msk [vmem:[#allocation3 + $0xd0] sm:$0x3] %vm5741, 0.0
  %5767 = vst.msk [vmem:[#allocation3 + $0xd8] sm:$0xff] %vm4940, 0.0
  %5768 = vst.msk [vmem:[#allocation3 + $0xe0] sm:$0xff] %vm4940, 0.0
  %5769 = vst.msk [vmem:[#allocation3 + $0xe8] sm:$0x3] %vm5741, 0.0
  %5770 = vst.msk [vmem:[#allocation3 + $0xf0] sm:$0xff] %vm4940, 0.0
  %5771 = vst.msk [vmem:[#allocation3 + $0xf8] sm:$0xff] %vm4940, 0.0
  %5772 = vst.msk [vmem:[#allocation3 + $0x100] sm:$0x3] %vm5741, 0.0
  %5773 = vst.msk [vmem:[#allocation3 + $0x108] sm:$0xff] %vm4940, 0.0
  %5774 = vst.msk [vmem:[#allocation3 + $0x110] sm:$0xff] %vm4940, 0.0
  %5775 = vst.msk [vmem:[#allocation3 + $0x118] sm:$0x3] %vm5741, 0.0
  %5776 = vst.msk [vmem:[#allocation3 + $0x120] sm:$0xff] %vm4940, 0.0
  %5777 = vst.msk [vmem:[#allocation3 + $0x128] sm:$0xff] %vm4940, 0.0
  %5778 = vst.msk [vmem:[#allocation3 + $0x130] sm:$0x3] %vm5741, 0.0
  %5779 = vst.msk [vmem:[#allocation3 + $0x138] sm:$0xff] %vm4940, 0.0
  %5780 = vst.msk [vmem:[#allocation3 + $0x140] sm:$0xff] %vm4940, 0.0
  %5781 = vst.msk [vmem:[#allocation3 + $0x148] sm:$0x3] %vm5741, 0.0
  %5782 = vst.msk [vmem:[#allocation3 + $0x150] sm:$0xff] %vm4940, 0.0
  %5783 = vst.msk [vmem:[#allocation3 + $0x158] sm:$0xff] %vm4940, 0.0
  %5784 = vst.msk [vmem:[#allocation3 + $0x160] sm:$0x3] %vm5741, 0.0
  %5785 = vst.msk [vmem:[#allocation3 + $0x168] sm:$0xff] %vm4940, 0.0
  %5786 = vst.msk [vmem:[#allocation3 + $0x170] sm:$0xff] %vm4940, 0.0
  %5787 = vst.msk [vmem:[#allocation3 + $0x178] sm:$0x3] %vm5741, 0.0
  %5788 = vst.msk [vmem:[#allocation3 + $0x180] sm:$0xff] %vm4940, 0.0
  %5789 = vst.msk [vmem:[#allocation3 + $0x188] sm:$0xff] %vm4940, 0.0
  %5790 = vst.msk [vmem:[#allocation3 + $0x190] sm:$0x3] %vm5741, 0.0
  %5791 = vst.msk [vmem:[#allocation3 + $0x198] sm:$0xff] %vm4940, 0.0
  %5792 = vst.msk [vmem:[#allocation3 + $0x1a0] sm:$0xff] %vm4940, 0.0
  %5793 = vst.msk [vmem:[#allocation3 + $0x1a8] sm:$0x3] %vm5741, 0.0
  %5794 = vst.msk [vmem:[#allocation3 + $0x1b0] sm:$0xff] %vm4940, 0.0
  %5795 = vst.msk [vmem:[#allocation3 + $0x1b8] sm:$0xff] %vm4940, 0.0
  %5796 = vst.msk [vmem:[#allocation3 + $0x1c0] sm:$0x3] %vm5741, 0.0
  %5797 = vst.msk [vmem:[#allocation3 + $0x1c8] sm:$0xff] %vm4940, 0.0
  %5798 = vst.msk [vmem:[#allocation3 + $0x1d0] sm:$0xff] %vm4940, 0.0
  %5799 = vst.msk [vmem:[#allocation3 + $0x1d8] sm:$0x3] %vm5741, 0.0
  %5800 = vst.msk [vmem:[#allocation3 + $0x1e0] sm:$0xff] %vm4940, 0.0
  %5801 = vst.msk [vmem:[#allocation3 + $0x1e8] sm:$0xff] %vm4940, 0.0
  %5802 = vst.msk [vmem:[#allocation3 + $0x1f0] sm:$0x3] %vm5741, 0.0
  %5803 = vst.msk [vmem:[#allocation3 + $0x1f8] sm:$0xff] %vm4940, 0.0
  %5804 = vst.msk [vmem:[#allocation3 + $0x200] sm:$0xff] %vm4940, 0.0
  %5805 = vst.msk [vmem:[#allocation3 + $0x208] sm:$0x3] %vm5741, 0.0
  %5806 = vst.msk [vmem:[#allocation3 + $0x210] sm:$0xff] %vm4940, 0.0
  %5807 = vst.msk [vmem:[#allocation3 + $0x218] sm:$0xff] %vm4940, 0.0
  %5808 = vst.msk [vmem:[#allocation3 + $0x220] sm:$0x3] %vm5741, 0.0
  %5809 = vst.msk [vmem:[#allocation3 + $0x228] sm:$0xff] %vm4940, 0.0
  %5810 = vst.msk [vmem:[#allocation3 + $0x230] sm:$0xff] %vm4940, 0.0
  %5811 = vst.msk [vmem:[#allocation3 + $0x238] sm:$0x3] %vm5741, 0.0
  %5812 = vst.msk [vmem:[#allocation3 + $0x240] sm:$0xff] %vm4940, 0.0
  %5813 = vst.msk [vmem:[#allocation3 + $0x248] sm:$0xff] %vm4940, 0.0
  %5814 = vst.msk [vmem:[#allocation3 + $0x250] sm:$0x3] %vm5741, 0.0
  %5815 = vst.msk [vmem:[#allocation3 + $0x258] sm:$0xff] %vm4940, 0.0
  %5816 = vst.msk [vmem:[#allocation3 + $0x260] sm:$0xff] %vm4940, 0.0
  %5817 = vst.msk [vmem:[#allocation3 + $0x268] sm:$0x3] %vm5741, 0.0
  %5818 = vst.msk [vmem:[#allocation3 + $0x270] sm:$0xff] %vm4940, 0.0
  %5819 = vst.msk [vmem:[#allocation3 + $0x278] sm:$0xff] %vm4940, 0.0
  %5820 = vst.msk [vmem:[#allocation3 + $0x280] sm:$0x3] %vm5741, 0.0
  %5821 = vst.msk [vmem:[#allocation3 + $0x288] sm:$0xff] %vm4940, 0.0
  %5822 = vst.msk [vmem:[#allocation3 + $0x290] sm:$0xff] %vm4940, 0.0
  %5823 = vst.msk [vmem:[#allocation3 + $0x298] sm:$0x3] %vm5741, 0.0
  %5824 = vst.msk [vmem:[#allocation3 + $0x2a0] sm:$0xff] %vm4940, 0.0
  %5825 = vst.msk [vmem:[#allocation3 + $0x2a8] sm:$0xff] %vm4940, 0.0
  %5826 = vst.msk [vmem:[#allocation3 + $0x2b0] sm:$0x3] %vm5741, 0.0
  %5827 = vst.msk [vmem:[#allocation3 + $0x2b8] sm:$0xff] %vm4940, 0.0
  %5828 = vst.msk [vmem:[#allocation3 + $0x2c0] sm:$0xff] %vm4940, 0.0
  %5829 = vst.msk [vmem:[#allocation3 + $0x2c8] sm:$0x3] %vm5741, 0.0
  %5830 = vst.msk [vmem:[#allocation3 + $0x2d0] sm:$0xff] %vm4940, 0.0
  %5831 = vst.msk [vmem:[#allocation3 + $0x2d8] sm:$0xff] %vm4940, 0.0
  %5832 = vst.msk [vmem:[#allocation3 + $0x2e0] sm:$0x3] %vm5741, 0.0
  %5833 = vst.msk [vmem:[#allocation3 + $0x2e8] sm:$0xff] %vm4940, 0.0
  %5834 = vst.msk [vmem:[#allocation3 + $0x2f0] sm:$0xff] %vm4940, 0.0
  %5835 = vst.msk [vmem:[#allocation3 + $0x2f8] sm:$0x3] %vm5741, 0.0
  %5836 = vst.msk [vmem:[#allocation3 + $0x300] sm:$0xff] %vm4940, 0.0
  %5837 = vst.msk [vmem:[#allocation3 + $0x308] sm:$0xff] %vm4940, 0.0
  %5838 = vst.msk [vmem:[#allocation3 + $0x310] sm:$0x3] %vm5741, 0.0
  %5839 = vst.msk [vmem:[#allocation3 + $0x318] sm:$0xff] %vm4940, 0.0
  %5840 = vst.msk [vmem:[#allocation3 + $0x320] sm:$0xff] %vm4940, 0.0
  %5841 = vst.msk [vmem:[#allocation3 + $0x328] sm:$0x3] %vm5741, 0.0
  %5842 = vst.msk [vmem:[#allocation3 + $0x330] sm:$0xff] %vm4940, 0.0
  %5843 = vst.msk [vmem:[#allocation3 + $0x338] sm:$0xff] %vm4940, 0.0
  %5844 = vst.msk [vmem:[#allocation3 + $0x340] sm:$0x3] %vm5741, 0.0
  %5845 = vst.msk [vmem:[#allocation3 + $0x348] sm:$0xff] %vm4940, 0.0
  %5846 = vst.msk [vmem:[#allocation3 + $0x350] sm:$0xff] %vm4940, 0.0
  %5847 = vst.msk [vmem:[#allocation3 + $0x358] sm:$0x3] %vm5741, 0.0
  %s5848 = scalar_lea.vmem [#allocation3], 24
  %5849 = vst.msk [vmem:[%s5848 + $0x1] sm:$0xff] %vm4940, %v5675
  %5850 = vst.msk [vmem:[%s5848 + $0x9] sm:$0xff] %vm4940, %v5676
  %5851 = vst.msk [vmem:[%s5848 + $0x19] sm:$0xff] %vm4940, %v5677
  %5852 = vst.msk [vmem:[%s5848 + $0x21] sm:$0xff] %vm4940, %v5678
  %5853 = vst.msk [vmem:[%s5848 + $0x31] sm:$0xff] %vm4940, %v5679
  %5854 = vst.msk [vmem:[%s5848 + $0x39] sm:$0xff] %vm4940, %v5680
  %5855 = vst.msk [vmem:[%s5848 + $0x49] sm:$0xff] %vm4940, %v5681
  %5856 = vst.msk [vmem:[%s5848 + $0x51] sm:$0xff] %vm4940, %v5682
  %5857 = vst.msk [vmem:[%s5848 + $0x61] sm:$0xff] %vm4940, %v5683
  %5858 = vst.msk [vmem:[%s5848 + $0x69] sm:$0xff] %vm4940, %v5684
  %5859 = vst.msk [vmem:[%s5848 + $0x79] sm:$0xff] %vm4940, %v5685
  %5860 = vst.msk [vmem:[%s5848 + $0x81] sm:$0xff] %vm4940, %v5686
  %5861 = vst.msk [vmem:[%s5848 + $0x91] sm:$0xff] %vm4940, %v5687
  %5862 = vst.msk [vmem:[%s5848 + $0x99] sm:$0xff] %vm4940, %v5688
  %5863 = vst.msk [vmem:[%s5848 + $0xa9] sm:$0xff] %vm4940, %v5689
  %5864 = vst.msk [vmem:[%s5848 + $0xb1] sm:$0xff] %vm4940, %v5690
  %5865 = vst.msk [vmem:[%s5848 + $0xc1] sm:$0xff] %vm4940, %v5691
  %5866 = vst.msk [vmem:[%s5848 + $0xc9] sm:$0xff] %vm4940, %v5692
  %5867 = vst.msk [vmem:[%s5848 + $0xd9] sm:$0xff] %vm4940, %v5693
  %5868 = vst.msk [vmem:[%s5848 + $0xe1] sm:$0xff] %vm4940, %v5694
  %5869 = vst.msk [vmem:[%s5848 + $0xf1] sm:$0xff] %vm4940, %v5695
  %5870 = vst.msk [vmem:[%s5848 + $0xf9] sm:$0xff] %vm4940, %v5696
  %5871 = vst.msk [vmem:[%s5848 + $0x109] sm:$0xff] %vm4940, %v5697
  %5872 = vst.msk [vmem:[%s5848 + $0x111] sm:$0xff] %vm4940, %v5698
  %5873 = vst.msk [vmem:[%s5848 + $0x121] sm:$0xff] %vm4940, %v5699
  %5874 = vst.msk [vmem:[%s5848 + $0x129] sm:$0xff] %vm4940, %v5700
  %5875 = vst.msk [vmem:[%s5848 + $0x139] sm:$0xff] %vm4940, %v5701
  %5876 = vst.msk [vmem:[%s5848 + $0x141] sm:$0xff] %vm4940, %v5702
  %5877 = vst.msk [vmem:[%s5848 + $0x151] sm:$0xff] %vm4940, %v5703
  %5878 = vst.msk [vmem:[%s5848 + $0x159] sm:$0xff] %vm4940, %v5704
  %5879 = vst.msk [vmem:[%s5848 + $0x169] sm:$0xff] %vm4940, %v5705
  %5880 = vst.msk [vmem:[%s5848 + $0x171] sm:$0xff] %vm4940, %v5706
  %5881 = vst.msk [vmem:[%s5848 + $0x1b1] sm:$0xff] %vm4940, %v5707
  %5882 = vst.msk [vmem:[%s5848 + $0x1b9] sm:$0xff] %vm4940, %v5708
  %5883 = vst.msk [vmem:[%s5848 + $0x1c9] sm:$0xff] %vm4940, %v5709
  %5884 = vst.msk [vmem:[%s5848 + $0x1d1] sm:$0xff] %vm4940, %v5710
  %5885 = vst.msk [vmem:[%s5848 + $0x1e1] sm:$0xff] %vm4940, %v5711
  %5886 = vst.msk [vmem:[%s5848 + $0x1e9] sm:$0xff] %vm4940, %v5712
  %5887 = vst.msk [vmem:[%s5848 + $0x1f9] sm:$0xff] %vm4940, %v5713
  %5888 = vst.msk [vmem:[%s5848 + $0x201] sm:$0xff] %vm4940, %v5714
  %5889 = vst.msk [vmem:[%s5848 + $0x211] sm:$0xff] %vm4940, %v5715
  %5890 = vst.msk [vmem:[%s5848 + $0x219] sm:$0xff] %vm4940, %v5716
  %5891 = vst.msk [vmem:[%s5848 + $0x229] sm:$0xff] %vm4940, %v5717
  %5892 = vst.msk [vmem:[%s5848 + $0x231] sm:$0xff] %vm4940, %v5718
  %5893 = vst.msk [vmem:[%s5848 + $0x241] sm:$0xff] %vm4940, %v5719
  %5894 = vst.msk [vmem:[%s5848 + $0x249] sm:$0xff] %vm4940, %v5720
  %5895 = vst.msk [vmem:[%s5848 + $0x259] sm:$0xff] %vm4940, %v5721
  %5896 = vst.msk [vmem:[%s5848 + $0x261] sm:$0xff] %vm4940, %v5722
  %5897 = vst.msk [vmem:[%s5848 + $0x271] sm:$0xff] %vm4940, %v5723
  %5898 = vst.msk [vmem:[%s5848 + $0x279] sm:$0xff] %vm4940, %v5724
  %5899 = vst.msk [vmem:[%s5848 + $0x289] sm:$0xff] %vm4940, %v5725
  %5900 = vst.msk [vmem:[%s5848 + $0x291] sm:$0xff] %vm4940, %v5726
  %5901 = vst.msk [vmem:[%s5848 + $0x2a1] sm:$0xff] %vm4940, %v5727
  %5902 = vst.msk [vmem:[%s5848 + $0x2a9] sm:$0xff] %vm4940, %v5728
  %5903 = vst.msk [vmem:[%s5848 + $0x2b9] sm:$0xff] %vm4940, %v5729
  %5904 = vst.msk [vmem:[%s5848 + $0x2c1] sm:$0xff] %vm4940, %v5730
  %5905 = vst.msk [vmem:[%s5848 + $0x2d1] sm:$0xff] %vm4940, %v5731
  %5906 = vst.msk [vmem:[%s5848 + $0x2d9] sm:$0xff] %vm4940, %v5732
  %5907 = vst.msk [vmem:[%s5848 + $0x2e9] sm:$0xff] %vm4940, %v5733
  %5908 = vst.msk [vmem:[%s5848 + $0x2f1] sm:$0xff] %vm4940, %v5734
  %5909 = vst.msk [vmem:[%s5848 + $0x301] sm:$0xff] %vm4940, %v5735
  %5910 = vst.msk [vmem:[%s5848 + $0x309] sm:$0xff] %vm4940, %v5736
  %5911 = vst.msk [vmem:[%s5848 + $0x319] sm:$0xff] %vm4940, %v5737
  %5912 = vst.msk [vmem:[%s5848 + $0x321] sm:$0xff] %vm4940, %v5738
  %v5913 = vld [vmem:[#allocation3] sm:$0xff]
  %v5914 = vld [vmem:[#allocation3 + $0x8] sm:$0xff]
  %v5915 = vld [vmem:[#allocation3 + $0x18] sm:$0xff]
  %v5916 = vld [vmem:[#allocation3 + $0x20] sm:$0xff]
  %v5917 = vld [vmem:[#allocation3 + $0x30] sm:$0xff]
  %v5918 = vld [vmem:[#allocation3 + $0x38] sm:$0xff]
  %v5919 = vld [vmem:[#allocation3 + $0x48] sm:$0xff]
  %v5920 = vld [vmem:[#allocation3 + $0x50] sm:$0xff]
  %v5921 = vld [vmem:[#allocation3 + $0x60] sm:$0xff]
  %v5922 = vld [vmem:[#allocation3 + $0x68] sm:$0xff]
  %v5923 = vld [vmem:[#allocation3 + $0x78] sm:$0xff]
  %v5924 = vld [vmem:[#allocation3 + $0x80] sm:$0xff]
  %v5925 = vld [vmem:[#allocation3 + $0x90] sm:$0xff]
  %v5926 = vld [vmem:[#allocation3 + $0x98] sm:$0xff]
  %v5927 = vld [vmem:[#allocation3 + $0xa8] sm:$0xff]
  %v5928 = vld [vmem:[#allocation3 + $0xb0] sm:$0xff]
  %v5929 = vld [vmem:[#allocation3 + $0xc0] sm:$0xff]
  %v5930 = vld [vmem:[#allocation3 + $0xc8] sm:$0xff]
  %v5931 = vld [vmem:[#allocation3 + $0xd8] sm:$0xff]
  %v5932 = vld [vmem:[#allocation3 + $0xe0] sm:$0xff]
  %v5933 = vld [vmem:[#allocation3 + $0xf0] sm:$0xff]
  %v5934 = vld [vmem:[#allocation3 + $0xf8] sm:$0xff]
  %v5935 = vld [vmem:[#allocation3 + $0x108] sm:$0xff]
  %v5936 = vld [vmem:[#allocation3 + $0x110] sm:$0xff]
  %v5937 = vld [vmem:[#allocation3 + $0x120] sm:$0xff]
  %v5938 = vld [vmem:[#allocation3 + $0x128] sm:$0xff]
  %v5939 = vld [vmem:[#allocation3 + $0x138] sm:$0xff]
  %v5940 = vld [vmem:[#allocation3 + $0x140] sm:$0xff]
  %v5941 = vld [vmem:[#allocation3 + $0x150] sm:$0xff]
  %v5942 = vld [vmem:[#allocation3 + $0x158] sm:$0xff]
  %v5943 = vld [vmem:[#allocation3 + $0x168] sm:$0xff]
  %v5944 = vld [vmem:[#allocation3 + $0x170] sm:$0xff]
  %v5945 = vld [vmem:[#allocation3 + $0x1b0] sm:$0xff]
  %v5946 = vld [vmem:[#allocation3 + $0x1b8] sm:$0xff]
  %v5947 = vld [vmem:[#allocation3 + $0x1c8] sm:$0xff]
  %v5948 = vld [vmem:[#allocation3 + $0x1d0] sm:$0xff]
  %v5949 = vld [vmem:[#allocation3 + $0x1e0] sm:$0xff]
  %v5950 = vld [vmem:[#allocation3 + $0x1e8] sm:$0xff]
  %v5951 = vld [vmem:[#allocation3 + $0x1f8] sm:$0xff]
  %v5952 = vld [vmem:[#allocation3 + $0x200] sm:$0xff]
  %v5953 = vld [vmem:[#allocation3 + $0x210] sm:$0xff]
  %v5954 = vld [vmem:[#allocation3 + $0x218] sm:$0xff]
  %v5955 = vld [vmem:[#allocation3 + $0x228] sm:$0xff]
  %v5956 = vld [vmem:[#allocation3 + $0x230] sm:$0xff]
  %v5957 = vld [vmem:[#allocation3 + $0x240] sm:$0xff]
  %v5958 = vld [vmem:[#allocation3 + $0x248] sm:$0xff]
  %v5959 = vld [vmem:[#allocation3 + $0x258] sm:$0xff]
  %v5960 = vld [vmem:[#allocation3 + $0x260] sm:$0xff]
  %v5961 = vld [vmem:[#allocation3 + $0x270] sm:$0xff]
  %v5962 = vld [vmem:[#allocation3 + $0x278] sm:$0xff]
  %v5963 = vld [vmem:[#allocation3 + $0x288] sm:$0xff]
  %v5964 = vld [vmem:[#allocation3 + $0x290] sm:$0xff]
  %v5965 = vld [vmem:[#allocation3 + $0x2a0] sm:$0xff]
  %v5966 = vld [vmem:[#allocation3 + $0x2a8] sm:$0xff]
  %v5967 = vld [vmem:[#allocation3 + $0x2b8] sm:$0xff]
  %v5968 = vld [vmem:[#allocation3 + $0x2c0] sm:$0xff]
  %v5969 = vld [vmem:[#allocation3 + $0x2d0] sm:$0xff]
  %v5970 = vld [vmem:[#allocation3 + $0x2d8] sm:$0xff]
  %v5971 = vld [vmem:[#allocation3 + $0x2e8] sm:$0xff]
  %v5972 = vld [vmem:[#allocation3 + $0x2f0] sm:$0xff]
  %v5973 = vld [vmem:[#allocation3 + $0x300] sm:$0xff]
  %v5974 = vld [vmem:[#allocation3 + $0x308] sm:$0xff]
  %v5975 = vld [vmem:[#allocation3 + $0x318] sm:$0xff]
  %v5976 = vld [vmem:[#allocation3 + $0x320] sm:$0xff]
  %v5977 = vld [vmem:[%s2] sm:$0xff]
  %v5978 = vld [vmem:[#allocation3 + $0x1] sm:$0xff]
  %v5979 = vld [vmem:[#allocation3 + $0x9] sm:$0xff]
  %v5980 = vld [vmem:[#allocation3 + $0x19] sm:$0xff]
  %v5981 = vld [vmem:[#allocation3 + $0x21] sm:$0xff]
  %v5982 = vld [vmem:[#allocation3 + $0x31] sm:$0xff]
  %v5983 = vld [vmem:[#allocation3 + $0x39] sm:$0xff]
  %v5984 = vld [vmem:[#allocation3 + $0x49] sm:$0xff]
  %v5985 = vld [vmem:[#allocation3 + $0x51] sm:$0xff]
  %v5986 = vld [vmem:[#allocation3 + $0x61] sm:$0xff]
  %v5987 = vld [vmem:[#allocation3 + $0x69] sm:$0xff]
  %v5988 = vld [vmem:[#allocation3 + $0x79] sm:$0xff]
  %v5989 = vld [vmem:[#allocation3 + $0x81] sm:$0xff]
  %v5990 = vld [vmem:[#allocation3 + $0x91] sm:$0xff]
  %v5991 = vld [vmem:[#allocation3 + $0x99] sm:$0xff]
  %v5992 = vld [vmem:[#allocation3 + $0xa9] sm:$0xff]
  %v5993 = vld [vmem:[#allocation3 + $0xb1] sm:$0xff]
  %v5994 = vld [vmem:[#allocation3 + $0xc1] sm:$0xff]
  %v5995 = vld [vmem:[#allocation3 + $0xc9] sm:$0xff]
  %v5996 = vld [vmem:[#allocation3 + $0xd9] sm:$0xff]
  %v5997 = vld [vmem:[#allocation3 + $0xe1] sm:$0xff]
  %v5998 = vld [vmem:[#allocation3 + $0xf1] sm:$0xff]
  %v5999 = vld [vmem:[#allocation3 + $0xf9] sm:$0xff]
  %v6000 = vld [vmem:[#allocation3 + $0x109] sm:$0xff]
  %v6001 = vld [vmem:[#allocation3 + $0x111] sm:$0xff]
  %v6002 = vld [vmem:[#allocation3 + $0x121] sm:$0xff]
  %v6003 = vld [vmem:[#allocation3 + $0x129] sm:$0xff]
  %v6004 = vld [vmem:[#allocation3 + $0x139] sm:$0xff]
  %v6005 = vld [vmem:[#allocation3 + $0x141] sm:$0xff]
  %v6006 = vld [vmem:[#allocation3 + $0x151] sm:$0xff]
  %v6007 = vld [vmem:[#allocation3 + $0x159] sm:$0xff]
  %v6008 = vld [vmem:[#allocation3 + $0x169] sm:$0xff]
  %v6009 = vld [vmem:[#allocation3 + $0x171] sm:$0xff]
  %v6010 = vld [vmem:[#allocation3 + $0x1b1] sm:$0xff]
  %v6011 = vld [vmem:[#allocation3 + $0x1b9] sm:$0xff]
  %v6012 = vld [vmem:[#allocation3 + $0x1c9] sm:$0xff]
  %v6013 = vld [vmem:[#allocation3 + $0x1d1] sm:$0xff]
  %v6014 = vld [vmem:[#allocation3 + $0x1e1] sm:$0xff]
  %v6015 = vld [vmem:[#allocation3 + $0x1e9] sm:$0xff]
  %v6016 = vld [vmem:[#allocation3 + $0x1f9] sm:$0xff]
  %v6017 = vld [vmem:[#allocation3 + $0x201] sm:$0xff]
  %v6018 = vld [vmem:[#allocation3 + $0x211] sm:$0xff]
  %v6019 = vld [vmem:[#allocation3 + $0x219] sm:$0xff]
  %v6020 = vld [vmem:[#allocation3 + $0x229] sm:$0xff]
  %v6021 = vld [vmem:[#allocation3 + $0x231] sm:$0xff]
  %v6022 = vld [vmem:[#allocation3 + $0x241] sm:$0xff]
  %v6023 = vld [vmem:[#allocation3 + $0x249] sm:$0xff]
  %v6024 = vld [vmem:[#allocation3 + $0x259] sm:$0xff]
  %v6025 = vld [vmem:[#allocation3 + $0x261] sm:$0xff]
  %v6026 = vld [vmem:[#allocation3 + $0x271] sm:$0xff]
  %v6027 = vld [vmem:[#allocation3 + $0x279] sm:$0xff]
  %v6028 = vld [vmem:[#allocation3 + $0x289] sm:$0xff]
  %v6029 = vld [vmem:[#allocation3 + $0x291] sm:$0xff]
  %v6030 = vld [vmem:[#allocation3 + $0x2a1] sm:$0xff]
  %v6031 = vld [vmem:[#allocation3 + $0x2a9] sm:$0xff]
  %v6032 = vld [vmem:[#allocation3 + $0x2b9] sm:$0xff]
  %v6033 = vld [vmem:[#allocation3 + $0x2c1] sm:$0xff]
  %v6034 = vld [vmem:[#allocation3 + $0x2d1] sm:$0xff]
  %v6035 = vld [vmem:[#allocation3 + $0x2d9] sm:$0xff]
  %v6036 = vld [vmem:[#allocation3 + $0x2e9] sm:$0xff]
  %v6037 = vld [vmem:[#allocation3 + $0x2f1] sm:$0xff]
  %v6038 = vld [vmem:[#allocation3 + $0x301] sm:$0xff]
  %v6039 = vld [vmem:[#allocation3 + $0x309] sm:$0xff]
  %v6040 = vld [vmem:[#allocation3 + $0x319] sm:$0xff]
  %v6041 = vld [vmem:[#allocation3 + $0x321] sm:$0xff]
  %s6042 = scalar_lea.vmem %s2, 8
  %v6043 = vld [vmem:[%s6042] sm:$0xff]
  %v6045 = vsel %vm4940, %v6043, 0
  %v6048 = vsel %vm4940, %v5978, 0
  %v6051 = vsel %vm4940, %v5979, 0
  %v6054 = vsel %vm4940, %v5980, 0
  %v6057 = vsel %vm4940, %v5981, 0
  %v6060 = vsel %vm4940, %v5982, 0
  %v6063 = vsel %vm4940, %v5983, 0
  %v6066 = vsel %vm4940, %v5984, 0
  %v6069 = vsel %vm4940, %v5985, 0
  %v6072 = vsel %vm4940, %v5986, 0
  %v6075 = vsel %vm4940, %v5987, 0
  %v6078 = vsel %vm4940, %v5988, 0
  %v6081 = vsel %vm4940, %v5989, 0
  %v6084 = vsel %vm4940, %v5990, 0
  %v6087 = vsel %vm4940, %v5991, 0
  %v6090 = vsel %vm4940, %v5992, 0
  %v6093 = vsel %vm4940, %v5993, 0
  %v6096 = vsel %vm4940, %v5994, 0
  %v6099 = vsel %vm4940, %v5995, 0
  %v6102 = vsel %vm4940, %v5996, 0
  %v6105 = vsel %vm4940, %v5997, 0
  %v6108 = vsel %vm4940, %v5998, 0
  %v6111 = vsel %vm4940, %v5999, 0
  %v6114 = vsel %vm4940, %v6000, 0
  %v6117 = vsel %vm4940, %v6001, 0
  %v6120 = vsel %vm4940, %v6002, 0
  %v6123 = vsel %vm4940, %v6003, 0
  %v6126 = vsel %vm4940, %v6004, 0
  %v6129 = vsel %vm4940, %v6005, 0
  %v6132 = vsel %vm4940, %v6006, 0
  %v6135 = vsel %vm4940, %v6007, 0
  %v6138 = vsel %vm4940, %v6008, 0
  %v6141 = vsel %vm4940, %v6009, 0
  %v6144 = vsel %vm4940, %v6010, 0
  %v6147 = vsel %vm4940, %v6011, 0
  %v6150 = vsel %vm4940, %v6012, 0
  %v6153 = vsel %vm4940, %v6013, 0
  %v6156 = vsel %vm4940, %v6014, 0
  %v6159 = vsel %vm4940, %v6015, 0
  %v6162 = vsel %vm4940, %v6016, 0
  %v6165 = vsel %vm4940, %v6017, 0
  %v6168 = vsel %vm4940, %v6018, 0
  %v6171 = vsel %vm4940, %v6019, 0
  %v6174 = vsel %vm4940, %v6020, 0
  %v6177 = vsel %vm4940, %v6021, 0
  %v6180 = vsel %vm4940, %v6022, 0
  %v6183 = vsel %vm4940, %v6023, 0
  %v6186 = vsel %vm4940, %v6024, 0
  %v6189 = vsel %vm4940, %v6025, 0
  %v6192 = vsel %vm4940, %v6026, 0
  %v6195 = vsel %vm4940, %v6027, 0
  %v6198 = vsel %vm4940, %v6028, 0
  %v6201 = vsel %vm4940, %v6029, 0
  %v6204 = vsel %vm4940, %v6030, 0
  %v6207 = vsel %vm4940, %v6031, 0
  %v6210 = vsel %vm4940, %v6032, 0
  %v6213 = vsel %vm4940, %v6033, 0
  %v6216 = vsel %vm4940, %v6034, 0
  %v6219 = vsel %vm4940, %v6035, 0
  %v6222 = vsel %vm4940, %v6036, 0
  %v6225 = vsel %vm4940, %v6037, 0
  %v6228 = vsel %vm4940, %v6038, 0
  %v6231 = vsel %vm4940, %v6039, 0
  %v6234 = vsel %vm4940, %v6040, 0
  %v6237 = vsel %vm4940, %v6041, 0
  %6239 = vmatpush.xpose.msra.mxu0 %v6093
  %6240 = vmatpush.xpose.msra.mxu0 %v6090
  %6241 = vmatpush.xpose.msra.mxu0 %v6087
  %6242 = vmatpush.xpose.msra.mxu0 %v6084
  %6243 = vmatpush.xpose.msra.mxu0 %v6081
  %6244 = vmatpush.xpose.msra.mxu0 %v6078
  %6245 = vmatpush.xpose.msra.mxu0 %v6075
  %6246 = vmatpush.xpose.msra.mxu0 %v6072
  %6247 = vmatpush.xpose.msra.mxu0 %v6069
  %6248 = vmatpush.xpose.msra.mxu0 %v6066
  %6249 = vmatpush.xpose.msra.mxu0 %v6063
  %6250 = vmatpush.xpose.msra.mxu0 %v6060
  %6251 = vmatpush.xpose.msra.mxu0 %v6057
  %6252 = vmatpush.xpose.msra.mxu0 %v6054
  %6253 = vmatpush.xpose.msra.mxu0 %v6051
  %6254 = vmatpush.xpose.msra.mxu0 %v6048
  %6255 = vmatmul.f32.gmra.mxu0 %v6045
  %v6256 = vpop.f32.mrf.mxu0
  %v6257 = vadd.f32 0.0, %v6256
  %6258 = vdwg.mxu0
  %6259 = vmatpush.xpose.msra.mxu0 %v6141
  %6260 = vmatpush.xpose.msra.mxu0 %v6138
  %6261 = vmatpush.xpose.msra.mxu0 %v6135
  %6262 = vmatpush.xpose.msra.mxu0 %v6132
  %6263 = vmatpush.xpose.msra.mxu0 %v6129
  %6264 = vmatpush.xpose.msra.mxu0 %v6126
  %6265 = vmatpush.xpose.msra.mxu0 %v6123
  %6266 = vmatpush.xpose.msra.mxu0 %v6120
  %6267 = vmatpush.xpose.msra.mxu0 %v6117
  %6268 = vmatpush.xpose.msra.mxu0 %v6114
  %6269 = vmatpush.xpose.msra.mxu0 %v6111
  %6270 = vmatpush.xpose.msra.mxu0 %v6108
  %6271 = vmatpush.xpose.msra.mxu0 %v6105
  %6272 = vmatpush.xpose.msra.mxu0 %v6102
  %6273 = vmatpush.xpose.msra.mxu0 %v6099
  %6274 = vmatpush.xpose.msra.mxu0 %v6096
  %6275 = vmatmul.f32.gmra.mxu0 %v6045
  %v6276 = vpop.f32.mrf.mxu0
  %v6277 = vadd.f32 0.0, %v6276
  %6278 = vdwg.mxu0
  %6279 = vmatpush.xpose.msra.mxu0 %v6189
  %6280 = vmatpush.xpose.msra.mxu0 %v6186
  %6281 = vmatpush.xpose.msra.mxu0 %v6183
  %6282 = vmatpush.xpose.msra.mxu0 %v6180
  %6283 = vmatpush.xpose.msra.mxu0 %v6177
  %6284 = vmatpush.xpose.msra.mxu0 %v6174
  %6285 = vmatpush.xpose.msra.mxu0 %v6171
  %6286 = vmatpush.xpose.msra.mxu0 %v6168
  %6287 = vmatpush.xpose.msra.mxu0 %v6165
  %6288 = vmatpush.xpose.msra.mxu0 %v6162
  %6289 = vmatpush.xpose.msra.mxu0 %v6159
  %6290 = vmatpush.xpose.msra.mxu0 %v6156
  %6291 = vmatpush.xpose.msra.mxu0 %v6153
  %6292 = vmatpush.xpose.msra.mxu0 %v6150
  %6293 = vmatpush.xpose.msra.mxu0 %v6147
  %6294 = vmatpush.xpose.msra.mxu0 %v6144
  %6295 = vmatmul.f32.gmra.mxu0 %v6045
  %v6296 = vpop.f32.mrf.mxu0
  %v6297 = vadd.f32 0.0, %v6296
  %6298 = vdwg.mxu0
  %6299 = vmatpush.xpose.msra.mxu0 %v6237
  %6300 = vmatpush.xpose.msra.mxu0 %v6234
  %6301 = vmatpush.xpose.msra.mxu0 %v6231
  %6302 = vmatpush.xpose.msra.mxu0 %v6228
  %6303 = vmatpush.xpose.msra.mxu0 %v6225
  %6304 = vmatpush.xpose.msra.mxu0 %v6222
  %6305 = vmatpush.xpose.msra.mxu0 %v6219
  %6306 = vmatpush.xpose.msra.mxu0 %v6216
  %6307 = vmatpush.xpose.msra.mxu0 %v6213
  %6308 = vmatpush.xpose.msra.mxu0 %v6210
  %6309 = vmatpush.xpose.msra.mxu0 %v6207
  %6310 = vmatpush.xpose.msra.mxu0 %v6204
  %6311 = vmatpush.xpose.msra.mxu0 %v6201
  %6312 = vmatpush.xpose.msra.mxu0 %v6198
  %6313 = vmatpush.xpose.msra.mxu0 %v6195
  %6314 = vmatpush.xpose.msra.mxu0 %v6192
  %6315 = vmatmul.f32.gmra.mxu0 %v6045
  %v6316 = vpop.f32.mrf.mxu0
  %v6317 = vadd.f32 0.0, %v6316
  %6318 = vdwg.mxu0
  %v6320 = vsel %vm4940, %v5977, 0
  %v6323 = vsel %vm4940, %v5913, 0
  %v6326 = vsel %vm4940, %v5914, 0
  %v6329 = vsel %vm4940, %v5915, 0
  %v6332 = vsel %vm4940, %v5916, 0
  %v6335 = vsel %vm4940, %v5917, 0
  %v6338 = vsel %vm4940, %v5918, 0
  %v6341 = vsel %vm4940, %v5919, 0
  %v6344 = vsel %vm4940, %v5920, 0
  %v6347 = vsel %vm4940, %v5921, 0
  %v6350 = vsel %vm4940, %v5922, 0
  %v6353 = vsel %vm4940, %v5923, 0
  %v6356 = vsel %vm4940, %v5924, 0
  %v6359 = vsel %vm4940, %v5925, 0
  %v6362 = vsel %vm4940, %v5926, 0
  %v6365 = vsel %vm4940, %v5927, 0
  %v6368 = vsel %vm4940, %v5928, 0
  %v6371 = vsel %vm4940, %v5929, 0
  %v6374 = vsel %vm4940, %v5930, 0
  %v6377 = vsel %vm4940, %v5931, 0
  %v6380 = vsel %vm4940, %v5932, 0
  %v6383 = vsel %vm4940, %v5933, 0
  %v6386 = vsel %vm4940, %v5934, 0
  %v6389 = vsel %vm4940, %v5935, 0
  %v6392 = vsel %vm4940, %v5936, 0
  %v6395 = vsel %vm4940, %v5937, 0
  %v6398 = vsel %vm4940, %v5938, 0
  %v6401 = vsel %vm4940, %v5939, 0
  %v6404 = vsel %vm4940, %v5940, 0
  %v6407 = vsel %vm4940, %v5941, 0
  %v6410 = vsel %vm4940, %v5942, 0
  %v6413 = vsel %vm4940, %v5943, 0
  %v6416 = vsel %vm4940, %v5944, 0
  %v6419 = vsel %vm4940, %v5945, 0
  %v6422 = vsel %vm4940, %v5946, 0
  %v6425 = vsel %vm4940, %v5947, 0
  %v6428 = vsel %vm4940, %v5948, 0
  %v6431 = vsel %vm4940, %v5949, 0
  %v6434 = vsel %vm4940, %v5950, 0
  %v6437 = vsel %vm4940, %v5951, 0
  %v6440 = vsel %vm4940, %v5952, 0
  %v6443 = vsel %vm4940, %v5953, 0
  %v6446 = vsel %vm4940, %v5954, 0
  %v6449 = vsel %vm4940, %v5955, 0
  %v6452 = vsel %vm4940, %v5956, 0
  %v6455 = vsel %vm4940, %v5957, 0
  %v6458 = vsel %vm4940, %v5958, 0
  %v6461 = vsel %vm4940, %v5959, 0
  %v6464 = vsel %vm4940, %v5960, 0
  %v6467 = vsel %vm4940, %v5961, 0
  %v6470 = vsel %vm4940, %v5962, 0
  %v6473 = vsel %vm4940, %v5963, 0
  %v6476 = vsel %vm4940, %v5964, 0
  %v6479 = vsel %vm4940, %v5965, 0
  %v6482 = vsel %vm4940, %v5966, 0
  %v6485 = vsel %vm4940, %v5967, 0
  %v6488 = vsel %vm4940, %v5968, 0
  %v6491 = vsel %vm4940, %v5969, 0
  %v6494 = vsel %vm4940, %v5970, 0
  %v6497 = vsel %vm4940, %v5971, 0
  %v6500 = vsel %vm4940, %v5972, 0
  %v6503 = vsel %vm4940, %v5973, 0
  %v6506 = vsel %vm4940, %v5974, 0
  %v6509 = vsel %vm4940, %v5975, 0
  %v6512 = vsel %vm4940, %v5976, 0
  %6514 = vmatpush.xpose.msra.mxu0 %v6368
  %6515 = vmatpush.xpose.msra.mxu0 %v6365
  %6516 = vmatpush.xpose.msra.mxu0 %v6362
  %6517 = vmatpush.xpose.msra.mxu0 %v6359
  %6518 = vmatpush.xpose.msra.mxu0 %v6356
  %6519 = vmatpush.xpose.msra.mxu0 %v6353
  %6520 = vmatpush.xpose.msra.mxu0 %v6350
  %6521 = vmatpush.xpose.msra.mxu0 %v6347
  %6522 = vmatpush.xpose.msra.mxu0 %v6344
  %6523 = vmatpush.xpose.msra.mxu0 %v6341
  %6524 = vmatpush.xpose.msra.mxu0 %v6338
  %6525 = vmatpush.xpose.msra.mxu0 %v6335
  %6526 = vmatpush.xpose.msra.mxu0 %v6332
  %6527 = vmatpush.xpose.msra.mxu0 %v6329
  %6528 = vmatpush.xpose.msra.mxu0 %v6326
  %6529 = vmatpush.xpose.msra.mxu0 %v6323
  %6530 = vmatmul.f32.gmra.mxu0 %v6320
  %v6531 = vpop.f32.mrf.mxu0
  %v6532 = vadd.f32 %v6257, %v6531
  %6533 = vdwg.mxu0
  %6534 = vmatpush.xpose.msra.mxu0 %v6416
  %6535 = vmatpush.xpose.msra.mxu0 %v6413
  %6536 = vmatpush.xpose.msra.mxu0 %v6410
  %6537 = vmatpush.xpose.msra.mxu0 %v6407
  %6538 = vmatpush.xpose.msra.mxu0 %v6404
  %6539 = vmatpush.xpose.msra.mxu0 %v6401
  %6540 = vmatpush.xpose.msra.mxu0 %v6398
  %6541 = vmatpush.xpose.msra.mxu0 %v6395
  %6542 = vmatpush.xpose.msra.mxu0 %v6392
  %6543 = vmatpush.xpose.msra.mxu0 %v6389
  %6544 = vmatpush.xpose.msra.mxu0 %v6386
  %6545 = vmatpush.xpose.msra.mxu0 %v6383
  %6546 = vmatpush.xpose.msra.mxu0 %v6380
  %6547 = vmatpush.xpose.msra.mxu0 %v6377
  %6548 = vmatpush.xpose.msra.mxu0 %v6374
  %6549 = vmatpush.xpose.msra.mxu0 %v6371
  %6550 = vmatmul.f32.gmra.mxu0 %v6320
  %v6551 = vpop.f32.mrf.mxu0
  %v6552 = vadd.f32 %v6277, %v6551
  %6553 = vdwg.mxu0
  %6554 = vmatpush.xpose.msra.mxu0 %v6464
  %6555 = vmatpush.xpose.msra.mxu0 %v6461
  %6556 = vmatpush.xpose.msra.mxu0 %v6458
  %6557 = vmatpush.xpose.msra.mxu0 %v6455
  %6558 = vmatpush.xpose.msra.mxu0 %v6452
  %6559 = vmatpush.xpose.msra.mxu0 %v6449
  %6560 = vmatpush.xpose.msra.mxu0 %v6446
  %6561 = vmatpush.xpose.msra.mxu0 %v6443
  %6562 = vmatpush.xpose.msra.mxu0 %v6440
  %6563 = vmatpush.xpose.msra.mxu0 %v6437
  %6564 = vmatpush.xpose.msra.mxu0 %v6434
  %6565 = vmatpush.xpose.msra.mxu0 %v6431
  %6566 = vmatpush.xpose.msra.mxu0 %v6428
  %6567 = vmatpush.xpose.msra.mxu0 %v6425
  %6568 = vmatpush.xpose.msra.mxu0 %v6422
  %6569 = vmatpush.xpose.msra.mxu0 %v6419
  %6570 = vmatmul.f32.gmra.mxu0 %v6320
  %v6571 = vpop.f32.mrf.mxu0
  %v6572 = vadd.f32 %v6297, %v6571
  %6573 = vdwg.mxu0
  %6574 = vmatpush.xpose.msra.mxu0 %v6512
  %6575 = vmatpush.xpose.msra.mxu0 %v6509
  %6576 = vmatpush.xpose.msra.mxu0 %v6506
  %6577 = vmatpush.xpose.msra.mxu0 %v6503
  %6578 = vmatpush.xpose.msra.mxu0 %v6500
  %6579 = vmatpush.xpose.msra.mxu0 %v6497
  %6580 = vmatpush.xpose.msra.mxu0 %v6494
  %6581 = vmatpush.xpose.msra.mxu0 %v6491
  %6582 = vmatpush.xpose.msra.mxu0 %v6488
  %6583 = vmatpush.xpose.msra.mxu0 %v6485
  %6584 = vmatpush.xpose.msra.mxu0 %v6482
  %6585 = vmatpush.xpose.msra.mxu0 %v6479
  %6586 = vmatpush.xpose.msra.mxu0 %v6476
  %6587 = vmatpush.xpose.msra.mxu0 %v6473
  %6588 = vmatpush.xpose.msra.mxu0 %v6470
  %6589 = vmatpush.xpose.msra.mxu0 %v6467
  %6590 = vmatmul.f32.gmra.mxu0 %v6320
  %v6591 = vpop.f32.mrf.mxu0
  %v6592 = vadd.f32 %v6317, %v6591
  %6593 = vdwg.mxu0
  %v6594 = vld [vmem:[#allocation3 + $0x2] sm:$0xff]
  %v6595 = vld [vmem:[#allocation3 + $0xa] sm:$0xff]
  %v6596 = vld [vmem:[#allocation3 + $0x1a] sm:$0xff]
  %v6597 = vld [vmem:[#allocation3 + $0x22] sm:$0xff]
  %v6598 = vld [vmem:[#allocation3 + $0x32] sm:$0xff]
  %v6599 = vld [vmem:[#allocation3 + $0x3a] sm:$0xff]
  %v6600 = vld [vmem:[#allocation3 + $0x4a] sm:$0xff]
  %v6601 = vld [vmem:[#allocation3 + $0x52] sm:$0xff]
  %v6602 = vld [vmem:[#allocation3 + $0x62] sm:$0xff]
  %v6603 = vld [vmem:[#allocation3 + $0x6a] sm:$0xff]
  %v6604 = vld [vmem:[#allocation3 + $0x7a] sm:$0xff]
  %v6605 = vld [vmem:[#allocation3 + $0x82] sm:$0xff]
  %v6606 = vld [vmem:[#allocation3 + $0x92] sm:$0xff]
  %v6607 = vld [vmem:[#allocation3 + $0x9a] sm:$0xff]
  %v6608 = vld [vmem:[#allocation3 + $0xaa] sm:$0xff]
  %v6609 = vld [vmem:[#allocation3 + $0xb2] sm:$0xff]
  %v6610 = vld [vmem:[#allocation3 + $0xc2] sm:$0xff]
  %v6611 = vld [vmem:[#allocation3 + $0xca] sm:$0xff]
  %v6612 = vld [vmem:[#allocation3 + $0xda] sm:$0xff]
  %v6613 = vld [vmem:[#allocation3 + $0xe2] sm:$0xff]
  %v6614 = vld [vmem:[#allocation3 + $0xf2] sm:$0xff]
  %v6615 = vld [vmem:[#allocation3 + $0xfa] sm:$0xff]
  %v6616 = vld [vmem:[#allocation3 + $0x10a] sm:$0xff]
  %v6617 = vld [vmem:[#allocation3 + $0x112] sm:$0xff]
  %v6618 = vld [vmem:[#allocation3 + $0x122] sm:$0xff]
  %v6619 = vld [vmem:[#allocation3 + $0x12a] sm:$0xff]
  %v6620 = vld [vmem:[#allocation3 + $0x13a] sm:$0xff]
  %v6621 = vld [vmem:[#allocation3 + $0x142] sm:$0xff]
  %v6622 = vld [vmem:[#allocation3 + $0x152] sm:$0xff]
  %v6623 = vld [vmem:[#allocation3 + $0x15a] sm:$0xff]
  %v6624 = vld [vmem:[#allocation3 + $0x16a] sm:$0xff]
  %v6625 = vld [vmem:[#allocation3 + $0x172] sm:$0xff]
  %v6626 = vld [vmem:[#allocation3 + $0x1b2] sm:$0xff]
  %v6627 = vld [vmem:[#allocation3 + $0x1ba] sm:$0xff]
  %v6628 = vld [vmem:[#allocation3 + $0x1ca] sm:$0xff]
  %v6629 = vld [vmem:[#allocation3 + $0x1d2] sm:$0xff]
  %v6630 = vld [vmem:[#allocation3 + $0x1e2] sm:$0xff]
  %v6631 = vld [vmem:[#allocation3 + $0x1ea] sm:$0xff]
  %v6632 = vld [vmem:[#allocation3 + $0x1fa] sm:$0xff]
  %v6633 = vld [vmem:[#allocation3 + $0x202] sm:$0xff]
  %v6634 = vld [vmem:[#allocation3 + $0x212] sm:$0xff]
  %v6635 = vld [vmem:[#allocation3 + $0x21a] sm:$0xff]
  %v6636 = vld [vmem:[#allocation3 + $0x22a] sm:$0xff]
  %v6637 = vld [vmem:[#allocation3 + $0x232] sm:$0xff]
  %v6638 = vld [vmem:[#allocation3 + $0x242] sm:$0xff]
  %v6639 = vld [vmem:[#allocation3 + $0x24a] sm:$0xff]
  %v6640 = vld [vmem:[#allocation3 + $0x25a] sm:$0xff]
  %v6641 = vld [vmem:[#allocation3 + $0x262] sm:$0xff]
  %v6642 = vld [vmem:[#allocation3 + $0x272] sm:$0xff]
  %v6643 = vld [vmem:[#allocation3 + $0x27a] sm:$0xff]
  %v6644 = vld [vmem:[#allocation3 + $0x28a] sm:$0xff]
  %v6645 = vld [vmem:[#allocation3 + $0x292] sm:$0xff]
  %v6646 = vld [vmem:[#allocation3 + $0x2a2] sm:$0xff]
  %v6647 = vld [vmem:[#allocation3 + $0x2aa] sm:$0xff]
  %v6648 = vld [vmem:[#allocation3 + $0x2ba] sm:$0xff]
  %v6649 = vld [vmem:[#allocation3 + $0x2c2] sm:$0xff]
  %v6650 = vld [vmem:[#allocation3 + $0x2d2] sm:$0xff]
  %v6651 = vld [vmem:[#allocation3 + $0x2da] sm:$0xff]
  %v6652 = vld [vmem:[#allocation3 + $0x2ea] sm:$0xff]
  %v6653 = vld [vmem:[#allocation3 + $0x2f2] sm:$0xff]
  %v6654 = vld [vmem:[#allocation3 + $0x302] sm:$0xff]
  %v6655 = vld [vmem:[#allocation3 + $0x30a] sm:$0xff]
  %v6656 = vld [vmem:[#allocation3 + $0x31a] sm:$0xff]
  %v6657 = vld [vmem:[#allocation3 + $0x322] sm:$0xff]
  %s6658 = scalar_lea.vmem %s2, 16
  %v6659 = vld [vmem:[%s6658] sm:$0xff]
  %v6661 = vsel %vm4940, %v6659, 0
  %v6664 = vsel %vm4940, %v6594, 0
  %v6667 = vsel %vm4940, %v6595, 0
  %v6670 = vsel %vm4940, %v6596, 0
  %v6673 = vsel %vm4940, %v6597, 0
  %v6676 = vsel %vm4940, %v6598, 0
  %v6679 = vsel %vm4940, %v6599, 0
  %v6682 = vsel %vm4940, %v6600, 0
  %v6685 = vsel %vm4940, %v6601, 0
  %v6688 = vsel %vm4940, %v6602, 0
  %v6691 = vsel %vm4940, %v6603, 0
  %v6694 = vsel %vm4940, %v6604, 0
  %v6697 = vsel %vm4940, %v6605, 0
  %v6700 = vsel %vm4940, %v6606, 0
  %v6703 = vsel %vm4940, %v6607, 0
  %v6706 = vsel %vm4940, %v6608, 0
  %v6709 = vsel %vm4940, %v6609, 0
  %v6712 = vsel %vm4940, %v6610, 0
  %v6715 = vsel %vm4940, %v6611, 0
  %v6718 = vsel %vm4940, %v6612, 0
  %v6721 = vsel %vm4940, %v6613, 0
  %v6724 = vsel %vm4940, %v6614, 0
  %v6727 = vsel %vm4940, %v6615, 0
  %v6730 = vsel %vm4940, %v6616, 0
  %v6733 = vsel %vm4940, %v6617, 0
  %v6736 = vsel %vm4940, %v6618, 0
  %v6739 = vsel %vm4940, %v6619, 0
  %v6742 = vsel %vm4940, %v6620, 0
  %v6745 = vsel %vm4940, %v6621, 0
  %v6748 = vsel %vm4940, %v6622, 0
  %v6751 = vsel %vm4940, %v6623, 0
  %v6754 = vsel %vm4940, %v6624, 0
  %v6757 = vsel %vm4940, %v6625, 0
  %v6760 = vsel %vm4940, %v6626, 0
  %v6763 = vsel %vm4940, %v6627, 0
  %v6766 = vsel %vm4940, %v6628, 0
  %v6769 = vsel %vm4940, %v6629, 0
  %v6772 = vsel %vm4940, %v6630, 0
  %v6775 = vsel %vm4940, %v6631, 0
  %v6778 = vsel %vm4940, %v6632, 0
  %v6781 = vsel %vm4940, %v6633, 0
  %v6784 = vsel %vm4940, %v6634, 0
  %v6787 = vsel %vm4940, %v6635, 0
  %v6790 = vsel %vm4940, %v6636, 0
  %v6793 = vsel %vm4940, %v6637, 0
  %v6796 = vsel %vm4940, %v6638, 0
  %v6799 = vsel %vm4940, %v6639, 0
  %v6802 = vsel %vm4940, %v6640, 0
  %v6805 = vsel %vm4940, %v6641, 0
  %v6808 = vsel %vm4940, %v6642, 0
  %v6811 = vsel %vm4940, %v6643, 0
  %v6814 = vsel %vm4940, %v6644, 0
  %v6817 = vsel %vm4940, %v6645, 0
  %v6820 = vsel %vm4940, %v6646, 0
  %v6823 = vsel %vm4940, %v6647, 0
  %v6826 = vsel %vm4940, %v6648, 0
  %v6829 = vsel %vm4940, %v6649, 0
  %v6832 = vsel %vm4940, %v6650, 0
  %v6835 = vsel %vm4940, %v6651, 0
  %v6838 = vsel %vm4940, %v6652, 0
  %v6841 = vsel %vm4940, %v6653, 0
  %v6844 = vsel %vm4940, %v6654, 0
  %v6847 = vsel %vm4940, %v6655, 0
  %v6850 = vsel %vm4940, %v6656, 0
  %v6853 = vsel %vm4940, %v6657, 0
  %6855 = vmatpush.xpose.msra.mxu0 %v6709
  %6856 = vmatpush.xpose.msra.mxu0 %v6706
  %6857 = vmatpush.xpose.msra.mxu0 %v6703
  %6858 = vmatpush.xpose.msra.mxu0 %v6700
  %6859 = vmatpush.xpose.msra.mxu0 %v6697
  %6860 = vmatpush.xpose.msra.mxu0 %v6694
  %6861 = vmatpush.xpose.msra.mxu0 %v6691
  %6862 = vmatpush.xpose.msra.mxu0 %v6688
  %6863 = vmatpush.xpose.msra.mxu0 %v6685
  %6864 = vmatpush.xpose.msra.mxu0 %v6682
  %6865 = vmatpush.xpose.msra.mxu0 %v6679
  %6866 = vmatpush.xpose.msra.mxu0 %v6676
  %6867 = vmatpush.xpose.msra.mxu0 %v6673
  %6868 = vmatpush.xpose.msra.mxu0 %v6670
  %6869 = vmatpush.xpose.msra.mxu0 %v6667
  %6870 = vmatpush.xpose.msra.mxu0 %v6664
  %6871 = vmatmul.f32.gmra.mxu0 %v6661
  %v6872 = vpop.f32.mrf.mxu0
  %v6873 = vadd.f32 0.0, %v6872
  %6874 = vdwg.mxu0
  %6875 = vmatpush.xpose.msra.mxu0 %v6757
  %6876 = vmatpush.xpose.msra.mxu0 %v6754
  %6877 = vmatpush.xpose.msra.mxu0 %v6751
  %6878 = vmatpush.xpose.msra.mxu0 %v6748
  %6879 = vmatpush.xpose.msra.mxu0 %v6745
  %6880 = vmatpush.xpose.msra.mxu0 %v6742
  %6881 = vmatpush.xpose.msra.mxu0 %v6739
  %6882 = vmatpush.xpose.msra.mxu0 %v6736
  %6883 = vmatpush.xpose.msra.mxu0 %v6733
  %6884 = vmatpush.xpose.msra.mxu0 %v6730
  %6885 = vmatpush.xpose.msra.mxu0 %v6727
  %6886 = vmatpush.xpose.msra.mxu0 %v6724
  %6887 = vmatpush.xpose.msra.mxu0 %v6721
  %6888 = vmatpush.xpose.msra.mxu0 %v6718
  %6889 = vmatpush.xpose.msra.mxu0 %v6715
  %6890 = vmatpush.xpose.msra.mxu0 %v6712
  %6891 = vmatmul.f32.gmra.mxu0 %v6661
  %v6892 = vpop.f32.mrf.mxu0
  %v6893 = vadd.f32 0.0, %v6892
  %6894 = vdwg.mxu0
  %6895 = vmatpush.xpose.msra.mxu0 %v6805
  %6896 = vmatpush.xpose.msra.mxu0 %v6802
  %6897 = vmatpush.xpose.msra.mxu0 %v6799
  %6898 = vmatpush.xpose.msra.mxu0 %v6796
  %6899 = vmatpush.xpose.msra.mxu0 %v6793
  %6900 = vmatpush.xpose.msra.mxu0 %v6790
  %6901 = vmatpush.xpose.msra.mxu0 %v6787
  %6902 = vmatpush.xpose.msra.mxu0 %v6784
  %6903 = vmatpush.xpose.msra.mxu0 %v6781
  %6904 = vmatpush.xpose.msra.mxu0 %v6778
  %6905 = vmatpush.xpose.msra.mxu0 %v6775
  %6906 = vmatpush.xpose.msra.mxu0 %v6772
  %6907 = vmatpush.xpose.msra.mxu0 %v6769
  %6908 = vmatpush.xpose.msra.mxu0 %v6766
  %6909 = vmatpush.xpose.msra.mxu0 %v6763
  %6910 = vmatpush.xpose.msra.mxu0 %v6760
  %6911 = vmatmul.f32.gmra.mxu0 %v6661
  %v6912 = vpop.f32.mrf.mxu0
  %v6913 = vadd.f32 0.0, %v6912
  %6914 = vdwg.mxu0
  %6915 = vmatpush.xpose.msra.mxu0 %v6853
  %6916 = vmatpush.xpose.msra.mxu0 %v6850
  %6917 = vmatpush.xpose.msra.mxu0 %v6847
  %6918 = vmatpush.xpose.msra.mxu0 %v6844
  %6919 = vmatpush.xpose.msra.mxu0 %v6841
  %6920 = vmatpush.xpose.msra.mxu0 %v6838
  %6921 = vmatpush.xpose.msra.mxu0 %v6835
  %6922 = vmatpush.xpose.msra.mxu0 %v6832
  %6923 = vmatpush.xpose.msra.mxu0 %v6829
  %6924 = vmatpush.xpose.msra.mxu0 %v6826
  %6925 = vmatpush.xpose.msra.mxu0 %v6823
  %6926 = vmatpush.xpose.msra.mxu0 %v6820
  %6927 = vmatpush.xpose.msra.mxu0 %v6817
  %6928 = vmatpush.xpose.msra.mxu0 %v6814
  %6929 = vmatpush.xpose.msra.mxu0 %v6811
  %6930 = vmatpush.xpose.msra.mxu0 %v6808
  %6931 = vmatmul.f32.gmra.mxu0 %v6661
  %v6932 = vpop.f32.mrf.mxu0
  %v6933 = vadd.f32 0.0, %v6932
  %6934 = vdwg.mxu0
  %v6935 = vadd.f32 %v6532, %v6873
  %v6936 = vadd.f32 %v6552, %v6893
  %v6937 = vadd.f32 %v6572, %v6913
  %v6938 = vadd.f32 %v6592, %v6933
  %v6939 = vld [vmem:[%s5848] sm:$0xff]
  %v6940 = vld [vmem:[%s5848 + $0x8] sm:$0xff]
  %v6941 = vld [vmem:[%s5848 + $0x18] sm:$0xff]
  %v6942 = vld [vmem:[%s5848 + $0x20] sm:$0xff]
  %v6943 = vld [vmem:[%s5848 + $0x30] sm:$0xff]
  %v6944 = vld [vmem:[%s5848 + $0x38] sm:$0xff]
  %v6945 = vld [vmem:[%s5848 + $0x48] sm:$0xff]
  %v6946 = vld [vmem:[%s5848 + $0x50] sm:$0xff]
  %v6947 = vld [vmem:[%s5848 + $0x60] sm:$0xff]
  %v6948 = vld [vmem:[%s5848 + $0x68] sm:$0xff]
  %v6949 = vld [vmem:[%s5848 + $0x78] sm:$0xff]
  %v6950 = vld [vmem:[%s5848 + $0x80] sm:$0xff]
  %v6951 = vld [vmem:[%s5848 + $0x90] sm:$0xff]
  %v6952 = vld [vmem:[%s5848 + $0x98] sm:$0xff]
  %v6953 = vld [vmem:[%s5848 + $0xa8] sm:$0xff]
  %v6954 = vld [vmem:[%s5848 + $0xb0] sm:$0xff]
  %v6955 = vld [vmem:[%s5848 + $0xc0] sm:$0xff]
  %v6956 = vld [vmem:[%s5848 + $0xc8] sm:$0xff]
  %v6957 = vld [vmem:[%s5848 + $0xd8] sm:$0xff]
  %v6958 = vld [vmem:[%s5848 + $0xe0] sm:$0xff]
  %v6959 = vld [vmem:[%s5848 + $0xf0] sm:$0xff]
  %v6960 = vld [vmem:[%s5848 + $0xf8] sm:$0xff]
  %v6961 = vld [vmem:[%s5848 + $0x108] sm:$0xff]
  %v6962 = vld [vmem:[%s5848 + $0x110] sm:$0xff]
  %v6963 = vld [vmem:[%s5848 + $0x120] sm:$0xff]
  %v6964 = vld [vmem:[%s5848 + $0x128] sm:$0xff]
  %v6965 = vld [vmem:[%s5848 + $0x138] sm:$0xff]
  %v6966 = vld [vmem:[%s5848 + $0x140] sm:$0xff]
  %v6967 = vld [vmem:[%s5848 + $0x150] sm:$0xff]
  %v6968 = vld [vmem:[%s5848 + $0x158] sm:$0xff]
  %v6969 = vld [vmem:[%s5848 + $0x168] sm:$0xff]
  %v6970 = vld [vmem:[%s5848 + $0x170] sm:$0xff]
  %v6971 = vld [vmem:[%s5848 + $0x1b0] sm:$0xff]
  %v6972 = vld [vmem:[%s5848 + $0x1b8] sm:$0xff]
  %v6973 = vld [vmem:[%s5848 + $0x1c8] sm:$0xff]
  %v6974 = vld [vmem:[%s5848 + $0x1d0] sm:$0xff]
  %v6975 = vld [vmem:[%s5848 + $0x1e0] sm:$0xff]
  %v6976 = vld [vmem:[%s5848 + $0x1e8] sm:$0xff]
  %v6977 = vld [vmem:[%s5848 + $0x1f8] sm:$0xff]
  %v6978 = vld [vmem:[%s5848 + $0x200] sm:$0xff]
  %v6979 = vld [vmem:[%s5848 + $0x210] sm:$0xff]
  %v6980 = vld [vmem:[%s5848 + $0x218] sm:$0xff]
  %v6981 = vld [vmem:[%s5848 + $0x228] sm:$0xff]
  %v6982 = vld [vmem:[%s5848 + $0x230] sm:$0xff]
  %v6983 = vld [vmem:[%s5848 + $0x240] sm:$0xff]
  %v6984 = vld [vmem:[%s5848 + $0x248] sm:$0xff]
  %v6985 = vld [vmem:[%s5848 + $0x258] sm:$0xff]
  %v6986 = vld [vmem:[%s5848 + $0x260] sm:$0xff]
  %v6987 = vld [vmem:[%s5848 + $0x270] sm:$0xff]
  %v6988 = vld [vmem:[%s5848 + $0x278] sm:$0xff]
  %v6989 = vld [vmem:[%s5848 + $0x288] sm:$0xff]
  %v6990 = vld [vmem:[%s5848 + $0x290] sm:$0xff]
  %v6991 = vld [vmem:[%s5848 + $0x2a0] sm:$0xff]
  %v6992 = vld [vmem:[%s5848 + $0x2a8] sm:$0xff]
  %v6993 = vld [vmem:[%s5848 + $0x2b8] sm:$0xff]
  %v6994 = vld [vmem:[%s5848 + $0x2c0] sm:$0xff]
  %v6995 = vld [vmem:[%s5848 + $0x2d0] sm:$0xff]
  %v6996 = vld [vmem:[%s5848 + $0x2d8] sm:$0xff]
  %v6997 = vld [vmem:[%s5848 + $0x2e8] sm:$0xff]
  %v6998 = vld [vmem:[%s5848 + $0x2f0] sm:$0xff]
  %v6999 = vld [vmem:[%s5848 + $0x300] sm:$0xff]
  %v7000 = vld [vmem:[%s5848 + $0x308] sm:$0xff]
  %v7001 = vld [vmem:[%s5848 + $0x318] sm:$0xff]
  %v7002 = vld [vmem:[%s5848 + $0x320] sm:$0xff]
  %s7003 = scalar_lea.vmem %s2, 24
  %v7004 = vld [vmem:[%s7003] sm:$0xff]
  %v7006 = vsel %vm4940, %v7004, 0
  %v7009 = vsel %vm4940, %v6939, 0
  %v7012 = vsel %vm4940, %v6940, 0
  %v7015 = vsel %vm4940, %v6941, 0
  %v7018 = vsel %vm4940, %v6942, 0
  %v7021 = vsel %vm4940, %v6943, 0
  %v7024 = vsel %vm4940, %v6944, 0
  %v7027 = vsel %vm4940, %v6945, 0
  %v7030 = vsel %vm4940, %v6946, 0
  %v7033 = vsel %vm4940, %v6947, 0
  %v7036 = vsel %vm4940, %v6948, 0
  %v7039 = vsel %vm4940, %v6949, 0
  %v7042 = vsel %vm4940, %v6950, 0
  %v7045 = vsel %vm4940, %v6951, 0
  %v7048 = vsel %vm4940, %v6952, 0
  %v7051 = vsel %vm4940, %v6953, 0
  %v7054 = vsel %vm4940, %v6954, 0
  %v7057 = vsel %vm4940, %v6955, 0
  %v7060 = vsel %vm4940, %v6956, 0
  %v7063 = vsel %vm4940, %v6957, 0
  %v7066 = vsel %vm4940, %v6958, 0
  %v7069 = vsel %vm4940, %v6959, 0
  %v7072 = vsel %vm4940, %v6960, 0
  %v7075 = vsel %vm4940, %v6961, 0
  %v7078 = vsel %vm4940, %v6962, 0
  %v7081 = vsel %vm4940, %v6963, 0
  %v7084 = vsel %vm4940, %v6964, 0
  %v7087 = vsel %vm4940, %v6965, 0
  %v7090 = vsel %vm4940, %v6966, 0
  %v7093 = vsel %vm4940, %v6967, 0
  %v7096 = vsel %vm4940, %v6968, 0
  %v7099 = vsel %vm4940, %v6969, 0
  %v7102 = vsel %vm4940, %v6970, 0
  %v7105 = vsel %vm4940, %v6971, 0
  %v7108 = vsel %vm4940, %v6972, 0
  %v7111 = vsel %vm4940, %v6973, 0
  %v7114 = vsel %vm4940, %v6974, 0
  %v7117 = vsel %vm4940, %v6975, 0
  %v7120 = vsel %vm4940, %v6976, 0
  %v7123 = vsel %vm4940, %v6977, 0
  %v7126 = vsel %vm4940, %v6978, 0
  %v7129 = vsel %vm4940, %v6979, 0
  %v7132 = vsel %vm4940, %v6980, 0
  %v7135 = vsel %vm4940, %v6981, 0
  %v7138 = vsel %vm4940, %v6982, 0
  %v7141 = vsel %vm4940, %v6983, 0
  %v7144 = vsel %vm4940, %v6984, 0
  %v7147 = vsel %vm4940, %v6985, 0
  %v7150 = vsel %vm4940, %v6986, 0
  %v7153 = vsel %vm4940, %v6987, 0
  %v7156 = vsel %vm4940, %v6988, 0
  %v7159 = vsel %vm4940, %v6989, 0
  %v7162 = vsel %vm4940, %v6990, 0
  %v7165 = vsel %vm4940, %v6991, 0
  %v7168 = vsel %vm4940, %v6992, 0
  %v7171 = vsel %vm4940, %v6993, 0
  %v7174 = vsel %vm4940, %v6994, 0
  %v7177 = vsel %vm4940, %v6995, 0
  %v7180 = vsel %vm4940, %v6996, 0
  %v7183 = vsel %vm4940, %v6997, 0
  %v7186 = vsel %vm4940, %v6998, 0
  %v7189 = vsel %vm4940, %v6999, 0
  %v7192 = vsel %vm4940, %v7000, 0
  %v7195 = vsel %vm4940, %v7001, 0
  %v7198 = vsel %vm4940, %v7002, 0
  %7200 = vmatpush.xpose.msra.mxu0 %v7054
  %7201 = vmatpush.xpose.msra.mxu0 %v7051
  %7202 = vmatpush.xpose.msra.mxu0 %v7048
  %7203 = vmatpush.xpose.msra.mxu0 %v7045
  %7204 = vmatpush.xpose.msra.mxu0 %v7042
  %7205 = vmatpush.xpose.msra.mxu0 %v7039
  %7206 = vmatpush.xpose.msra.mxu0 %v7036
  %7207 = vmatpush.xpose.msra.mxu0 %v7033
  %7208 = vmatpush.xpose.msra.mxu0 %v7030
  %7209 = vmatpush.xpose.msra.mxu0 %v7027
  %7210 = vmatpush.xpose.msra.mxu0 %v7024
  %7211 = vmatpush.xpose.msra.mxu0 %v7021
  %7212 = vmatpush.xpose.msra.mxu0 %v7018
  %7213 = vmatpush.xpose.msra.mxu0 %v7015
  %7214 = vmatpush.xpose.msra.mxu0 %v7012
  %7215 = vmatpush.xpose.msra.mxu0 %v7009
  %7216 = vmatmul.f32.gmra.mxu0 %v7006
  %v7217 = vpop.f32.mrf.mxu0
  %v7218 = vadd.f32 0.0, %v7217
  %7219 = vdwg.mxu0
  %7220 = vmatpush.xpose.msra.mxu0 %v7102
  %7221 = vmatpush.xpose.msra.mxu0 %v7099
  %7222 = vmatpush.xpose.msra.mxu0 %v7096
  %7223 = vmatpush.xpose.msra.mxu0 %v7093
  %7224 = vmatpush.xpose.msra.mxu0 %v7090
  %7225 = vmatpush.xpose.msra.mxu0 %v7087
  %7226 = vmatpush.xpose.msra.mxu0 %v7084
  %7227 = vmatpush.xpose.msra.mxu0 %v7081
  %7228 = vmatpush.xpose.msra.mxu0 %v7078
  %7229 = vmatpush.xpose.msra.mxu0 %v7075
  %7230 = vmatpush.xpose.msra.mxu0 %v7072
  %7231 = vmatpush.xpose.msra.mxu0 %v7069
  %7232 = vmatpush.xpose.msra.mxu0 %v7066
  %7233 = vmatpush.xpose.msra.mxu0 %v7063
  %7234 = vmatpush.xpose.msra.mxu0 %v7060
  %7235 = vmatpush.xpose.msra.mxu0 %v7057
  %7236 = vmatmul.f32.gmra.mxu0 %v7006
  %v7237 = vpop.f32.mrf.mxu0
  %v7238 = vadd.f32 0.0, %v7237
  %7239 = vdwg.mxu0
  %7240 = vmatpush.xpose.msra.mxu0 %v7150
  %7241 = vmatpush.xpose.msra.mxu0 %v7147
  %7242 = vmatpush.xpose.msra.mxu0 %v7144
  %7243 = vmatpush.xpose.msra.mxu0 %v7141
  %7244 = vmatpush.xpose.msra.mxu0 %v7138
  %7245 = vmatpush.xpose.msra.mxu0 %v7135
  %7246 = vmatpush.xpose.msra.mxu0 %v7132
  %7247 = vmatpush.xpose.msra.mxu0 %v7129
  %7248 = vmatpush.xpose.msra.mxu0 %v7126
  %7249 = vmatpush.xpose.msra.mxu0 %v7123
  %7250 = vmatpush.xpose.msra.mxu0 %v7120
  %7251 = vmatpush.xpose.msra.mxu0 %v7117
  %7252 = vmatpush.xpose.msra.mxu0 %v7114
  %7253 = vmatpush.xpose.msra.mxu0 %v7111
  %7254 = vmatpush.xpose.msra.mxu0 %v7108
  %7255 = vmatpush.xpose.msra.mxu0 %v7105
  %7256 = vmatmul.f32.gmra.mxu0 %v7006
  %v7257 = vpop.f32.mrf.mxu0
  %v7258 = vadd.f32 0.0, %v7257
  %7259 = vdwg.mxu0
  %7260 = vmatpush.xpose.msra.mxu0 %v7198
  %7261 = vmatpush.xpose.msra.mxu0 %v7195
  %7262 = vmatpush.xpose.msra.mxu0 %v7192
  %7263 = vmatpush.xpose.msra.mxu0 %v7189
  %7264 = vmatpush.xpose.msra.mxu0 %v7186
  %7265 = vmatpush.xpose.msra.mxu0 %v7183
  %7266 = vmatpush.xpose.msra.mxu0 %v7180
  %7267 = vmatpush.xpose.msra.mxu0 %v7177
  %7268 = vmatpush.xpose.msra.mxu0 %v7174
  %7269 = vmatpush.xpose.msra.mxu0 %v7171
  %7270 = vmatpush.xpose.msra.mxu0 %v7168
  %7271 = vmatpush.xpose.msra.mxu0 %v7165
  %7272 = vmatpush.xpose.msra.mxu0 %v7162
  %7273 = vmatpush.xpose.msra.mxu0 %v7159
  %7274 = vmatpush.xpose.msra.mxu0 %v7156
  %7275 = vmatpush.xpose.msra.mxu0 %v7153
  %7276 = vmatmul.f32.gmra.mxu0 %v7006
  %v7277 = vpop.f32.mrf.mxu0
  %v7278 = vadd.f32 0.0, %v7277
  %7279 = vdwg.mxu0
  %v7280 = vadd.f32 %v6935, %v7218
  %v7281 = vadd.f32 %v6936, %v7238
  %v7282 = vadd.f32 %v6937, %v7258
  %v7283 = vadd.f32 %v6938, %v7278
  %v7284 = vld [vmem:[%s5848 + $0x1] sm:$0xff]
  %v7285 = vld [vmem:[%s5848 + $0x9] sm:$0xff]
  %v7286 = vld [vmem:[%s5848 + $0x19] sm:$0xff]
  %v7287 = vld [vmem:[%s5848 + $0x21] sm:$0xff]
  %v7288 = vld [vmem:[%s5848 + $0x31] sm:$0xff]
  %v7289 = vld [vmem:[%s5848 + $0x39] sm:$0xff]
  %v7290 = vld [vmem:[%s5848 + $0x49] sm:$0xff]
  %v7291 = vld [vmem:[%s5848 + $0x51] sm:$0xff]
  %v7292 = vld [vmem:[%s5848 + $0x61] sm:$0xff]
  %v7293 = vld [vmem:[%s5848 + $0x69] sm:$0xff]
  %v7294 = vld [vmem:[%s5848 + $0x79] sm:$0xff]
  %v7295 = vld [vmem:[%s5848 + $0x81] sm:$0xff]
  %v7296 = vld [vmem:[%s5848 + $0x91] sm:$0xff]
  %v7297 = vld [vmem:[%s5848 + $0x99] sm:$0xff]
  %v7298 = vld [vmem:[%s5848 + $0xa9] sm:$0xff]
  %v7299 = vld [vmem:[%s5848 + $0xb1] sm:$0xff]
  %v7300 = vld [vmem:[%s5848 + $0xc1] sm:$0xff]
  %v7301 = vld [vmem:[%s5848 + $0xc9] sm:$0xff]
  %v7302 = vld [vmem:[%s5848 + $0xd9] sm:$0xff]
  %v7303 = vld [vmem:[%s5848 + $0xe1] sm:$0xff]
  %v7304 = vld [vmem:[%s5848 + $0xf1] sm:$0xff]
  %v7305 = vld [vmem:[%s5848 + $0xf9] sm:$0xff]
  %v7306 = vld [vmem:[%s5848 + $0x109] sm:$0xff]
  %v7307 = vld [vmem:[%s5848 + $0x111] sm:$0xff]
  %v7308 = vld [vmem:[%s5848 + $0x121] sm:$0xff]
  %v7309 = vld [vmem:[%s5848 + $0x129] sm:$0xff]
  %v7310 = vld [vmem:[%s5848 + $0x139] sm:$0xff]
  %v7311 = vld [vmem:[%s5848 + $0x141] sm:$0xff]
  %v7312 = vld [vmem:[%s5848 + $0x151] sm:$0xff]
  %v7313 = vld [vmem:[%s5848 + $0x159] sm:$0xff]
  %v7314 = vld [vmem:[%s5848 + $0x169] sm:$0xff]
  %v7315 = vld [vmem:[%s5848 + $0x171] sm:$0xff]
  %v7316 = vld [vmem:[%s5848 + $0x1b1] sm:$0xff]
  %v7317 = vld [vmem:[%s5848 + $0x1b9] sm:$0xff]
  %v7318 = vld [vmem:[%s5848 + $0x1c9] sm:$0xff]
  %v7319 = vld [vmem:[%s5848 + $0x1d1] sm:$0xff]
  %v7320 = vld [vmem:[%s5848 + $0x1e1] sm:$0xff]
  %v7321 = vld [vmem:[%s5848 + $0x1e9] sm:$0xff]
  %v7322 = vld [vmem:[%s5848 + $0x1f9] sm:$0xff]
  %v7323 = vld [vmem:[%s5848 + $0x201] sm:$0xff]
  %v7324 = vld [vmem:[%s5848 + $0x211] sm:$0xff]
  %v7325 = vld [vmem:[%s5848 + $0x219] sm:$0xff]
  %v7326 = vld [vmem:[%s5848 + $0x229] sm:$0xff]
  %v7327 = vld [vmem:[%s5848 + $0x231] sm:$0xff]
  %v7328 = vld [vmem:[%s5848 + $0x241] sm:$0xff]
  %v7329 = vld [vmem:[%s5848 + $0x249] sm:$0xff]
  %v7330 = vld [vmem:[%s5848 + $0x259] sm:$0xff]
  %v7331 = vld [vmem:[%s5848 + $0x261] sm:$0xff]
  %v7332 = vld [vmem:[%s5848 + $0x271] sm:$0xff]
  %v7333 = vld [vmem:[%s5848 + $0x279] sm:$0xff]
  %v7334 = vld [vmem:[%s5848 + $0x289] sm:$0xff]
  %v7335 = vld [vmem:[%s5848 + $0x291] sm:$0xff]
  %v7336 = vld [vmem:[%s5848 + $0x2a1] sm:$0xff]
  %v7337 = vld [vmem:[%s5848 + $0x2a9] sm:$0xff]
  %v7338 = vld [vmem:[%s5848 + $0x2b9] sm:$0xff]
  %v7339 = vld [vmem:[%s5848 + $0x2c1] sm:$0xff]
  %v7340 = vld [vmem:[%s5848 + $0x2d1] sm:$0xff]
  %v7341 = vld [vmem:[%s5848 + $0x2d9] sm:$0xff]
  %v7342 = vld [vmem:[%s5848 + $0x2e9] sm:$0xff]
  %v7343 = vld [vmem:[%s5848 + $0x2f1] sm:$0xff]
  %v7344 = vld [vmem:[%s5848 + $0x301] sm:$0xff]
  %v7345 = vld [vmem:[%s5848 + $0x309] sm:$0xff]
  %v7346 = vld [vmem:[%s5848 + $0x319] sm:$0xff]
  %v7347 = vld [vmem:[%s5848 + $0x321] sm:$0xff]
  %s7348 = scalar_lea.vmem %s2, 32
  %v7349 = vld [vmem:[%s7348] sm:$0xff]
  %v7351 = vsel %vm4940, %v7349, 0
  %v7354 = vsel %vm4940, %v7284, 0
  %v7357 = vsel %vm4940, %v7285, 0
  %v7360 = vsel %vm4940, %v7286, 0
  %v7363 = vsel %vm4940, %v7287, 0
  %v7366 = vsel %vm4940, %v7288, 0
  %v7369 = vsel %vm4940, %v7289, 0
  %v7372 = vsel %vm4940, %v7290, 0
  %v7375 = vsel %vm4940, %v7291, 0
  %v7378 = vsel %vm4940, %v7292, 0
  %v7381 = vsel %vm4940, %v7293, 0
  %v7384 = vsel %vm4940, %v7294, 0
  %v7387 = vsel %vm4940, %v7295, 0
  %v7390 = vsel %vm4940, %v7296, 0
  %v7393 = vsel %vm4940, %v7297, 0
  %v7396 = vsel %vm4940, %v7298, 0
  %v7399 = vsel %vm4940, %v7299, 0
  %v7402 = vsel %vm4940, %v7300, 0
  %v7405 = vsel %vm4940, %v7301, 0
  %v7408 = vsel %vm4940, %v7302, 0
  %v7411 = vsel %vm4940, %v7303, 0
  %v7414 = vsel %vm4940, %v7304, 0
  %v7417 = vsel %vm4940, %v7305, 0
  %v7420 = vsel %vm4940, %v7306, 0
  %v7423 = vsel %vm4940, %v7307, 0
  %v7426 = vsel %vm4940, %v7308, 0
  %v7429 = vsel %vm4940, %v7309, 0
  %v7432 = vsel %vm4940, %v7310, 0
  %v7435 = vsel %vm4940, %v7311, 0
  %v7438 = vsel %vm4940, %v7312, 0
  %v7441 = vsel %vm4940, %v7313, 0
  %v7444 = vsel %vm4940, %v7314, 0
  %v7447 = vsel %vm4940, %v7315, 0
  %v7450 = vsel %vm4940, %v7316, 0
  %v7453 = vsel %vm4940, %v7317, 0
  %v7456 = vsel %vm4940, %v7318, 0
  %v7459 = vsel %vm4940, %v7319, 0
  %v7462 = vsel %vm4940, %v7320, 0
  %v7465 = vsel %vm4940, %v7321, 0
  %v7468 = vsel %vm4940, %v7322, 0
  %v7471 = vsel %vm4940, %v7323, 0
  %v7474 = vsel %vm4940, %v7324, 0
  %v7477 = vsel %vm4940, %v7325, 0
  %v7480 = vsel %vm4940, %v7326, 0
  %v7483 = vsel %vm4940, %v7327, 0
  %v7486 = vsel %vm4940, %v7328, 0
  %v7489 = vsel %vm4940, %v7329, 0
  %v7492 = vsel %vm4940, %v7330, 0
  %v7495 = vsel %vm4940, %v7331, 0
  %v7498 = vsel %vm4940, %v7332, 0
  %v7501 = vsel %vm4940, %v7333, 0
  %v7504 = vsel %vm4940, %v7334, 0
  %v7507 = vsel %vm4940, %v7335, 0
  %v7510 = vsel %vm4940, %v7336, 0
  %v7513 = vsel %vm4940, %v7337, 0
  %v7516 = vsel %vm4940, %v7338, 0
  %v7519 = vsel %vm4940, %v7339, 0
  %v7522 = vsel %vm4940, %v7340, 0
  %v7525 = vsel %vm4940, %v7341, 0
  %v7528 = vsel %vm4940, %v7342, 0
  %v7531 = vsel %vm4940, %v7343, 0
  %v7534 = vsel %vm4940, %v7344, 0
  %v7537 = vsel %vm4940, %v7345, 0
  %v7540 = vsel %vm4940, %v7346, 0
  %v7543 = vsel %vm4940, %v7347, 0
  %7545 = vmatpush.xpose.msra.mxu0 %v7399
  %7546 = vmatpush.xpose.msra.mxu0 %v7396
  %7547 = vmatpush.xpose.msra.mxu0 %v7393
  %7548 = vmatpush.xpose.msra.mxu0 %v7390
  %7549 = vmatpush.xpose.msra.mxu0 %v7387
  %7550 = vmatpush.xpose.msra.mxu0 %v7384
  %7551 = vmatpush.xpose.msra.mxu0 %v7381
  %7552 = vmatpush.xpose.msra.mxu0 %v7378
  %7553 = vmatpush.xpose.msra.mxu0 %v7375
  %7554 = vmatpush.xpose.msra.mxu0 %v7372
  %7555 = vmatpush.xpose.msra.mxu0 %v7369
  %7556 = vmatpush.xpose.msra.mxu0 %v7366
  %7557 = vmatpush.xpose.msra.mxu0 %v7363
  %7558 = vmatpush.xpose.msra.mxu0 %v7360
  %7559 = vmatpush.xpose.msra.mxu0 %v7357
  %7560 = vmatpush.xpose.msra.mxu0 %v7354
  %7561 = vmatmul.f32.gmra.mxu0 %v7351
  %v7562 = vpop.f32.mrf.mxu0
  %v7563 = vadd.f32 0.0, %v7562
  %7564 = vdwg.mxu0
  %7565 = vmatpush.xpose.msra.mxu0 %v7447
  %7566 = vmatpush.xpose.msra.mxu0 %v7444
  %7567 = vmatpush.xpose.msra.mxu0 %v7441
  %7568 = vmatpush.xpose.msra.mxu0 %v7438
  %7569 = vmatpush.xpose.msra.mxu0 %v7435
  %7570 = vmatpush.xpose.msra.mxu0 %v7432
  %7571 = vmatpush.xpose.msra.mxu0 %v7429
  %7572 = vmatpush.xpose.msra.mxu0 %v7426
  %7573 = vmatpush.xpose.msra.mxu0 %v7423
  %7574 = vmatpush.xpose.msra.mxu0 %v7420
  %7575 = vmatpush.xpose.msra.mxu0 %v7417
  %7576 = vmatpush.xpose.msra.mxu0 %v7414
  %7577 = vmatpush.xpose.msra.mxu0 %v7411
  %7578 = vmatpush.xpose.msra.mxu0 %v7408
  %7579 = vmatpush.xpose.msra.mxu0 %v7405
  %7580 = vmatpush.xpose.msra.mxu0 %v7402
  %7581 = vmatmul.f32.gmra.mxu0 %v7351
  %v7582 = vpop.f32.mrf.mxu0
  %v7583 = vadd.f32 0.0, %v7582
  %7584 = vdwg.mxu0
  %7585 = vmatpush.xpose.msra.mxu0 %v7495
  %7586 = vmatpush.xpose.msra.mxu0 %v7492
  %7587 = vmatpush.xpose.msra.mxu0 %v7489
  %7588 = vmatpush.xpose.msra.mxu0 %v7486
  %7589 = vmatpush.xpose.msra.mxu0 %v7483
  %7590 = vmatpush.xpose.msra.mxu0 %v7480
  %7591 = vmatpush.xpose.msra.mxu0 %v7477
  %7592 = vmatpush.xpose.msra.mxu0 %v7474
  %7593 = vmatpush.xpose.msra.mxu0 %v7471
  %7594 = vmatpush.xpose.msra.mxu0 %v7468
  %7595 = vmatpush.xpose.msra.mxu0 %v7465
  %7596 = vmatpush.xpose.msra.mxu0 %v7462
  %7597 = vmatpush.xpose.msra.mxu0 %v7459
  %7598 = vmatpush.xpose.msra.mxu0 %v7456
  %7599 = vmatpush.xpose.msra.mxu0 %v7453
  %7600 = vmatpush.xpose.msra.mxu0 %v7450
  %7601 = vmatmul.f32.gmra.mxu0 %v7351
  %v7602 = vpop.f32.mrf.mxu0
  %v7603 = vadd.f32 0.0, %v7602
  %7604 = vdwg.mxu0
  %7605 = vmatpush.xpose.msra.mxu0 %v7543
  %7606 = vmatpush.xpose.msra.mxu0 %v7540
  %7607 = vmatpush.xpose.msra.mxu0 %v7537
  %7608 = vmatpush.xpose.msra.mxu0 %v7534
  %7609 = vmatpush.xpose.msra.mxu0 %v7531
  %7610 = vmatpush.xpose.msra.mxu0 %v7528
  %7611 = vmatpush.xpose.msra.mxu0 %v7525
  %7612 = vmatpush.xpose.msra.mxu0 %v7522
  %7613 = vmatpush.xpose.msra.mxu0 %v7519
  %7614 = vmatpush.xpose.msra.mxu0 %v7516
  %7615 = vmatpush.xpose.msra.mxu0 %v7513
  %7616 = vmatpush.xpose.msra.mxu0 %v7510
  %7617 = vmatpush.xpose.msra.mxu0 %v7507
  %7618 = vmatpush.xpose.msra.mxu0 %v7504
  %7619 = vmatpush.xpose.msra.mxu0 %v7501
  %7620 = vmatpush.xpose.msra.mxu0 %v7498
  %7621 = vmatmul.f32.gmra.mxu0 %v7351
  %v7622 = vpop.f32.mrf.mxu0
  %v7623 = vadd.f32 0.0, %v7622
  %7624 = vdwg.mxu0
  %v7625 = vadd.f32 %v7280, %v7563
  %v7626 = vadd.f32 %v7281, %v7583
  %v7627 = vadd.f32 %v7282, %v7603
  %v7628 = vadd.f32 %v7283, %v7623
  %v7629 = vld [vmem:[%s5848 + $0x2] sm:$0xff]
  %v7630 = vld [vmem:[%s5848 + $0xa] sm:$0xff]
  %v7631 = vld [vmem:[%s5848 + $0x1a] sm:$0xff]
  %v7632 = vld [vmem:[%s5848 + $0x22] sm:$0xff]
  %v7633 = vld [vmem:[%s5848 + $0x32] sm:$0xff]
  %v7634 = vld [vmem:[%s5848 + $0x3a] sm:$0xff]
  %v7635 = vld [vmem:[%s5848 + $0x4a] sm:$0xff]
  %v7636 = vld [vmem:[%s5848 + $0x52] sm:$0xff]
  %v7637 = vld [vmem:[%s5848 + $0x62] sm:$0xff]
  %v7638 = vld [vmem:[%s5848 + $0x6a] sm:$0xff]
  %v7639 = vld [vmem:[%s5848 + $0x7a] sm:$0xff]
  %v7640 = vld [vmem:[%s5848 + $0x82] sm:$0xff]
  %v7641 = vld [vmem:[%s5848 + $0x92] sm:$0xff]
  %v7642 = vld [vmem:[%s5848 + $0x9a] sm:$0xff]
  %v7643 = vld [vmem:[%s5848 + $0xaa] sm:$0xff]
  %v7644 = vld [vmem:[%s5848 + $0xb2] sm:$0xff]
  %v7645 = vld [vmem:[%s5848 + $0xc2] sm:$0xff]
  %v7646 = vld [vmem:[%s5848 + $0xca] sm:$0xff]
  %v7647 = vld [vmem:[%s5848 + $0xda] sm:$0xff]
  %v7648 = vld [vmem:[%s5848 + $0xe2] sm:$0xff]
  %v7649 = vld [vmem:[%s5848 + $0xf2] sm:$0xff]
  %v7650 = vld [vmem:[%s5848 + $0xfa] sm:$0xff]
  %v7651 = vld [vmem:[%s5848 + $0x10a] sm:$0xff]
  %v7652 = vld [vmem:[%s5848 + $0x112] sm:$0xff]
  %v7653 = vld [vmem:[%s5848 + $0x122] sm:$0xff]
  %v7654 = vld [vmem:[%s5848 + $0x12a] sm:$0xff]
  %v7655 = vld [vmem:[%s5848 + $0x13a] sm:$0xff]
  %v7656 = vld [vmem:[%s5848 + $0x142] sm:$0xff]
  %v7657 = vld [vmem:[%s5848 + $0x152] sm:$0xff]
  %v7658 = vld [vmem:[%s5848 + $0x15a] sm:$0xff]
  %v7659 = vld [vmem:[%s5848 + $0x16a] sm:$0xff]
  %v7660 = vld [vmem:[%s5848 + $0x172] sm:$0xff]
  %v7661 = vld [vmem:[%s5848 + $0x1b2] sm:$0xff]
  %v7662 = vld [vmem:[%s5848 + $0x1ba] sm:$0xff]
  %v7663 = vld [vmem:[%s5848 + $0x1ca] sm:$0xff]
  %v7664 = vld [vmem:[%s5848 + $0x1d2] sm:$0xff]
  %v7665 = vld [vmem:[%s5848 + $0x1e2] sm:$0xff]
  %v7666 = vld [vmem:[%s5848 + $0x1ea] sm:$0xff]
  %v7667 = vld [vmem:[%s5848 + $0x1fa] sm:$0xff]
  %v7668 = vld [vmem:[%s5848 + $0x202] sm:$0xff]
  %v7669 = vld [vmem:[%s5848 + $0x212] sm:$0xff]
  %v7670 = vld [vmem:[%s5848 + $0x21a] sm:$0xff]
  %v7671 = vld [vmem:[%s5848 + $0x22a] sm:$0xff]
  %v7672 = vld [vmem:[%s5848 + $0x232] sm:$0xff]
  %v7673 = vld [vmem:[%s5848 + $0x242] sm:$0xff]
  %v7674 = vld [vmem:[%s5848 + $0x24a] sm:$0xff]
  %v7675 = vld [vmem:[%s5848 + $0x25a] sm:$0xff]
  %v7676 = vld [vmem:[%s5848 + $0x262] sm:$0xff]
  %v7677 = vld [vmem:[%s5848 + $0x272] sm:$0xff]
  %v7678 = vld [vmem:[%s5848 + $0x27a] sm:$0xff]
  %v7679 = vld [vmem:[%s5848 + $0x28a] sm:$0xff]
  %v7680 = vld [vmem:[%s5848 + $0x292] sm:$0xff]
  %v7681 = vld [vmem:[%s5848 + $0x2a2] sm:$0xff]
  %v7682 = vld [vmem:[%s5848 + $0x2aa] sm:$0xff]
  %v7683 = vld [vmem:[%s5848 + $0x2ba] sm:$0xff]
  %v7684 = vld [vmem:[%s5848 + $0x2c2] sm:$0xff]
  %v7685 = vld [vmem:[%s5848 + $0x2d2] sm:$0xff]
  %v7686 = vld [vmem:[%s5848 + $0x2da] sm:$0xff]
  %v7687 = vld [vmem:[%s5848 + $0x2ea] sm:$0xff]
  %v7688 = vld [vmem:[%s5848 + $0x2f2] sm:$0xff]
  %v7689 = vld [vmem:[%s5848 + $0x302] sm:$0xff]
  %v7690 = vld [vmem:[%s5848 + $0x30a] sm:$0xff]
  %v7691 = vld [vmem:[%s5848 + $0x31a] sm:$0xff]
  %v7692 = vld [vmem:[%s5848 + $0x322] sm:$0xff]
  %s7693 = scalar_lea.vmem %s2, 40
  %v7694 = vld [vmem:[%s7693] sm:$0xff]
  %v7696 = vsel %vm4940, %v7694, 0
  %v7699 = vsel %vm4940, %v7629, 0
  %v7702 = vsel %vm4940, %v7630, 0
  %v7705 = vsel %vm4940, %v7631, 0
  %v7708 = vsel %vm4940, %v7632, 0
  %v7711 = vsel %vm4940, %v7633, 0
  %v7714 = vsel %vm4940, %v7634, 0
  %v7717 = vsel %vm4940, %v7635, 0
  %v7720 = vsel %vm4940, %v7636, 0
  %v7723 = vsel %vm4940, %v7637, 0
  %v7726 = vsel %vm4940, %v7638, 0
  %v7729 = vsel %vm4940, %v7639, 0
  %v7732 = vsel %vm4940, %v7640, 0
  %v7735 = vsel %vm4940, %v7641, 0
  %v7738 = vsel %vm4940, %v7642, 0
  %v7741 = vsel %vm4940, %v7643, 0
  %v7744 = vsel %vm4940, %v7644, 0
  %v7747 = vsel %vm4940, %v7645, 0
  %v7750 = vsel %vm4940, %v7646, 0
  %v7753 = vsel %vm4940, %v7647, 0
  %v7756 = vsel %vm4940, %v7648, 0
  %v7759 = vsel %vm4940, %v7649, 0
  %v7762 = vsel %vm4940, %v7650, 0
  %v7765 = vsel %vm4940, %v7651, 0
  %v7768 = vsel %vm4940, %v7652, 0
  %v7771 = vsel %vm4940, %v7653, 0
  %v7774 = vsel %vm4940, %v7654, 0
  %v7777 = vsel %vm4940, %v7655, 0
  %v7780 = vsel %vm4940, %v7656, 0
  %v7783 = vsel %vm4940, %v7657, 0
  %v7786 = vsel %vm4940, %v7658, 0
  %v7789 = vsel %vm4940, %v7659, 0
  %v7792 = vsel %vm4940, %v7660, 0
  %v7795 = vsel %vm4940, %v7661, 0
  %v7798 = vsel %vm4940, %v7662, 0
  %v7801 = vsel %vm4940, %v7663, 0
  %v7804 = vsel %vm4940, %v7664, 0
  %v7807 = vsel %vm4940, %v7665, 0
  %v7810 = vsel %vm4940, %v7666, 0
  %v7813 = vsel %vm4940, %v7667, 0
  %v7816 = vsel %vm4940, %v7668, 0
  %v7819 = vsel %vm4940, %v7669, 0
  %v7822 = vsel %vm4940, %v7670, 0
  %v7825 = vsel %vm4940, %v7671, 0
  %v7828 = vsel %vm4940, %v7672, 0
  %v7831 = vsel %vm4940, %v7673, 0
  %v7834 = vsel %vm4940, %v7674, 0
  %v7837 = vsel %vm4940, %v7675, 0
  %v7840 = vsel %vm4940, %v7676, 0
  %v7843 = vsel %vm4940, %v7677, 0
  %v7846 = vsel %vm4940, %v7678, 0
  %v7849 = vsel %vm4940, %v7679, 0
  %v7852 = vsel %vm4940, %v7680, 0
  %v7855 = vsel %vm4940, %v7681, 0
  %v7858 = vsel %vm4940, %v7682, 0
  %v7861 = vsel %vm4940, %v7683, 0
  %v7864 = vsel %vm4940, %v7684, 0
  %v7867 = vsel %vm4940, %v7685, 0
  %v7870 = vsel %vm4940, %v7686, 0
  %v7873 = vsel %vm4940, %v7687, 0
  %v7876 = vsel %vm4940, %v7688, 0
  %v7879 = vsel %vm4940, %v7689, 0
  %v7882 = vsel %vm4940, %v7690, 0
  %v7885 = vsel %vm4940, %v7691, 0
  %v7888 = vsel %vm4940, %v7692, 0
  %7890 = vmatpush.xpose.msra.mxu0 %v7744
  %7891 = vmatpush.xpose.msra.mxu0 %v7741
  %7892 = vmatpush.xpose.msra.mxu0 %v7738
  %7893 = vmatpush.xpose.msra.mxu0 %v7735
  %7894 = vmatpush.xpose.msra.mxu0 %v7732
  %7895 = vmatpush.xpose.msra.mxu0 %v7729
  %7896 = vmatpush.xpose.msra.mxu0 %v7726
  %7897 = vmatpush.xpose.msra.mxu0 %v7723
  %7898 = vmatpush.xpose.msra.mxu0 %v7720
  %7899 = vmatpush.xpose.msra.mxu0 %v7717
  %7900 = vmatpush.xpose.msra.mxu0 %v7714
  %7901 = vmatpush.xpose.msra.mxu0 %v7711
  %7902 = vmatpush.xpose.msra.mxu0 %v7708
  %7903 = vmatpush.xpose.msra.mxu0 %v7705
  %7904 = vmatpush.xpose.msra.mxu0 %v7702
  %7905 = vmatpush.xpose.msra.mxu0 %v7699
  %7906 = vmatmul.f32.gmra.mxu0 %v7696
  %v7907 = vpop.f32.mrf.mxu0
  %v7908 = vadd.f32 0.0, %v7907
  %7909 = vdwg.mxu0
  %7910 = vmatpush.xpose.msra.mxu0 %v7792
  %7911 = vmatpush.xpose.msra.mxu0 %v7789
  %7912 = vmatpush.xpose.msra.mxu0 %v7786
  %7913 = vmatpush.xpose.msra.mxu0 %v7783
  %7914 = vmatpush.xpose.msra.mxu0 %v7780
  %7915 = vmatpush.xpose.msra.mxu0 %v7777
  %7916 = vmatpush.xpose.msra.mxu0 %v7774
  %7917 = vmatpush.xpose.msra.mxu0 %v7771
  %7918 = vmatpush.xpose.msra.mxu0 %v7768
  %7919 = vmatpush.xpose.msra.mxu0 %v7765
  %7920 = vmatpush.xpose.msra.mxu0 %v7762
  %7921 = vmatpush.xpose.msra.mxu0 %v7759
  %7922 = vmatpush.xpose.msra.mxu0 %v7756
  %7923 = vmatpush.xpose.msra.mxu0 %v7753
  %7924 = vmatpush.xpose.msra.mxu0 %v7750
  %7925 = vmatpush.xpose.msra.mxu0 %v7747
  %7926 = vmatmul.f32.gmra.mxu0 %v7696
  %v7927 = vpop.f32.mrf.mxu0
  %v7928 = vadd.f32 0.0, %v7927
  %7929 = vdwg.mxu0
  %7930 = vmatpush.xpose.msra.mxu0 %v7840
  %7931 = vmatpush.xpose.msra.mxu0 %v7837
  %7932 = vmatpush.xpose.msra.mxu0 %v7834
  %7933 = vmatpush.xpose.msra.mxu0 %v7831
  %7934 = vmatpush.xpose.msra.mxu0 %v7828
  %7935 = vmatpush.xpose.msra.mxu0 %v7825
  %7936 = vmatpush.xpose.msra.mxu0 %v7822
  %7937 = vmatpush.xpose.msra.mxu0 %v7819
  %7938 = vmatpush.xpose.msra.mxu0 %v7816
  %7939 = vmatpush.xpose.msra.mxu0 %v7813
  %7940 = vmatpush.xpose.msra.mxu0 %v7810
  %7941 = vmatpush.xpose.msra.mxu0 %v7807
  %7942 = vmatpush.xpose.msra.mxu0 %v7804
  %7943 = vmatpush.xpose.msra.mxu0 %v7801
  %7944 = vmatpush.xpose.msra.mxu0 %v7798
  %7945 = vmatpush.xpose.msra.mxu0 %v7795
  %7946 = vmatmul.f32.gmra.mxu0 %v7696
  %v7947 = vpop.f32.mrf.mxu0
  %v7948 = vadd.f32 0.0, %v7947
  %7949 = vdwg.mxu0
  %7950 = vmatpush.xpose.msra.mxu0 %v7888
  %7951 = vmatpush.xpose.msra.mxu0 %v7885
  %7952 = vmatpush.xpose.msra.mxu0 %v7882
  %7953 = vmatpush.xpose.msra.mxu0 %v7879
  %7954 = vmatpush.xpose.msra.mxu0 %v7876
  %7955 = vmatpush.xpose.msra.mxu0 %v7873
  %7956 = vmatpush.xpose.msra.mxu0 %v7870
  %7957 = vmatpush.xpose.msra.mxu0 %v7867
  %7958 = vmatpush.xpose.msra.mxu0 %v7864
  %7959 = vmatpush.xpose.msra.mxu0 %v7861
  %7960 = vmatpush.xpose.msra.mxu0 %v7858
  %7961 = vmatpush.xpose.msra.mxu0 %v7855
  %7962 = vmatpush.xpose.msra.mxu0 %v7852
  %7963 = vmatpush.xpose.msra.mxu0 %v7849
  %7964 = vmatpush.xpose.msra.mxu0 %v7846
  %7965 = vmatpush.xpose.msra.mxu0 %v7843
  %7966 = vmatmul.f32.gmra.mxu0 %v7696
  %v7967 = vpop.f32.mrf.mxu0
  %v7968 = vadd.f32 0.0, %v7967
  %7969 = vdwg.mxu0
  %v7970 = vadd.f32 %v7625, %v7908
  %v7971 = vadd.f32 %v7626, %v7928
  %v7972 = vadd.f32 %v7627, %v7948
  %v7973 = vadd.f32 %v7628, %v7968
  %s7974 = scalar_lea.vmem [#allocation3], 48
  %v7975 = vld [vmem:[%s7974] sm:$0xff]
  %v7976 = vld [vmem:[%s7974 + $0x8] sm:$0xff]
  %v7977 = vld [vmem:[%s7974 + $0x18] sm:$0xff]
  %v7978 = vld [vmem:[%s7974 + $0x20] sm:$0xff]
  %v7979 = vld [vmem:[%s7974 + $0x30] sm:$0xff]
  %v7980 = vld [vmem:[%s7974 + $0x38] sm:$0xff]
  %v7981 = vld [vmem:[%s7974 + $0x48] sm:$0xff]
  %v7982 = vld [vmem:[%s7974 + $0x50] sm:$0xff]
  %v7983 = vld [vmem:[%s7974 + $0x60] sm:$0xff]
  %v7984 = vld [vmem:[%s7974 + $0x68] sm:$0xff]
  %v7985 = vld [vmem:[%s7974 + $0x78] sm:$0xff]
  %v7986 = vld [vmem:[%s7974 + $0x80] sm:$0xff]
  %v7987 = vld [vmem:[%s7974 + $0x90] sm:$0xff]
  %v7988 = vld [vmem:[%s7974 + $0x98] sm:$0xff]
  %v7989 = vld [vmem:[%s7974 + $0xa8] sm:$0xff]
  %v7990 = vld [vmem:[%s7974 + $0xb0] sm:$0xff]
  %v7991 = vld [vmem:[%s7974 + $0xc0] sm:$0xff]
  %v7992 = vld [vmem:[%s7974 + $0xc8] sm:$0xff]
  %v7993 = vld [vmem:[%s7974 + $0xd8] sm:$0xff]
  %v7994 = vld [vmem:[%s7974 + $0xe0] sm:$0xff]
  %v7995 = vld [vmem:[%s7974 + $0xf0] sm:$0xff]
  %v7996 = vld [vmem:[%s7974 + $0xf8] sm:$0xff]
  %v7997 = vld [vmem:[%s7974 + $0x108] sm:$0xff]
  %v7998 = vld [vmem:[%s7974 + $0x110] sm:$0xff]
  %v7999 = vld [vmem:[%s7974 + $0x120] sm:$0xff]
  %v8000 = vld [vmem:[%s7974 + $0x128] sm:$0xff]
  %v8001 = vld [vmem:[%s7974 + $0x138] sm:$0xff]
  %v8002 = vld [vmem:[%s7974 + $0x140] sm:$0xff]
  %v8003 = vld [vmem:[%s7974 + $0x150] sm:$0xff]
  %v8004 = vld [vmem:[%s7974 + $0x158] sm:$0xff]
  %v8005 = vld [vmem:[%s7974 + $0x168] sm:$0xff]
  %v8006 = vld [vmem:[%s7974 + $0x170] sm:$0xff]
  %v8007 = vld [vmem:[%s7974 + $0x1b0] sm:$0xff]
  %v8008 = vld [vmem:[%s7974 + $0x1b8] sm:$0xff]
  %v8009 = vld [vmem:[%s7974 + $0x1c8] sm:$0xff]
  %v8010 = vld [vmem:[%s7974 + $0x1d0] sm:$0xff]
  %v8011 = vld [vmem:[%s7974 + $0x1e0] sm:$0xff]
  %v8012 = vld [vmem:[%s7974 + $0x1e8] sm:$0xff]
  %v8013 = vld [vmem:[%s7974 + $0x1f8] sm:$0xff]
  %v8014 = vld [vmem:[%s7974 + $0x200] sm:$0xff]
  %v8015 = vld [vmem:[%s7974 + $0x210] sm:$0xff]
  %v8016 = vld [vmem:[%s7974 + $0x218] sm:$0xff]
  %v8017 = vld [vmem:[%s7974 + $0x228] sm:$0xff]
  %v8018 = vld [vmem:[%s7974 + $0x230] sm:$0xff]
  %v8019 = vld [vmem:[%s7974 + $0x240] sm:$0xff]
  %v8020 = vld [vmem:[%s7974 + $0x248] sm:$0xff]
  %v8021 = vld [vmem:[%s7974 + $0x258] sm:$0xff]
  %v8022 = vld [vmem:[%s7974 + $0x260] sm:$0xff]
  %v8023 = vld [vmem:[%s7974 + $0x270] sm:$0xff]
  %v8024 = vld [vmem:[%s7974 + $0x278] sm:$0xff]
  %v8025 = vld [vmem:[%s7974 + $0x288] sm:$0xff]
  %v8026 = vld [vmem:[%s7974 + $0x290] sm:$0xff]
  %v8027 = vld [vmem:[%s7974 + $0x2a0] sm:$0xff]
  %v8028 = vld [vmem:[%s7974 + $0x2a8] sm:$0xff]
  %v8029 = vld [vmem:[%s7974 + $0x2b8] sm:$0xff]
  %v8030 = vld [vmem:[%s7974 + $0x2c0] sm:$0xff]
  %v8031 = vld [vmem:[%s7974 + $0x2d0] sm:$0xff]
  %v8032 = vld [vmem:[%s7974 + $0x2d8] sm:$0xff]
  %v8033 = vld [vmem:[%s7974 + $0x2e8] sm:$0xff]
  %v8034 = vld [vmem:[%s7974 + $0x2f0] sm:$0xff]
  %v8035 = vld [vmem:[%s7974 + $0x300] sm:$0xff]
  %v8036 = vld [vmem:[%s7974 + $0x308] sm:$0xff]
  %v8037 = vld [vmem:[%s7974 + $0x318] sm:$0xff]
  %v8038 = vld [vmem:[%s7974 + $0x320] sm:$0xff]
  %s8039 = scalar_lea.vmem %s2, 48
  %v8040 = vld [vmem:[%s8039] sm:$0xff]
  %v8042 = vsel %vm4940, %v8040, 0
  %v8045 = vsel %vm4940, %v7975, 0
  %v8048 = vsel %vm4940, %v7976, 0
  %v8051 = vsel %vm4940, %v7977, 0
  %v8054 = vsel %vm4940, %v7978, 0
  %v8057 = vsel %vm4940, %v7979, 0
  %v8060 = vsel %vm4940, %v7980, 0
  %v8063 = vsel %vm4940, %v7981, 0
  %v8066 = vsel %vm4940, %v7982, 0
  %v8069 = vsel %vm4940, %v7983, 0
  %v8072 = vsel %vm4940, %v7984, 0
  %v8075 = vsel %vm4940, %v7985, 0
  %v8078 = vsel %vm4940, %v7986, 0
  %v8081 = vsel %vm4940, %v7987, 0
  %v8084 = vsel %vm4940, %v7988, 0
  %v8087 = vsel %vm4940, %v7989, 0
  %v8090 = vsel %vm4940, %v7990, 0
  %v8093 = vsel %vm4940, %v7991, 0
  %v8096 = vsel %vm4940, %v7992, 0
  %v8099 = vsel %vm4940, %v7993, 0
  %v8102 = vsel %vm4940, %v7994, 0
  %v8105 = vsel %vm4940, %v7995, 0
  %v8108 = vsel %vm4940, %v7996, 0
  %v8111 = vsel %vm4940, %v7997, 0
  %v8114 = vsel %vm4940, %v7998, 0
  %v8117 = vsel %vm4940, %v7999, 0
  %v8120 = vsel %vm4940, %v8000, 0
  %v8123 = vsel %vm4940, %v8001, 0
  %v8126 = vsel %vm4940, %v8002, 0
  %v8129 = vsel %vm4940, %v8003, 0
  %v8132 = vsel %vm4940, %v8004, 0
  %v8135 = vsel %vm4940, %v8005, 0
  %v8138 = vsel %vm4940, %v8006, 0
  %v8141 = vsel %vm4940, %v8007, 0
  %v8144 = vsel %vm4940, %v8008, 0
  %v8147 = vsel %vm4940, %v8009, 0
  %v8150 = vsel %vm4940, %v8010, 0
  %v8153 = vsel %vm4940, %v8011, 0
  %v8156 = vsel %vm4940, %v8012, 0
  %v8159 = vsel %vm4940, %v8013, 0
  %v8162 = vsel %vm4940, %v8014, 0
  %v8165 = vsel %vm4940, %v8015, 0
  %v8168 = vsel %vm4940, %v8016, 0
  %v8171 = vsel %vm4940, %v8017, 0
  %v8174 = vsel %vm4940, %v8018, 0
  %v8177 = vsel %vm4940, %v8019, 0
  %v8180 = vsel %vm4940, %v8020, 0
  %v8183 = vsel %vm4940, %v8021, 0
  %v8186 = vsel %vm4940, %v8022, 0
  %v8189 = vsel %vm4940, %v8023, 0
  %v8192 = vsel %vm4940, %v8024, 0
  %v8195 = vsel %vm4940, %v8025, 0
  %v8198 = vsel %vm4940, %v8026, 0
  %v8201 = vsel %vm4940, %v8027, 0
  %v8204 = vsel %vm4940, %v8028, 0
  %v8207 = vsel %vm4940, %v8029, 0
  %v8210 = vsel %vm4940, %v8030, 0
  %v8213 = vsel %vm4940, %v8031, 0
  %v8216 = vsel %vm4940, %v8032, 0
  %v8219 = vsel %vm4940, %v8033, 0
  %v8222 = vsel %vm4940, %v8034, 0
  %v8225 = vsel %vm4940, %v8035, 0
  %v8228 = vsel %vm4940, %v8036, 0
  %v8231 = vsel %vm4940, %v8037, 0
  %v8234 = vsel %vm4940, %v8038, 0
  %8236 = vmatpush.xpose.msra.mxu0 %v8090
  %8237 = vmatpush.xpose.msra.mxu0 %v8087
  %8238 = vmatpush.xpose.msra.mxu0 %v8084
  %8239 = vmatpush.xpose.msra.mxu0 %v8081
  %8240 = vmatpush.xpose.msra.mxu0 %v8078
  %8241 = vmatpush.xpose.msra.mxu0 %v8075
  %8242 = vmatpush.xpose.msra.mxu0 %v8072
  %8243 = vmatpush.xpose.msra.mxu0 %v8069
  %8244 = vmatpush.xpose.msra.mxu0 %v8066
  %8245 = vmatpush.xpose.msra.mxu0 %v8063
  %8246 = vmatpush.xpose.msra.mxu0 %v8060
  %8247 = vmatpush.xpose.msra.mxu0 %v8057
  %8248 = vmatpush.xpose.msra.mxu0 %v8054
  %8249 = vmatpush.xpose.msra.mxu0 %v8051
  %8250 = vmatpush.xpose.msra.mxu0 %v8048
  %8251 = vmatpush.xpose.msra.mxu0 %v8045
  %8252 = vmatmul.f32.gmra.mxu0 %v8042
  %v8253 = vpop.f32.mrf.mxu0
  %v8254 = vadd.f32 0.0, %v8253
  %8255 = vdwg.mxu0
  %8256 = vmatpush.xpose.msra.mxu0 %v8138
  %8257 = vmatpush.xpose.msra.mxu0 %v8135
  %8258 = vmatpush.xpose.msra.mxu0 %v8132
  %8259 = vmatpush.xpose.msra.mxu0 %v8129
  %8260 = vmatpush.xpose.msra.mxu0 %v8126
  %8261 = vmatpush.xpose.msra.mxu0 %v8123
  %8262 = vmatpush.xpose.msra.mxu0 %v8120
  %8263 = vmatpush.xpose.msra.mxu0 %v8117
  %8264 = vmatpush.xpose.msra.mxu0 %v8114
  %8265 = vmatpush.xpose.msra.mxu0 %v8111
  %8266 = vmatpush.xpose.msra.mxu0 %v8108
  %8267 = vmatpush.xpose.msra.mxu0 %v8105
  %8268 = vmatpush.xpose.msra.mxu0 %v8102
  %8269 = vmatpush.xpose.msra.mxu0 %v8099
  %8270 = vmatpush.xpose.msra.mxu0 %v8096
  %8271 = vmatpush.xpose.msra.mxu0 %v8093
  %8272 = vmatmul.f32.gmra.mxu0 %v8042
  %v8273 = vpop.f32.mrf.mxu0
  %v8274 = vadd.f32 0.0, %v8273
  %8275 = vdwg.mxu0
  %8276 = vmatpush.xpose.msra.mxu0 %v8186
  %8277 = vmatpush.xpose.msra.mxu0 %v8183
  %8278 = vmatpush.xpose.msra.mxu0 %v8180
  %8279 = vmatpush.xpose.msra.mxu0 %v8177
  %8280 = vmatpush.xpose.msra.mxu0 %v8174
  %8281 = vmatpush.xpose.msra.mxu0 %v8171
  %8282 = vmatpush.xpose.msra.mxu0 %v8168
  %8283 = vmatpush.xpose.msra.mxu0 %v8165
  %8284 = vmatpush.xpose.msra.mxu0 %v8162
  %8285 = vmatpush.xpose.msra.mxu0 %v8159
  %8286 = vmatpush.xpose.msra.mxu0 %v8156
  %8287 = vmatpush.xpose.msra.mxu0 %v8153
  %8288 = vmatpush.xpose.msra.mxu0 %v8150
  %8289 = vmatpush.xpose.msra.mxu0 %v8147
  %8290 = vmatpush.xpose.msra.mxu0 %v8144
  %8291 = vmatpush.xpose.msra.mxu0 %v8141
  %8292 = vmatmul.f32.gmra.mxu0 %v8042
  %v8293 = vpop.f32.mrf.mxu0
  %v8294 = vadd.f32 0.0, %v8293
  %8295 = vdwg.mxu0
  %8296 = vmatpush.xpose.msra.mxu0 %v8234
  %8297 = vmatpush.xpose.msra.mxu0 %v8231
  %8298 = vmatpush.xpose.msra.mxu0 %v8228
  %8299 = vmatpush.xpose.msra.mxu0 %v8225
  %8300 = vmatpush.xpose.msra.mxu0 %v8222
  %8301 = vmatpush.xpose.msra.mxu0 %v8219
  %8302 = vmatpush.xpose.msra.mxu0 %v8216
  %8303 = vmatpush.xpose.msra.mxu0 %v8213
  %8304 = vmatpush.xpose.msra.mxu0 %v8210
  %8305 = vmatpush.xpose.msra.mxu0 %v8207
  %8306 = vmatpush.xpose.msra.mxu0 %v8204
  %8307 = vmatpush.xpose.msra.mxu0 %v8201
  %8308 = vmatpush.xpose.msra.mxu0 %v8198
  %8309 = vmatpush.xpose.msra.mxu0 %v8195
  %8310 = vmatpush.xpose.msra.mxu0 %v8192
  %8311 = vmatpush.xpose.msra.mxu0 %v8189
  %8312 = vmatmul.f32.gmra.mxu0 %v8042
  %v8313 = vpop.f32.mrf.mxu0
  %v8314 = vadd.f32 0.0, %v8313
  %8315 = vdwg.mxu0
  %v8316 = vadd.f32 %v7970, %v8254
  %v8317 = vadd.f32 %v7971, %v8274
  %v8318 = vadd.f32 %v7972, %v8294
  %v8319 = vadd.f32 %v7973, %v8314
  %v8320 = vld [vmem:[%s7974 + $0x1] sm:$0xff]
  %v8321 = vld [vmem:[%s7974 + $0x9] sm:$0xff]
  %v8322 = vld [vmem:[%s7974 + $0x19] sm:$0xff]
  %v8323 = vld [vmem:[%s7974 + $0x21] sm:$0xff]
  %v8324 = vld [vmem:[%s7974 + $0x31] sm:$0xff]
  %v8325 = vld [vmem:[%s7974 + $0x39] sm:$0xff]
  %v8326 = vld [vmem:[%s7974 + $0x49] sm:$0xff]
  %v8327 = vld [vmem:[%s7974 + $0x51] sm:$0xff]
  %v8328 = vld [vmem:[%s7974 + $0x61] sm:$0xff]
  %v8329 = vld [vmem:[%s7974 + $0x69] sm:$0xff]
  %v8330 = vld [vmem:[%s7974 + $0x79] sm:$0xff]
  %v8331 = vld [vmem:[%s7974 + $0x81] sm:$0xff]
  %v8332 = vld [vmem:[%s7974 + $0x91] sm:$0xff]
  %v8333 = vld [vmem:[%s7974 + $0x99] sm:$0xff]
  %v8334 = vld [vmem:[%s7974 + $0xa9] sm:$0xff]
  %v8335 = vld [vmem:[%s7974 + $0xb1] sm:$0xff]
  %v8336 = vld [vmem:[%s7974 + $0xc1] sm:$0xff]
  %v8337 = vld [vmem:[%s7974 + $0xc9] sm:$0xff]
  %v8338 = vld [vmem:[%s7974 + $0xd9] sm:$0xff]
  %v8339 = vld [vmem:[%s7974 + $0xe1] sm:$0xff]
  %v8340 = vld [vmem:[%s7974 + $0xf1] sm:$0xff]
  %v8341 = vld [vmem:[%s7974 + $0xf9] sm:$0xff]
  %v8342 = vld [vmem:[%s7974 + $0x109] sm:$0xff]
  %v8343 = vld [vmem:[%s7974 + $0x111] sm:$0xff]
  %v8344 = vld [vmem:[%s7974 + $0x121] sm:$0xff]
  %v8345 = vld [vmem:[%s7974 + $0x129] sm:$0xff]
  %v8346 = vld [vmem:[%s7974 + $0x139] sm:$0xff]
  %v8347 = vld [vmem:[%s7974 + $0x141] sm:$0xff]
  %v8348 = vld [vmem:[%s7974 + $0x151] sm:$0xff]
  %v8349 = vld [vmem:[%s7974 + $0x159] sm:$0xff]
  %v8350 = vld [vmem:[%s7974 + $0x169] sm:$0xff]
  %v8351 = vld [vmem:[%s7974 + $0x171] sm:$0xff]
  %v8352 = vld [vmem:[%s7974 + $0x1b1] sm:$0xff]
  %v8353 = vld [vmem:[%s7974 + $0x1b9] sm:$0xff]
  %v8354 = vld [vmem:[%s7974 + $0x1c9] sm:$0xff]
  %v8355 = vld [vmem:[%s7974 + $0x1d1] sm:$0xff]
  %v8356 = vld [vmem:[%s7974 + $0x1e1] sm:$0xff]
  %v8357 = vld [vmem:[%s7974 + $0x1e9] sm:$0xff]
  %v8358 = vld [vmem:[%s7974 + $0x1f9] sm:$0xff]
  %v8359 = vld [vmem:[%s7974 + $0x201] sm:$0xff]
  %v8360 = vld [vmem:[%s7974 + $0x211] sm:$0xff]
  %v8361 = vld [vmem:[%s7974 + $0x219] sm:$0xff]
  %v8362 = vld [vmem:[%s7974 + $0x229] sm:$0xff]
  %v8363 = vld [vmem:[%s7974 + $0x231] sm:$0xff]
  %v8364 = vld [vmem:[%s7974 + $0x241] sm:$0xff]
  %v8365 = vld [vmem:[%s7974 + $0x249] sm:$0xff]
  %v8366 = vld [vmem:[%s7974 + $0x259] sm:$0xff]
  %v8367 = vld [vmem:[%s7974 + $0x261] sm:$0xff]
  %v8368 = vld [vmem:[%s7974 + $0x271] sm:$0xff]
  %v8369 = vld [vmem:[%s7974 + $0x279] sm:$0xff]
  %v8370 = vld [vmem:[%s7974 + $0x289] sm:$0xff]
  %v8371 = vld [vmem:[%s7974 + $0x291] sm:$0xff]
  %v8372 = vld [vmem:[%s7974 + $0x2a1] sm:$0xff]
  %v8373 = vld [vmem:[%s7974 + $0x2a9] sm:$0xff]
  %v8374 = vld [vmem:[%s7974 + $0x2b9] sm:$0xff]
  %v8375 = vld [vmem:[%s7974 + $0x2c1] sm:$0xff]
  %v8376 = vld [vmem:[%s7974 + $0x2d1] sm:$0xff]
  %v8377 = vld [vmem:[%s7974 + $0x2d9] sm:$0xff]
  %v8378 = vld [vmem:[%s7974 + $0x2e9] sm:$0xff]
  %v8379 = vld [vmem:[%s7974 + $0x2f1] sm:$0xff]
  %v8380 = vld [vmem:[%s7974 + $0x301] sm:$0xff]
  %v8381 = vld [vmem:[%s7974 + $0x309] sm:$0xff]
  %v8382 = vld [vmem:[%s7974 + $0x319] sm:$0xff]
  %v8383 = vld [vmem:[%s7974 + $0x321] sm:$0xff]
  %s8384 = scalar_lea.vmem %s2, 56
  %v8385 = vld [vmem:[%s8384] sm:$0xff]
  %v8387 = vsel %vm4940, %v8385, 0
  %v8390 = vsel %vm4940, %v8320, 0
  %v8393 = vsel %vm4940, %v8321, 0
  %v8396 = vsel %vm4940, %v8322, 0
  %v8399 = vsel %vm4940, %v8323, 0
  %v8402 = vsel %vm4940, %v8324, 0
  %v8405 = vsel %vm4940, %v8325, 0
  %v8408 = vsel %vm4940, %v8326, 0
  %v8411 = vsel %vm4940, %v8327, 0
  %v8414 = vsel %vm4940, %v8328, 0
  %v8417 = vsel %vm4940, %v8329, 0
  %v8420 = vsel %vm4940, %v8330, 0
  %v8423 = vsel %vm4940, %v8331, 0
  %v8426 = vsel %vm4940, %v8332, 0
  %v8429 = vsel %vm4940, %v8333, 0
  %v8432 = vsel %vm4940, %v8334, 0
  %v8435 = vsel %vm4940, %v8335, 0
  %v8438 = vsel %vm4940, %v8336, 0
  %v8441 = vsel %vm4940, %v8337, 0
  %v8444 = vsel %vm4940, %v8338, 0
  %v8447 = vsel %vm4940, %v8339, 0
  %v8450 = vsel %vm4940, %v8340, 0
  %v8453 = vsel %vm4940, %v8341, 0
  %v8456 = vsel %vm4940, %v8342, 0
  %v8459 = vsel %vm4940, %v8343, 0
  %v8462 = vsel %vm4940, %v8344, 0
  %v8465 = vsel %vm4940, %v8345, 0
  %v8468 = vsel %vm4940, %v8346, 0
  %v8471 = vsel %vm4940, %v8347, 0
  %v8474 = vsel %vm4940, %v8348, 0
  %v8477 = vsel %vm4940, %v8349, 0
  %v8480 = vsel %vm4940, %v8350, 0
  %v8483 = vsel %vm4940, %v8351, 0
  %v8486 = vsel %vm4940, %v8352, 0
  %v8489 = vsel %vm4940, %v8353, 0
  %v8492 = vsel %vm4940, %v8354, 0
  %v8495 = vsel %vm4940, %v8355, 0
  %v8498 = vsel %vm4940, %v8356, 0
  %v8501 = vsel %vm4940, %v8357, 0
  %v8504 = vsel %vm4940, %v8358, 0
  %v8507 = vsel %vm4940, %v8359, 0
  %v8510 = vsel %vm4940, %v8360, 0
  %v8513 = vsel %vm4940, %v8361, 0
  %v8516 = vsel %vm4940, %v8362, 0
  %v8519 = vsel %vm4940, %v8363, 0
  %v8522 = vsel %vm4940, %v8364, 0
  %v8525 = vsel %vm4940, %v8365, 0
  %v8528 = vsel %vm4940, %v8366, 0
  %v8531 = vsel %vm4940, %v8367, 0
  %v8534 = vsel %vm4940, %v8368, 0
  %v8537 = vsel %vm4940, %v8369, 0
  %v8540 = vsel %vm4940, %v8370, 0
  %v8543 = vsel %vm4940, %v8371, 0
  %v8546 = vsel %vm4940, %v8372, 0
  %v8549 = vsel %vm4940, %v8373, 0
  %v8552 = vsel %vm4940, %v8374, 0
  %v8555 = vsel %vm4940, %v8375, 0
  %v8558 = vsel %vm4940, %v8376, 0
  %v8561 = vsel %vm4940, %v8377, 0
  %v8564 = vsel %vm4940, %v8378, 0
  %v8567 = vsel %vm4940, %v8379, 0
  %v8570 = vsel %vm4940, %v8380, 0
  %v8573 = vsel %vm4940, %v8381, 0
  %v8576 = vsel %vm4940, %v8382, 0
  %v8579 = vsel %vm4940, %v8383, 0
  %8581 = vmatpush.xpose.msra.mxu0 %v8435
  %8582 = vmatpush.xpose.msra.mxu0 %v8432
  %8583 = vmatpush.xpose.msra.mxu0 %v8429
  %8584 = vmatpush.xpose.msra.mxu0 %v8426
  %8585 = vmatpush.xpose.msra.mxu0 %v8423
  %8586 = vmatpush.xpose.msra.mxu0 %v8420
  %8587 = vmatpush.xpose.msra.mxu0 %v8417
  %8588 = vmatpush.xpose.msra.mxu0 %v8414
  %8589 = vmatpush.xpose.msra.mxu0 %v8411
  %8590 = vmatpush.xpose.msra.mxu0 %v8408
  %8591 = vmatpush.xpose.msra.mxu0 %v8405
  %8592 = vmatpush.xpose.msra.mxu0 %v8402
  %8593 = vmatpush.xpose.msra.mxu0 %v8399
  %8594 = vmatpush.xpose.msra.mxu0 %v8396
  %8595 = vmatpush.xpose.msra.mxu0 %v8393
  %8596 = vmatpush.xpose.msra.mxu0 %v8390
  %8597 = vmatmul.f32.gmra.mxu0 %v8387
  %v8598 = vpop.f32.mrf.mxu0
  %v8599 = vadd.f32 0.0, %v8598
  %8600 = vdwg.mxu0
  %8601 = vmatpush.xpose.msra.mxu0 %v8483
  %8602 = vmatpush.xpose.msra.mxu0 %v8480
  %8603 = vmatpush.xpose.msra.mxu0 %v8477
  %8604 = vmatpush.xpose.msra.mxu0 %v8474
  %8605 = vmatpush.xpose.msra.mxu0 %v8471
  %8606 = vmatpush.xpose.msra.mxu0 %v8468
  %8607 = vmatpush.xpose.msra.mxu0 %v8465
  %8608 = vmatpush.xpose.msra.mxu0 %v8462
  %8609 = vmatpush.xpose.msra.mxu0 %v8459
  %8610 = vmatpush.xpose.msra.mxu0 %v8456
  %8611 = vmatpush.xpose.msra.mxu0 %v8453
  %8612 = vmatpush.xpose.msra.mxu0 %v8450
  %8613 = vmatpush.xpose.msra.mxu0 %v8447
  %8614 = vmatpush.xpose.msra.mxu0 %v8444
  %8615 = vmatpush.xpose.msra.mxu0 %v8441
  %8616 = vmatpush.xpose.msra.mxu0 %v8438
  %8617 = vmatmul.f32.gmra.mxu0 %v8387
  %v8618 = vpop.f32.mrf.mxu0
  %v8619 = vadd.f32 0.0, %v8618
  %8620 = vdwg.mxu0
  %8621 = vmatpush.xpose.msra.mxu0 %v8531
  %8622 = vmatpush.xpose.msra.mxu0 %v8528
  %8623 = vmatpush.xpose.msra.mxu0 %v8525
  %8624 = vmatpush.xpose.msra.mxu0 %v8522
  %8625 = vmatpush.xpose.msra.mxu0 %v8519
  %8626 = vmatpush.xpose.msra.mxu0 %v8516
  %8627 = vmatpush.xpose.msra.mxu0 %v8513
  %8628 = vmatpush.xpose.msra.mxu0 %v8510
  %8629 = vmatpush.xpose.msra.mxu0 %v8507
  %8630 = vmatpush.xpose.msra.mxu0 %v8504
  %8631 = vmatpush.xpose.msra.mxu0 %v8501
  %8632 = vmatpush.xpose.msra.mxu0 %v8498
  %8633 = vmatpush.xpose.msra.mxu0 %v8495
  %8634 = vmatpush.xpose.msra.mxu0 %v8492
  %8635 = vmatpush.xpose.msra.mxu0 %v8489
  %8636 = vmatpush.xpose.msra.mxu0 %v8486
  %8637 = vmatmul.f32.gmra.mxu0 %v8387
  %v8638 = vpop.f32.mrf.mxu0
  %v8639 = vadd.f32 0.0, %v8638
  %8640 = vdwg.mxu0
  %8641 = vmatpush.xpose.msra.mxu0 %v8579
  %8642 = vmatpush.xpose.msra.mxu0 %v8576
  %8643 = vmatpush.xpose.msra.mxu0 %v8573
  %8644 = vmatpush.xpose.msra.mxu0 %v8570
  %8645 = vmatpush.xpose.msra.mxu0 %v8567
  %8646 = vmatpush.xpose.msra.mxu0 %v8564
  %8647 = vmatpush.xpose.msra.mxu0 %v8561
  %8648 = vmatpush.xpose.msra.mxu0 %v8558
  %8649 = vmatpush.xpose.msra.mxu0 %v8555
  %8650 = vmatpush.xpose.msra.mxu0 %v8552
  %8651 = vmatpush.xpose.msra.mxu0 %v8549
  %8652 = vmatpush.xpose.msra.mxu0 %v8546
  %8653 = vmatpush.xpose.msra.mxu0 %v8543
  %8654 = vmatpush.xpose.msra.mxu0 %v8540
  %8655 = vmatpush.xpose.msra.mxu0 %v8537
  %8656 = vmatpush.xpose.msra.mxu0 %v8534
  %8657 = vmatmul.f32.gmra.mxu0 %v8387
  %v8658 = vpop.f32.mrf.mxu0
  %v8659 = vadd.f32 0.0, %v8658
  %8660 = vdwg.mxu0
  %v8661 = vadd.f32 %v8316, %v8599
  %v8662 = vadd.f32 %v8317, %v8619
  %v8663 = vadd.f32 %v8318, %v8639
  %v8664 = vadd.f32 %v8319, %v8659
  %v8665 = vld [vmem:[%s7974 + $0x2] sm:$0xff]
  %v8666 = vld [vmem:[%s7974 + $0xa] sm:$0xff]
  %v8667 = vld [vmem:[%s7974 + $0x1a] sm:$0xff]
  %v8668 = vld [vmem:[%s7974 + $0x22] sm:$0xff]
  %v8669 = vld [vmem:[%s7974 + $0x32] sm:$0xff]
  %v8670 = vld [vmem:[%s7974 + $0x3a] sm:$0xff]
  %v8671 = vld [vmem:[%s7974 + $0x4a] sm:$0xff]
  %v8672 = vld [vmem:[%s7974 + $0x52] sm:$0xff]
  %v8673 = vld [vmem:[%s7974 + $0x62] sm:$0xff]
  %v8674 = vld [vmem:[%s7974 + $0x6a] sm:$0xff]
  %v8675 = vld [vmem:[%s7974 + $0x7a] sm:$0xff]
  %v8676 = vld [vmem:[%s7974 + $0x82] sm:$0xff]
  %v8677 = vld [vmem:[%s7974 + $0x92] sm:$0xff]
  %v8678 = vld [vmem:[%s7974 + $0x9a] sm:$0xff]
  %v8679 = vld [vmem:[%s7974 + $0xaa] sm:$0xff]
  %v8680 = vld [vmem:[%s7974 + $0xb2] sm:$0xff]
  %v8681 = vld [vmem:[%s7974 + $0xc2] sm:$0xff]
  %v8682 = vld [vmem:[%s7974 + $0xca] sm:$0xff]
  %v8683 = vld [vmem:[%s7974 + $0xda] sm:$0xff]
  %v8684 = vld [vmem:[%s7974 + $0xe2] sm:$0xff]
  %v8685 = vld [vmem:[%s7974 + $0xf2] sm:$0xff]
  %v8686 = vld [vmem:[%s7974 + $0xfa] sm:$0xff]
  %v8687 = vld [vmem:[%s7974 + $0x10a] sm:$0xff]
  %v8688 = vld [vmem:[%s7974 + $0x112] sm:$0xff]
  %v8689 = vld [vmem:[%s7974 + $0x122] sm:$0xff]
  %v8690 = vld [vmem:[%s7974 + $0x12a] sm:$0xff]
  %v8691 = vld [vmem:[%s7974 + $0x13a] sm:$0xff]
  %v8692 = vld [vmem:[%s7974 + $0x142] sm:$0xff]
  %v8693 = vld [vmem:[%s7974 + $0x152] sm:$0xff]
  %v8694 = vld [vmem:[%s7974 + $0x15a] sm:$0xff]
  %v8695 = vld [vmem:[%s7974 + $0x16a] sm:$0xff]
  %v8696 = vld [vmem:[%s7974 + $0x172] sm:$0xff]
  %v8697 = vld [vmem:[%s7974 + $0x1b2] sm:$0xff]
  %v8698 = vld [vmem:[%s7974 + $0x1ba] sm:$0xff]
  %v8699 = vld [vmem:[%s7974 + $0x1ca] sm:$0xff]
  %v8700 = vld [vmem:[%s7974 + $0x1d2] sm:$0xff]
  %v8701 = vld [vmem:[%s7974 + $0x1e2] sm:$0xff]
  %v8702 = vld [vmem:[%s7974 + $0x1ea] sm:$0xff]
  %v8703 = vld [vmem:[%s7974 + $0x1fa] sm:$0xff]
  %v8704 = vld [vmem:[%s7974 + $0x202] sm:$0xff]
  %v8705 = vld [vmem:[%s7974 + $0x212] sm:$0xff]
  %v8706 = vld [vmem:[%s7974 + $0x21a] sm:$0xff]
  %v8707 = vld [vmem:[%s7974 + $0x22a] sm:$0xff]
  %v8708 = vld [vmem:[%s7974 + $0x232] sm:$0xff]
  %v8709 = vld [vmem:[%s7974 + $0x242] sm:$0xff]
  %v8710 = vld [vmem:[%s7974 + $0x24a] sm:$0xff]
  %v8711 = vld [vmem:[%s7974 + $0x25a] sm:$0xff]
  %v8712 = vld [vmem:[%s7974 + $0x262] sm:$0xff]
  %v8713 = vld [vmem:[%s7974 + $0x272] sm:$0xff]
  %v8714 = vld [vmem:[%s7974 + $0x27a] sm:$0xff]
  %v8715 = vld [vmem:[%s7974 + $0x28a] sm:$0xff]
  %v8716 = vld [vmem:[%s7974 + $0x292] sm:$0xff]
  %v8717 = vld [vmem:[%s7974 + $0x2a2] sm:$0xff]
  %v8718 = vld [vmem:[%s7974 + $0x2aa] sm:$0xff]
  %v8719 = vld [vmem:[%s7974 + $0x2ba] sm:$0xff]
  %v8720 = vld [vmem:[%s7974 + $0x2c2] sm:$0xff]
  %v8721 = vld [vmem:[%s7974 + $0x2d2] sm:$0xff]
  %v8722 = vld [vmem:[%s7974 + $0x2da] sm:$0xff]
  %v8723 = vld [vmem:[%s7974 + $0x2ea] sm:$0xff]
  %v8724 = vld [vmem:[%s7974 + $0x2f2] sm:$0xff]
  %v8725 = vld [vmem:[%s7974 + $0x302] sm:$0xff]
  %v8726 = vld [vmem:[%s7974 + $0x30a] sm:$0xff]
  %v8727 = vld [vmem:[%s7974 + $0x31a] sm:$0xff]
  %v8728 = vld [vmem:[%s7974 + $0x322] sm:$0xff]
  %s8729 = scalar_lea.vmem %s2, 64
  %v8730 = vld [vmem:[%s8729] sm:$0xff]
  %v8732 = vsel %vm4940, %v8730, 0
  %v8735 = vsel %vm4940, %v8665, 0
  %v8738 = vsel %vm4940, %v8666, 0
  %v8741 = vsel %vm4940, %v8667, 0
  %v8744 = vsel %vm4940, %v8668, 0
  %v8747 = vsel %vm4940, %v8669, 0
  %v8750 = vsel %vm4940, %v8670, 0
  %v8753 = vsel %vm4940, %v8671, 0
  %v8756 = vsel %vm4940, %v8672, 0
  %v8759 = vsel %vm4940, %v8673, 0
  %v8762 = vsel %vm4940, %v8674, 0
  %v8765 = vsel %vm4940, %v8675, 0
  %v8768 = vsel %vm4940, %v8676, 0
  %v8771 = vsel %vm4940, %v8677, 0
  %v8774 = vsel %vm4940, %v8678, 0
  %v8777 = vsel %vm4940, %v8679, 0
  %v8780 = vsel %vm4940, %v8680, 0
  %v8783 = vsel %vm4940, %v8681, 0
  %v8786 = vsel %vm4940, %v8682, 0
  %v8789 = vsel %vm4940, %v8683, 0
  %v8792 = vsel %vm4940, %v8684, 0
  %v8795 = vsel %vm4940, %v8685, 0
  %v8798 = vsel %vm4940, %v8686, 0
  %v8801 = vsel %vm4940, %v8687, 0
  %v8804 = vsel %vm4940, %v8688, 0
  %v8807 = vsel %vm4940, %v8689, 0
  %v8810 = vsel %vm4940, %v8690, 0
  %v8813 = vsel %vm4940, %v8691, 0
  %v8816 = vsel %vm4940, %v8692, 0
  %v8819 = vsel %vm4940, %v8693, 0
  %v8822 = vsel %vm4940, %v8694, 0
  %v8825 = vsel %vm4940, %v8695, 0
  %v8828 = vsel %vm4940, %v8696, 0
  %v8831 = vsel %vm4940, %v8697, 0
  %v8834 = vsel %vm4940, %v8698, 0
  %v8837 = vsel %vm4940, %v8699, 0
  %v8840 = vsel %vm4940, %v8700, 0
  %v8843 = vsel %vm4940, %v8701, 0
  %v8846 = vsel %vm4940, %v8702, 0
  %v8849 = vsel %vm4940, %v8703, 0
  %v8852 = vsel %vm4940, %v8704, 0
  %v8855 = vsel %vm4940, %v8705, 0
  %v8858 = vsel %vm4940, %v8706, 0
  %v8861 = vsel %vm4940, %v8707, 0
  %v8864 = vsel %vm4940, %v8708, 0
  %v8867 = vsel %vm4940, %v8709, 0
  %v8870 = vsel %vm4940, %v8710, 0
  %v8873 = vsel %vm4940, %v8711, 0
  %v8876 = vsel %vm4940, %v8712, 0
  %v8879 = vsel %vm4940, %v8713, 0
  %v8882 = vsel %vm4940, %v8714, 0
  %v8885 = vsel %vm4940, %v8715, 0
  %v8888 = vsel %vm4940, %v8716, 0
  %v8891 = vsel %vm4940, %v8717, 0
  %v8894 = vsel %vm4940, %v8718, 0
  %v8897 = vsel %vm4940, %v8719, 0
  %v8900 = vsel %vm4940, %v8720, 0
  %v8903 = vsel %vm4940, %v8721, 0
  %v8906 = vsel %vm4940, %v8722, 0
  %v8909 = vsel %vm4940, %v8723, 0
  %v8912 = vsel %vm4940, %v8724, 0
  %v8915 = vsel %vm4940, %v8725, 0
  %v8918 = vsel %vm4940, %v8726, 0
  %v8921 = vsel %vm4940, %v8727, 0
  %v8924 = vsel %vm4940, %v8728, 0
  %8926 = vmatpush.xpose.msra.mxu0 %v8780
  %8927 = vmatpush.xpose.msra.mxu0 %v8777
  %8928 = vmatpush.xpose.msra.mxu0 %v8774
  %8929 = vmatpush.xpose.msra.mxu0 %v8771
  %8930 = vmatpush.xpose.msra.mxu0 %v8768
  %8931 = vmatpush.xpose.msra.mxu0 %v8765
  %8932 = vmatpush.xpose.msra.mxu0 %v8762
  %8933 = vmatpush.xpose.msra.mxu0 %v8759
  %8934 = vmatpush.xpose.msra.mxu0 %v8756
  %8935 = vmatpush.xpose.msra.mxu0 %v8753
  %8936 = vmatpush.xpose.msra.mxu0 %v8750
  %8937 = vmatpush.xpose.msra.mxu0 %v8747
  %8938 = vmatpush.xpose.msra.mxu0 %v8744
  %8939 = vmatpush.xpose.msra.mxu0 %v8741
  %8940 = vmatpush.xpose.msra.mxu0 %v8738
  %8941 = vmatpush.xpose.msra.mxu0 %v8735
  %8942 = vmatmul.f32.gmra.mxu0 %v8732
  %v8943 = vpop.f32.mrf.mxu0
  %v8944 = vadd.f32 0.0, %v8943
  %8945 = vdwg.mxu0
  %8946 = vmatpush.xpose.msra.mxu0 %v8828
  %8947 = vmatpush.xpose.msra.mxu0 %v8825
  %8948 = vmatpush.xpose.msra.mxu0 %v8822
  %8949 = vmatpush.xpose.msra.mxu0 %v8819
  %8950 = vmatpush.xpose.msra.mxu0 %v8816
  %8951 = vmatpush.xpose.msra.mxu0 %v8813
  %8952 = vmatpush.xpose.msra.mxu0 %v8810
  %8953 = vmatpush.xpose.msra.mxu0 %v8807
  %8954 = vmatpush.xpose.msra.mxu0 %v8804
  %8955 = vmatpush.xpose.msra.mxu0 %v8801
  %8956 = vmatpush.xpose.msra.mxu0 %v8798
  %8957 = vmatpush.xpose.msra.mxu0 %v8795
  %8958 = vmatpush.xpose.msra.mxu0 %v8792
  %8959 = vmatpush.xpose.msra.mxu0 %v8789
  %8960 = vmatpush.xpose.msra.mxu0 %v8786
  %8961 = vmatpush.xpose.msra.mxu0 %v8783
  %8962 = vmatmul.f32.gmra.mxu0 %v8732
  %v8963 = vpop.f32.mrf.mxu0
  %v8964 = vadd.f32 0.0, %v8963
  %8965 = vdwg.mxu0
  %8966 = vmatpush.xpose.msra.mxu0 %v8876
  %8967 = vmatpush.xpose.msra.mxu0 %v8873
  %8968 = vmatpush.xpose.msra.mxu0 %v8870
  %8969 = vmatpush.xpose.msra.mxu0 %v8867
  %8970 = vmatpush.xpose.msra.mxu0 %v8864
  %8971 = vmatpush.xpose.msra.mxu0 %v8861
  %8972 = vmatpush.xpose.msra.mxu0 %v8858
  %8973 = vmatpush.xpose.msra.mxu0 %v8855
  %8974 = vmatpush.xpose.msra.mxu0 %v8852
  %8975 = vmatpush.xpose.msra.mxu0 %v8849
  %8976 = vmatpush.xpose.msra.mxu0 %v8846
  %8977 = vmatpush.xpose.msra.mxu0 %v8843
  %8978 = vmatpush.xpose.msra.mxu0 %v8840
  %8979 = vmatpush.xpose.msra.mxu0 %v8837
  %8980 = vmatpush.xpose.msra.mxu0 %v8834
  %8981 = vmatpush.xpose.msra.mxu0 %v8831
  %8982 = vmatmul.f32.gmra.mxu0 %v8732
  %v8983 = vpop.f32.mrf.mxu0
  %v8984 = vadd.f32 0.0, %v8983
  %8985 = vdwg.mxu0
  %8986 = vmatpush.xpose.msra.mxu0 %v8924
  %8987 = vmatpush.xpose.msra.mxu0 %v8921
  %8988 = vmatpush.xpose.msra.mxu0 %v8918
  %8989 = vmatpush.xpose.msra.mxu0 %v8915
  %8990 = vmatpush.xpose.msra.mxu0 %v8912
  %8991 = vmatpush.xpose.msra.mxu0 %v8909
  %8992 = vmatpush.xpose.msra.mxu0 %v8906
  %8993 = vmatpush.xpose.msra.mxu0 %v8903
  %8994 = vmatpush.xpose.msra.mxu0 %v8900
  %8995 = vmatpush.xpose.msra.mxu0 %v8897
  %8996 = vmatpush.xpose.msra.mxu0 %v8894
  %8997 = vmatpush.xpose.msra.mxu0 %v8891
  %8998 = vmatpush.xpose.msra.mxu0 %v8888
  %8999 = vmatpush.xpose.msra.mxu0 %v8885
  %9000 = vmatpush.xpose.msra.mxu0 %v8882
  %9001 = vmatpush.xpose.msra.mxu0 %v8879
  %9002 = vmatmul.f32.gmra.mxu0 %v8732
  %v9003 = vpop.f32.mrf.mxu0
  %v9004 = vadd.f32 0.0, %v9003
  %9005 = vdwg.mxu0
  %v9006 = vadd.f32 %v8661, %v8944
  %v9007 = vadd.f32 %v8662, %v8964
  %v9008 = vadd.f32 %v8663, %v8984
  %v9009 = vadd.f32 %v8664, %v9004
  %v9010 = vld [vmem:[%s4] sm:$0xff]
  %v9011 = vadd.f32 %v9006, %v9007
  %v9012 = vadd.f32 %v9011, %v9008
  %v9013 = vadd.f32 %v9012, %v9009
  %9014 = vadd.xlane.f32.xlu0 %v9013
  %v9015 = vpop.xlane.xlu0 %9014
  %v9016 = vmul.f32 %v9015, 0.001953125
  %v9017 = vmul.f32 %v9006, %v9006
  %v9018 = vmul.f32 %v9007, %v9007
  %v9019 = vmul.f32 %v9008, %v9008
  %v9020 = vmul.f32 %v9009, %v9009
  %v9021 = vadd.f32 %v9017, %v9018
  %v9022 = vadd.f32 %v9021, %v9019
  %v9023 = vadd.f32 %v9022, %v9020
  %9024 = vadd.xlane.f32.xlu0 %v9023
  %v9025 = vpop.xlane.xlu0 %9024
  %v9026 = vmul.f32 %v9025, 0.001953125
  %v9027 = vmul.f32 %v9016, %v9016
  %v9028 = vsub.f32 %v9026, %v9027
  %v9029 = vadd.f32 %v9028, 1e-05
  %v9030 = vrsqrt.pop %v9029
  %v9031 = vmul.f32 %v9030, %v9029
  %v9032 = vmul.f32 %v9031, %v9030
  %v9033 = vmul.f32 0.5, %v9032
  %v9034 = vsub.f32 1.5, %v9033
  %v9035 = vmul.f32 %v9030, %v9034
  %vm9036 = vweird.f32 %v9029
  %vm9037 = vweird.f32 %v9030
  %vm9038 = vmor %vm9036, %vm9037
  %v9039 = vsel %vm9038, %v9030, %v9035
  %v9040 = vmul.f32 %v9010, %v9039
  %v9041 = vmul.f32 %v9016, %v9040
  %9043 = vrot.lane.b32.xlu0 %v9041, 1
  %v9044 = vpop.permute.xlu0 %9043
  %v9046 = vsub.f32 %v9010, %v9044
  %9048 = vset.pattern.permute.xlu0 0
  %9049 = vperm.xlu0 %9048, %v9040
  %v9050 = vpop.permute.xlu0 %9049
  %v9052 = vmul.f32 %v9006, %v9050
  %v9053 = vmul.f32 %v9007, %v9050
  %v9054 = vmul.f32 %v9008, %v9050
  %v9055 = vmul.f32 %v9009, %v9050
  %9057 = vset.pattern.permute.xlu0 1
  %9058 = vperm.xlu0 %9057, %v9046
  %v9059 = vpop.permute.xlu0 %9058
  %v9061 = vadd.f32 %v9052, %v9059
  %v9062 = vadd.f32 %v9053, %v9059
  %v9063 = vadd.f32 %v9054, %v9059
  %v9064 = vadd.f32 %v9055, %v9059
  %vm9065 = vcmp.gt.f32.partialorder %v9061, 0.0
  %vm9066 = vcmp.gt.f32.partialorder %v9062, 0.0
  %vm9067 = vcmp.gt.f32.partialorder %v9063, 0.0
  %vm9068 = vcmp.gt.f32.partialorder %v9064, 0.0
  %v9069 = vmul.f32 %v9061, 1.442695
  %v9070 = vpow.pop %v9069
  %v9071 = vmul.f32 %v9062, 1.442695
  %v9072 = vpow.pop %v9071
  %v9073 = vmul.f32 %v9063, 1.442695
  %v9074 = vpow.pop %v9073
  %v9075 = vmul.f32 %v9064, 1.442695
  %v9076 = vpow.pop %v9075
  %v9077 = vsub.f32 %v9070, 1.0
  %v9078 = vsub.f32 %v9072, 1.0
  %v9079 = vsub.f32 %v9074, 1.0
  %v9080 = vsub.f32 %v9076, 1.0
  %v9081 = vsel %vm9065, %v9061, %v9077
  %v9082 = vsel %vm9066, %v9062, %v9078
  %v9083 = vsel %vm9067, %v9063, %v9079
  %v9084 = vsel %vm9068, %v9064, %v9080
  %9085 = vst [vmem:[%s5] sm:$0xff] %v9081
  %9086 = vst [vmem:[%s5 + $0x8] sm:$0xff] %v9082
  %9087 = vst [vmem:[%s5 + $0x10] sm:$0xff] %v9083
  %9088 = vst [vmem:[%s5 + $0x18] sm:$0xff] %v9084
  // Predicated region
  $region22: #{double_conv_forward.1} parent=0 // pred_check
    _
  $region23: #{double_conv_forward.1} parent=0 // pred_check_branch
    %9090 = sbr.rel (0) target = $region25
  $region24: #{double_conv_forward.1} parent=0 // pred_region
    _
  $region25: #{double_conv_forward.1} parent=0 // pred_fallthru
    _
  // Predicated region
  $region26: #{double_conv_forward.1} parent=0 // pred_check
    _
  $region27: #{double_conv_forward.1} parent=0 // pred_check_branch
    %9092 = sbr.rel (0) target = $region29
  $region28: #{double_conv_forward.1} parent=0 // pred_region
    _
  $region29: #{double_conv_forward.1} parent=0 // pred_fallthru
    _

</llo_original>
